<compile_context>
chip_gen: v7x
topology: tpu7x:2x2x1
jax: 0.10.0
libtpu: 0.0.40
codegen_flags: <defaults>
</compile_context>

<pallas_src>
import jax
import jax.numpy as jnp
from jax.experimental import pallas as pl
from jax.experimental.pallas import tpu as pltpu


def _round_up(n, m):
    return ((n + m - 1) // m) * m


# --------------------------- fused 2-layer LSTM + FC --------------------------
def _make_fused_kernel(t_real, mask_tail, unroll):
    """Kernel factory. t_real = un-padded sequence length (static)."""

    def kernel(pre_ref, w0h_ref, w1x_ref, w1h_ref, b1_ref, fcw_ref, fcb_ref,
               h0_ref, c0_ref, out_ref, hn_ref, cn_ref, h1seq_ref):
        t_chunk = pl.program_id(0)
        Tc, Bg, G = pre_ref.shape            # G = 4 * Hp
        Hp = w0h_ref.shape[0]
        V = fcw_ref.shape[1]
        mxu_dt = w0h_ref.dtype

        # h_n / c_n output blocks double as the resident recurrent-state carrier
        # (constant index_map over the single "arbitrary" time axis). NOTE: this
        # pattern requires time to stay the sole/innermost grid axis.
        @pl.when(t_chunk == 0)
        def _():
            hn_ref[...] = h0_ref[...]
            cn_ref[...] = c0_ref[...]

        # Hoisted out of the (unrolled) loop: JAX does not CSE broadcast_in_dim.
        b1b = jnp.broadcast_to(b1_ref[...], (Bg, G))

        def cell(gates, c):
            # gate layout [i | f | o | g]: one wide sigmoid + one tanh (EUP).
            act = jax.nn.sigmoid(gates[:, :3 * Hp])
            g_g = jnp.tanh(gates[:, 3 * Hp:])
            i_g = act[:, :Hp]
            f_g = act[:, Hp:2 * Hp]
            o_g = act[:, 2 * Hp:3 * Hp]
            c_new = f_g * c + i_g * g_g                   # f32 cell state
            h_new = o_g * jnp.tanh(c_new)                 # f32 hidden
            return h_new, c_new

        def step(t, carry):
            h0, c0, h1, c1 = carry
            # layer 0: x-projection + condition term + biases are already folded
            # into the streamed pregates -> only the recurrent matmul remains.
            g0 = pre_ref[t] + jnp.dot(h0.astype(mxu_dt), w0h_ref[...],
                                      preferred_element_type=jnp.float32)
            h0n, c0n = cell(g0, c0)
            # layer 1 consumes layer-0's hidden state straight from VMEM/regs.
            g1 = (jnp.dot(h0n.astype(mxu_dt), w1x_ref[...],
                          preferred_element_type=jnp.float32)
                  + jnp.dot(h1.astype(mxu_dt), w1h_ref[...],
                            preferred_element_type=jnp.float32)
                  + b1b)
            h1n, c1n = cell(g1, c1)
            if mask_tail:
                valid = (t_chunk * Tc + t) < t_real
                h0n = jnp.where(valid, h0n, h0)
                c0n = jnp.where(valid, c0n, c0)
                h1n = jnp.where(valid, h1n, h1)
                c1n = jnp.where(valid, c1n, c1)
            h1seq_ref[t] = h1n.astype(mxu_dt)
            return h0n, c0n, h1n, c1n

        carry0 = (hn_ref[0], cn_ref[0], hn_ref[1], cn_ref[1])
        h0, c0, h1, c1 = jax.lax.fori_loop(0, Tc, step, carry0, unroll=unroll)
        hn_ref[0] = h0
        hn_ref[1] = h1
        cn_ref[0] = c0
        cn_ref[1] = c1

        # Batched FC head (eval dropout = identity): one (B*Tc, Hp) x (Hp, V)
        # matmul and one contiguous (B, Tc, V) store per chunk, directly in the
        # (B, T, V) output layout.
        hseq = jnp.transpose(h1seq_ref[...], (1, 0, 2)).reshape(Bg * Tc, Hp)
        logits = (jnp.dot(hseq, fcw_ref[...], preferred_element_type=jnp.float32)
                  + fcb_ref[...])
        out_ref[...] = logits.reshape(Bg, Tc, V).astype(out_ref.dtype)

    return kernel


# ----------------------------- weight preprocessing ---------------------------
def _prep_gate_weights(w, b, H, Hp, in_pad=0):
    """w: (4H, in) PyTorch gate-row order [i, f, g, o]; b: (4H,).

    Returns (w_t, b_r): w_t (in + in_pad, 4Hp) transposed, gate order [i,f,o,g]
    with each gate zero-padded H -> Hp (padded lanes provably stay zero through
    the recurrence); b_r (4Hp,) reordered/padded the same way."""
    wi, wf, wg, wo = jnp.split(w, 4, axis=0)
    bi, bf, bg, bo = jnp.split(b, 4)
    padw = lambda m: jnp.pad(m, ((0, Hp - H), (0, 0)))
    padb = lambda v: jnp.pad(v, (0, Hp - H))
    w_r = jnp.concatenate([padw(wi), padw(wf), padw(wo), padw(wg)], axis=0)
    b_r = jnp.concatenate([padb(bi), padb(bf), padb(bo), padb(bg)], axis=0)
    w_t = jnp.transpose(w_r)
    if in_pad:
        w_t = jnp.pad(w_t, ((0, in_pad), (0, 0)))
    return w_t, b_r


# ------------------------------ model wrapper ---------------------------------
def conditional_lstm_forward(params, x_tokens, c_tokens, h=None, *,
                             time_chunk=32, mxu_dtype=jnp.bfloat16,
                             logits_dtype=jnp.float32):
    """x_tokens: (B, T) int32, c_tokens: (B,) int32.

    Returns (out (B, T, vocab), (h_n, c_n) each (num_layers, B, hidden))."""
    assert len(params["lstm"]) == 2, "fused kernel is specialized to num_layers=2"
    # TODO(synk): generalize the fused kernel to arbitrary num_layers.

    B, T = x_tokens.shape
    p0, p1 = params["lstm"]
    E = params["embedding"].shape[1]
    H = p0["w_hh"].shape[1]
    V = params["fc_w"].shape[0]
    Hp = _round_up(H, 128)                     # lane-dense hidden / gate slices

    # ---- time chunking: pad T to a multiple of Tc, mask tail state updates ----
    Tc = min(_round_up(time_chunk, 8), _round_up(T, 8))
    T_pad = _round_up(T, Tc)
    mask_tail = (T_pad != T)
    x_tok = jnp.pad(x_tokens, ((0, 0), (0, T_pad - T))) if mask_tail else x_tokens

    # ---- one-time XLA glue: embeddings, gate reorder/pad, input projection ----
    b0_sum = p0["b_ih"] + p0["b_hh"]
    b1_sum = p1["b_ih"] + p1["b_hh"]
    w0_t, b0_r = _prep_gate_weights(p0["w_ih"], b0_sum, H, Hp)       # (2E, 4Hp)
    w0x_t, w0c_t = w0_t[:E], w0_t[E:]
    w0h_t, _ = _prep_gate_weights(p0["w_hh"], b0_sum, H, Hp, in_pad=Hp - H)
    w1x_t, b1_r = _prep_gate_weights(p1["w_ih"], b1_sum, H, Hp, in_pad=Hp - H)
    w1h_t, _ = _prep_gate_weights(p1["w_hh"], b1_sum, H, Hp, in_pad=Hp - H)
    fc_wt = jnp.pad(jnp.transpose(params["fc_w"]), ((0, Hp - H), (0, 0)))  # (Hp, V)
    fc_b = params["fc_b"].reshape(1, V)

    emb_x = jnp.take(params["embedding"], jnp.transpose(x_tok), axis=0)   # (T_pad, B, E)
    emb_c = jnp.take(params["condition_embedding"], c_tokens, axis=0)     # (B, E)

    # Time-parallel layer-0 input projection hoisted out of the recurrence
    # (one big GEMM); condition term + layer-0 biases folded in. Streamed to
    # the kernel lane-dense as (Tc, B, 4Hp) f32 blocks.
    b0_eff = emb_c @ w0c_t + b0_r[None, :]                                # (B, 4Hp)
    pre0 = jnp.einsum("tbe,eg->tbg", emb_x, w0x_t) + b0_eff[None, :, :]   # (T_pad, B, 4Hp)
    pre0 = pre0.astype(jnp.float32)

    if h is None:
        h0 = jnp.zeros((2, B, Hp), jnp.float32)
        c0 = jnp.zeros((2, B, Hp), jnp.float32)
    else:
        h0, c0 = h
        h0 = jnp.pad(h0.astype(jnp.float32), ((0, 0), (0, 0), (0, Hp - H)))
        c0 = jnp.pad(c0.astype(jnp.float32), ((0, 0), (0, 0), (0, Hp - H)))

    # MXU operands in bf16; f32 accumulation / cell state preserved in-kernel.
    w0h_t = w0h_t.astype(mxu_dtype)
    w1x_t = w1x_t.astype(mxu_dtype)
    w1h_t = w1h_t.astype(mxu_dtype)
    fc_wt = fc_wt.astype(mxu_dtype)
    b1_r = b1_r.reshape(1, 4 * Hp).astype(jnp.float32)

    # ---- grid / blocking: 1-D grid over time only (no batch split on 1-TC) ----
    # TODO(synk): on v7x (2 TCs) add a leading "parallel" batch-group axis when
    # B per group stays >= 128 rows; tile V and single-buffer resident weights
    # at production vocab sizes.
    grid = (T_pad // Tc,)
    const2 = lambda t: (0, 0)
    const3 = lambda t: (0, 0, 0)

    grid_spec = pltpu.PrefetchScalarGridSpec(
        num_scalar_prefetch=0,
        grid=grid,
        in_specs=[
            pl.BlockSpec((Tc, B, 4 * Hp), lambda t: (t, 0, 0)),   # layer-0 pregates
            pl.BlockSpec((Hp, 4 * Hp), const2),                   # W0_hh^T   (resident)
            pl.BlockSpec((Hp, 4 * Hp), const2),                   # W1_ih^T   (resident)
            pl.BlockSpec((Hp, 4 * Hp), const2),                   # W1_hh^T   (resident)
            pl.BlockSpec((1, 4 * Hp), const2),                    # layer-1 bias
            pl.BlockSpec((Hp, V), const2),                        # fc W^T    (resident)
            pl.BlockSpec((1, V), const2),                         # fc bias
            pl.BlockSpec((2, B, Hp), const3),                     # initial h
            pl.BlockSpec((2, B, Hp), const3),                     # initial c
        ],
        out_specs=[
            pl.BlockSpec((B, Tc, V), lambda t: (0, t, 0)),        # logits in (B,T,V)
            pl.BlockSpec((2, B, Hp), const3),                     # h_n (state carrier)
            pl.BlockSpec((2, B, Hp), const3),                     # c_n (state carrier)
        ],
        scratch_shapes=[pltpu.VMEM((Tc, B, Hp), mxu_dtype)],      # per-chunk h1 seq
    )

    mxu_bytes = jnp.dtype(mxu_dtype).itemsize
    cost = pl.CostEstimate(
        flops=2 * T_pad * B * Hp * (3 * 4 * Hp + V),
        transcendentals=T_pad * B * 2 * 5 * Hp,
        bytes_accessed=(T_pad * B * 4 * Hp * 4
                        + (3 * Hp * 4 * Hp + Hp * V) * mxu_bytes
                        + B * T_pad * V * jnp.dtype(logits_dtype).itemsize
                        + 8 * B * Hp * 4),
    )

    kernel = _make_fused_kernel(T, mask_tail, unroll=min(Tc, 8))

    out_pad, h_n, c_n = pl.pallas_call(
        kernel,
        grid_spec=grid_spec,
        out_shape=(jax.ShapeDtypeStruct((B, T_pad, V), logits_dtype),
                   jax.ShapeDtypeStruct((2, B, Hp), jnp.float32),
                   jax.ShapeDtypeStruct((2, B, Hp), jnp.float32)),
        compiler_params=pltpu.CompilerParams(
            dimension_semantics=("arbitrary",),          # time carries the recurrence
            vmem_limit_bytes=32 * 1024 * 1024),
        cost_estimate=cost,
    )(pre0, w0h_t, w1x_t, w1h_t, b1_r, fc_wt, fc_b, h0, c0)

    out = out_pad[:, :T, :] if mask_tail else out_pad
    return out, (h_n[:, :, :H], c_n[:, :, :H])


# -------------------------------- params init ---------------------------------
def init_params(key, vocab_size, embed_size, hidden_size, num_layers, condition_dim):
    ks = jax.random.split(key, 4 + 4 * num_layers)
    k = 1.0 / jnp.sqrt(hidden_size)
    params = {
        "embedding": jax.random.normal(ks[0], (vocab_size, embed_size), jnp.float32),
        "condition_embedding": jax.random.normal(ks[1], (condition_dim, embed_size),
                                                 jnp.float32),
        "fc_w": jax.random.uniform(ks[2], (vocab_size, hidden_size), jnp.float32, -k, k),
        "fc_b": jax.random.uniform(ks[3], (vocab_size,), jnp.float32, -k, k),
        "lstm": [],
    }
    for l in range(num_layers):
        in_size = embed_size * 2 if l == 0 else hidden_size
        kk = ks[4 + 4 * l: 8 + 4 * l]
        params["lstm"].append({
            "w_ih": jax.random.uniform(kk[0], (4 * hidden_size, in_size), jnp.float32, -k, k),
            "w_hh": jax.random.uniform(kk[1], (4 * hidden_size, hidden_size), jnp.float32, -k, k),
            "b_ih": jax.random.uniform(kk[2], (4 * hidden_size,), jnp.float32, -k, k),
            "b_hh": jax.random.uniform(kk[3], (4 * hidden_size,), jnp.float32, -k, k),
        })
    return params


if __name__ == "__main__":
    vocab_size = 32
    embed_size = 16
    hidden_size = 32
    num_layers = 2
    condition_dim = 8
    batch = 2
    seq = 8

    root = jax.random.PRNGKey(0)
    kp, kx, kc = jax.random.split(root, 3)
    params = init_params(kp, vocab_size, embed_size, hidden_size, num_layers, condition_dim)

    x_tokens = jax.random.randint(kx, (batch, seq), 0, vocab_size, dtype=jnp.int32)
    c_tokens = jax.random.randint(kc, (batch,), 0, condition_dim, dtype=jnp.int32)

    fwd = jax.jit(conditional_lstm_forward)
    out, (h_n, c_n) = fwd(params, x_tokens, c_tokens)
    jax.block_until_ready((out, h_n, c_n))

    assert out.shape == (batch, seq, vocab_size)
    assert h_n.shape == (num_layers, batch, hidden_size)
    assert c_n.shape == (num_layers, batch, hidden_size)
    assert bool(jnp.all(jnp.isfinite(out)))
    assert bool(jnp.all(jnp.isfinite(h_n))) and bool(jnp.all(jnp.isfinite(c_n)))
    print("KERNEL_OK")
</pallas_src>

<mosaic_0001>
module attributes {stable_mosaic.version = 11 : i64} {
  func.func @kernel(%arg0: i32, %arg1: memref<8x2x512xf32, #tpu.memory_space<vmem>>, %arg2: memref<128x512xbf16, #tpu.memory_space<vmem>>, %arg3: memref<128x512xbf16, #tpu.memory_space<vmem>>, %arg4: memref<128x512xbf16, #tpu.memory_space<vmem>>, %arg5: memref<1x512xf32, #tpu.memory_space<vmem>>, %arg6: memref<128x32xbf16, #tpu.memory_space<vmem>>, %arg7: memref<1x32xf32, #tpu.memory_space<vmem>>, %arg8: memref<2x2x128xf32, #tpu.memory_space<vmem>>, %arg9: memref<2x2x128xf32, #tpu.memory_space<vmem>>, %arg10: memref<2x8x32xf32, #tpu.memory_space<vmem>>, %arg11: memref<2x2x128xf32, #tpu.memory_space<vmem>>, %arg12: memref<2x2x128xf32, #tpu.memory_space<vmem>>, %arg13: memref<8x2x128xbf16, #tpu.memory_space<vmem>>) attributes {dimension_semantics = [#tpu.dimension_semantics<arbitrary>], iteration_bounds = array<i64: 1>, scalar_prefetch = 0 : i64, scratch_operands = 1 : i64, tpu.core_type = #tpu.core_type<tc>, window_params = [{transform_indices = @transform_0, window_bounds = array<i64: 8, 2, 512>}, {pipeline_mode = #tpu.pipeline_mode<synchronous>, transform_indices = @transform_1, window_bounds = array<i64: 128, 512>}, {pipeline_mode = #tpu.pipeline_mode<synchronous>, transform_indices = @transform_2, window_bounds = array<i64: 128, 512>}, {pipeline_mode = #tpu.pipeline_mode<synchronous>, transform_indices = @transform_3, window_bounds = array<i64: 128, 512>}, {pipeline_mode = #tpu.pipeline_mode<synchronous>, transform_indices = @transform_4, window_bounds = array<i64: 1, 512>}, {pipeline_mode = #tpu.pipeline_mode<synchronous>, transform_indices = @transform_5, window_bounds = array<i64: 128, 32>}, {pipeline_mode = #tpu.pipeline_mode<synchronous>, transform_indices = @transform_6, window_bounds = array<i64: 1, 32>}, {pipeline_mode = #tpu.pipeline_mode<synchronous>, transform_indices = @transform_7, window_bounds = array<i64: 2, 2, 128>}, {pipeline_mode = #tpu.pipeline_mode<synchronous>, transform_indices = @transform_8, window_bounds = array<i64: 2, 2, 128>}, {transform_indices = @transform_9, window_bounds = array<i64: 2, 8, 32>}, {pipeline_mode = #tpu.pipeline_mode<synchronous>, transform_indices = @transform_10, window_bounds = array<i64: 2, 2, 128>}, {pipeline_mode = #tpu.pipeline_mode<synchronous>, transform_indices = @transform_11, window_bounds = array<i64: 2, 2, 128>}]} {
    %c0_i32 = arith.constant 0 : i32
    %0 = arith.cmpi eq, %arg0, %c0_i32 : i32
    %1 = arith.extui %0 : i1 to i32
    %c0_i32_0 = arith.constant 0 : i32
    %2 = arith.cmpi ne, %1, %c0_i32_0 : i32
    scf.if %2 {
      %c0_156 = arith.constant 0 : index
      %c0_157 = arith.constant 0 : index
      %c0_158 = arith.constant 0 : index
      %452 = vector.load %arg8[%c0_156, %c0_157, %c0_158] : memref<2x2x128xf32, #tpu.memory_space<vmem>>, vector<2x2x128xf32>
      %c0_159 = arith.constant 0 : index
      %c0_160 = arith.constant 0 : index
      %c0_161 = arith.constant 0 : index
      %453 = vector.load %arg11[%c0_159, %c0_160, %c0_161] : memref<2x2x128xf32, #tpu.memory_space<vmem>>, vector<2x2x128xf32>
      tpu.vector_store %arg11[%c0_159, %c0_160, %c0_161], %452 {strides = array<i32>} : memref<2x2x128xf32, #tpu.memory_space<vmem>>, vector<2x2x128xf32>,
      %c0_162 = arith.constant 0 : index
      %c0_163 = arith.constant 0 : index
      %c0_164 = arith.constant 0 : index
      %454 = vector.load %arg9[%c0_162, %c0_163, %c0_164] : memref<2x2x128xf32, #tpu.memory_space<vmem>>, vector<2x2x128xf32>
      %c0_165 = arith.constant 0 : index
      %c0_166 = arith.constant 0 : index
      %c0_167 = arith.constant 0 : index
      %455 = vector.load %arg12[%c0_165, %c0_166, %c0_167] : memref<2x2x128xf32, #tpu.memory_space<vmem>>, vector<2x2x128xf32>
      tpu.vector_store %arg12[%c0_165, %c0_166, %c0_167], %454 {strides = array<i32>} : memref<2x2x128xf32, #tpu.memory_space<vmem>>, vector<2x2x128xf32>,
    } else {
    }
    %c0 = arith.constant 0 : index
    %c0_1 = arith.constant 0 : index
    %3 = vector.load %arg5[%c0, %c0_1] : memref<1x512xf32, #tpu.memory_space<vmem>>, vector<1x512xf32>
    %4 = vector.shape_cast %3 : vector<1x512xf32> to vector<1x512xf32>
    %5 = vector.broadcast %4 : vector<1x512xf32> to vector<2x512xf32>
    %c0_2 = arith.constant 0 : index
    %c0_3 = arith.constant 0 : index
    %c0_4 = arith.constant 0 : index
    %6 = vector.load %arg11[%c0_2, %c0_3, %c0_4] : memref<2x2x128xf32, #tpu.memory_space<vmem>>, vector<1x2x128xf32>
    %7 = vector.shape_cast %6 : vector<1x2x128xf32> to vector<2x128xf32>
    %c0_5 = arith.constant 0 : index
    %c0_6 = arith.constant 0 : index
    %c0_7 = arith.constant 0 : index
    %8 = vector.load %arg12[%c0_5, %c0_6, %c0_7] : memref<2x2x128xf32, #tpu.memory_space<vmem>>, vector<1x2x128xf32>
    %9 = vector.shape_cast %8 : vector<1x2x128xf32> to vector<2x128xf32>
    %c1 = arith.constant 1 : index
    %c0_8 = arith.constant 0 : index
    %c0_9 = arith.constant 0 : index
    %10 = vector.load %arg11[%c1, %c0_8, %c0_9] : memref<2x2x128xf32, #tpu.memory_space<vmem>>, vector<1x2x128xf32>
    %11 = vector.shape_cast %10 : vector<1x2x128xf32> to vector<2x128xf32>
    %c1_10 = arith.constant 1 : index
    %c0_11 = arith.constant 0 : index
    %c0_12 = arith.constant 0 : index
    %12 = vector.load %arg12[%c1_10, %c0_11, %c0_12] : memref<2x2x128xf32, #tpu.memory_space<vmem>>, vector<1x2x128xf32>
    %13 = vector.shape_cast %12 : vector<1x2x128xf32> to vector<2x128xf32>
    %c0_i32_13 = arith.constant 0 : i32
    %14 = arith.index_cast %c0_i32_13 : i32 to index
    %c0_14 = arith.constant 0 : index
    %c0_15 = arith.constant 0 : index
    %15 = vector.load %arg1[%14, %c0_14, %c0_15] : memref<8x2x512xf32, #tpu.memory_space<vmem>>, vector<1x2x512xf32>
    %16 = vector.shape_cast %15 : vector<1x2x512xf32> to vector<2x512xf32>
    %17 = arith.truncf %7 : vector<2x128xf32> to vector<2x128xbf16>
    %c0_16 = arith.constant 0 : index
    %c0_17 = arith.constant 0 : index
    %18 = vector.load %arg2[%c0_16, %c0_17] : memref<128x512xbf16, #tpu.memory_space<vmem>>, vector<128x512xbf16>
    %cst = arith.constant dense<0.000000e+00> : vector<2x512xf32>
    %19 = tpu.matmul %17, %18, %cst {dimension_numbers = #tpu.dot_dimension_numbers<[1], [0], [0], [1], [0, 0, 1, 1], [], []>} : vector<2x128xbf16>, vector<128x512xbf16>, vector<2x512xf32> -> vector<2x512xf32>
    %20 = arith.addf %16, %19 : vector<2x512xf32>
    %21 = vector.extract_strided_slice %20 {offsets = [0, 0], sizes = [2, 384], strides = [1, 1]} : vector<2x512xf32> to vector<2x384xf32>
    %22 = arith.negf %21 : vector<2x384xf32>
    %23 = math.exp %22 : vector<2x384xf32>
    %cst_18 = arith.constant 1.000000e+00 : f32
    %24 = vector.broadcast %cst_18 : f32 to vector<2x384xf32>
    %25 = arith.addf %24, %23 : vector<2x384xf32>
    %26 = arith.divf %24, %25 : vector<2x384xf32>
    %27 = vector.extract_strided_slice %20 {offsets = [0, 384], sizes = [2, 128], strides = [1, 1]} : vector<2x512xf32> to vector<2x128xf32>
    %28 = math.tanh %27 : vector<2x128xf32>
    %29 = vector.extract_strided_slice %26 {offsets = [0, 0], sizes = [2, 128], strides = [1, 1]} : vector<2x384xf32> to vector<2x128xf32>
    %30 = vector.extract_strided_slice %26 {offsets = [0, 128], sizes = [2, 128], strides = [1, 1]} : vector<2x384xf32> to vector<2x128xf32>
    %31 = vector.extract_strided_slice %26 {offsets = [0, 256], sizes = [2, 128], strides = [1, 1]} : vector<2x384xf32> to vector<2x128xf32>
    %32 = arith.mulf %30, %9 : vector<2x128xf32>
    %33 = arith.mulf %29, %28 : vector<2x128xf32>
    %34 = arith.addf %32, %33 : vector<2x128xf32>
    %35 = math.tanh %34 : vector<2x128xf32>
    %36 = arith.mulf %31, %35 : vector<2x128xf32>
    %37 = arith.truncf %36 : vector<2x128xf32> to vector<2x128xbf16>
    %c0_19 = arith.constant 0 : index
    %c0_20 = arith.constant 0 : index
    %38 = vector.load %arg3[%c0_19, %c0_20] : memref<128x512xbf16, #tpu.memory_space<vmem>>, vector<128x512xbf16>
    %cst_21 = arith.constant dense<0.000000e+00> : vector<2x512xf32>
    %39 = tpu.matmul %37, %38, %cst_21 {dimension_numbers = #tpu.dot_dimension_numbers<[1], [0], [0], [1], [0, 0, 1, 1], [], []>} : vector<2x128xbf16>, vector<128x512xbf16>, vector<2x512xf32> -> vector<2x512xf32>
    %40 = arith.truncf %11 : vector<2x128xf32> to vector<2x128xbf16>
    %c0_22 = arith.constant 0 : index
    %c0_23 = arith.constant 0 : index
    %41 = vector.load %arg4[%c0_22, %c0_23] : memref<128x512xbf16, #tpu.memory_space<vmem>>, vector<128x512xbf16>
    %cst_24 = arith.constant dense<0.000000e+00> : vector<2x512xf32>
    %42 = tpu.matmul %40, %41, %cst_24 {dimension_numbers = #tpu.dot_dimension_numbers<[1], [0], [0], [1], [0, 0, 1, 1], [], []>} : vector<2x128xbf16>, vector<128x512xbf16>, vector<2x512xf32> -> vector<2x512xf32>
    %43 = arith.addf %39, %42 : vector<2x512xf32>
    %44 = arith.addf %43, %5 : vector<2x512xf32>
    %45 = vector.extract_strided_slice %44 {offsets = [0, 0], sizes = [2, 384], strides = [1, 1]} : vector<2x512xf32> to vector<2x384xf32>
    %46 = arith.negf %45 : vector<2x384xf32>
    %47 = math.exp %46 : vector<2x384xf32>
    %cst_25 = arith.constant 1.000000e+00 : f32
    %48 = vector.broadcast %cst_25 : f32 to vector<2x384xf32>
    %49 = arith.addf %48, %47 : vector<2x384xf32>
    %50 = arith.divf %48, %49 : vector<2x384xf32>
    %51 = vector.extract_strided_slice %44 {offsets = [0, 384], sizes = [2, 128], strides = [1, 1]} : vector<2x512xf32> to vector<2x128xf32>
    %52 = math.tanh %51 : vector<2x128xf32>
    %53 = vector.extract_strided_slice %50 {offsets = [0, 0], sizes = [2, 128], strides = [1, 1]} : vector<2x384xf32> to vector<2x128xf32>
    %54 = vector.extract_strided_slice %50 {offsets = [0, 128], sizes = [2, 128], strides = [1, 1]} : vector<2x384xf32> to vector<2x128xf32>
    %55 = vector.extract_strided_slice %50 {offsets = [0, 256], sizes = [2, 128], strides = [1, 1]} : vector<2x384xf32> to vector<2x128xf32>
    %56 = arith.mulf %54, %13 : vector<2x128xf32>
    %57 = arith.mulf %53, %52 : vector<2x128xf32>
    %58 = arith.addf %56, %57 : vector<2x128xf32>
    %59 = math.tanh %58 : vector<2x128xf32>
    %60 = arith.mulf %55, %59 : vector<2x128xf32>
    %61 = arith.truncf %60 : vector<2x128xf32> to vector<2x128xbf16>
    %62 = arith.index_cast %c0_i32_13 : i32 to index
    %c0_26 = arith.constant 0 : index
    %c0_27 = arith.constant 0 : index
    %63 = vector.load %arg13[%62, %c0_26, %c0_27] : memref<8x2x128xbf16, #tpu.memory_space<vmem>>, vector<1x2x128xbf16>
    %64 = vector.shape_cast %63 : vector<1x2x128xbf16> to vector<2x128xbf16>
    %65 = vector.shape_cast %61 : vector<2x128xbf16> to vector<1x2x128xbf16>
    tpu.vector_store %arg13[%62, %c0_26, %c0_27], %65 {strides = array<i32>} : memref<8x2x128xbf16, #tpu.memory_space<vmem>>, vector<1x2x128xbf16>,
    %c1_i32 = arith.constant 1 : i32
    %66 = arith.index_cast %c1_i32 : i32 to index
    %c0_28 = arith.constant 0 : index
    %c0_29 = arith.constant 0 : index
    %67 = vector.load %arg1[%66, %c0_28, %c0_29] : memref<8x2x512xf32, #tpu.memory_space<vmem>>, vector<1x2x512xf32>
    %68 = vector.shape_cast %67 : vector<1x2x512xf32> to vector<2x512xf32>
    %69 = arith.truncf %36 : vector<2x128xf32> to vector<2x128xbf16>
    %c0_30 = arith.constant 0 : index
    %c0_31 = arith.constant 0 : index
    %70 = vector.load %arg2[%c0_30, %c0_31] : memref<128x512xbf16, #tpu.memory_space<vmem>>, vector<128x512xbf16>
    %cst_32 = arith.constant dense<0.000000e+00> : vector<2x512xf32>
    %71 = tpu.matmul %69, %70, %cst_32 {dimension_numbers = #tpu.dot_dimension_numbers<[1], [0], [0], [1], [0, 0, 1, 1], [], []>} : vector<2x128xbf16>, vector<128x512xbf16>, vector<2x512xf32> -> vector<2x512xf32>
    %72 = arith.addf %68, %71 : vector<2x512xf32>
    %73 = vector.extract_strided_slice %72 {offsets = [0, 0], sizes = [2, 384], strides = [1, 1]} : vector<2x512xf32> to vector<2x384xf32>
    %74 = arith.negf %73 : vector<2x384xf32>
    %75 = math.exp %74 : vector<2x384xf32>
    %cst_33 = arith.constant 1.000000e+00 : f32
    %76 = vector.broadcast %cst_33 : f32 to vector<2x384xf32>
    %77 = arith.addf %76, %75 : vector<2x384xf32>
    %78 = arith.divf %76, %77 : vector<2x384xf32>
    %79 = vector.extract_strided_slice %72 {offsets = [0, 384], sizes = [2, 128], strides = [1, 1]} : vector<2x512xf32> to vector<2x128xf32>
    %80 = math.tanh %79 : vector<2x128xf32>
    %81 = vector.extract_strided_slice %78 {offsets = [0, 0], sizes = [2, 128], strides = [1, 1]} : vector<2x384xf32> to vector<2x128xf32>
    %82 = vector.extract_strided_slice %78 {offsets = [0, 128], sizes = [2, 128], strides = [1, 1]} : vector<2x384xf32> to vector<2x128xf32>
    %83 = vector.extract_strided_slice %78 {offsets = [0, 256], sizes = [2, 128], strides = [1, 1]} : vector<2x384xf32> to vector<2x128xf32>
    %84 = arith.mulf %82, %34 : vector<2x128xf32>
    %85 = arith.mulf %81, %80 : vector<2x128xf32>
    %86 = arith.addf %84, %85 : vector<2x128xf32>
    %87 = math.tanh %86 : vector<2x128xf32>
    %88 = arith.mulf %83, %87 : vector<2x128xf32>
    %89 = arith.truncf %88 : vector<2x128xf32> to vector<2x128xbf16>
    %c0_34 = arith.constant 0 : index
    %c0_35 = arith.constant 0 : index
    %90 = vector.load %arg3[%c0_34, %c0_35] : memref<128x512xbf16, #tpu.memory_space<vmem>>, vector<128x512xbf16>
    %cst_36 = arith.constant dense<0.000000e+00> : vector<2x512xf32>
    %91 = tpu.matmul %89, %90, %cst_36 {dimension_numbers = #tpu.dot_dimension_numbers<[1], [0], [0], [1], [0, 0, 1, 1], [], []>} : vector<2x128xbf16>, vector<128x512xbf16>, vector<2x512xf32> -> vector<2x512xf32>
    %92 = arith.truncf %60 : vector<2x128xf32> to vector<2x128xbf16>
    %c0_37 = arith.constant 0 : index
    %c0_38 = arith.constant 0 : index
    %93 = vector.load %arg4[%c0_37, %c0_38] : memref<128x512xbf16, #tpu.memory_space<vmem>>, vector<128x512xbf16>
    %cst_39 = arith.constant dense<0.000000e+00> : vector<2x512xf32>
    %94 = tpu.matmul %92, %93, %cst_39 {dimension_numbers = #tpu.dot_dimension_numbers<[1], [0], [0], [1], [0, 0, 1, 1], [], []>} : vector<2x128xbf16>, vector<128x512xbf16>, vector<2x512xf32> -> vector<2x512xf32>
    %95 = arith.addf %91, %94 : vector<2x512xf32>
    %96 = arith.addf %95, %5 : vector<2x512xf32>
    %97 = vector.extract_strided_slice %96 {offsets = [0, 0], sizes = [2, 384], strides = [1, 1]} : vector<2x512xf32> to vector<2x384xf32>
    %98 = arith.negf %97 : vector<2x384xf32>
    %99 = math.exp %98 : vector<2x384xf32>
    %cst_40 = arith.constant 1.000000e+00 : f32
    %100 = vector.broadcast %cst_40 : f32 to vector<2x384xf32>
    %101 = arith.addf %100, %99 : vector<2x384xf32>
    %102 = arith.divf %100, %101 : vector<2x384xf32>
    %103 = vector.extract_strided_slice %96 {offsets = [0, 384], sizes = [2, 128], strides = [1, 1]} : vector<2x512xf32> to vector<2x128xf32>
    %104 = math.tanh %103 : vector<2x128xf32>
    %105 = vector.extract_strided_slice %102 {offsets = [0, 0], sizes = [2, 128], strides = [1, 1]} : vector<2x384xf32> to vector<2x128xf32>
    %106 = vector.extract_strided_slice %102 {offsets = [0, 128], sizes = [2, 128], strides = [1, 1]} : vector<2x384xf32> to vector<2x128xf32>
    %107 = vector.extract_strided_slice %102 {offsets = [0, 256], sizes = [2, 128], strides = [1, 1]} : vector<2x384xf32> to vector<2x128xf32>
    %108 = arith.mulf %106, %58 : vector<2x128xf32>
    %109 = arith.mulf %105, %104 : vector<2x128xf32>
    %110 = arith.addf %108, %109 : vector<2x128xf32>
    %111 = math.tanh %110 : vector<2x128xf32>
    %112 = arith.mulf %107, %111 : vector<2x128xf32>
    %113 = arith.truncf %112 : vector<2x128xf32> to vector<2x128xbf16>
    %114 = arith.index_cast %c1_i32 : i32 to index
    %c0_41 = arith.constant 0 : index
    %c0_42 = arith.constant 0 : index
    %115 = vector.load %arg13[%114, %c0_41, %c0_42] : memref<8x2x128xbf16, #tpu.memory_space<vmem>>, vector<1x2x128xbf16>
    %116 = vector.shape_cast %115 : vector<1x2x128xbf16> to vector<2x128xbf16>
    %117 = vector.shape_cast %113 : vector<2x128xbf16> to vector<1x2x128xbf16>
    tpu.vector_store %arg13[%114, %c0_41, %c0_42], %117 {strides = array<i32>} : memref<8x2x128xbf16, #tpu.memory_space<vmem>>, vector<1x2x128xbf16>,
    %c2_i32 = arith.constant 2 : i32
    %118 = arith.index_cast %c2_i32 : i32 to index
    %c0_43 = arith.constant 0 : index
    %c0_44 = arith.constant 0 : index
    %119 = vector.load %arg1[%118, %c0_43, %c0_44] : memref<8x2x512xf32, #tpu.memory_space<vmem>>, vector<1x2x512xf32>
    %120 = vector.shape_cast %119 : vector<1x2x512xf32> to vector<2x512xf32>
    %121 = arith.truncf %88 : vector<2x128xf32> to vector<2x128xbf16>
    %c0_45 = arith.constant 0 : index
    %c0_46 = arith.constant 0 : index
    %122 = vector.load %arg2[%c0_45, %c0_46] : memref<128x512xbf16, #tpu.memory_space<vmem>>, vector<128x512xbf16>
    %cst_47 = arith.constant dense<0.000000e+00> : vector<2x512xf32>
    %123 = tpu.matmul %121, %122, %cst_47 {dimension_numbers = #tpu.dot_dimension_numbers<[1], [0], [0], [1], [0, 0, 1, 1], [], []>} : vector<2x128xbf16>, vector<128x512xbf16>, vector<2x512xf32> -> vector<2x512xf32>
    %124 = arith.addf %120, %123 : vector<2x512xf32>
    %125 = vector.extract_strided_slice %124 {offsets = [0, 0], sizes = [2, 384], strides = [1, 1]} : vector<2x512xf32> to vector<2x384xf32>
    %126 = arith.negf %125 : vector<2x384xf32>
    %127 = math.exp %126 : vector<2x384xf32>
    %cst_48 = arith.constant 1.000000e+00 : f32
    %128 = vector.broadcast %cst_48 : f32 to vector<2x384xf32>
    %129 = arith.addf %128, %127 : vector<2x384xf32>
    %130 = arith.divf %128, %129 : vector<2x384xf32>
    %131 = vector.extract_strided_slice %124 {offsets = [0, 384], sizes = [2, 128], strides = [1, 1]} : vector<2x512xf32> to vector<2x128xf32>
    %132 = math.tanh %131 : vector<2x128xf32>
    %133 = vector.extract_strided_slice %130 {offsets = [0, 0], sizes = [2, 128], strides = [1, 1]} : vector<2x384xf32> to vector<2x128xf32>
    %134 = vector.extract_strided_slice %130 {offsets = [0, 128], sizes = [2, 128], strides = [1, 1]} : vector<2x384xf32> to vector<2x128xf32>
    %135 = vector.extract_strided_slice %130 {offsets = [0, 256], sizes = [2, 128], strides = [1, 1]} : vector<2x384xf32> to vector<2x128xf32>
    %136 = arith.mulf %134, %86 : vector<2x128xf32>
    %137 = arith.mulf %133, %132 : vector<2x128xf32>
    %138 = arith.addf %136, %137 : vector<2x128xf32>
    %139 = math.tanh %138 : vector<2x128xf32>
    %140 = arith.mulf %135, %139 : vector<2x128xf32>
    %141 = arith.truncf %140 : vector<2x128xf32> to vector<2x128xbf16>
    %c0_49 = arith.constant 0 : index
    %c0_50 = arith.constant 0 : index
    %142 = vector.load %arg3[%c0_49, %c0_50] : memref<128x512xbf16, #tpu.memory_space<vmem>>, vector<128x512xbf16>
    %cst_51 = arith.constant dense<0.000000e+00> : vector<2x512xf32>
    %143 = tpu.matmul %141, %142, %cst_51 {dimension_numbers = #tpu.dot_dimension_numbers<[1], [0], [0], [1], [0, 0, 1, 1], [], []>} : vector<2x128xbf16>, vector<128x512xbf16>, vector<2x512xf32> -> vector<2x512xf32>
    %144 = arith.truncf %112 : vector<2x128xf32> to vector<2x128xbf16>
    %c0_52 = arith.constant 0 : index
    %c0_53 = arith.constant 0 : index
    %145 = vector.load %arg4[%c0_52, %c0_53] : memref<128x512xbf16, #tpu.memory_space<vmem>>, vector<128x512xbf16>
    %cst_54 = arith.constant dense<0.000000e+00> : vector<2x512xf32>
    %146 = tpu.matmul %144, %145, %cst_54 {dimension_numbers = #tpu.dot_dimension_numbers<[1], [0], [0], [1], [0, 0, 1, 1], [], []>} : vector<2x128xbf16>, vector<128x512xbf16>, vector<2x512xf32> -> vector<2x512xf32>
    %147 = arith.addf %143, %146 : vector<2x512xf32>
    %148 = arith.addf %147, %5 : vector<2x512xf32>
    %149 = vector.extract_strided_slice %148 {offsets = [0, 0], sizes = [2, 384], strides = [1, 1]} : vector<2x512xf32> to vector<2x384xf32>
    %150 = arith.negf %149 : vector<2x384xf32>
    %151 = math.exp %150 : vector<2x384xf32>
    %cst_55 = arith.constant 1.000000e+00 : f32
    %152 = vector.broadcast %cst_55 : f32 to vector<2x384xf32>
    %153 = arith.addf %152, %151 : vector<2x384xf32>
    %154 = arith.divf %152, %153 : vector<2x384xf32>
    %155 = vector.extract_strided_slice %148 {offsets = [0, 384], sizes = [2, 128], strides = [1, 1]} : vector<2x512xf32> to vector<2x128xf32>
    %156 = math.tanh %155 : vector<2x128xf32>
    %157 = vector.extract_strided_slice %154 {offsets = [0, 0], sizes = [2, 128], strides = [1, 1]} : vector<2x384xf32> to vector<2x128xf32>
    %158 = vector.extract_strided_slice %154 {offsets = [0, 128], sizes = [2, 128], strides = [1, 1]} : vector<2x384xf32> to vector<2x128xf32>
    %159 = vector.extract_strided_slice %154 {offsets = [0, 256], sizes = [2, 128], strides = [1, 1]} : vector<2x384xf32> to vector<2x128xf32>
    %160 = arith.mulf %158, %110 : vector<2x128xf32>
    %161 = arith.mulf %157, %156 : vector<2x128xf32>
    %162 = arith.addf %160, %161 : vector<2x128xf32>
    %163 = math.tanh %162 : vector<2x128xf32>
    %164 = arith.mulf %159, %163 : vector<2x128xf32>
    %165 = arith.truncf %164 : vector<2x128xf32> to vector<2x128xbf16>
    %166 = arith.index_cast %c2_i32 : i32 to index
    %c0_56 = arith.constant 0 : index
    %c0_57 = arith.constant 0 : index
    %167 = vector.load %arg13[%166, %c0_56, %c0_57] : memref<8x2x128xbf16, #tpu.memory_space<vmem>>, vector<1x2x128xbf16>
    %168 = vector.shape_cast %167 : vector<1x2x128xbf16> to vector<2x128xbf16>
    %169 = vector.shape_cast %165 : vector<2x128xbf16> to vector<1x2x128xbf16>
    tpu.vector_store %arg13[%166, %c0_56, %c0_57], %169 {strides = array<i32>} : memref<8x2x128xbf16, #tpu.memory_space<vmem>>, vector<1x2x128xbf16>,
    %c3_i32 = arith.constant 3 : i32
    %170 = arith.index_cast %c3_i32 : i32 to index
    %c0_58 = arith.constant 0 : index
    %c0_59 = arith.constant 0 : index
    %171 = vector.load %arg1[%170, %c0_58, %c0_59] : memref<8x2x512xf32, #tpu.memory_space<vmem>>, vector<1x2x512xf32>
    %172 = vector.shape_cast %171 : vector<1x2x512xf32> to vector<2x512xf32>
    %173 = arith.truncf %140 : vector<2x128xf32> to vector<2x128xbf16>
    %c0_60 = arith.constant 0 : index
    %c0_61 = arith.constant 0 : index
    %174 = vector.load %arg2[%c0_60, %c0_61] : memref<128x512xbf16, #tpu.memory_space<vmem>>, vector<128x512xbf16>
    %cst_62 = arith.constant dense<0.000000e+00> : vector<2x512xf32>
    %175 = tpu.matmul %173, %174, %cst_62 {dimension_numbers = #tpu.dot_dimension_numbers<[1], [0], [0], [1], [0, 0, 1, 1], [], []>} : vector<2x128xbf16>, vector<128x512xbf16>, vector<2x512xf32> -> vector<2x512xf32>
    %176 = arith.addf %172, %175 : vector<2x512xf32>
    %177 = vector.extract_strided_slice %176 {offsets = [0, 0], sizes = [2, 384], strides = [1, 1]} : vector<2x512xf32> to vector<2x384xf32>
    %178 = arith.negf %177 : vector<2x384xf32>
    %179 = math.exp %178 : vector<2x384xf32>
    %cst_63 = arith.constant 1.000000e+00 : f32
    %180 = vector.broadcast %cst_63 : f32 to vector<2x384xf32>
    %181 = arith.addf %180, %179 : vector<2x384xf32>
    %182 = arith.divf %180, %181 : vector<2x384xf32>
    %183 = vector.extract_strided_slice %176 {offsets = [0, 384], sizes = [2, 128], strides = [1, 1]} : vector<2x512xf32> to vector<2x128xf32>
    %184 = math.tanh %183 : vector<2x128xf32>
    %185 = vector.extract_strided_slice %182 {offsets = [0, 0], sizes = [2, 128], strides = [1, 1]} : vector<2x384xf32> to vector<2x128xf32>
    %186 = vector.extract_strided_slice %182 {offsets = [0, 128], sizes = [2, 128], strides = [1, 1]} : vector<2x384xf32> to vector<2x128xf32>
    %187 = vector.extract_strided_slice %182 {offsets = [0, 256], sizes = [2, 128], strides = [1, 1]} : vector<2x384xf32> to vector<2x128xf32>
    %188 = arith.mulf %186, %138 : vector<2x128xf32>
    %189 = arith.mulf %185, %184 : vector<2x128xf32>
    %190 = arith.addf %188, %189 : vector<2x128xf32>
    %191 = math.tanh %190 : vector<2x128xf32>
    %192 = arith.mulf %187, %191 : vector<2x128xf32>
    %193 = arith.truncf %192 : vector<2x128xf32> to vector<2x128xbf16>
    %c0_64 = arith.constant 0 : index
    %c0_65 = arith.constant 0 : index
    %194 = vector.load %arg3[%c0_64, %c0_65] : memref<128x512xbf16, #tpu.memory_space<vmem>>, vector<128x512xbf16>
    %cst_66 = arith.constant dense<0.000000e+00> : vector<2x512xf32>
    %195 = tpu.matmul %193, %194, %cst_66 {dimension_numbers = #tpu.dot_dimension_numbers<[1], [0], [0], [1], [0, 0, 1, 1], [], []>} : vector<2x128xbf16>, vector<128x512xbf16>, vector<2x512xf32> -> vector<2x512xf32>
    %196 = arith.truncf %164 : vector<2x128xf32> to vector<2x128xbf16>
    %c0_67 = arith.constant 0 : index
    %c0_68 = arith.constant 0 : index
    %197 = vector.load %arg4[%c0_67, %c0_68] : memref<128x512xbf16, #tpu.memory_space<vmem>>, vector<128x512xbf16>
    %cst_69 = arith.constant dense<0.000000e+00> : vector<2x512xf32>
    %198 = tpu.matmul %196, %197, %cst_69 {dimension_numbers = #tpu.dot_dimension_numbers<[1], [0], [0], [1], [0, 0, 1, 1], [], []>} : vector<2x128xbf16>, vector<128x512xbf16>, vector<2x512xf32> -> vector<2x512xf32>
    %199 = arith.addf %195, %198 : vector<2x512xf32>
    %200 = arith.addf %199, %5 : vector<2x512xf32>
    %201 = vector.extract_strided_slice %200 {offsets = [0, 0], sizes = [2, 384], strides = [1, 1]} : vector<2x512xf32> to vector<2x384xf32>
    %202 = arith.negf %201 : vector<2x384xf32>
    %203 = math.exp %202 : vector<2x384xf32>
    %cst_70 = arith.constant 1.000000e+00 : f32
    %204 = vector.broadcast %cst_70 : f32 to vector<2x384xf32>
    %205 = arith.addf %204, %203 : vector<2x384xf32>
    %206 = arith.divf %204, %205 : vector<2x384xf32>
    %207 = vector.extract_strided_slice %200 {offsets = [0, 384], sizes = [2, 128], strides = [1, 1]} : vector<2x512xf32> to vector<2x128xf32>
    %208 = math.tanh %207 : vector<2x128xf32>
    %209 = vector.extract_strided_slice %206 {offsets = [0, 0], sizes = [2, 128], strides = [1, 1]} : vector<2x384xf32> to vector<2x128xf32>
    %210 = vector.extract_strided_slice %206 {offsets = [0, 128], sizes = [2, 128], strides = [1, 1]} : vector<2x384xf32> to vector<2x128xf32>
    %211 = vector.extract_strided_slice %206 {offsets = [0, 256], sizes = [2, 128], strides = [1, 1]} : vector<2x384xf32> to vector<2x128xf32>
    %212 = arith.mulf %210, %162 : vector<2x128xf32>
    %213 = arith.mulf %209, %208 : vector<2x128xf32>
    %214 = arith.addf %212, %213 : vector<2x128xf32>
    %215 = math.tanh %214 : vector<2x128xf32>
    %216 = arith.mulf %211, %215 : vector<2x128xf32>
    %217 = arith.truncf %216 : vector<2x128xf32> to vector<2x128xbf16>
    %218 = arith.index_cast %c3_i32 : i32 to index
    %c0_71 = arith.constant 0 : index
    %c0_72 = arith.constant 0 : index
    %219 = vector.load %arg13[%218, %c0_71, %c0_72] : memref<8x2x128xbf16, #tpu.memory_space<vmem>>, vector<1x2x128xbf16>
    %220 = vector.shape_cast %219 : vector<1x2x128xbf16> to vector<2x128xbf16>
    %221 = vector.shape_cast %217 : vector<2x128xbf16> to vector<1x2x128xbf16>
    tpu.vector_store %arg13[%218, %c0_71, %c0_72], %221 {strides = array<i32>} : memref<8x2x128xbf16, #tpu.memory_space<vmem>>, vector<1x2x128xbf16>,
    %c4_i32 = arith.constant 4 : i32
    %222 = arith.index_cast %c4_i32 : i32 to index
    %c0_73 = arith.constant 0 : index
    %c0_74 = arith.constant 0 : index
    %223 = vector.load %arg1[%222, %c0_73, %c0_74] : memref<8x2x512xf32, #tpu.memory_space<vmem>>, vector<1x2x512xf32>
    %224 = vector.shape_cast %223 : vector<1x2x512xf32> to vector<2x512xf32>
    %225 = arith.truncf %192 : vector<2x128xf32> to vector<2x128xbf16>
    %c0_75 = arith.constant 0 : index
    %c0_76 = arith.constant 0 : index
    %226 = vector.load %arg2[%c0_75, %c0_76] : memref<128x512xbf16, #tpu.memory_space<vmem>>, vector<128x512xbf16>
    %cst_77 = arith.constant dense<0.000000e+00> : vector<2x512xf32>
    %227 = tpu.matmul %225, %226, %cst_77 {dimension_numbers = #tpu.dot_dimension_numbers<[1], [0], [0], [1], [0, 0, 1, 1], [], []>} : vector<2x128xbf16>, vector<128x512xbf16>, vector<2x512xf32> -> vector<2x512xf32>
    %228 = arith.addf %224, %227 : vector<2x512xf32>
    %229 = vector.extract_strided_slice %228 {offsets = [0, 0], sizes = [2, 384], strides = [1, 1]} : vector<2x512xf32> to vector<2x384xf32>
    %230 = arith.negf %229 : vector<2x384xf32>
    %231 = math.exp %230 : vector<2x384xf32>
    %cst_78 = arith.constant 1.000000e+00 : f32
    %232 = vector.broadcast %cst_78 : f32 to vector<2x384xf32>
    %233 = arith.addf %232, %231 : vector<2x384xf32>
    %234 = arith.divf %232, %233 : vector<2x384xf32>
    %235 = vector.extract_strided_slice %228 {offsets = [0, 384], sizes = [2, 128], strides = [1, 1]} : vector<2x512xf32> to vector<2x128xf32>
    %236 = math.tanh %235 : vector<2x128xf32>
    %237 = vector.extract_strided_slice %234 {offsets = [0, 0], sizes = [2, 128], strides = [1, 1]} : vector<2x384xf32> to vector<2x128xf32>
    %238 = vector.extract_strided_slice %234 {offsets = [0, 128], sizes = [2, 128], strides = [1, 1]} : vector<2x384xf32> to vector<2x128xf32>
    %239 = vector.extract_strided_slice %234 {offsets = [0, 256], sizes = [2, 128], strides = [1, 1]} : vector<2x384xf32> to vector<2x128xf32>
    %240 = arith.mulf %238, %190 : vector<2x128xf32>
    %241 = arith.mulf %237, %236 : vector<2x128xf32>
    %242 = arith.addf %240, %241 : vector<2x128xf32>
    %243 = math.tanh %242 : vector<2x128xf32>
    %244 = arith.mulf %239, %243 : vector<2x128xf32>
    %245 = arith.truncf %244 : vector<2x128xf32> to vector<2x128xbf16>
    %c0_79 = arith.constant 0 : index
    %c0_80 = arith.constant 0 : index
    %246 = vector.load %arg3[%c0_79, %c0_80] : memref<128x512xbf16, #tpu.memory_space<vmem>>, vector<128x512xbf16>
    %cst_81 = arith.constant dense<0.000000e+00> : vector<2x512xf32>
    %247 = tpu.matmul %245, %246, %cst_81 {dimension_numbers = #tpu.dot_dimension_numbers<[1], [0], [0], [1], [0, 0, 1, 1], [], []>} : vector<2x128xbf16>, vector<128x512xbf16>, vector<2x512xf32> -> vector<2x512xf32>
    %248 = arith.truncf %216 : vector<2x128xf32> to vector<2x128xbf16>
    %c0_82 = arith.constant 0 : index
    %c0_83 = arith.constant 0 : index
    %249 = vector.load %arg4[%c0_82, %c0_83] : memref<128x512xbf16, #tpu.memory_space<vmem>>, vector<128x512xbf16>
    %cst_84 = arith.constant dense<0.000000e+00> : vector<2x512xf32>
    %250 = tpu.matmul %248, %249, %cst_84 {dimension_numbers = #tpu.dot_dimension_numbers<[1], [0], [0], [1], [0, 0, 1, 1], [], []>} : vector<2x128xbf16>, vector<128x512xbf16>, vector<2x512xf32> -> vector<2x512xf32>
    %251 = arith.addf %247, %250 : vector<2x512xf32>
    %252 = arith.addf %251, %5 : vector<2x512xf32>
    %253 = vector.extract_strided_slice %252 {offsets = [0, 0], sizes = [2, 384], strides = [1, 1]} : vector<2x512xf32> to vector<2x384xf32>
    %254 = arith.negf %253 : vector<2x384xf32>
    %255 = math.exp %254 : vector<2x384xf32>
    %cst_85 = arith.constant 1.000000e+00 : f32
    %256 = vector.broadcast %cst_85 : f32 to vector<2x384xf32>
    %257 = arith.addf %256, %255 : vector<2x384xf32>
    %258 = arith.divf %256, %257 : vector<2x384xf32>
    %259 = vector.extract_strided_slice %252 {offsets = [0, 384], sizes = [2, 128], strides = [1, 1]} : vector<2x512xf32> to vector<2x128xf32>
    %260 = math.tanh %259 : vector<2x128xf32>
    %261 = vector.extract_strided_slice %258 {offsets = [0, 0], sizes = [2, 128], strides = [1, 1]} : vector<2x384xf32> to vector<2x128xf32>
    %262 = vector.extract_strided_slice %258 {offsets = [0, 128], sizes = [2, 128], strides = [1, 1]} : vector<2x384xf32> to vector<2x128xf32>
    %263 = vector.extract_strided_slice %258 {offsets = [0, 256], sizes = [2, 128], strides = [1, 1]} : vector<2x384xf32> to vector<2x128xf32>
    %264 = arith.mulf %262, %214 : vector<2x128xf32>
    %265 = arith.mulf %261, %260 : vector<2x128xf32>
    %266 = arith.addf %264, %265 : vector<2x128xf32>
    %267 = math.tanh %266 : vector<2x128xf32>
    %268 = arith.mulf %263, %267 : vector<2x128xf32>
    %269 = arith.truncf %268 : vector<2x128xf32> to vector<2x128xbf16>
    %270 = arith.index_cast %c4_i32 : i32 to index
    %c0_86 = arith.constant 0 : index
    %c0_87 = arith.constant 0 : index
    %271 = vector.load %arg13[%270, %c0_86, %c0_87] : memref<8x2x128xbf16, #tpu.memory_space<vmem>>, vector<1x2x128xbf16>
    %272 = vector.shape_cast %271 : vector<1x2x128xbf16> to vector<2x128xbf16>
    %273 = vector.shape_cast %269 : vector<2x128xbf16> to vector<1x2x128xbf16>
    tpu.vector_store %arg13[%270, %c0_86, %c0_87], %273 {strides = array<i32>} : memref<8x2x128xbf16, #tpu.memory_space<vmem>>, vector<1x2x128xbf16>,
    %c5_i32 = arith.constant 5 : i32
    %274 = arith.index_cast %c5_i32 : i32 to index
    %c0_88 = arith.constant 0 : index
    %c0_89 = arith.constant 0 : index
    %275 = vector.load %arg1[%274, %c0_88, %c0_89] : memref<8x2x512xf32, #tpu.memory_space<vmem>>, vector<1x2x512xf32>
    %276 = vector.shape_cast %275 : vector<1x2x512xf32> to vector<2x512xf32>
    %277 = arith.truncf %244 : vector<2x128xf32> to vector<2x128xbf16>
    %c0_90 = arith.constant 0 : index
    %c0_91 = arith.constant 0 : index
    %278 = vector.load %arg2[%c0_90, %c0_91] : memref<128x512xbf16, #tpu.memory_space<vmem>>, vector<128x512xbf16>
    %cst_92 = arith.constant dense<0.000000e+00> : vector<2x512xf32>
    %279 = tpu.matmul %277, %278, %cst_92 {dimension_numbers = #tpu.dot_dimension_numbers<[1], [0], [0], [1], [0, 0, 1, 1], [], []>} : vector<2x128xbf16>, vector<128x512xbf16>, vector<2x512xf32> -> vector<2x512xf32>
    %280 = arith.addf %276, %279 : vector<2x512xf32>
    %281 = vector.extract_strided_slice %280 {offsets = [0, 0], sizes = [2, 384], strides = [1, 1]} : vector<2x512xf32> to vector<2x384xf32>
    %282 = arith.negf %281 : vector<2x384xf32>
    %283 = math.exp %282 : vector<2x384xf32>
    %cst_93 = arith.constant 1.000000e+00 : f32
    %284 = vector.broadcast %cst_93 : f32 to vector<2x384xf32>
    %285 = arith.addf %284, %283 : vector<2x384xf32>
    %286 = arith.divf %284, %285 : vector<2x384xf32>
    %287 = vector.extract_strided_slice %280 {offsets = [0, 384], sizes = [2, 128], strides = [1, 1]} : vector<2x512xf32> to vector<2x128xf32>
    %288 = math.tanh %287 : vector<2x128xf32>
    %289 = vector.extract_strided_slice %286 {offsets = [0, 0], sizes = [2, 128], strides = [1, 1]} : vector<2x384xf32> to vector<2x128xf32>
    %290 = vector.extract_strided_slice %286 {offsets = [0, 128], sizes = [2, 128], strides = [1, 1]} : vector<2x384xf32> to vector<2x128xf32>
    %291 = vector.extract_strided_slice %286 {offsets = [0, 256], sizes = [2, 128], strides = [1, 1]} : vector<2x384xf32> to vector<2x128xf32>
    %292 = arith.mulf %290, %242 : vector<2x128xf32>
    %293 = arith.mulf %289, %288 : vector<2x128xf32>
    %294 = arith.addf %292, %293 : vector<2x128xf32>
    %295 = math.tanh %294 : vector<2x128xf32>
    %296 = arith.mulf %291, %295 : vector<2x128xf32>
    %297 = arith.truncf %296 : vector<2x128xf32> to vector<2x128xbf16>
    %c0_94 = arith.constant 0 : index
    %c0_95 = arith.constant 0 : index
    %298 = vector.load %arg3[%c0_94, %c0_95] : memref<128x512xbf16, #tpu.memory_space<vmem>>, vector<128x512xbf16>
    %cst_96 = arith.constant dense<0.000000e+00> : vector<2x512xf32>
    %299 = tpu.matmul %297, %298, %cst_96 {dimension_numbers = #tpu.dot_dimension_numbers<[1], [0], [0], [1], [0, 0, 1, 1], [], []>} : vector<2x128xbf16>, vector<128x512xbf16>, vector<2x512xf32> -> vector<2x512xf32>
    %300 = arith.truncf %268 : vector<2x128xf32> to vector<2x128xbf16>
    %c0_97 = arith.constant 0 : index
    %c0_98 = arith.constant 0 : index
    %301 = vector.load %arg4[%c0_97, %c0_98] : memref<128x512xbf16, #tpu.memory_space<vmem>>, vector<128x512xbf16>
    %cst_99 = arith.constant dense<0.000000e+00> : vector<2x512xf32>
    %302 = tpu.matmul %300, %301, %cst_99 {dimension_numbers = #tpu.dot_dimension_numbers<[1], [0], [0], [1], [0, 0, 1, 1], [], []>} : vector<2x128xbf16>, vector<128x512xbf16>, vector<2x512xf32> -> vector<2x512xf32>
    %303 = arith.addf %299, %302 : vector<2x512xf32>
    %304 = arith.addf %303, %5 : vector<2x512xf32>
    %305 = vector.extract_strided_slice %304 {offsets = [0, 0], sizes = [2, 384], strides = [1, 1]} : vector<2x512xf32> to vector<2x384xf32>
    %306 = arith.negf %305 : vector<2x384xf32>
    %307 = math.exp %306 : vector<2x384xf32>
    %cst_100 = arith.constant 1.000000e+00 : f32
    %308 = vector.broadcast %cst_100 : f32 to vector<2x384xf32>
    %309 = arith.addf %308, %307 : vector<2x384xf32>
    %310 = arith.divf %308, %309 : vector<2x384xf32>
    %311 = vector.extract_strided_slice %304 {offsets = [0, 384], sizes = [2, 128], strides = [1, 1]} : vector<2x512xf32> to vector<2x128xf32>
    %312 = math.tanh %311 : vector<2x128xf32>
    %313 = vector.extract_strided_slice %310 {offsets = [0, 0], sizes = [2, 128], strides = [1, 1]} : vector<2x384xf32> to vector<2x128xf32>
    %314 = vector.extract_strided_slice %310 {offsets = [0, 128], sizes = [2, 128], strides = [1, 1]} : vector<2x384xf32> to vector<2x128xf32>
    %315 = vector.extract_strided_slice %310 {offsets = [0, 256], sizes = [2, 128], strides = [1, 1]} : vector<2x384xf32> to vector<2x128xf32>
    %316 = arith.mulf %314, %266 : vector<2x128xf32>
    %317 = arith.mulf %313, %312 : vector<2x128xf32>
    %318 = arith.addf %316, %317 : vector<2x128xf32>
    %319 = math.tanh %318 : vector<2x128xf32>
    %320 = arith.mulf %315, %319 : vector<2x128xf32>
    %321 = arith.truncf %320 : vector<2x128xf32> to vector<2x128xbf16>
    %322 = arith.index_cast %c5_i32 : i32 to index
    %c0_101 = arith.constant 0 : index
    %c0_102 = arith.constant 0 : index
    %323 = vector.load %arg13[%322, %c0_101, %c0_102] : memref<8x2x128xbf16, #tpu.memory_space<vmem>>, vector<1x2x128xbf16>
    %324 = vector.shape_cast %323 : vector<1x2x128xbf16> to vector<2x128xbf16>
    %325 = vector.shape_cast %321 : vector<2x128xbf16> to vector<1x2x128xbf16>
    tpu.vector_store %arg13[%322, %c0_101, %c0_102], %325 {strides = array<i32>} : memref<8x2x128xbf16, #tpu.memory_space<vmem>>, vector<1x2x128xbf16>,
    %c6_i32 = arith.constant 6 : i32
    %326 = arith.index_cast %c6_i32 : i32 to index
    %c0_103 = arith.constant 0 : index
    %c0_104 = arith.constant 0 : index
    %327 = vector.load %arg1[%326, %c0_103, %c0_104] : memref<8x2x512xf32, #tpu.memory_space<vmem>>, vector<1x2x512xf32>
    %328 = vector.shape_cast %327 : vector<1x2x512xf32> to vector<2x512xf32>
    %329 = arith.truncf %296 : vector<2x128xf32> to vector<2x128xbf16>
    %c0_105 = arith.constant 0 : index
    %c0_106 = arith.constant 0 : index
    %330 = vector.load %arg2[%c0_105, %c0_106] : memref<128x512xbf16, #tpu.memory_space<vmem>>, vector<128x512xbf16>
    %cst_107 = arith.constant dense<0.000000e+00> : vector<2x512xf32>
    %331 = tpu.matmul %329, %330, %cst_107 {dimension_numbers = #tpu.dot_dimension_numbers<[1], [0], [0], [1], [0, 0, 1, 1], [], []>} : vector<2x128xbf16>, vector<128x512xbf16>, vector<2x512xf32> -> vector<2x512xf32>
    %332 = arith.addf %328, %331 : vector<2x512xf32>
    %333 = vector.extract_strided_slice %332 {offsets = [0, 0], sizes = [2, 384], strides = [1, 1]} : vector<2x512xf32> to vector<2x384xf32>
    %334 = arith.negf %333 : vector<2x384xf32>
    %335 = math.exp %334 : vector<2x384xf32>
    %cst_108 = arith.constant 1.000000e+00 : f32
    %336 = vector.broadcast %cst_108 : f32 to vector<2x384xf32>
    %337 = arith.addf %336, %335 : vector<2x384xf32>
    %338 = arith.divf %336, %337 : vector<2x384xf32>
    %339 = vector.extract_strided_slice %332 {offsets = [0, 384], sizes = [2, 128], strides = [1, 1]} : vector<2x512xf32> to vector<2x128xf32>
    %340 = math.tanh %339 : vector<2x128xf32>
    %341 = vector.extract_strided_slice %338 {offsets = [0, 0], sizes = [2, 128], strides = [1, 1]} : vector<2x384xf32> to vector<2x128xf32>
    %342 = vector.extract_strided_slice %338 {offsets = [0, 128], sizes = [2, 128], strides = [1, 1]} : vector<2x384xf32> to vector<2x128xf32>
    %343 = vector.extract_strided_slice %338 {offsets = [0, 256], sizes = [2, 128], strides = [1, 1]} : vector<2x384xf32> to vector<2x128xf32>
    %344 = arith.mulf %342, %294 : vector<2x128xf32>
    %345 = arith.mulf %341, %340 : vector<2x128xf32>
    %346 = arith.addf %344, %345 : vector<2x128xf32>
    %347 = math.tanh %346 : vector<2x128xf32>
    %348 = arith.mulf %343, %347 : vector<2x128xf32>
    %349 = arith.truncf %348 : vector<2x128xf32> to vector<2x128xbf16>
    %c0_109 = arith.constant 0 : index
    %c0_110 = arith.constant 0 : index
    %350 = vector.load %arg3[%c0_109, %c0_110] : memref<128x512xbf16, #tpu.memory_space<vmem>>, vector<128x512xbf16>
    %cst_111 = arith.constant dense<0.000000e+00> : vector<2x512xf32>
    %351 = tpu.matmul %349, %350, %cst_111 {dimension_numbers = #tpu.dot_dimension_numbers<[1], [0], [0], [1], [0, 0, 1, 1], [], []>} : vector<2x128xbf16>, vector<128x512xbf16>, vector<2x512xf32> -> vector<2x512xf32>
    %352 = arith.truncf %320 : vector<2x128xf32> to vector<2x128xbf16>
    %c0_112 = arith.constant 0 : index
    %c0_113 = arith.constant 0 : index
    %353 = vector.load %arg4[%c0_112, %c0_113] : memref<128x512xbf16, #tpu.memory_space<vmem>>, vector<128x512xbf16>
    %cst_114 = arith.constant dense<0.000000e+00> : vector<2x512xf32>
    %354 = tpu.matmul %352, %353, %cst_114 {dimension_numbers = #tpu.dot_dimension_numbers<[1], [0], [0], [1], [0, 0, 1, 1], [], []>} : vector<2x128xbf16>, vector<128x512xbf16>, vector<2x512xf32> -> vector<2x512xf32>
    %355 = arith.addf %351, %354 : vector<2x512xf32>
    %356 = arith.addf %355, %5 : vector<2x512xf32>
    %357 = vector.extract_strided_slice %356 {offsets = [0, 0], sizes = [2, 384], strides = [1, 1]} : vector<2x512xf32> to vector<2x384xf32>
    %358 = arith.negf %357 : vector<2x384xf32>
    %359 = math.exp %358 : vector<2x384xf32>
    %cst_115 = arith.constant 1.000000e+00 : f32
    %360 = vector.broadcast %cst_115 : f32 to vector<2x384xf32>
    %361 = arith.addf %360, %359 : vector<2x384xf32>
    %362 = arith.divf %360, %361 : vector<2x384xf32>
    %363 = vector.extract_strided_slice %356 {offsets = [0, 384], sizes = [2, 128], strides = [1, 1]} : vector<2x512xf32> to vector<2x128xf32>
    %364 = math.tanh %363 : vector<2x128xf32>
    %365 = vector.extract_strided_slice %362 {offsets = [0, 0], sizes = [2, 128], strides = [1, 1]} : vector<2x384xf32> to vector<2x128xf32>
    %366 = vector.extract_strided_slice %362 {offsets = [0, 128], sizes = [2, 128], strides = [1, 1]} : vector<2x384xf32> to vector<2x128xf32>
    %367 = vector.extract_strided_slice %362 {offsets = [0, 256], sizes = [2, 128], strides = [1, 1]} : vector<2x384xf32> to vector<2x128xf32>
    %368 = arith.mulf %366, %318 : vector<2x128xf32>
    %369 = arith.mulf %365, %364 : vector<2x128xf32>
    %370 = arith.addf %368, %369 : vector<2x128xf32>
    %371 = math.tanh %370 : vector<2x128xf32>
    %372 = arith.mulf %367, %371 : vector<2x128xf32>
    %373 = arith.truncf %372 : vector<2x128xf32> to vector<2x128xbf16>
    %374 = arith.index_cast %c6_i32 : i32 to index
    %c0_116 = arith.constant 0 : index
    %c0_117 = arith.constant 0 : index
    %375 = vector.load %arg13[%374, %c0_116, %c0_117] : memref<8x2x128xbf16, #tpu.memory_space<vmem>>, vector<1x2x128xbf16>
    %376 = vector.shape_cast %375 : vector<1x2x128xbf16> to vector<2x128xbf16>
    %377 = vector.shape_cast %373 : vector<2x128xbf16> to vector<1x2x128xbf16>
    tpu.vector_store %arg13[%374, %c0_116, %c0_117], %377 {strides = array<i32>} : memref<8x2x128xbf16, #tpu.memory_space<vmem>>, vector<1x2x128xbf16>,
    %c7_i32 = arith.constant 7 : i32
    %378 = arith.index_cast %c7_i32 : i32 to index
    %c0_118 = arith.constant 0 : index
    %c0_119 = arith.constant 0 : index
    %379 = vector.load %arg1[%378, %c0_118, %c0_119] : memref<8x2x512xf32, #tpu.memory_space<vmem>>, vector<1x2x512xf32>
    %380 = vector.shape_cast %379 : vector<1x2x512xf32> to vector<2x512xf32>
    %381 = arith.truncf %348 : vector<2x128xf32> to vector<2x128xbf16>
    %c0_120 = arith.constant 0 : index
    %c0_121 = arith.constant 0 : index
    %382 = vector.load %arg2[%c0_120, %c0_121] : memref<128x512xbf16, #tpu.memory_space<vmem>>, vector<128x512xbf16>
    %cst_122 = arith.constant dense<0.000000e+00> : vector<2x512xf32>
    %383 = tpu.matmul %381, %382, %cst_122 {dimension_numbers = #tpu.dot_dimension_numbers<[1], [0], [0], [1], [0, 0, 1, 1], [], []>} : vector<2x128xbf16>, vector<128x512xbf16>, vector<2x512xf32> -> vector<2x512xf32>
    %384 = arith.addf %380, %383 : vector<2x512xf32>
    %385 = vector.extract_strided_slice %384 {offsets = [0, 0], sizes = [2, 384], strides = [1, 1]} : vector<2x512xf32> to vector<2x384xf32>
    %386 = arith.negf %385 : vector<2x384xf32>
    %387 = math.exp %386 : vector<2x384xf32>
    %cst_123 = arith.constant 1.000000e+00 : f32
    %388 = vector.broadcast %cst_123 : f32 to vector<2x384xf32>
    %389 = arith.addf %388, %387 : vector<2x384xf32>
    %390 = arith.divf %388, %389 : vector<2x384xf32>
    %391 = vector.extract_strided_slice %384 {offsets = [0, 384], sizes = [2, 128], strides = [1, 1]} : vector<2x512xf32> to vector<2x128xf32>
    %392 = math.tanh %391 : vector<2x128xf32>
    %393 = vector.extract_strided_slice %390 {offsets = [0, 0], sizes = [2, 128], strides = [1, 1]} : vector<2x384xf32> to vector<2x128xf32>
    %394 = vector.extract_strided_slice %390 {offsets = [0, 128], sizes = [2, 128], strides = [1, 1]} : vector<2x384xf32> to vector<2x128xf32>
    %395 = vector.extract_strided_slice %390 {offsets = [0, 256], sizes = [2, 128], strides = [1, 1]} : vector<2x384xf32> to vector<2x128xf32>
    %396 = arith.mulf %394, %346 : vector<2x128xf32>
    %397 = arith.mulf %393, %392 : vector<2x128xf32>
    %398 = arith.addf %396, %397 : vector<2x128xf32>
    %399 = math.tanh %398 : vector<2x128xf32>
    %400 = arith.mulf %395, %399 : vector<2x128xf32>
    %401 = arith.truncf %400 : vector<2x128xf32> to vector<2x128xbf16>
    %c0_124 = arith.constant 0 : index
    %c0_125 = arith.constant 0 : index
    %402 = vector.load %arg3[%c0_124, %c0_125] : memref<128x512xbf16, #tpu.memory_space<vmem>>, vector<128x512xbf16>
    %cst_126 = arith.constant dense<0.000000e+00> : vector<2x512xf32>
    %403 = tpu.matmul %401, %402, %cst_126 {dimension_numbers = #tpu.dot_dimension_numbers<[1], [0], [0], [1], [0, 0, 1, 1], [], []>} : vector<2x128xbf16>, vector<128x512xbf16>, vector<2x512xf32> -> vector<2x512xf32>
    %404 = arith.truncf %372 : vector<2x128xf32> to vector<2x128xbf16>
    %c0_127 = arith.constant 0 : index
    %c0_128 = arith.constant 0 : index
    %405 = vector.load %arg4[%c0_127, %c0_128] : memref<128x512xbf16, #tpu.memory_space<vmem>>, vector<128x512xbf16>
    %cst_129 = arith.constant dense<0.000000e+00> : vector<2x512xf32>
    %406 = tpu.matmul %404, %405, %cst_129 {dimension_numbers = #tpu.dot_dimension_numbers<[1], [0], [0], [1], [0, 0, 1, 1], [], []>} : vector<2x128xbf16>, vector<128x512xbf16>, vector<2x512xf32> -> vector<2x512xf32>
    %407 = arith.addf %403, %406 : vector<2x512xf32>
    %408 = arith.addf %407, %5 : vector<2x512xf32>
    %409 = vector.extract_strided_slice %408 {offsets = [0, 0], sizes = [2, 384], strides = [1, 1]} : vector<2x512xf32> to vector<2x384xf32>
    %410 = arith.negf %409 : vector<2x384xf32>
    %411 = math.exp %410 : vector<2x384xf32>
    %cst_130 = arith.constant 1.000000e+00 : f32
    %412 = vector.broadcast %cst_130 : f32 to vector<2x384xf32>
    %413 = arith.addf %412, %411 : vector<2x384xf32>
    %414 = arith.divf %412, %413 : vector<2x384xf32>
    %415 = vector.extract_strided_slice %408 {offsets = [0, 384], sizes = [2, 128], strides = [1, 1]} : vector<2x512xf32> to vector<2x128xf32>
    %416 = math.tanh %415 : vector<2x128xf32>
    %417 = vector.extract_strided_slice %414 {offsets = [0, 0], sizes = [2, 128], strides = [1, 1]} : vector<2x384xf32> to vector<2x128xf32>
    %418 = vector.extract_strided_slice %414 {offsets = [0, 128], sizes = [2, 128], strides = [1, 1]} : vector<2x384xf32> to vector<2x128xf32>
    %419 = vector.extract_strided_slice %414 {offsets = [0, 256], sizes = [2, 128], strides = [1, 1]} : vector<2x384xf32> to vector<2x128xf32>
    %420 = arith.mulf %418, %370 : vector<2x128xf32>
    %421 = arith.mulf %417, %416 : vector<2x128xf32>
    %422 = arith.addf %420, %421 : vector<2x128xf32>
    %423 = math.tanh %422 : vector<2x128xf32>
    %424 = arith.mulf %419, %423 : vector<2x128xf32>
    %425 = arith.truncf %424 : vector<2x128xf32> to vector<2x128xbf16>
    %426 = arith.index_cast %c7_i32 : i32 to index
    %c0_131 = arith.constant 0 : index
    %c0_132 = arith.constant 0 : index
    %427 = vector.load %arg13[%426, %c0_131, %c0_132] : memref<8x2x128xbf16, #tpu.memory_space<vmem>>, vector<1x2x128xbf16>
    %428 = vector.shape_cast %427 : vector<1x2x128xbf16> to vector<2x128xbf16>
    %429 = vector.shape_cast %425 : vector<2x128xbf16> to vector<1x2x128xbf16>
    tpu.vector_store %arg13[%426, %c0_131, %c0_132], %429 {strides = array<i32>} : memref<8x2x128xbf16, #tpu.memory_space<vmem>>, vector<1x2x128xbf16>,
    %c8_i32 = arith.constant 8 : i32
    %c0_133 = arith.constant 0 : index
    %c0_134 = arith.constant 0 : index
    %c0_135 = arith.constant 0 : index
    %430 = vector.load %arg11[%c0_133, %c0_134, %c0_135] : memref<2x2x128xf32, #tpu.memory_space<vmem>>, vector<1x2x128xf32>
    %431 = vector.shape_cast %430 : vector<1x2x128xf32> to vector<2x128xf32>
    %432 = vector.shape_cast %400 : vector<2x128xf32> to vector<1x2x128xf32>
    tpu.vector_store %arg11[%c0_133, %c0_134, %c0_135], %432 {strides = array<i32>} : memref<2x2x128xf32, #tpu.memory_space<vmem>>, vector<1x2x128xf32>,
    %c1_136 = arith.constant 1 : index
    %c0_137 = arith.constant 0 : index
    %c0_138 = arith.constant 0 : index
    %433 = vector.load %arg11[%c1_136, %c0_137, %c0_138] : memref<2x2x128xf32, #tpu.memory_space<vmem>>, vector<1x2x128xf32>
    %434 = vector.shape_cast %433 : vector<1x2x128xf32> to vector<2x128xf32>
    %435 = vector.shape_cast %424 : vector<2x128xf32> to vector<1x2x128xf32>
    tpu.vector_store %arg11[%c1_136, %c0_137, %c0_138], %435 {strides = array<i32>} : memref<2x2x128xf32, #tpu.memory_space<vmem>>, vector<1x2x128xf32>,
    %c0_139 = arith.constant 0 : index
    %c0_140 = arith.constant 0 : index
    %c0_141 = arith.constant 0 : index
    %436 = vector.load %arg12[%c0_139, %c0_140, %c0_141] : memref<2x2x128xf32, #tpu.memory_space<vmem>>, vector<1x2x128xf32>
    %437 = vector.shape_cast %436 : vector<1x2x128xf32> to vector<2x128xf32>
    %438 = vector.shape_cast %398 : vector<2x128xf32> to vector<1x2x128xf32>
    tpu.vector_store %arg12[%c0_139, %c0_140, %c0_141], %438 {strides = array<i32>} : memref<2x2x128xf32, #tpu.memory_space<vmem>>, vector<1x2x128xf32>,
    %c1_142 = arith.constant 1 : index
    %c0_143 = arith.constant 0 : index
    %c0_144 = arith.constant 0 : index
    %439 = vector.load %arg12[%c1_142, %c0_143, %c0_144] : memref<2x2x128xf32, #tpu.memory_space<vmem>>, vector<1x2x128xf32>
    %440 = vector.shape_cast %439 : vector<1x2x128xf32> to vector<2x128xf32>
    %441 = vector.shape_cast %422 : vector<2x128xf32> to vector<1x2x128xf32>
    tpu.vector_store %arg12[%c1_142, %c0_143, %c0_144], %441 {strides = array<i32>} : memref<2x2x128xf32, #tpu.memory_space<vmem>>, vector<1x2x128xf32>,
    %c0_145 = arith.constant 0 : index
    %c0_146 = arith.constant 0 : index
    %c0_147 = arith.constant 0 : index
    %442 = vector.load %arg13[%c0_145, %c0_146, %c0_147] : memref<8x2x128xbf16, #tpu.memory_space<vmem>>, vector<8x2x128xbf16>
    %443 = tpu.transpose %442, [1, 0, 2] : vector<8x2x128xbf16> -> vector<2x8x128xbf16>
    %444 = vector.shape_cast %443 : vector<2x8x128xbf16> to vector<16x128xbf16>
    %c0_148 = arith.constant 0 : index
    %c0_149 = arith.constant 0 : index
    %445 = vector.load %arg6[%c0_148, %c0_149] : memref<128x32xbf16, #tpu.memory_space<vmem>>, vector<128x32xbf16>
    %cst_150 = arith.constant dense<0.000000e+00> : vector<16x32xf32>
    %446 = tpu.matmul %444, %445, %cst_150 {dimension_numbers = #tpu.dot_dimension_numbers<[1], [0], [0], [1], [0, 0, 1, 1], [], []>} : vector<16x128xbf16>, vector<128x32xbf16>, vector<16x32xf32> -> vector<16x32xf32>
    %c0_151 = arith.constant 0 : index
    %c0_152 = arith.constant 0 : index
    %447 = vector.load %arg7[%c0_151, %c0_152] : memref<1x32xf32, #tpu.memory_space<vmem>>, vector<1x32xf32>
    %448 = vector.broadcast %447 : vector<1x32xf32> to vector<16x32xf32>
    %449 = arith.addf %446, %448 : vector<16x32xf32>
    %450 = vector.shape_cast %449 : vector<16x32xf32> to vector<2x8x32xf32>
    %c0_153 = arith.constant 0 : index
    %c0_154 = arith.constant 0 : index
    %c0_155 = arith.constant 0 : index
    %451 = vector.load %arg10[%c0_153, %c0_154, %c0_155] : memref<2x8x32xf32, #tpu.memory_space<vmem>>, vector<2x8x32xf32>
    tpu.vector_store %arg10[%c0_153, %c0_154, %c0_155], %450 {strides = array<i32>} : memref<2x8x32xf32, #tpu.memory_space<vmem>>, vector<2x8x32xf32>,
    return
  }
  func.func @transform_0(%arg0: i32) -> (i32, i32, i32) {
    %c0_i32 = arith.constant 0 : i32
    %c0_i32_0 = arith.constant 0 : i32
    %c0_i32_1 = arith.constant 0 : i32
    return %arg0, %c0_i32, %c0_i32_0 : i32, i32, i32
  }
  func.func @transform_1(%arg0: i32) -> (i32, i32) {
    %c0_i32 = arith.constant 0 : i32
    %c0_i32_0 = arith.constant 0 : i32
    %c0_i32_1 = arith.constant 0 : i32
    return %c0_i32, %c0_i32_0 : i32, i32
  }
  func.func @transform_2(%arg0: i32) -> (i32, i32) {
    %c0_i32 = arith.constant 0 : i32
    %c0_i32_0 = arith.constant 0 : i32
    %c0_i32_1 = arith.constant 0 : i32
    return %c0_i32, %c0_i32_0 : i32, i32
  }
  func.func @transform_3(%arg0: i32) -> (i32, i32) {
    %c0_i32 = arith.constant 0 : i32
    %c0_i32_0 = arith.constant 0 : i32
    %c0_i32_1 = arith.constant 0 : i32
    return %c0_i32, %c0_i32_0 : i32, i32
  }
  func.func @transform_4(%arg0: i32) -> (i32, i32) {
    %c0_i32 = arith.constant 0 : i32
    %c0_i32_0 = arith.constant 0 : i32
    %c0_i32_1 = arith.constant 0 : i32
    return %c0_i32, %c0_i32_0 : i32, i32
  }
  func.func @transform_5(%arg0: i32) -> (i32, i32) {
    %c0_i32 = arith.constant 0 : i32
    %c0_i32_0 = arith.constant 0 : i32
    %c0_i32_1 = arith.constant 0 : i32
    return %c0_i32, %c0_i32_0 : i32, i32
  }
  func.func @transform_6(%arg0: i32) -> (i32, i32) {
    %c0_i32 = arith.constant 0 : i32
    %c0_i32_0 = arith.constant 0 : i32
    %c0_i32_1 = arith.constant 0 : i32
    return %c0_i32, %c0_i32_0 : i32, i32
  }
  func.func @transform_7(%arg0: i32) -> (i32, i32, i32) {
    %c0_i32 = arith.constant 0 : i32
    %c0_i32_0 = arith.constant 0 : i32
    %c0_i32_1 = arith.constant 0 : i32
    %c0_i32_2 = arith.constant 0 : i32
    return %c0_i32, %c0_i32_0, %c0_i32_1 : i32, i32, i32
  }
  func.func @transform_8(%arg0: i32) -> (i32, i32, i32) {
    %c0_i32 = arith.constant 0 : i32
    %c0_i32_0 = arith.constant 0 : i32
    %c0_i32_1 = arith.constant 0 : i32
    %c0_i32_2 = arith.constant 0 : i32
    return %c0_i32, %c0_i32_0, %c0_i32_1 : i32, i32, i32
  }
  func.func @transform_9(%arg0: i32) -> (i32, i32, i32) {
    %c0_i32 = arith.constant 0 : i32
    %c0_i32_0 = arith.constant 0 : i32
    %c0_i32_1 = arith.constant 0 : i32
    return %c0_i32, %arg0, %c0_i32_0 : i32, i32, i32
  }
  func.func @transform_10(%arg0: i32) -> (i32, i32, i32) {
    %c0_i32 = arith.constant 0 : i32
    %c0_i32_0 = arith.constant 0 : i32
    %c0_i32_1 = arith.constant 0 : i32
    %c0_i32_2 = arith.constant 0 : i32
    return %c0_i32, %c0_i32_0, %c0_i32_1 : i32, i32, i32
  }
  func.func @transform_11(%arg0: i32) -> (i32, i32, i32) {
    %c0_i32 = arith.constant 0 : i32
    %c0_i32_0 = arith.constant 0 : i32
    %c0_i32_1 = arith.constant 0 : i32
    %c0_i32_2 = arith.constant 0 : i32
    return %c0_i32, %c0_i32_0, %c0_i32_1 : i32, i32, i32
  }
}

</mosaic_0001>

<llo_original>
// kernel: conditional_lstm_forward.1
$region0: #{conditional_lstm_forward.1}
  #allocation0 [shape = 'u32[]', space=smem, size = 0x4, offset = 0x4, fixed_abs, tag = 'smem constant byte address 0x4 - core index']
  #allocation1 [shape = 'u32[144,128]{1,0:T(1,128)}', space=vmem, size = 0x12000, scoped, tag = 'internal scratch']
  #allocation2 [shape = 'bf16[8,2,128]{2,1,0:T(2,128)(2,1)}', space=vmem, size = 0x1000, scoped, tag = 'scratch operand']
  %s0 = inlined_call_operand.vmem [shape: f32[8,2,512], index: 0, kind: input, shape index: {}]
  %s1 = inlined_call_operand.vmem [shape: bf16[128,512], index: 1, kind: input, shape index: {}]
  %s2 = inlined_call_operand.vmem [shape: bf16[128,512], index: 2, kind: input, shape index: {}]
  %s3 = inlined_call_operand.vmem [shape: bf16[128,512], index: 3, kind: input, shape index: {}]
  %s4 = inlined_call_operand.vmem [shape: f32[1,512], index: 4, kind: input, shape index: {}]
  %s5 = inlined_call_operand.vmem [shape: bf16[128,32], index: 5, kind: input, shape index: {}]
  %s6 = inlined_call_operand.vmem [shape: f32[1,32], index: 6, kind: input, shape index: {}]
  %s7 = inlined_call_operand.vmem [shape: f32[2,2,128], index: 7, kind: input, shape index: {}, may-alias: {7,8}]
  %s8 = inlined_call_operand.vmem [shape: f32[2,2,128], index: 8, kind: input, shape index: {}, may-alias: {7,8}]
  %s9 = inlined_call_operand.hbm [shape: f32[2,8,32], index: 9, kind: output, shape index: {0}]
  %s10 = inlined_call_operand.hbm [shape: f32[2,2,128], index: 10, kind: output, shape index: {1}]
  %s11 = inlined_call_operand.hbm [shape: f32[2,2,128], index: 11, kind: output, shape index: {2}]
  %12 = xla_tuple %s9, %s10, %s11
  %s13 = sld [smem:[#allocation0]]
  $region66: #{conditional_lstm_forward.1} parent=0
    _
  %s15 = ssub.s32 1, %s13
  %s16 = scalar_select 0, %s15, %s13
  $region1: #{conditional_lstm_forward.1} parent=0
    #allocation3 [shape = 'u8[8192]{0}', space=vmem, size = 0x2000, scoped, tag = 'output window, operand 0, single buffered']
    #allocation4 [shape = 's32[1]{0}', space=sflag, size = 0x4, scoped, tag = 'scoped memory for conditional_lstm_forward.1']
    #allocation5 [shape = 'u8[2048]{0}', space=vmem, size = 0x800, scoped, tag = 'output window, operand 1, single buffered']
    #allocation6 [shape = 's32[1]{0}', space=sflag, size = 0x4, scoped, tag = 'scoped memory for conditional_lstm_forward.1']
    #allocation7 [shape = 'u8[2048]{0}', space=vmem, size = 0x800, scoped, tag = 'output window, operand 2, single buffered']
    %17 = vsyncpa [#allocation4], 0
    %18 = vsyncpa [#allocation6], 0
    // Predicated region
    $region2: #{conditional_lstm_forward.1} parent=1 // pred_check
      _
    $region3: #{conditional_lstm_forward.1} parent=1 // pred_check_branch
      %20 = sbr.rel (0) target = $region5
    $region4: #{conditional_lstm_forward.1} parent=1 // pred_region
      _
    $region5: #{conditional_lstm_forward.1} parent=1 // pred_fallthru
      _
    // Predicated region
    $region6: #{conditional_lstm_forward.1} parent=1 // pred_check
      _
    $region7: #{conditional_lstm_forward.1} parent=1 // pred_check_branch
      %22 = sbr.rel (0) target = $region9
    $region8: #{conditional_lstm_forward.1} parent=1 // pred_region
      _
    $region9: #{conditional_lstm_forward.1} parent=1 // pred_fallthru
      _
    // Predicated region
    $region10: #{conditional_lstm_forward.1} parent=1 // pred_check
      _
    $region11: #{conditional_lstm_forward.1} parent=1 // pred_check_branch
      %24 = sbr.rel (0) target = $region13
    $region12: #{conditional_lstm_forward.1} parent=1 // pred_region
      _
    $region13: #{conditional_lstm_forward.1} parent=1 // pred_fallthru
      _
    // Predicated region
    $region14: #{conditional_lstm_forward.1} parent=1 // pred_check
      _
    $region15: #{conditional_lstm_forward.1} parent=1 // pred_check_branch
      %26 = sbr.rel (0) target = $region17
    $region16: #{conditional_lstm_forward.1} parent=1 // pred_region
      _
    $region17: #{conditional_lstm_forward.1} parent=1 // pred_fallthru
      _
    // Predicated region
    $region18: #{conditional_lstm_forward.1} parent=1 // pred_check
      _
    $region19: #{conditional_lstm_forward.1} parent=1 // pred_check_branch
      %28 = sbr.rel (0) target = $region21
    $region20: #{conditional_lstm_forward.1} parent=1 // pred_region
      _
    $region21: #{conditional_lstm_forward.1} parent=1 // pred_fallthru
      _
    // Predicated region
    $region22: #{conditional_lstm_forward.1} parent=1 // pred_check
      _
    $region23: #{conditional_lstm_forward.1} parent=1 // pred_check_branch
      %30 = sbr.rel (0) target = $region25
    $region24: #{conditional_lstm_forward.1} parent=1 // pred_region
      _
    $region25: #{conditional_lstm_forward.1} parent=1 // pred_fallthru
      _
    // Predicated region
    $region26: #{conditional_lstm_forward.1} parent=1 // pred_check
      _
    $region27: #{conditional_lstm_forward.1} parent=1 // pred_check_branch
      %32 = sbr.rel (0) target = $region29
    $region28: #{conditional_lstm_forward.1} parent=1 // pred_region
      _
    $region29: #{conditional_lstm_forward.1} parent=1 // pred_fallthru
      _
    // Predicated region
    $region30: #{conditional_lstm_forward.1} parent=1 // pred_check
      _
    $region31: #{conditional_lstm_forward.1} parent=1 // pred_check_branch
      %34 = sbr.rel (0) target = $region33
    $region32: #{conditional_lstm_forward.1} parent=1 // pred_region
      _
    $region33: #{conditional_lstm_forward.1} parent=1 // pred_fallthru
      _
    // Predicated region
    $region34: #{conditional_lstm_forward.1} parent=1 // pred_check
      _
    $region35: #{conditional_lstm_forward.1} parent=1 // pred_check_branch
      %36 = sbr.rel (0) target = $region37
    $region36: #{conditional_lstm_forward.1} parent=1 // pred_region
      _
    $region37: #{conditional_lstm_forward.1} parent=1 // pred_fallthru
      _
    %p38 = scmp.eq.s32.totalorder 0, 0
    // Predicated region
    $region38: #{conditional_lstm_forward.1} parent=1 // pred_check
      %p39 = pneg %p38
    $region39: #{conditional_lstm_forward.1} parent=1 // pred_check_branch
      %41 = sbr.rel (%p39) target = $region41
    $region40: #{conditional_lstm_forward.1} parent=1 // pred_region
      %v42 = vld [vmem:[%s7] sm:$0x3]
      %v43 = vld [vmem:[%s7 + $0x2] sm:$0x3]
      %44 = vst [vmem:[#allocation5] sm:$0x3] %v42
      %45 = vst [vmem:[#allocation5 + $0x2] sm:$0x3] %v43
      %v46 = vld [vmem:[%s8] sm:$0x3]
      %v47 = vld [vmem:[%s8 + $0x2] sm:$0x3]
      %48 = vst [vmem:[#allocation7] sm:$0x3] %v46
      %49 = vst [vmem:[#allocation7 + $0x2] sm:$0x3] %v47
    $region41: #{conditional_lstm_forward.1} parent=1 // pred_fallthru
      _
    %v50 = vld [vmem:[%s4] sm:$0xf]
    %v52 = vlaneseq
    %v53 = vshrl.u32 %v52, 7
    %v54 = vsub.s32 0, %v53
    %v55 = vrot.slane %v50, %v54
    %v56 = vlaneseq
    %v57 = vshrl.u32 %v56, 7
    %v58 = vsub.s32 1, %v57
    %v59 = vrot.slane %v50, %v58
    %v60 = vlaneseq
    %v61 = vshrl.u32 %v60, 7
    %v62 = vsub.s32 2, %v61
    %v63 = vrot.slane %v50, %v62
    %v64 = vlaneseq
    %v65 = vshrl.u32 %v64, 7
    %v66 = vsub.s32 3, %v65
    %v67 = vrot.slane %v50, %v66
    %v72 = vld [vmem:[#allocation5] sm:$0x3]
    %v73 = vld [vmem:[#allocation7] sm:$0x3]
    %s74 = scalar_lea.vmem [#allocation5], 2
    %v75 = vld [vmem:[%s74] sm:$0x3]
    %s76 = scalar_lea.vmem [#allocation7], 2
    %v77 = vld [vmem:[%s76] sm:$0x3]
    %v78 = vld [vmem:[%s0] sm:$0xff]
    %v79 = vpack.c.bf16 %v72, %v72
    %v80 = vld [vmem:[%s1] sm:$0xff]
    %v81 = vld [vmem:[%s1 + $0x8] sm:$0xff]
    %v82 = vld [vmem:[%s1 + $0x10] sm:$0xff]
    %v83 = vld [vmem:[%s1 + $0x18] sm:$0xff]
    %v84 = vld [vmem:[%s1 + $0x20] sm:$0xff]
    %v85 = vld [vmem:[%s1 + $0x28] sm:$0xff]
    %v86 = vld [vmem:[%s1 + $0x30] sm:$0xff]
    %v87 = vld [vmem:[%s1 + $0x38] sm:$0xff]
    %v88 = vld [vmem:[%s1 + $0x40] sm:$0xff]
    %v89 = vld [vmem:[%s1 + $0x48] sm:$0xff]
    %v90 = vld [vmem:[%s1 + $0x50] sm:$0xff]
    %v91 = vld [vmem:[%s1 + $0x58] sm:$0xff]
    %v92 = vld [vmem:[%s1 + $0x60] sm:$0xff]
    %v93 = vld [vmem:[%s1 + $0x68] sm:$0xff]
    %v94 = vld [vmem:[%s1 + $0x70] sm:$0xff]
    %v95 = vld [vmem:[%s1 + $0x78] sm:$0xff]
    %v96 = vld [vmem:[%s1 + $0x80] sm:$0xff]
    %v97 = vld [vmem:[%s1 + $0x88] sm:$0xff]
    %v98 = vld [vmem:[%s1 + $0x90] sm:$0xff]
    %v99 = vld [vmem:[%s1 + $0x98] sm:$0xff]
    %v100 = vld [vmem:[%s1 + $0xa0] sm:$0xff]
    %v101 = vld [vmem:[%s1 + $0xa8] sm:$0xff]
    %v102 = vld [vmem:[%s1 + $0xb0] sm:$0xff]
    %v103 = vld [vmem:[%s1 + $0xb8] sm:$0xff]
    %v104 = vld [vmem:[%s1 + $0xc0] sm:$0xff]
    %v105 = vld [vmem:[%s1 + $0xc8] sm:$0xff]
    %v106 = vld [vmem:[%s1 + $0xd0] sm:$0xff]
    %v107 = vld [vmem:[%s1 + $0xd8] sm:$0xff]
    %v108 = vld [vmem:[%s1 + $0xe0] sm:$0xff]
    %v109 = vld [vmem:[%s1 + $0xe8] sm:$0xff]
    %v110 = vld [vmem:[%s1 + $0xf0] sm:$0xff]
    %v111 = vld [vmem:[%s1 + $0xf8] sm:$0xff]
    %v144 = vunpack.c.l.b16 %v80
    %v145 = vunpack.c.h.b16 %v80
    %v146 = vunpack.c.l.b16 %v81
    %v147 = vunpack.c.h.b16 %v81
    %v148 = vunpack.c.l.b16 %v82
    %v149 = vunpack.c.h.b16 %v82
    %v150 = vunpack.c.l.b16 %v83
    %v151 = vunpack.c.h.b16 %v83
    %v152 = vunpack.c.l.b16 %v84
    %v153 = vunpack.c.h.b16 %v84
    %v154 = vunpack.c.l.b16 %v85
    %v155 = vunpack.c.h.b16 %v85
    %v156 = vunpack.c.l.b16 %v86
    %v157 = vunpack.c.h.b16 %v86
    %v158 = vunpack.c.l.b16 %v87
    %v159 = vunpack.c.h.b16 %v87
    %v160 = vunpack.c.l.b16 %v88
    %v161 = vunpack.c.h.b16 %v88
    %v162 = vunpack.c.l.b16 %v89
    %v163 = vunpack.c.h.b16 %v89
    %v164 = vunpack.c.l.b16 %v90
    %v165 = vunpack.c.h.b16 %v90
    %v166 = vunpack.c.l.b16 %v91
    %v167 = vunpack.c.h.b16 %v91
    %v168 = vunpack.c.l.b16 %v92
    %v169 = vunpack.c.h.b16 %v92
    %v170 = vunpack.c.l.b16 %v93
    %v171 = vunpack.c.h.b16 %v93
    %v172 = vunpack.c.l.b16 %v94
    %v173 = vunpack.c.h.b16 %v94
    %v174 = vunpack.c.l.b16 %v95
    %v175 = vunpack.c.h.b16 %v95
    %v176 = vunpack.c.l.b16 %v96
    %v177 = vunpack.c.h.b16 %v96
    %v178 = vunpack.c.l.b16 %v97
    %v179 = vunpack.c.h.b16 %v97
    %v180 = vunpack.c.l.b16 %v98
    %v181 = vunpack.c.h.b16 %v98
    %v182 = vunpack.c.l.b16 %v99
    %v183 = vunpack.c.h.b16 %v99
    %v184 = vunpack.c.l.b16 %v100
    %v185 = vunpack.c.h.b16 %v100
    %v186 = vunpack.c.l.b16 %v101
    %v187 = vunpack.c.h.b16 %v101
    %v188 = vunpack.c.l.b16 %v102
    %v189 = vunpack.c.h.b16 %v102
    %v190 = vunpack.c.l.b16 %v103
    %v191 = vunpack.c.h.b16 %v103
    %v192 = vunpack.c.l.b16 %v104
    %v193 = vunpack.c.h.b16 %v104
    %v194 = vunpack.c.l.b16 %v105
    %v195 = vunpack.c.h.b16 %v105
    %v196 = vunpack.c.l.b16 %v106
    %v197 = vunpack.c.h.b16 %v106
    %v198 = vunpack.c.l.b16 %v107
    %v199 = vunpack.c.h.b16 %v107
    %v200 = vunpack.c.l.b16 %v108
    %v201 = vunpack.c.h.b16 %v108
    %v202 = vunpack.c.l.b16 %v109
    %v203 = vunpack.c.h.b16 %v109
    %v204 = vunpack.c.l.b16 %v110
    %v205 = vunpack.c.h.b16 %v110
    %v206 = vunpack.c.l.b16 %v111
    %v207 = vunpack.c.h.b16 %v111
    %v208 = vpack.c.b16 %v148, %v144
    %v209 = vpack.c.b16 %v149, %v145
    %v210 = vpack.c.b16 %v150, %v146
    %v211 = vpack.c.b16 %v151, %v147
    %v212 = vpack.c.b16 %v156, %v152
    %v213 = vpack.c.b16 %v157, %v153
    %v214 = vpack.c.b16 %v158, %v154
    %v215 = vpack.c.b16 %v159, %v155
    %v216 = vpack.c.b16 %v164, %v160
    %v217 = vpack.c.b16 %v165, %v161
    %v218 = vpack.c.b16 %v166, %v162
    %v219 = vpack.c.b16 %v167, %v163
    %v220 = vpack.c.b16 %v172, %v168
    %v221 = vpack.c.b16 %v173, %v169
    %v222 = vpack.c.b16 %v174, %v170
    %v223 = vpack.c.b16 %v175, %v171
    %v224 = vpack.c.b16 %v180, %v176
    %v225 = vpack.c.b16 %v181, %v177
    %v226 = vpack.c.b16 %v182, %v178
    %v227 = vpack.c.b16 %v183, %v179
    %v228 = vpack.c.b16 %v188, %v184
    %v229 = vpack.c.b16 %v189, %v185
    %v230 = vpack.c.b16 %v190, %v186
    %v231 = vpack.c.b16 %v191, %v187
    %v232 = vpack.c.b16 %v196, %v192
    %v233 = vpack.c.b16 %v197, %v193
    %v234 = vpack.c.b16 %v198, %v194
    %v235 = vpack.c.b16 %v199, %v195
    %v236 = vpack.c.b16 %v204, %v200
    %v237 = vpack.c.b16 %v205, %v201
    %v238 = vpack.c.b16 %v206, %v202
    %v239 = vpack.c.b16 %v207, %v203
    %272 = vmatprep.subr.bf16.mxu0 %v209
    %273 = vmatpush1.bf16.msra.mxu0 %v208
    %274 = vmatprep.subr.bf16.mxu0 %v213
    %275 = vmatpush1.bf16.msra.mxu0 %v212
    %276 = vmatprep.subr.bf16.mxu0 %v217
    %277 = vmatpush1.bf16.msra.mxu0 %v216
    %278 = vmatprep.subr.bf16.mxu0 %v221
    %279 = vmatpush1.bf16.msra.mxu0 %v220
    %280 = vmatprep.subr.bf16.mxu0 %v225
    %281 = vmatpush1.bf16.msra.mxu0 %v224
    %282 = vmatprep.subr.bf16.mxu0 %v229
    %283 = vmatpush1.bf16.msra.mxu0 %v228
    %284 = vmatprep.subr.bf16.mxu0 %v233
    %285 = vmatpush1.bf16.msra.mxu0 %v232
    %286 = vmatprep.subr.bf16.mxu0 %v237
    %287 = vmatpush1.bf16.msra.mxu0 %v236
    %288 = vmatprep.subr.bf16.mxu0 0
    %289 = vmatpush1.bf16.msra.mxu0 0
    %290 = vmatprep.subr.bf16.mxu0 0
    %291 = vmatpush1.bf16.msra.mxu0 0
    %292 = vmatprep.subr.bf16.mxu0 0
    %293 = vmatpush1.bf16.msra.mxu0 0
    %294 = vmatprep.subr.bf16.mxu0 0
    %295 = vmatpush1.bf16.msra.mxu0 0
    %296 = vmatprep.subr.bf16.mxu0 0
    %297 = vmatpush1.bf16.msra.mxu0 0
    %298 = vmatprep.subr.bf16.mxu0 0
    %299 = vmatpush1.bf16.msra.mxu0 0
    %300 = vmatprep.subr.bf16.mxu0 0
    %301 = vmatpush1.bf16.msra.mxu0 0
    %302 = vmatprep.subr.bf16.mxu0 0
    %303 = vmatpush1.bf16.msra.mxu0 0
    %304 = vmatprep.mubr.bf16.mxu0 0
    %305 = vmatmul.mubr.bf16.gmra.mrb[0].mxu0 %v79
    %v306 = vpop.f32.mrb[0].mxu0
    %v307 = vadd.f32 0.0, %v306
    %v308 = vpop.f32.mrb[0].mxu0
    %v309 = vadd.f32 0.0, %v308
    %v310 = vpop.f32.mrb[0].mxu0
    %v311 = vpop.f32.mrb[0].mxu0
    %312 = vdwg.mxu0
    %313 = vmatprep.subr.bf16.mxu0 %v211
    %314 = vmatpush1.bf16.msra.mxu0 %v210
    %315 = vmatprep.subr.bf16.mxu0 %v215
    %316 = vmatpush1.bf16.msra.mxu0 %v214
    %317 = vmatprep.subr.bf16.mxu0 %v219
    %318 = vmatpush1.bf16.msra.mxu0 %v218
    %319 = vmatprep.subr.bf16.mxu0 %v223
    %320 = vmatpush1.bf16.msra.mxu0 %v222
    %321 = vmatprep.subr.bf16.mxu0 %v227
    %322 = vmatpush1.bf16.msra.mxu0 %v226
    %323 = vmatprep.subr.bf16.mxu0 %v231
    %324 = vmatpush1.bf16.msra.mxu0 %v230
    %325 = vmatprep.subr.bf16.mxu0 %v235
    %326 = vmatpush1.bf16.msra.mxu0 %v234
    %327 = vmatprep.subr.bf16.mxu0 %v239
    %328 = vmatpush1.bf16.msra.mxu0 %v238
    %329 = vmatprep.subr.bf16.mxu0 0
    %330 = vmatpush1.bf16.msra.mxu0 0
    %331 = vmatprep.subr.bf16.mxu0 0
    %332 = vmatpush1.bf16.msra.mxu0 0
    %333 = vmatprep.subr.bf16.mxu0 0
    %334 = vmatpush1.bf16.msra.mxu0 0
    %335 = vmatprep.subr.bf16.mxu0 0
    %336 = vmatpush1.bf16.msra.mxu0 0
    %337 = vmatprep.subr.bf16.mxu0 0
    %338 = vmatpush1.bf16.msra.mxu0 0
    %339 = vmatprep.subr.bf16.mxu0 0
    %340 = vmatpush1.bf16.msra.mxu0 0
    %341 = vmatprep.subr.bf16.mxu0 0
    %342 = vmatpush1.bf16.msra.mxu0 0
    %343 = vmatprep.subr.bf16.mxu0 0
    %344 = vmatpush1.bf16.msra.mxu0 0
    %345 = vmatprep.mubr.bf16.mxu0 0
    %346 = vmatmul.mubr.bf16.gmra.mrb[0].mxu0 %v79
    %v347 = vpop.f32.mrb[0].mxu0
    %v348 = vadd.f32 0.0, %v347
    %v349 = vpop.f32.mrb[0].mxu0
    %v350 = vadd.f32 0.0, %v349
    %v351 = vpop.f32.mrb[0].mxu0
    %v352 = vpop.f32.mrb[0].mxu0
    %353 = vdwg.mxu0
    %v358 = vcombine.low %v307, %v309
    %v359 = vcombine.low %v348, %v350
    %v361 = vunpack.c.l.s4 1983009808
    %v362 = vunpack.c.0.s8 %v361
    %v363 = vlaneseq
    %v364 = vshrl.u32 %v363, 7
    %v365 = vsub.s32 %v362, %v364
    %v366 = vrot.slane %v358, %v365
    %v368 = vunpack.c.l.s4 1983009808
    %v369 = vunpack.c.0.s8 %v368
    %v370 = vlaneseq
    %v371 = vshrl.u32 %v370, 7
    %v372 = vsub.s32 %v369, %v371
    %v373 = vrot.slane %v359, %v372
    %v374 = vcombine.low %v366, %v373
    %v376 = vadd.f32 %v78, %v374
    %v377 = vxor.u32 %v376, 2147483648
    %v378 = vmul.f32 %v377, 1.442695
    %v379 = vpow.pop %v378
    %v380 = vadd.f32 %v379, 1.0
    %v381 = vrcp.pop %v380
    %v382 = vmul.f32 1.0, %v381
    %v384 = vrot.slane %v376, 6
    %v386 = vtanh.pop %v384
    %v388 = vrot.slane %v382, 2
    %v390 = vmul.f32 %v388, %v73
    %v391 = vmul.f32 %v382, %v386
    %v392 = vadd.f32 %v390, %v391
    %v393 = vtanh.pop %v392
    %v394 = vrot.slane %v382, 4
    %v396 = vmul.f32 %v394, %v393
    %v397 = vpack.c.bf16 %v396, %v396
    %v398 = vld [vmem:[%s2] sm:$0xff]
    %v399 = vld [vmem:[%s2 + $0x8] sm:$0xff]
    %v400 = vld [vmem:[%s2 + $0x10] sm:$0xff]
    %v401 = vld [vmem:[%s2 + $0x18] sm:$0xff]
    %v402 = vld [vmem:[%s2 + $0x20] sm:$0xff]
    %v403 = vld [vmem:[%s2 + $0x28] sm:$0xff]
    %v404 = vld [vmem:[%s2 + $0x30] sm:$0xff]
    %v405 = vld [vmem:[%s2 + $0x38] sm:$0xff]
    %v406 = vld [vmem:[%s2 + $0x40] sm:$0xff]
    %v407 = vld [vmem:[%s2 + $0x48] sm:$0xff]
    %v408 = vld [vmem:[%s2 + $0x50] sm:$0xff]
    %v409 = vld [vmem:[%s2 + $0x58] sm:$0xff]
    %v410 = vld [vmem:[%s2 + $0x60] sm:$0xff]
    %v411 = vld [vmem:[%s2 + $0x68] sm:$0xff]
    %v412 = vld [vmem:[%s2 + $0x70] sm:$0xff]
    %v413 = vld [vmem:[%s2 + $0x78] sm:$0xff]
    %v414 = vld [vmem:[%s2 + $0x80] sm:$0xff]
    %v415 = vld [vmem:[%s2 + $0x88] sm:$0xff]
    %v416 = vld [vmem:[%s2 + $0x90] sm:$0xff]
    %v417 = vld [vmem:[%s2 + $0x98] sm:$0xff]
    %v418 = vld [vmem:[%s2 + $0xa0] sm:$0xff]
    %v419 = vld [vmem:[%s2 + $0xa8] sm:$0xff]
    %v420 = vld [vmem:[%s2 + $0xb0] sm:$0xff]
    %v421 = vld [vmem:[%s2 + $0xb8] sm:$0xff]
    %v422 = vld [vmem:[%s2 + $0xc0] sm:$0xff]
    %v423 = vld [vmem:[%s2 + $0xc8] sm:$0xff]
    %v424 = vld [vmem:[%s2 + $0xd0] sm:$0xff]
    %v425 = vld [vmem:[%s2 + $0xd8] sm:$0xff]
    %v426 = vld [vmem:[%s2 + $0xe0] sm:$0xff]
    %v427 = vld [vmem:[%s2 + $0xe8] sm:$0xff]
    %v428 = vld [vmem:[%s2 + $0xf0] sm:$0xff]
    %v429 = vld [vmem:[%s2 + $0xf8] sm:$0xff]
    %v430 = vpack.c.bf16 %v75, %v75
    %v431 = vld [vmem:[%s3] sm:$0xff]
    %v432 = vld [vmem:[%s3 + $0x8] sm:$0xff]
    %v433 = vld [vmem:[%s3 + $0x10] sm:$0xff]
    %v434 = vld [vmem:[%s3 + $0x18] sm:$0xff]
    %v435 = vld [vmem:[%s3 + $0x20] sm:$0xff]
    %v436 = vld [vmem:[%s3 + $0x28] sm:$0xff]
    %v437 = vld [vmem:[%s3 + $0x30] sm:$0xff]
    %v438 = vld [vmem:[%s3 + $0x38] sm:$0xff]
    %v439 = vld [vmem:[%s3 + $0x40] sm:$0xff]
    %v440 = vld [vmem:[%s3 + $0x48] sm:$0xff]
    %v441 = vld [vmem:[%s3 + $0x50] sm:$0xff]
    %v442 = vld [vmem:[%s3 + $0x58] sm:$0xff]
    %v443 = vld [vmem:[%s3 + $0x60] sm:$0xff]
    %v444 = vld [vmem:[%s3 + $0x68] sm:$0xff]
    %v445 = vld [vmem:[%s3 + $0x70] sm:$0xff]
    %v446 = vld [vmem:[%s3 + $0x78] sm:$0xff]
    %v447 = vld [vmem:[%s3 + $0x80] sm:$0xff]
    %v448 = vld [vmem:[%s3 + $0x88] sm:$0xff]
    %v449 = vld [vmem:[%s3 + $0x90] sm:$0xff]
    %v450 = vld [vmem:[%s3 + $0x98] sm:$0xff]
    %v451 = vld [vmem:[%s3 + $0xa0] sm:$0xff]
    %v452 = vld [vmem:[%s3 + $0xa8] sm:$0xff]
    %v453 = vld [vmem:[%s3 + $0xb0] sm:$0xff]
    %v454 = vld [vmem:[%s3 + $0xb8] sm:$0xff]
    %v455 = vld [vmem:[%s3 + $0xc0] sm:$0xff]
    %v456 = vld [vmem:[%s3 + $0xc8] sm:$0xff]
    %v457 = vld [vmem:[%s3 + $0xd0] sm:$0xff]
    %v458 = vld [vmem:[%s3 + $0xd8] sm:$0xff]
    %v459 = vld [vmem:[%s3 + $0xe0] sm:$0xff]
    %v460 = vld [vmem:[%s3 + $0xe8] sm:$0xff]
    %v461 = vld [vmem:[%s3 + $0xf0] sm:$0xff]
    %v462 = vld [vmem:[%s3 + $0xf8] sm:$0xff]
    %v495 = vunpack.c.l.b16 %v431
    %v496 = vunpack.c.h.b16 %v431
    %v497 = vunpack.c.l.b16 %v432
    %v498 = vunpack.c.h.b16 %v432
    %v499 = vunpack.c.l.b16 %v433
    %v500 = vunpack.c.h.b16 %v433
    %v501 = vunpack.c.l.b16 %v434
    %v502 = vunpack.c.h.b16 %v434
    %v503 = vunpack.c.l.b16 %v435
    %v504 = vunpack.c.h.b16 %v435
    %v505 = vunpack.c.l.b16 %v436
    %v506 = vunpack.c.h.b16 %v436
    %v507 = vunpack.c.l.b16 %v437
    %v508 = vunpack.c.h.b16 %v437
    %v509 = vunpack.c.l.b16 %v438
    %v510 = vunpack.c.h.b16 %v438
    %v511 = vunpack.c.l.b16 %v439
    %v512 = vunpack.c.h.b16 %v439
    %v513 = vunpack.c.l.b16 %v440
    %v514 = vunpack.c.h.b16 %v440
    %v515 = vunpack.c.l.b16 %v441
    %v516 = vunpack.c.h.b16 %v441
    %v517 = vunpack.c.l.b16 %v442
    %v518 = vunpack.c.h.b16 %v442
    %v519 = vunpack.c.l.b16 %v443
    %v520 = vunpack.c.h.b16 %v443
    %v521 = vunpack.c.l.b16 %v444
    %v522 = vunpack.c.h.b16 %v444
    %v523 = vunpack.c.l.b16 %v445
    %v524 = vunpack.c.h.b16 %v445
    %v525 = vunpack.c.l.b16 %v446
    %v526 = vunpack.c.h.b16 %v446
    %v527 = vunpack.c.l.b16 %v447
    %v528 = vunpack.c.h.b16 %v447
    %v529 = vunpack.c.l.b16 %v448
    %v530 = vunpack.c.h.b16 %v448
    %v531 = vunpack.c.l.b16 %v449
    %v532 = vunpack.c.h.b16 %v449
    %v533 = vunpack.c.l.b16 %v450
    %v534 = vunpack.c.h.b16 %v450
    %v535 = vunpack.c.l.b16 %v451
    %v536 = vunpack.c.h.b16 %v451
    %v537 = vunpack.c.l.b16 %v452
    %v538 = vunpack.c.h.b16 %v452
    %v539 = vunpack.c.l.b16 %v453
    %v540 = vunpack.c.h.b16 %v453
    %v541 = vunpack.c.l.b16 %v454
    %v542 = vunpack.c.h.b16 %v454
    %v543 = vunpack.c.l.b16 %v455
    %v544 = vunpack.c.h.b16 %v455
    %v545 = vunpack.c.l.b16 %v456
    %v546 = vunpack.c.h.b16 %v456
    %v547 = vunpack.c.l.b16 %v457
    %v548 = vunpack.c.h.b16 %v457
    %v549 = vunpack.c.l.b16 %v458
    %v550 = vunpack.c.h.b16 %v458
    %v551 = vunpack.c.l.b16 %v459
    %v552 = vunpack.c.h.b16 %v459
    %v553 = vunpack.c.l.b16 %v460
    %v554 = vunpack.c.h.b16 %v460
    %v555 = vunpack.c.l.b16 %v461
    %v556 = vunpack.c.h.b16 %v461
    %v557 = vunpack.c.l.b16 %v462
    %v558 = vunpack.c.h.b16 %v462
    %v559 = vpack.c.b16 %v499, %v495
    %v560 = vpack.c.b16 %v500, %v496
    %v561 = vpack.c.b16 %v501, %v497
    %v562 = vpack.c.b16 %v502, %v498
    %v563 = vpack.c.b16 %v507, %v503
    %v564 = vpack.c.b16 %v508, %v504
    %v565 = vpack.c.b16 %v509, %v505
    %v566 = vpack.c.b16 %v510, %v506
    %v567 = vpack.c.b16 %v515, %v511
    %v568 = vpack.c.b16 %v516, %v512
    %v569 = vpack.c.b16 %v517, %v513
    %v570 = vpack.c.b16 %v518, %v514
    %v571 = vpack.c.b16 %v523, %v519
    %v572 = vpack.c.b16 %v524, %v520
    %v573 = vpack.c.b16 %v525, %v521
    %v574 = vpack.c.b16 %v526, %v522
    %v575 = vpack.c.b16 %v531, %v527
    %v576 = vpack.c.b16 %v532, %v528
    %v577 = vpack.c.b16 %v533, %v529
    %v578 = vpack.c.b16 %v534, %v530
    %v579 = vpack.c.b16 %v539, %v535
    %v580 = vpack.c.b16 %v540, %v536
    %v581 = vpack.c.b16 %v541, %v537
    %v582 = vpack.c.b16 %v542, %v538
    %v583 = vpack.c.b16 %v547, %v543
    %v584 = vpack.c.b16 %v548, %v544
    %v585 = vpack.c.b16 %v549, %v545
    %v586 = vpack.c.b16 %v550, %v546
    %v587 = vpack.c.b16 %v555, %v551
    %v588 = vpack.c.b16 %v556, %v552
    %v589 = vpack.c.b16 %v557, %v553
    %v590 = vpack.c.b16 %v558, %v554
    %623 = vmatprep.subr.bf16.mxu0 %v560
    %624 = vmatpush1.bf16.msra.mxu0 %v559
    %625 = vmatprep.subr.bf16.mxu0 %v564
    %626 = vmatpush1.bf16.msra.mxu0 %v563
    %627 = vmatprep.subr.bf16.mxu0 %v568
    %628 = vmatpush1.bf16.msra.mxu0 %v567
    %629 = vmatprep.subr.bf16.mxu0 %v572
    %630 = vmatpush1.bf16.msra.mxu0 %v571
    %631 = vmatprep.subr.bf16.mxu0 %v576
    %632 = vmatpush1.bf16.msra.mxu0 %v575
    %633 = vmatprep.subr.bf16.mxu0 %v580
    %634 = vmatpush1.bf16.msra.mxu0 %v579
    %635 = vmatprep.subr.bf16.mxu0 %v584
    %636 = vmatpush1.bf16.msra.mxu0 %v583
    %637 = vmatprep.subr.bf16.mxu0 %v588
    %638 = vmatpush1.bf16.msra.mxu0 %v587
    %639 = vmatprep.subr.bf16.mxu0 0
    %640 = vmatpush1.bf16.msra.mxu0 0
    %641 = vmatprep.subr.bf16.mxu0 0
    %642 = vmatpush1.bf16.msra.mxu0 0
    %643 = vmatprep.subr.bf16.mxu0 0
    %644 = vmatpush1.bf16.msra.mxu0 0
    %645 = vmatprep.subr.bf16.mxu0 0
    %646 = vmatpush1.bf16.msra.mxu0 0
    %647 = vmatprep.subr.bf16.mxu0 0
    %648 = vmatpush1.bf16.msra.mxu0 0
    %649 = vmatprep.subr.bf16.mxu0 0
    %650 = vmatpush1.bf16.msra.mxu0 0
    %651 = vmatprep.subr.bf16.mxu0 0
    %652 = vmatpush1.bf16.msra.mxu0 0
    %653 = vmatprep.subr.bf16.mxu0 0
    %654 = vmatpush1.bf16.msra.mxu0 0
    %655 = vmatprep.mubr.bf16.mxu0 0
    %656 = vmatmul.mubr.bf16.gmra.mrb[0].mxu0 %v430
    %v657 = vpop.f32.mrb[0].mxu0
    %v658 = vadd.f32 0.0, %v657
    %v659 = vpop.f32.mrb[0].mxu0
    %v660 = vadd.f32 0.0, %v659
    %v661 = vpop.f32.mrb[0].mxu0
    %v662 = vpop.f32.mrb[0].mxu0
    %663 = vdwg.mxu0
    %664 = vmatprep.subr.bf16.mxu0 %v562
    %665 = vmatpush1.bf16.msra.mxu0 %v561
    %666 = vmatprep.subr.bf16.mxu0 %v566
    %667 = vmatpush1.bf16.msra.mxu0 %v565
    %668 = vmatprep.subr.bf16.mxu0 %v570
    %669 = vmatpush1.bf16.msra.mxu0 %v569
    %670 = vmatprep.subr.bf16.mxu0 %v574
    %671 = vmatpush1.bf16.msra.mxu0 %v573
    %672 = vmatprep.subr.bf16.mxu0 %v578
    %673 = vmatpush1.bf16.msra.mxu0 %v577
    %674 = vmatprep.subr.bf16.mxu0 %v582
    %675 = vmatpush1.bf16.msra.mxu0 %v581
    %676 = vmatprep.subr.bf16.mxu0 %v586
    %677 = vmatpush1.bf16.msra.mxu0 %v585
    %678 = vmatprep.subr.bf16.mxu0 %v590
    %679 = vmatpush1.bf16.msra.mxu0 %v589
    %680 = vmatprep.subr.bf16.mxu0 0
    %681 = vmatpush1.bf16.msra.mxu0 0
    %682 = vmatprep.subr.bf16.mxu0 0
    %683 = vmatpush1.bf16.msra.mxu0 0
    %684 = vmatprep.subr.bf16.mxu0 0
    %685 = vmatpush1.bf16.msra.mxu0 0
    %686 = vmatprep.subr.bf16.mxu0 0
    %687 = vmatpush1.bf16.msra.mxu0 0
    %688 = vmatprep.subr.bf16.mxu0 0
    %689 = vmatpush1.bf16.msra.mxu0 0
    %690 = vmatprep.subr.bf16.mxu0 0
    %691 = vmatpush1.bf16.msra.mxu0 0
    %692 = vmatprep.subr.bf16.mxu0 0
    %693 = vmatpush1.bf16.msra.mxu0 0
    %694 = vmatprep.subr.bf16.mxu0 0
    %695 = vmatpush1.bf16.msra.mxu0 0
    %696 = vmatprep.mubr.bf16.mxu0 0
    %697 = vmatmul.mubr.bf16.gmra.mrb[0].mxu0 %v430
    %v698 = vpop.f32.mrb[0].mxu0
    %v699 = vadd.f32 0.0, %v698
    %v700 = vpop.f32.mrb[0].mxu0
    %v701 = vadd.f32 0.0, %v700
    %v702 = vpop.f32.mrb[0].mxu0
    %v703 = vpop.f32.mrb[0].mxu0
    %704 = vdwg.mxu0
    %v737 = vunpack.c.l.b16 %v398
    %v738 = vunpack.c.h.b16 %v398
    %v739 = vunpack.c.l.b16 %v399
    %v740 = vunpack.c.h.b16 %v399
    %v741 = vunpack.c.l.b16 %v400
    %v742 = vunpack.c.h.b16 %v400
    %v743 = vunpack.c.l.b16 %v401
    %v744 = vunpack.c.h.b16 %v401
    %v745 = vunpack.c.l.b16 %v402
    %v746 = vunpack.c.h.b16 %v402
    %v747 = vunpack.c.l.b16 %v403
    %v748 = vunpack.c.h.b16 %v403
    %v749 = vunpack.c.l.b16 %v404
    %v750 = vunpack.c.h.b16 %v404
    %v751 = vunpack.c.l.b16 %v405
    %v752 = vunpack.c.h.b16 %v405
    %v753 = vunpack.c.l.b16 %v406
    %v754 = vunpack.c.h.b16 %v406
    %v755 = vunpack.c.l.b16 %v407
    %v756 = vunpack.c.h.b16 %v407
    %v757 = vunpack.c.l.b16 %v408
    %v758 = vunpack.c.h.b16 %v408
    %v759 = vunpack.c.l.b16 %v409
    %v760 = vunpack.c.h.b16 %v409
    %v761 = vunpack.c.l.b16 %v410
    %v762 = vunpack.c.h.b16 %v410
    %v763 = vunpack.c.l.b16 %v411
    %v764 = vunpack.c.h.b16 %v411
    %v765 = vunpack.c.l.b16 %v412
    %v766 = vunpack.c.h.b16 %v412
    %v767 = vunpack.c.l.b16 %v413
    %v768 = vunpack.c.h.b16 %v413
    %v769 = vunpack.c.l.b16 %v414
    %v770 = vunpack.c.h.b16 %v414
    %v771 = vunpack.c.l.b16 %v415
    %v772 = vunpack.c.h.b16 %v415
    %v773 = vunpack.c.l.b16 %v416
    %v774 = vunpack.c.h.b16 %v416
    %v775 = vunpack.c.l.b16 %v417
    %v776 = vunpack.c.h.b16 %v417
    %v777 = vunpack.c.l.b16 %v418
    %v778 = vunpack.c.h.b16 %v418
    %v779 = vunpack.c.l.b16 %v419
    %v780 = vunpack.c.h.b16 %v419
    %v781 = vunpack.c.l.b16 %v420
    %v782 = vunpack.c.h.b16 %v420
    %v783 = vunpack.c.l.b16 %v421
    %v784 = vunpack.c.h.b16 %v421
    %v785 = vunpack.c.l.b16 %v422
    %v786 = vunpack.c.h.b16 %v422
    %v787 = vunpack.c.l.b16 %v423
    %v788 = vunpack.c.h.b16 %v423
    %v789 = vunpack.c.l.b16 %v424
    %v790 = vunpack.c.h.b16 %v424
    %v791 = vunpack.c.l.b16 %v425
    %v792 = vunpack.c.h.b16 %v425
    %v793 = vunpack.c.l.b16 %v426
    %v794 = vunpack.c.h.b16 %v426
    %v795 = vunpack.c.l.b16 %v427
    %v796 = vunpack.c.h.b16 %v427
    %v797 = vunpack.c.l.b16 %v428
    %v798 = vunpack.c.h.b16 %v428
    %v799 = vunpack.c.l.b16 %v429
    %v800 = vunpack.c.h.b16 %v429
    %v801 = vpack.c.b16 %v741, %v737
    %v802 = vpack.c.b16 %v742, %v738
    %v803 = vpack.c.b16 %v743, %v739
    %v804 = vpack.c.b16 %v744, %v740
    %v805 = vpack.c.b16 %v749, %v745
    %v806 = vpack.c.b16 %v750, %v746
    %v807 = vpack.c.b16 %v751, %v747
    %v808 = vpack.c.b16 %v752, %v748
    %v809 = vpack.c.b16 %v757, %v753
    %v810 = vpack.c.b16 %v758, %v754
    %v811 = vpack.c.b16 %v759, %v755
    %v812 = vpack.c.b16 %v760, %v756
    %v813 = vpack.c.b16 %v765, %v761
    %v814 = vpack.c.b16 %v766, %v762
    %v815 = vpack.c.b16 %v767, %v763
    %v816 = vpack.c.b16 %v768, %v764
    %v817 = vpack.c.b16 %v773, %v769
    %v818 = vpack.c.b16 %v774, %v770
    %v819 = vpack.c.b16 %v775, %v771
    %v820 = vpack.c.b16 %v776, %v772
    %v821 = vpack.c.b16 %v781, %v777
    %v822 = vpack.c.b16 %v782, %v778
    %v823 = vpack.c.b16 %v783, %v779
    %v824 = vpack.c.b16 %v784, %v780
    %v825 = vpack.c.b16 %v789, %v785
    %v826 = vpack.c.b16 %v790, %v786
    %v827 = vpack.c.b16 %v791, %v787
    %v828 = vpack.c.b16 %v792, %v788
    %v829 = vpack.c.b16 %v797, %v793
    %v830 = vpack.c.b16 %v798, %v794
    %v831 = vpack.c.b16 %v799, %v795
    %v832 = vpack.c.b16 %v800, %v796
    %865 = vmatprep.subr.bf16.mxu0 %v802
    %866 = vmatpush1.bf16.msra.mxu0 %v801
    %867 = vmatprep.subr.bf16.mxu0 %v806
    %868 = vmatpush1.bf16.msra.mxu0 %v805
    %869 = vmatprep.subr.bf16.mxu0 %v810
    %870 = vmatpush1.bf16.msra.mxu0 %v809
    %871 = vmatprep.subr.bf16.mxu0 %v814
    %872 = vmatpush1.bf16.msra.mxu0 %v813
    %873 = vmatprep.subr.bf16.mxu0 %v818
    %874 = vmatpush1.bf16.msra.mxu0 %v817
    %875 = vmatprep.subr.bf16.mxu0 %v822
    %876 = vmatpush1.bf16.msra.mxu0 %v821
    %877 = vmatprep.subr.bf16.mxu0 %v826
    %878 = vmatpush1.bf16.msra.mxu0 %v825
    %879 = vmatprep.subr.bf16.mxu0 %v830
    %880 = vmatpush1.bf16.msra.mxu0 %v829
    %881 = vmatprep.subr.bf16.mxu0 0
    %882 = vmatpush1.bf16.msra.mxu0 0
    %883 = vmatprep.subr.bf16.mxu0 0
    %884 = vmatpush1.bf16.msra.mxu0 0
    %885 = vmatprep.subr.bf16.mxu0 0
    %886 = vmatpush1.bf16.msra.mxu0 0
    %887 = vmatprep.subr.bf16.mxu0 0
    %888 = vmatpush1.bf16.msra.mxu0 0
    %889 = vmatprep.subr.bf16.mxu0 0
    %890 = vmatpush1.bf16.msra.mxu0 0
    %891 = vmatprep.subr.bf16.mxu0 0
    %892 = vmatpush1.bf16.msra.mxu0 0
    %893 = vmatprep.subr.bf16.mxu0 0
    %894 = vmatpush1.bf16.msra.mxu0 0
    %895 = vmatprep.subr.bf16.mxu0 0
    %896 = vmatpush1.bf16.msra.mxu0 0
    %897 = vmatprep.mubr.bf16.mxu0 0
    %898 = vmatmul.mubr.bf16.gmra.mrb[0].mxu0 %v397
    %v899 = vpop.f32.mrb[0].mxu0
    %v900 = vadd.f32 %v658, %v899
    %v901 = vpop.f32.mrb[0].mxu0
    %v902 = vadd.f32 %v660, %v901
    %v903 = vpop.f32.mrb[0].mxu0
    %v904 = vpop.f32.mrb[0].mxu0
    %905 = vdwg.mxu0
    %906 = vmatprep.subr.bf16.mxu0 %v804
    %907 = vmatpush1.bf16.msra.mxu0 %v803
    %908 = vmatprep.subr.bf16.mxu0 %v808
    %909 = vmatpush1.bf16.msra.mxu0 %v807
    %910 = vmatprep.subr.bf16.mxu0 %v812
    %911 = vmatpush1.bf16.msra.mxu0 %v811
    %912 = vmatprep.subr.bf16.mxu0 %v816
    %913 = vmatpush1.bf16.msra.mxu0 %v815
    %914 = vmatprep.subr.bf16.mxu0 %v820
    %915 = vmatpush1.bf16.msra.mxu0 %v819
    %916 = vmatprep.subr.bf16.mxu0 %v824
    %917 = vmatpush1.bf16.msra.mxu0 %v823
    %918 = vmatprep.subr.bf16.mxu0 %v828
    %919 = vmatpush1.bf16.msra.mxu0 %v827
    %920 = vmatprep.subr.bf16.mxu0 %v832
    %921 = vmatpush1.bf16.msra.mxu0 %v831
    %922 = vmatprep.subr.bf16.mxu0 0
    %923 = vmatpush1.bf16.msra.mxu0 0
    %924 = vmatprep.subr.bf16.mxu0 0
    %925 = vmatpush1.bf16.msra.mxu0 0
    %926 = vmatprep.subr.bf16.mxu0 0
    %927 = vmatpush1.bf16.msra.mxu0 0
    %928 = vmatprep.subr.bf16.mxu0 0
    %929 = vmatpush1.bf16.msra.mxu0 0
    %930 = vmatprep.subr.bf16.mxu0 0
    %931 = vmatpush1.bf16.msra.mxu0 0
    %932 = vmatprep.subr.bf16.mxu0 0
    %933 = vmatpush1.bf16.msra.mxu0 0
    %934 = vmatprep.subr.bf16.mxu0 0
    %935 = vmatpush1.bf16.msra.mxu0 0
    %936 = vmatprep.subr.bf16.mxu0 0
    %937 = vmatpush1.bf16.msra.mxu0 0
    %938 = vmatprep.mubr.bf16.mxu0 0
    %939 = vmatmul.mubr.bf16.gmra.mrb[0].mxu0 %v397
    %v940 = vpop.f32.mrb[0].mxu0
    %v941 = vadd.f32 %v699, %v940
    %v942 = vpop.f32.mrb[0].mxu0
    %v943 = vadd.f32 %v701, %v942
    %v944 = vpop.f32.mrb[0].mxu0
    %v945 = vpop.f32.mrb[0].mxu0
    %946 = vdwg.mxu0
    %v947 = vadd.f32 %v900, %v55
    %v948 = vadd.f32 %v902, %v59
    %v949 = vadd.f32 %v941, %v63
    %v950 = vadd.f32 %v943, %v67
    %v951 = vxor.u32 %v947, 2147483648
    %v952 = vxor.u32 %v948, 2147483648
    %v953 = vxor.u32 %v949, 2147483648
    %v954 = vmul.f32 %v951, 1.442695
    %v955 = vpow.pop %v954
    %v956 = vmul.f32 %v952, 1.442695
    %v957 = vpow.pop %v956
    %v958 = vmul.f32 %v953, 1.442695
    %v959 = vpow.pop %v958
    %v960 = vadd.f32 %v955, 1.0
    %v961 = vadd.f32 %v957, 1.0
    %v962 = vadd.f32 %v959, 1.0
    %v963 = vrcp.pop %v960
    %v964 = vmul.f32 1.0, %v963
    %v965 = vrcp.pop %v961
    %v966 = vmul.f32 1.0, %v965
    %v967 = vrcp.pop %v962
    %v968 = vmul.f32 1.0, %v967
    %v969 = vtanh.pop %v950
    %v970 = vmul.f32 %v966, %v77
    %v971 = vmul.f32 %v964, %v969
    %v972 = vadd.f32 %v970, %v971
    %v973 = vtanh.pop %v972
    %v974 = vmul.f32 %v968, %v973
    %v975 = vpack.c.bf16 %v974, %v974
    %976 = vst [vmem:[#allocation2] sm:$0x1] %v975
    %s977 = scalar_lea.vmem %s0, 8
    %v978 = vld [vmem:[%s977] sm:$0xff]
    %v979 = vld [vmem:[%s1] sm:$0xff]
    %v980 = vld [vmem:[%s1 + $0x8] sm:$0xff]
    %v981 = vld [vmem:[%s1 + $0x10] sm:$0xff]
    %v982 = vld [vmem:[%s1 + $0x18] sm:$0xff]
    %v983 = vld [vmem:[%s1 + $0x20] sm:$0xff]
    %v984 = vld [vmem:[%s1 + $0x28] sm:$0xff]
    %v985 = vld [vmem:[%s1 + $0x30] sm:$0xff]
    %v986 = vld [vmem:[%s1 + $0x38] sm:$0xff]
    %v987 = vld [vmem:[%s1 + $0x40] sm:$0xff]
    %v988 = vld [vmem:[%s1 + $0x48] sm:$0xff]
    %v989 = vld [vmem:[%s1 + $0x50] sm:$0xff]
    %v990 = vld [vmem:[%s1 + $0x58] sm:$0xff]
    %v991 = vld [vmem:[%s1 + $0x60] sm:$0xff]
    %v992 = vld [vmem:[%s1 + $0x68] sm:$0xff]
    %v993 = vld [vmem:[%s1 + $0x70] sm:$0xff]
    %v994 = vld [vmem:[%s1 + $0x78] sm:$0xff]
    %v995 = vld [vmem:[%s1 + $0x80] sm:$0xff]
    %v996 = vld [vmem:[%s1 + $0x88] sm:$0xff]
    %v997 = vld [vmem:[%s1 + $0x90] sm:$0xff]
    %v998 = vld [vmem:[%s1 + $0x98] sm:$0xff]
    %v999 = vld [vmem:[%s1 + $0xa0] sm:$0xff]
    %v1000 = vld [vmem:[%s1 + $0xa8] sm:$0xff]
    %v1001 = vld [vmem:[%s1 + $0xb0] sm:$0xff]
    %v1002 = vld [vmem:[%s1 + $0xb8] sm:$0xff]
    %v1003 = vld [vmem:[%s1 + $0xc0] sm:$0xff]
    %v1004 = vld [vmem:[%s1 + $0xc8] sm:$0xff]
    %v1005 = vld [vmem:[%s1 + $0xd0] sm:$0xff]
    %v1006 = vld [vmem:[%s1 + $0xd8] sm:$0xff]
    %v1007 = vld [vmem:[%s1 + $0xe0] sm:$0xff]
    %v1008 = vld [vmem:[%s1 + $0xe8] sm:$0xff]
    %v1009 = vld [vmem:[%s1 + $0xf0] sm:$0xff]
    %v1010 = vld [vmem:[%s1 + $0xf8] sm:$0xff]
    %v1043 = vunpack.c.l.b16 %v979
    %v1044 = vunpack.c.h.b16 %v979
    %v1045 = vunpack.c.l.b16 %v980
    %v1046 = vunpack.c.h.b16 %v980
    %v1047 = vunpack.c.l.b16 %v981
    %v1048 = vunpack.c.h.b16 %v981
    %v1049 = vunpack.c.l.b16 %v982
    %v1050 = vunpack.c.h.b16 %v982
    %v1051 = vunpack.c.l.b16 %v983
    %v1052 = vunpack.c.h.b16 %v983
    %v1053 = vunpack.c.l.b16 %v984
    %v1054 = vunpack.c.h.b16 %v984
    %v1055 = vunpack.c.l.b16 %v985
    %v1056 = vunpack.c.h.b16 %v985
    %v1057 = vunpack.c.l.b16 %v986
    %v1058 = vunpack.c.h.b16 %v986
    %v1059 = vunpack.c.l.b16 %v987
    %v1060 = vunpack.c.h.b16 %v987
    %v1061 = vunpack.c.l.b16 %v988
    %v1062 = vunpack.c.h.b16 %v988
    %v1063 = vunpack.c.l.b16 %v989
    %v1064 = vunpack.c.h.b16 %v989
    %v1065 = vunpack.c.l.b16 %v990
    %v1066 = vunpack.c.h.b16 %v990
    %v1067 = vunpack.c.l.b16 %v991
    %v1068 = vunpack.c.h.b16 %v991
    %v1069 = vunpack.c.l.b16 %v992
    %v1070 = vunpack.c.h.b16 %v992
    %v1071 = vunpack.c.l.b16 %v993
    %v1072 = vunpack.c.h.b16 %v993
    %v1073 = vunpack.c.l.b16 %v994
    %v1074 = vunpack.c.h.b16 %v994
    %v1075 = vunpack.c.l.b16 %v995
    %v1076 = vunpack.c.h.b16 %v995
    %v1077 = vunpack.c.l.b16 %v996
    %v1078 = vunpack.c.h.b16 %v996
    %v1079 = vunpack.c.l.b16 %v997
    %v1080 = vunpack.c.h.b16 %v997
    %v1081 = vunpack.c.l.b16 %v998
    %v1082 = vunpack.c.h.b16 %v998
    %v1083 = vunpack.c.l.b16 %v999
    %v1084 = vunpack.c.h.b16 %v999
    %v1085 = vunpack.c.l.b16 %v1000
    %v1086 = vunpack.c.h.b16 %v1000
    %v1087 = vunpack.c.l.b16 %v1001
    %v1088 = vunpack.c.h.b16 %v1001
    %v1089 = vunpack.c.l.b16 %v1002
    %v1090 = vunpack.c.h.b16 %v1002
    %v1091 = vunpack.c.l.b16 %v1003
    %v1092 = vunpack.c.h.b16 %v1003
    %v1093 = vunpack.c.l.b16 %v1004
    %v1094 = vunpack.c.h.b16 %v1004
    %v1095 = vunpack.c.l.b16 %v1005
    %v1096 = vunpack.c.h.b16 %v1005
    %v1097 = vunpack.c.l.b16 %v1006
    %v1098 = vunpack.c.h.b16 %v1006
    %v1099 = vunpack.c.l.b16 %v1007
    %v1100 = vunpack.c.h.b16 %v1007
    %v1101 = vunpack.c.l.b16 %v1008
    %v1102 = vunpack.c.h.b16 %v1008
    %v1103 = vunpack.c.l.b16 %v1009
    %v1104 = vunpack.c.h.b16 %v1009
    %v1105 = vunpack.c.l.b16 %v1010
    %v1106 = vunpack.c.h.b16 %v1010
    %v1107 = vpack.c.b16 %v1047, %v1043
    %v1108 = vpack.c.b16 %v1048, %v1044
    %v1109 = vpack.c.b16 %v1049, %v1045
    %v1110 = vpack.c.b16 %v1050, %v1046
    %v1111 = vpack.c.b16 %v1055, %v1051
    %v1112 = vpack.c.b16 %v1056, %v1052
    %v1113 = vpack.c.b16 %v1057, %v1053
    %v1114 = vpack.c.b16 %v1058, %v1054
    %v1115 = vpack.c.b16 %v1063, %v1059
    %v1116 = vpack.c.b16 %v1064, %v1060
    %v1117 = vpack.c.b16 %v1065, %v1061
    %v1118 = vpack.c.b16 %v1066, %v1062
    %v1119 = vpack.c.b16 %v1071, %v1067
    %v1120 = vpack.c.b16 %v1072, %v1068
    %v1121 = vpack.c.b16 %v1073, %v1069
    %v1122 = vpack.c.b16 %v1074, %v1070
    %v1123 = vpack.c.b16 %v1079, %v1075
    %v1124 = vpack.c.b16 %v1080, %v1076
    %v1125 = vpack.c.b16 %v1081, %v1077
    %v1126 = vpack.c.b16 %v1082, %v1078
    %v1127 = vpack.c.b16 %v1087, %v1083
    %v1128 = vpack.c.b16 %v1088, %v1084
    %v1129 = vpack.c.b16 %v1089, %v1085
    %v1130 = vpack.c.b16 %v1090, %v1086
    %v1131 = vpack.c.b16 %v1095, %v1091
    %v1132 = vpack.c.b16 %v1096, %v1092
    %v1133 = vpack.c.b16 %v1097, %v1093
    %v1134 = vpack.c.b16 %v1098, %v1094
    %v1135 = vpack.c.b16 %v1103, %v1099
    %v1136 = vpack.c.b16 %v1104, %v1100
    %v1137 = vpack.c.b16 %v1105, %v1101
    %v1138 = vpack.c.b16 %v1106, %v1102
    %1171 = vmatprep.subr.bf16.mxu0 %v1108
    %1172 = vmatpush1.bf16.msra.mxu0 %v1107
    %1173 = vmatprep.subr.bf16.mxu0 %v1112
    %1174 = vmatpush1.bf16.msra.mxu0 %v1111
    %1175 = vmatprep.subr.bf16.mxu0 %v1116
    %1176 = vmatpush1.bf16.msra.mxu0 %v1115
    %1177 = vmatprep.subr.bf16.mxu0 %v1120
    %1178 = vmatpush1.bf16.msra.mxu0 %v1119
    %1179 = vmatprep.subr.bf16.mxu0 %v1124
    %1180 = vmatpush1.bf16.msra.mxu0 %v1123
    %1181 = vmatprep.subr.bf16.mxu0 %v1128
    %1182 = vmatpush1.bf16.msra.mxu0 %v1127
    %1183 = vmatprep.subr.bf16.mxu0 %v1132
    %1184 = vmatpush1.bf16.msra.mxu0 %v1131
    %1185 = vmatprep.subr.bf16.mxu0 %v1136
    %1186 = vmatpush1.bf16.msra.mxu0 %v1135
    %1187 = vmatprep.subr.bf16.mxu0 0
    %1188 = vmatpush1.bf16.msra.mxu0 0
    %1189 = vmatprep.subr.bf16.mxu0 0
    %1190 = vmatpush1.bf16.msra.mxu0 0
    %1191 = vmatprep.subr.bf16.mxu0 0
    %1192 = vmatpush1.bf16.msra.mxu0 0
    %1193 = vmatprep.subr.bf16.mxu0 0
    %1194 = vmatpush1.bf16.msra.mxu0 0
    %1195 = vmatprep.subr.bf16.mxu0 0
    %1196 = vmatpush1.bf16.msra.mxu0 0
    %1197 = vmatprep.subr.bf16.mxu0 0
    %1198 = vmatpush1.bf16.msra.mxu0 0
    %1199 = vmatprep.subr.bf16.mxu0 0
    %1200 = vmatpush1.bf16.msra.mxu0 0
    %1201 = vmatprep.subr.bf16.mxu0 0
    %1202 = vmatpush1.bf16.msra.mxu0 0
    %1203 = vmatprep.mubr.bf16.mxu0 0
    %1204 = vmatmul.mubr.bf16.gmra.mrb[0].mxu0 %v397
    %v1205 = vpop.f32.mrb[0].mxu0
    %v1206 = vadd.f32 0.0, %v1205
    %v1207 = vpop.f32.mrb[0].mxu0
    %v1208 = vadd.f32 0.0, %v1207
    %v1209 = vpop.f32.mrb[0].mxu0
    %v1210 = vpop.f32.mrb[0].mxu0
    %1211 = vdwg.mxu0
    %1212 = vmatprep.subr.bf16.mxu0 %v1110
    %1213 = vmatpush1.bf16.msra.mxu0 %v1109
    %1214 = vmatprep.subr.bf16.mxu0 %v1114
    %1215 = vmatpush1.bf16.msra.mxu0 %v1113
    %1216 = vmatprep.subr.bf16.mxu0 %v1118
    %1217 = vmatpush1.bf16.msra.mxu0 %v1117
    %1218 = vmatprep.subr.bf16.mxu0 %v1122
    %1219 = vmatpush1.bf16.msra.mxu0 %v1121
    %1220 = vmatprep.subr.bf16.mxu0 %v1126
    %1221 = vmatpush1.bf16.msra.mxu0 %v1125
    %1222 = vmatprep.subr.bf16.mxu0 %v1130
    %1223 = vmatpush1.bf16.msra.mxu0 %v1129
    %1224 = vmatprep.subr.bf16.mxu0 %v1134
    %1225 = vmatpush1.bf16.msra.mxu0 %v1133
    %1226 = vmatprep.subr.bf16.mxu0 %v1138
    %1227 = vmatpush1.bf16.msra.mxu0 %v1137
    %1228 = vmatprep.subr.bf16.mxu0 0
    %1229 = vmatpush1.bf16.msra.mxu0 0
    %1230 = vmatprep.subr.bf16.mxu0 0
    %1231 = vmatpush1.bf16.msra.mxu0 0
    %1232 = vmatprep.subr.bf16.mxu0 0
    %1233 = vmatpush1.bf16.msra.mxu0 0
    %1234 = vmatprep.subr.bf16.mxu0 0
    %1235 = vmatpush1.bf16.msra.mxu0 0
    %1236 = vmatprep.subr.bf16.mxu0 0
    %1237 = vmatpush1.bf16.msra.mxu0 0
    %1238 = vmatprep.subr.bf16.mxu0 0
    %1239 = vmatpush1.bf16.msra.mxu0 0
    %1240 = vmatprep.subr.bf16.mxu0 0
    %1241 = vmatpush1.bf16.msra.mxu0 0
    %1242 = vmatprep.subr.bf16.mxu0 0
    %1243 = vmatpush1.bf16.msra.mxu0 0
    %1244 = vmatprep.mubr.bf16.mxu0 0
    %1245 = vmatmul.mubr.bf16.gmra.mrb[0].mxu0 %v397
    %v1246 = vpop.f32.mrb[0].mxu0
    %v1247 = vadd.f32 0.0, %v1246
    %v1248 = vpop.f32.mrb[0].mxu0
    %v1249 = vadd.f32 0.0, %v1248
    %v1250 = vpop.f32.mrb[0].mxu0
    %v1251 = vpop.f32.mrb[0].mxu0
    %1252 = vdwg.mxu0
    %v1257 = vcombine.low %v1206, %v1208
    %v1258 = vcombine.low %v1247, %v1249
    %v1260 = vunpack.c.l.s4 1983009808
    %v1261 = vunpack.c.0.s8 %v1260
    %v1262 = vlaneseq
    %v1263 = vshrl.u32 %v1262, 7
    %v1264 = vsub.s32 %v1261, %v1263
    %v1265 = vrot.slane %v1257, %v1264
    %v1267 = vunpack.c.l.s4 1983009808
    %v1268 = vunpack.c.0.s8 %v1267
    %v1269 = vlaneseq
    %v1270 = vshrl.u32 %v1269, 7
    %v1271 = vsub.s32 %v1268, %v1270
    %v1272 = vrot.slane %v1258, %v1271
    %v1273 = vcombine.low %v1265, %v1272
    %v1275 = vadd.f32 %v978, %v1273
    %v1276 = vxor.u32 %v1275, 2147483648
    %v1277 = vmul.f32 %v1276, 1.442695
    %v1278 = vpow.pop %v1277
    %v1279 = vadd.f32 %v1278, 1.0
    %v1280 = vrcp.pop %v1279
    %v1281 = vmul.f32 1.0, %v1280
    %v1283 = vrot.slane %v1275, 6
    %v1285 = vtanh.pop %v1283
    %v1287 = vrot.slane %v1281, 2
    %v1289 = vmul.f32 %v1287, %v392
    %v1290 = vmul.f32 %v1281, %v1285
    %v1291 = vadd.f32 %v1289, %v1290
    %v1292 = vtanh.pop %v1291
    %v1293 = vrot.slane %v1281, 4
    %v1295 = vmul.f32 %v1293, %v1292
    %v1296 = vpack.c.bf16 %v1295, %v1295
    %v1297 = vld [vmem:[%s2] sm:$0xff]
    %v1298 = vld [vmem:[%s2 + $0x8] sm:$0xff]
    %v1299 = vld [vmem:[%s2 + $0x10] sm:$0xff]
    %v1300 = vld [vmem:[%s2 + $0x18] sm:$0xff]
    %v1301 = vld [vmem:[%s2 + $0x20] sm:$0xff]
    %v1302 = vld [vmem:[%s2 + $0x28] sm:$0xff]
    %v1303 = vld [vmem:[%s2 + $0x30] sm:$0xff]
    %v1304 = vld [vmem:[%s2 + $0x38] sm:$0xff]
    %v1305 = vld [vmem:[%s2 + $0x40] sm:$0xff]
    %v1306 = vld [vmem:[%s2 + $0x48] sm:$0xff]
    %v1307 = vld [vmem:[%s2 + $0x50] sm:$0xff]
    %v1308 = vld [vmem:[%s2 + $0x58] sm:$0xff]
    %v1309 = vld [vmem:[%s2 + $0x60] sm:$0xff]
    %v1310 = vld [vmem:[%s2 + $0x68] sm:$0xff]
    %v1311 = vld [vmem:[%s2 + $0x70] sm:$0xff]
    %v1312 = vld [vmem:[%s2 + $0x78] sm:$0xff]
    %v1313 = vld [vmem:[%s2 + $0x80] sm:$0xff]
    %v1314 = vld [vmem:[%s2 + $0x88] sm:$0xff]
    %v1315 = vld [vmem:[%s2 + $0x90] sm:$0xff]
    %v1316 = vld [vmem:[%s2 + $0x98] sm:$0xff]
    %v1317 = vld [vmem:[%s2 + $0xa0] sm:$0xff]
    %v1318 = vld [vmem:[%s2 + $0xa8] sm:$0xff]
    %v1319 = vld [vmem:[%s2 + $0xb0] sm:$0xff]
    %v1320 = vld [vmem:[%s2 + $0xb8] sm:$0xff]
    %v1321 = vld [vmem:[%s2 + $0xc0] sm:$0xff]
    %v1322 = vld [vmem:[%s2 + $0xc8] sm:$0xff]
    %v1323 = vld [vmem:[%s2 + $0xd0] sm:$0xff]
    %v1324 = vld [vmem:[%s2 + $0xd8] sm:$0xff]
    %v1325 = vld [vmem:[%s2 + $0xe0] sm:$0xff]
    %v1326 = vld [vmem:[%s2 + $0xe8] sm:$0xff]
    %v1327 = vld [vmem:[%s2 + $0xf0] sm:$0xff]
    %v1328 = vld [vmem:[%s2 + $0xf8] sm:$0xff]
    %v1329 = vld [vmem:[%s3] sm:$0xff]
    %v1330 = vld [vmem:[%s3 + $0x8] sm:$0xff]
    %v1331 = vld [vmem:[%s3 + $0x10] sm:$0xff]
    %v1332 = vld [vmem:[%s3 + $0x18] sm:$0xff]
    %v1333 = vld [vmem:[%s3 + $0x20] sm:$0xff]
    %v1334 = vld [vmem:[%s3 + $0x28] sm:$0xff]
    %v1335 = vld [vmem:[%s3 + $0x30] sm:$0xff]
    %v1336 = vld [vmem:[%s3 + $0x38] sm:$0xff]
    %v1337 = vld [vmem:[%s3 + $0x40] sm:$0xff]
    %v1338 = vld [vmem:[%s3 + $0x48] sm:$0xff]
    %v1339 = vld [vmem:[%s3 + $0x50] sm:$0xff]
    %v1340 = vld [vmem:[%s3 + $0x58] sm:$0xff]
    %v1341 = vld [vmem:[%s3 + $0x60] sm:$0xff]
    %v1342 = vld [vmem:[%s3 + $0x68] sm:$0xff]
    %v1343 = vld [vmem:[%s3 + $0x70] sm:$0xff]
    %v1344 = vld [vmem:[%s3 + $0x78] sm:$0xff]
    %v1345 = vld [vmem:[%s3 + $0x80] sm:$0xff]
    %v1346 = vld [vmem:[%s3 + $0x88] sm:$0xff]
    %v1347 = vld [vmem:[%s3 + $0x90] sm:$0xff]
    %v1348 = vld [vmem:[%s3 + $0x98] sm:$0xff]
    %v1349 = vld [vmem:[%s3 + $0xa0] sm:$0xff]
    %v1350 = vld [vmem:[%s3 + $0xa8] sm:$0xff]
    %v1351 = vld [vmem:[%s3 + $0xb0] sm:$0xff]
    %v1352 = vld [vmem:[%s3 + $0xb8] sm:$0xff]
    %v1353 = vld [vmem:[%s3 + $0xc0] sm:$0xff]
    %v1354 = vld [vmem:[%s3 + $0xc8] sm:$0xff]
    %v1355 = vld [vmem:[%s3 + $0xd0] sm:$0xff]
    %v1356 = vld [vmem:[%s3 + $0xd8] sm:$0xff]
    %v1357 = vld [vmem:[%s3 + $0xe0] sm:$0xff]
    %v1358 = vld [vmem:[%s3 + $0xe8] sm:$0xff]
    %v1359 = vld [vmem:[%s3 + $0xf0] sm:$0xff]
    %v1360 = vld [vmem:[%s3 + $0xf8] sm:$0xff]
    %v1393 = vunpack.c.l.b16 %v1329
    %v1394 = vunpack.c.h.b16 %v1329
    %v1395 = vunpack.c.l.b16 %v1330
    %v1396 = vunpack.c.h.b16 %v1330
    %v1397 = vunpack.c.l.b16 %v1331
    %v1398 = vunpack.c.h.b16 %v1331
    %v1399 = vunpack.c.l.b16 %v1332
    %v1400 = vunpack.c.h.b16 %v1332
    %v1401 = vunpack.c.l.b16 %v1333
    %v1402 = vunpack.c.h.b16 %v1333
    %v1403 = vunpack.c.l.b16 %v1334
    %v1404 = vunpack.c.h.b16 %v1334
    %v1405 = vunpack.c.l.b16 %v1335
    %v1406 = vunpack.c.h.b16 %v1335
    %v1407 = vunpack.c.l.b16 %v1336
    %v1408 = vunpack.c.h.b16 %v1336
    %v1409 = vunpack.c.l.b16 %v1337
    %v1410 = vunpack.c.h.b16 %v1337
    %v1411 = vunpack.c.l.b16 %v1338
    %v1412 = vunpack.c.h.b16 %v1338
    %v1413 = vunpack.c.l.b16 %v1339
    %v1414 = vunpack.c.h.b16 %v1339
    %v1415 = vunpack.c.l.b16 %v1340
    %v1416 = vunpack.c.h.b16 %v1340
    %v1417 = vunpack.c.l.b16 %v1341
    %v1418 = vunpack.c.h.b16 %v1341
    %v1419 = vunpack.c.l.b16 %v1342
    %v1420 = vunpack.c.h.b16 %v1342
    %v1421 = vunpack.c.l.b16 %v1343
    %v1422 = vunpack.c.h.b16 %v1343
    %v1423 = vunpack.c.l.b16 %v1344
    %v1424 = vunpack.c.h.b16 %v1344
    %v1425 = vunpack.c.l.b16 %v1345
    %v1426 = vunpack.c.h.b16 %v1345
    %v1427 = vunpack.c.l.b16 %v1346
    %v1428 = vunpack.c.h.b16 %v1346
    %v1429 = vunpack.c.l.b16 %v1347
    %v1430 = vunpack.c.h.b16 %v1347
    %v1431 = vunpack.c.l.b16 %v1348
    %v1432 = vunpack.c.h.b16 %v1348
    %v1433 = vunpack.c.l.b16 %v1349
    %v1434 = vunpack.c.h.b16 %v1349
    %v1435 = vunpack.c.l.b16 %v1350
    %v1436 = vunpack.c.h.b16 %v1350
    %v1437 = vunpack.c.l.b16 %v1351
    %v1438 = vunpack.c.h.b16 %v1351
    %v1439 = vunpack.c.l.b16 %v1352
    %v1440 = vunpack.c.h.b16 %v1352
    %v1441 = vunpack.c.l.b16 %v1353
    %v1442 = vunpack.c.h.b16 %v1353
    %v1443 = vunpack.c.l.b16 %v1354
    %v1444 = vunpack.c.h.b16 %v1354
    %v1445 = vunpack.c.l.b16 %v1355
    %v1446 = vunpack.c.h.b16 %v1355
    %v1447 = vunpack.c.l.b16 %v1356
    %v1448 = vunpack.c.h.b16 %v1356
    %v1449 = vunpack.c.l.b16 %v1357
    %v1450 = vunpack.c.h.b16 %v1357
    %v1451 = vunpack.c.l.b16 %v1358
    %v1452 = vunpack.c.h.b16 %v1358
    %v1453 = vunpack.c.l.b16 %v1359
    %v1454 = vunpack.c.h.b16 %v1359
    %v1455 = vunpack.c.l.b16 %v1360
    %v1456 = vunpack.c.h.b16 %v1360
    %v1457 = vpack.c.b16 %v1397, %v1393
    %v1458 = vpack.c.b16 %v1398, %v1394
    %v1459 = vpack.c.b16 %v1399, %v1395
    %v1460 = vpack.c.b16 %v1400, %v1396
    %v1461 = vpack.c.b16 %v1405, %v1401
    %v1462 = vpack.c.b16 %v1406, %v1402
    %v1463 = vpack.c.b16 %v1407, %v1403
    %v1464 = vpack.c.b16 %v1408, %v1404
    %v1465 = vpack.c.b16 %v1413, %v1409
    %v1466 = vpack.c.b16 %v1414, %v1410
    %v1467 = vpack.c.b16 %v1415, %v1411
    %v1468 = vpack.c.b16 %v1416, %v1412
    %v1469 = vpack.c.b16 %v1421, %v1417
    %v1470 = vpack.c.b16 %v1422, %v1418
    %v1471 = vpack.c.b16 %v1423, %v1419
    %v1472 = vpack.c.b16 %v1424, %v1420
    %v1473 = vpack.c.b16 %v1429, %v1425
    %v1474 = vpack.c.b16 %v1430, %v1426
    %v1475 = vpack.c.b16 %v1431, %v1427
    %v1476 = vpack.c.b16 %v1432, %v1428
    %v1477 = vpack.c.b16 %v1437, %v1433
    %v1478 = vpack.c.b16 %v1438, %v1434
    %v1479 = vpack.c.b16 %v1439, %v1435
    %v1480 = vpack.c.b16 %v1440, %v1436
    %v1481 = vpack.c.b16 %v1445, %v1441
    %v1482 = vpack.c.b16 %v1446, %v1442
    %v1483 = vpack.c.b16 %v1447, %v1443
    %v1484 = vpack.c.b16 %v1448, %v1444
    %v1485 = vpack.c.b16 %v1453, %v1449
    %v1486 = vpack.c.b16 %v1454, %v1450
    %v1487 = vpack.c.b16 %v1455, %v1451
    %v1488 = vpack.c.b16 %v1456, %v1452
    %1521 = vmatprep.subr.bf16.mxu0 %v1458
    %1522 = vmatpush1.bf16.msra.mxu0 %v1457
    %1523 = vmatprep.subr.bf16.mxu0 %v1462
    %1524 = vmatpush1.bf16.msra.mxu0 %v1461
    %1525 = vmatprep.subr.bf16.mxu0 %v1466
    %1526 = vmatpush1.bf16.msra.mxu0 %v1465
    %1527 = vmatprep.subr.bf16.mxu0 %v1470
    %1528 = vmatpush1.bf16.msra.mxu0 %v1469
    %1529 = vmatprep.subr.bf16.mxu0 %v1474
    %1530 = vmatpush1.bf16.msra.mxu0 %v1473
    %1531 = vmatprep.subr.bf16.mxu0 %v1478
    %1532 = vmatpush1.bf16.msra.mxu0 %v1477
    %1533 = vmatprep.subr.bf16.mxu0 %v1482
    %1534 = vmatpush1.bf16.msra.mxu0 %v1481
    %1535 = vmatprep.subr.bf16.mxu0 %v1486
    %1536 = vmatpush1.bf16.msra.mxu0 %v1485
    %1537 = vmatprep.subr.bf16.mxu0 0
    %1538 = vmatpush1.bf16.msra.mxu0 0
    %1539 = vmatprep.subr.bf16.mxu0 0
    %1540 = vmatpush1.bf16.msra.mxu0 0
    %1541 = vmatprep.subr.bf16.mxu0 0
    %1542 = vmatpush1.bf16.msra.mxu0 0
    %1543 = vmatprep.subr.bf16.mxu0 0
    %1544 = vmatpush1.bf16.msra.mxu0 0
    %1545 = vmatprep.subr.bf16.mxu0 0
    %1546 = vmatpush1.bf16.msra.mxu0 0
    %1547 = vmatprep.subr.bf16.mxu0 0
    %1548 = vmatpush1.bf16.msra.mxu0 0
    %1549 = vmatprep.subr.bf16.mxu0 0
    %1550 = vmatpush1.bf16.msra.mxu0 0
    %1551 = vmatprep.subr.bf16.mxu0 0
    %1552 = vmatpush1.bf16.msra.mxu0 0
    %1553 = vmatprep.mubr.bf16.mxu0 0
    %1554 = vmatmul.mubr.bf16.gmra.mrb[0].mxu0 %v975
    %v1555 = vpop.f32.mrb[0].mxu0
    %v1556 = vadd.f32 0.0, %v1555
    %v1557 = vpop.f32.mrb[0].mxu0
    %v1558 = vadd.f32 0.0, %v1557
    %v1559 = vpop.f32.mrb[0].mxu0
    %v1560 = vpop.f32.mrb[0].mxu0
    %1561 = vdwg.mxu0
    %1562 = vmatprep.subr.bf16.mxu0 %v1460
    %1563 = vmatpush1.bf16.msra.mxu0 %v1459
    %1564 = vmatprep.subr.bf16.mxu0 %v1464
    %1565 = vmatpush1.bf16.msra.mxu0 %v1463
    %1566 = vmatprep.subr.bf16.mxu0 %v1468
    %1567 = vmatpush1.bf16.msra.mxu0 %v1467
    %1568 = vmatprep.subr.bf16.mxu0 %v1472
    %1569 = vmatpush1.bf16.msra.mxu0 %v1471
    %1570 = vmatprep.subr.bf16.mxu0 %v1476
    %1571 = vmatpush1.bf16.msra.mxu0 %v1475
    %1572 = vmatprep.subr.bf16.mxu0 %v1480
    %1573 = vmatpush1.bf16.msra.mxu0 %v1479
    %1574 = vmatprep.subr.bf16.mxu0 %v1484
    %1575 = vmatpush1.bf16.msra.mxu0 %v1483
    %1576 = vmatprep.subr.bf16.mxu0 %v1488
    %1577 = vmatpush1.bf16.msra.mxu0 %v1487
    %1578 = vmatprep.subr.bf16.mxu0 0
    %1579 = vmatpush1.bf16.msra.mxu0 0
    %1580 = vmatprep.subr.bf16.mxu0 0
    %1581 = vmatpush1.bf16.msra.mxu0 0
    %1582 = vmatprep.subr.bf16.mxu0 0
    %1583 = vmatpush1.bf16.msra.mxu0 0
    %1584 = vmatprep.subr.bf16.mxu0 0
    %1585 = vmatpush1.bf16.msra.mxu0 0
    %1586 = vmatprep.subr.bf16.mxu0 0
    %1587 = vmatpush1.bf16.msra.mxu0 0
    %1588 = vmatprep.subr.bf16.mxu0 0
    %1589 = vmatpush1.bf16.msra.mxu0 0
    %1590 = vmatprep.subr.bf16.mxu0 0
    %1591 = vmatpush1.bf16.msra.mxu0 0
    %1592 = vmatprep.subr.bf16.mxu0 0
    %1593 = vmatpush1.bf16.msra.mxu0 0
    %1594 = vmatprep.mubr.bf16.mxu0 0
    %1595 = vmatmul.mubr.bf16.gmra.mrb[0].mxu0 %v975
    %v1596 = vpop.f32.mrb[0].mxu0
    %v1597 = vadd.f32 0.0, %v1596
    %v1598 = vpop.f32.mrb[0].mxu0
    %v1599 = vadd.f32 0.0, %v1598
    %v1600 = vpop.f32.mrb[0].mxu0
    %v1601 = vpop.f32.mrb[0].mxu0
    %1602 = vdwg.mxu0
    %v1635 = vunpack.c.l.b16 %v1297
    %v1636 = vunpack.c.h.b16 %v1297
    %v1637 = vunpack.c.l.b16 %v1298
    %v1638 = vunpack.c.h.b16 %v1298
    %v1639 = vunpack.c.l.b16 %v1299
    %v1640 = vunpack.c.h.b16 %v1299
    %v1641 = vunpack.c.l.b16 %v1300
    %v1642 = vunpack.c.h.b16 %v1300
    %v1643 = vunpack.c.l.b16 %v1301
    %v1644 = vunpack.c.h.b16 %v1301
    %v1645 = vunpack.c.l.b16 %v1302
    %v1646 = vunpack.c.h.b16 %v1302
    %v1647 = vunpack.c.l.b16 %v1303
    %v1648 = vunpack.c.h.b16 %v1303
    %v1649 = vunpack.c.l.b16 %v1304
    %v1650 = vunpack.c.h.b16 %v1304
    %v1651 = vunpack.c.l.b16 %v1305
    %v1652 = vunpack.c.h.b16 %v1305
    %v1653 = vunpack.c.l.b16 %v1306
    %v1654 = vunpack.c.h.b16 %v1306
    %v1655 = vunpack.c.l.b16 %v1307
    %v1656 = vunpack.c.h.b16 %v1307
    %v1657 = vunpack.c.l.b16 %v1308
    %v1658 = vunpack.c.h.b16 %v1308
    %v1659 = vunpack.c.l.b16 %v1309
    %v1660 = vunpack.c.h.b16 %v1309
    %v1661 = vunpack.c.l.b16 %v1310
    %v1662 = vunpack.c.h.b16 %v1310
    %v1663 = vunpack.c.l.b16 %v1311
    %v1664 = vunpack.c.h.b16 %v1311
    %v1665 = vunpack.c.l.b16 %v1312
    %v1666 = vunpack.c.h.b16 %v1312
    %v1667 = vunpack.c.l.b16 %v1313
    %v1668 = vunpack.c.h.b16 %v1313
    %v1669 = vunpack.c.l.b16 %v1314
    %v1670 = vunpack.c.h.b16 %v1314
    %v1671 = vunpack.c.l.b16 %v1315
    %v1672 = vunpack.c.h.b16 %v1315
    %v1673 = vunpack.c.l.b16 %v1316
    %v1674 = vunpack.c.h.b16 %v1316
    %v1675 = vunpack.c.l.b16 %v1317
    %v1676 = vunpack.c.h.b16 %v1317
    %v1677 = vunpack.c.l.b16 %v1318
    %v1678 = vunpack.c.h.b16 %v1318
    %v1679 = vunpack.c.l.b16 %v1319
    %v1680 = vunpack.c.h.b16 %v1319
    %v1681 = vunpack.c.l.b16 %v1320
    %v1682 = vunpack.c.h.b16 %v1320
    %v1683 = vunpack.c.l.b16 %v1321
    %v1684 = vunpack.c.h.b16 %v1321
    %v1685 = vunpack.c.l.b16 %v1322
    %v1686 = vunpack.c.h.b16 %v1322
    %v1687 = vunpack.c.l.b16 %v1323
    %v1688 = vunpack.c.h.b16 %v1323
    %v1689 = vunpack.c.l.b16 %v1324
    %v1690 = vunpack.c.h.b16 %v1324
    %v1691 = vunpack.c.l.b16 %v1325
    %v1692 = vunpack.c.h.b16 %v1325
    %v1693 = vunpack.c.l.b16 %v1326
    %v1694 = vunpack.c.h.b16 %v1326
    %v1695 = vunpack.c.l.b16 %v1327
    %v1696 = vunpack.c.h.b16 %v1327
    %v1697 = vunpack.c.l.b16 %v1328
    %v1698 = vunpack.c.h.b16 %v1328
    %v1699 = vpack.c.b16 %v1639, %v1635
    %v1700 = vpack.c.b16 %v1640, %v1636
    %v1701 = vpack.c.b16 %v1641, %v1637
    %v1702 = vpack.c.b16 %v1642, %v1638
    %v1703 = vpack.c.b16 %v1647, %v1643
    %v1704 = vpack.c.b16 %v1648, %v1644
    %v1705 = vpack.c.b16 %v1649, %v1645
    %v1706 = vpack.c.b16 %v1650, %v1646
    %v1707 = vpack.c.b16 %v1655, %v1651
    %v1708 = vpack.c.b16 %v1656, %v1652
    %v1709 = vpack.c.b16 %v1657, %v1653
    %v1710 = vpack.c.b16 %v1658, %v1654
    %v1711 = vpack.c.b16 %v1663, %v1659
    %v1712 = vpack.c.b16 %v1664, %v1660
    %v1713 = vpack.c.b16 %v1665, %v1661
    %v1714 = vpack.c.b16 %v1666, %v1662
    %v1715 = vpack.c.b16 %v1671, %v1667
    %v1716 = vpack.c.b16 %v1672, %v1668
    %v1717 = vpack.c.b16 %v1673, %v1669
    %v1718 = vpack.c.b16 %v1674, %v1670
    %v1719 = vpack.c.b16 %v1679, %v1675
    %v1720 = vpack.c.b16 %v1680, %v1676
    %v1721 = vpack.c.b16 %v1681, %v1677
    %v1722 = vpack.c.b16 %v1682, %v1678
    %v1723 = vpack.c.b16 %v1687, %v1683
    %v1724 = vpack.c.b16 %v1688, %v1684
    %v1725 = vpack.c.b16 %v1689, %v1685
    %v1726 = vpack.c.b16 %v1690, %v1686
    %v1727 = vpack.c.b16 %v1695, %v1691
    %v1728 = vpack.c.b16 %v1696, %v1692
    %v1729 = vpack.c.b16 %v1697, %v1693
    %v1730 = vpack.c.b16 %v1698, %v1694
    %1763 = vmatprep.subr.bf16.mxu0 %v1700
    %1764 = vmatpush1.bf16.msra.mxu0 %v1699
    %1765 = vmatprep.subr.bf16.mxu0 %v1704
    %1766 = vmatpush1.bf16.msra.mxu0 %v1703
    %1767 = vmatprep.subr.bf16.mxu0 %v1708
    %1768 = vmatpush1.bf16.msra.mxu0 %v1707
    %1769 = vmatprep.subr.bf16.mxu0 %v1712
    %1770 = vmatpush1.bf16.msra.mxu0 %v1711
    %1771 = vmatprep.subr.bf16.mxu0 %v1716
    %1772 = vmatpush1.bf16.msra.mxu0 %v1715
    %1773 = vmatprep.subr.bf16.mxu0 %v1720
    %1774 = vmatpush1.bf16.msra.mxu0 %v1719
    %1775 = vmatprep.subr.bf16.mxu0 %v1724
    %1776 = vmatpush1.bf16.msra.mxu0 %v1723
    %1777 = vmatprep.subr.bf16.mxu0 %v1728
    %1778 = vmatpush1.bf16.msra.mxu0 %v1727
    %1779 = vmatprep.subr.bf16.mxu0 0
    %1780 = vmatpush1.bf16.msra.mxu0 0
    %1781 = vmatprep.subr.bf16.mxu0 0
    %1782 = vmatpush1.bf16.msra.mxu0 0
    %1783 = vmatprep.subr.bf16.mxu0 0
    %1784 = vmatpush1.bf16.msra.mxu0 0
    %1785 = vmatprep.subr.bf16.mxu0 0
    %1786 = vmatpush1.bf16.msra.mxu0 0
    %1787 = vmatprep.subr.bf16.mxu0 0
    %1788 = vmatpush1.bf16.msra.mxu0 0
    %1789 = vmatprep.subr.bf16.mxu0 0
    %1790 = vmatpush1.bf16.msra.mxu0 0
    %1791 = vmatprep.subr.bf16.mxu0 0
    %1792 = vmatpush1.bf16.msra.mxu0 0
    %1793 = vmatprep.subr.bf16.mxu0 0
    %1794 = vmatpush1.bf16.msra.mxu0 0
    %1795 = vmatprep.mubr.bf16.mxu0 0
    %1796 = vmatmul.mubr.bf16.gmra.mrb[0].mxu0 %v1296
    %v1797 = vpop.f32.mrb[0].mxu0
    %v1798 = vadd.f32 %v1556, %v1797
    %v1799 = vpop.f32.mrb[0].mxu0
    %v1800 = vadd.f32 %v1558, %v1799
    %v1801 = vpop.f32.mrb[0].mxu0
    %v1802 = vpop.f32.mrb[0].mxu0
    %1803 = vdwg.mxu0
    %1804 = vmatprep.subr.bf16.mxu0 %v1702
    %1805 = vmatpush1.bf16.msra.mxu0 %v1701
    %1806 = vmatprep.subr.bf16.mxu0 %v1706
    %1807 = vmatpush1.bf16.msra.mxu0 %v1705
    %1808 = vmatprep.subr.bf16.mxu0 %v1710
    %1809 = vmatpush1.bf16.msra.mxu0 %v1709
    %1810 = vmatprep.subr.bf16.mxu0 %v1714
    %1811 = vmatpush1.bf16.msra.mxu0 %v1713
    %1812 = vmatprep.subr.bf16.mxu0 %v1718
    %1813 = vmatpush1.bf16.msra.mxu0 %v1717
    %1814 = vmatprep.subr.bf16.mxu0 %v1722
    %1815 = vmatpush1.bf16.msra.mxu0 %v1721
    %1816 = vmatprep.subr.bf16.mxu0 %v1726
    %1817 = vmatpush1.bf16.msra.mxu0 %v1725
    %1818 = vmatprep.subr.bf16.mxu0 %v1730
    %1819 = vmatpush1.bf16.msra.mxu0 %v1729
    %1820 = vmatprep.subr.bf16.mxu0 0
    %1821 = vmatpush1.bf16.msra.mxu0 0
    %1822 = vmatprep.subr.bf16.mxu0 0
    %1823 = vmatpush1.bf16.msra.mxu0 0
    %1824 = vmatprep.subr.bf16.mxu0 0
    %1825 = vmatpush1.bf16.msra.mxu0 0
    %1826 = vmatprep.subr.bf16.mxu0 0
    %1827 = vmatpush1.bf16.msra.mxu0 0
    %1828 = vmatprep.subr.bf16.mxu0 0
    %1829 = vmatpush1.bf16.msra.mxu0 0
    %1830 = vmatprep.subr.bf16.mxu0 0
    %1831 = vmatpush1.bf16.msra.mxu0 0
    %1832 = vmatprep.subr.bf16.mxu0 0
    %1833 = vmatpush1.bf16.msra.mxu0 0
    %1834 = vmatprep.subr.bf16.mxu0 0
    %1835 = vmatpush1.bf16.msra.mxu0 0
    %1836 = vmatprep.mubr.bf16.mxu0 0
    %1837 = vmatmul.mubr.bf16.gmra.mrb[0].mxu0 %v1296
    %v1838 = vpop.f32.mrb[0].mxu0
    %v1839 = vadd.f32 %v1597, %v1838
    %v1840 = vpop.f32.mrb[0].mxu0
    %v1841 = vadd.f32 %v1599, %v1840
    %v1842 = vpop.f32.mrb[0].mxu0
    %v1843 = vpop.f32.mrb[0].mxu0
    %1844 = vdwg.mxu0
    %v1845 = vadd.f32 %v1798, %v55
    %v1846 = vadd.f32 %v1800, %v59
    %v1847 = vadd.f32 %v1839, %v63
    %v1848 = vadd.f32 %v1841, %v67
    %v1849 = vxor.u32 %v1845, 2147483648
    %v1850 = vxor.u32 %v1846, 2147483648
    %v1851 = vxor.u32 %v1847, 2147483648
    %v1852 = vmul.f32 %v1849, 1.442695
    %v1853 = vpow.pop %v1852
    %v1854 = vmul.f32 %v1850, 1.442695
    %v1855 = vpow.pop %v1854
    %v1856 = vmul.f32 %v1851, 1.442695
    %v1857 = vpow.pop %v1856
    %v1858 = vadd.f32 %v1853, 1.0
    %v1859 = vadd.f32 %v1855, 1.0
    %v1860 = vadd.f32 %v1857, 1.0
    %v1861 = vrcp.pop %v1858
    %v1862 = vmul.f32 1.0, %v1861
    %v1863 = vrcp.pop %v1859
    %v1864 = vmul.f32 1.0, %v1863
    %v1865 = vrcp.pop %v1860
    %v1866 = vmul.f32 1.0, %v1865
    %v1867 = vtanh.pop %v1848
    %v1868 = vmul.f32 %v1864, %v972
    %v1869 = vmul.f32 %v1862, %v1867
    %v1870 = vadd.f32 %v1868, %v1869
    %v1871 = vtanh.pop %v1870
    %v1872 = vmul.f32 %v1866, %v1871
    %v1873 = vpack.c.bf16 %v1872, %v1872
    %s1874 = scalar_lea.vmem [#allocation2], 1
    %1875 = vst [vmem:[%s1874] sm:$0x1] %v1873
    %s1876 = scalar_lea.vmem %s0, 16
    %v1877 = vld [vmem:[%s1876] sm:$0xff]
    %v1878 = vld [vmem:[%s1] sm:$0xff]
    %v1879 = vld [vmem:[%s1 + $0x8] sm:$0xff]
    %v1880 = vld [vmem:[%s1 + $0x10] sm:$0xff]
    %v1881 = vld [vmem:[%s1 + $0x18] sm:$0xff]
    %v1882 = vld [vmem:[%s1 + $0x20] sm:$0xff]
    %v1883 = vld [vmem:[%s1 + $0x28] sm:$0xff]
    %v1884 = vld [vmem:[%s1 + $0x30] sm:$0xff]
    %v1885 = vld [vmem:[%s1 + $0x38] sm:$0xff]
    %v1886 = vld [vmem:[%s1 + $0x40] sm:$0xff]
    %v1887 = vld [vmem:[%s1 + $0x48] sm:$0xff]
    %v1888 = vld [vmem:[%s1 + $0x50] sm:$0xff]
    %v1889 = vld [vmem:[%s1 + $0x58] sm:$0xff]
    %v1890 = vld [vmem:[%s1 + $0x60] sm:$0xff]
    %v1891 = vld [vmem:[%s1 + $0x68] sm:$0xff]
    %v1892 = vld [vmem:[%s1 + $0x70] sm:$0xff]
    %v1893 = vld [vmem:[%s1 + $0x78] sm:$0xff]
    %v1894 = vld [vmem:[%s1 + $0x80] sm:$0xff]
    %v1895 = vld [vmem:[%s1 + $0x88] sm:$0xff]
    %v1896 = vld [vmem:[%s1 + $0x90] sm:$0xff]
    %v1897 = vld [vmem:[%s1 + $0x98] sm:$0xff]
    %v1898 = vld [vmem:[%s1 + $0xa0] sm:$0xff]
    %v1899 = vld [vmem:[%s1 + $0xa8] sm:$0xff]
    %v1900 = vld [vmem:[%s1 + $0xb0] sm:$0xff]
    %v1901 = vld [vmem:[%s1 + $0xb8] sm:$0xff]
    %v1902 = vld [vmem:[%s1 + $0xc0] sm:$0xff]
    %v1903 = vld [vmem:[%s1 + $0xc8] sm:$0xff]
    %v1904 = vld [vmem:[%s1 + $0xd0] sm:$0xff]
    %v1905 = vld [vmem:[%s1 + $0xd8] sm:$0xff]
    %v1906 = vld [vmem:[%s1 + $0xe0] sm:$0xff]
    %v1907 = vld [vmem:[%s1 + $0xe8] sm:$0xff]
    %v1908 = vld [vmem:[%s1 + $0xf0] sm:$0xff]
    %v1909 = vld [vmem:[%s1 + $0xf8] sm:$0xff]
    %v1942 = vunpack.c.l.b16 %v1878
    %v1943 = vunpack.c.h.b16 %v1878
    %v1944 = vunpack.c.l.b16 %v1879
    %v1945 = vunpack.c.h.b16 %v1879
    %v1946 = vunpack.c.l.b16 %v1880
    %v1947 = vunpack.c.h.b16 %v1880
    %v1948 = vunpack.c.l.b16 %v1881
    %v1949 = vunpack.c.h.b16 %v1881
    %v1950 = vunpack.c.l.b16 %v1882
    %v1951 = vunpack.c.h.b16 %v1882
    %v1952 = vunpack.c.l.b16 %v1883
    %v1953 = vunpack.c.h.b16 %v1883
    %v1954 = vunpack.c.l.b16 %v1884
    %v1955 = vunpack.c.h.b16 %v1884
    %v1956 = vunpack.c.l.b16 %v1885
    %v1957 = vunpack.c.h.b16 %v1885
    %v1958 = vunpack.c.l.b16 %v1886
    %v1959 = vunpack.c.h.b16 %v1886
    %v1960 = vunpack.c.l.b16 %v1887
    %v1961 = vunpack.c.h.b16 %v1887
    %v1962 = vunpack.c.l.b16 %v1888
    %v1963 = vunpack.c.h.b16 %v1888
    %v1964 = vunpack.c.l.b16 %v1889
    %v1965 = vunpack.c.h.b16 %v1889
    %v1966 = vunpack.c.l.b16 %v1890
    %v1967 = vunpack.c.h.b16 %v1890
    %v1968 = vunpack.c.l.b16 %v1891
    %v1969 = vunpack.c.h.b16 %v1891
    %v1970 = vunpack.c.l.b16 %v1892
    %v1971 = vunpack.c.h.b16 %v1892
    %v1972 = vunpack.c.l.b16 %v1893
    %v1973 = vunpack.c.h.b16 %v1893
    %v1974 = vunpack.c.l.b16 %v1894
    %v1975 = vunpack.c.h.b16 %v1894
    %v1976 = vunpack.c.l.b16 %v1895
    %v1977 = vunpack.c.h.b16 %v1895
    %v1978 = vunpack.c.l.b16 %v1896
    %v1979 = vunpack.c.h.b16 %v1896
    %v1980 = vunpack.c.l.b16 %v1897
    %v1981 = vunpack.c.h.b16 %v1897
    %v1982 = vunpack.c.l.b16 %v1898
    %v1983 = vunpack.c.h.b16 %v1898
    %v1984 = vunpack.c.l.b16 %v1899
    %v1985 = vunpack.c.h.b16 %v1899
    %v1986 = vunpack.c.l.b16 %v1900
    %v1987 = vunpack.c.h.b16 %v1900
    %v1988 = vunpack.c.l.b16 %v1901
    %v1989 = vunpack.c.h.b16 %v1901
    %v1990 = vunpack.c.l.b16 %v1902
    %v1991 = vunpack.c.h.b16 %v1902
    %v1992 = vunpack.c.l.b16 %v1903
    %v1993 = vunpack.c.h.b16 %v1903
    %v1994 = vunpack.c.l.b16 %v1904
    %v1995 = vunpack.c.h.b16 %v1904
    %v1996 = vunpack.c.l.b16 %v1905
    %v1997 = vunpack.c.h.b16 %v1905
    %v1998 = vunpack.c.l.b16 %v1906
    %v1999 = vunpack.c.h.b16 %v1906
    %v2000 = vunpack.c.l.b16 %v1907
    %v2001 = vunpack.c.h.b16 %v1907
    %v2002 = vunpack.c.l.b16 %v1908
    %v2003 = vunpack.c.h.b16 %v1908
    %v2004 = vunpack.c.l.b16 %v1909
    %v2005 = vunpack.c.h.b16 %v1909
    %v2006 = vpack.c.b16 %v1946, %v1942
    %v2007 = vpack.c.b16 %v1947, %v1943
    %v2008 = vpack.c.b16 %v1948, %v1944
    %v2009 = vpack.c.b16 %v1949, %v1945
    %v2010 = vpack.c.b16 %v1954, %v1950
    %v2011 = vpack.c.b16 %v1955, %v1951
    %v2012 = vpack.c.b16 %v1956, %v1952
    %v2013 = vpack.c.b16 %v1957, %v1953
    %v2014 = vpack.c.b16 %v1962, %v1958
    %v2015 = vpack.c.b16 %v1963, %v1959
    %v2016 = vpack.c.b16 %v1964, %v1960
    %v2017 = vpack.c.b16 %v1965, %v1961
    %v2018 = vpack.c.b16 %v1970, %v1966
    %v2019 = vpack.c.b16 %v1971, %v1967
    %v2020 = vpack.c.b16 %v1972, %v1968
    %v2021 = vpack.c.b16 %v1973, %v1969
    %v2022 = vpack.c.b16 %v1978, %v1974
    %v2023 = vpack.c.b16 %v1979, %v1975
    %v2024 = vpack.c.b16 %v1980, %v1976
    %v2025 = vpack.c.b16 %v1981, %v1977
    %v2026 = vpack.c.b16 %v1986, %v1982
    %v2027 = vpack.c.b16 %v1987, %v1983
    %v2028 = vpack.c.b16 %v1988, %v1984
    %v2029 = vpack.c.b16 %v1989, %v1985
    %v2030 = vpack.c.b16 %v1994, %v1990
    %v2031 = vpack.c.b16 %v1995, %v1991
    %v2032 = vpack.c.b16 %v1996, %v1992
    %v2033 = vpack.c.b16 %v1997, %v1993
    %v2034 = vpack.c.b16 %v2002, %v1998
    %v2035 = vpack.c.b16 %v2003, %v1999
    %v2036 = vpack.c.b16 %v2004, %v2000
    %v2037 = vpack.c.b16 %v2005, %v2001
    %2070 = vmatprep.subr.bf16.mxu0 %v2007
    %2071 = vmatpush1.bf16.msra.mxu0 %v2006
    %2072 = vmatprep.subr.bf16.mxu0 %v2011
    %2073 = vmatpush1.bf16.msra.mxu0 %v2010
    %2074 = vmatprep.subr.bf16.mxu0 %v2015
    %2075 = vmatpush1.bf16.msra.mxu0 %v2014
    %2076 = vmatprep.subr.bf16.mxu0 %v2019
    %2077 = vmatpush1.bf16.msra.mxu0 %v2018
    %2078 = vmatprep.subr.bf16.mxu0 %v2023
    %2079 = vmatpush1.bf16.msra.mxu0 %v2022
    %2080 = vmatprep.subr.bf16.mxu0 %v2027
    %2081 = vmatpush1.bf16.msra.mxu0 %v2026
    %2082 = vmatprep.subr.bf16.mxu0 %v2031
    %2083 = vmatpush1.bf16.msra.mxu0 %v2030
    %2084 = vmatprep.subr.bf16.mxu0 %v2035
    %2085 = vmatpush1.bf16.msra.mxu0 %v2034
    %2086 = vmatprep.subr.bf16.mxu0 0
    %2087 = vmatpush1.bf16.msra.mxu0 0
    %2088 = vmatprep.subr.bf16.mxu0 0
    %2089 = vmatpush1.bf16.msra.mxu0 0
    %2090 = vmatprep.subr.bf16.mxu0 0
    %2091 = vmatpush1.bf16.msra.mxu0 0
    %2092 = vmatprep.subr.bf16.mxu0 0
    %2093 = vmatpush1.bf16.msra.mxu0 0
    %2094 = vmatprep.subr.bf16.mxu0 0
    %2095 = vmatpush1.bf16.msra.mxu0 0
    %2096 = vmatprep.subr.bf16.mxu0 0
    %2097 = vmatpush1.bf16.msra.mxu0 0
    %2098 = vmatprep.subr.bf16.mxu0 0
    %2099 = vmatpush1.bf16.msra.mxu0 0
    %2100 = vmatprep.subr.bf16.mxu0 0
    %2101 = vmatpush1.bf16.msra.mxu0 0
    %2102 = vmatprep.mubr.bf16.mxu0 0
    %2103 = vmatmul.mubr.bf16.gmra.mrb[0].mxu0 %v1296
    %v2104 = vpop.f32.mrb[0].mxu0
    %v2105 = vadd.f32 0.0, %v2104
    %v2106 = vpop.f32.mrb[0].mxu0
    %v2107 = vadd.f32 0.0, %v2106
    %v2108 = vpop.f32.mrb[0].mxu0
    %v2109 = vpop.f32.mrb[0].mxu0
    %2110 = vdwg.mxu0
    %2111 = vmatprep.subr.bf16.mxu0 %v2009
    %2112 = vmatpush1.bf16.msra.mxu0 %v2008
    %2113 = vmatprep.subr.bf16.mxu0 %v2013
    %2114 = vmatpush1.bf16.msra.mxu0 %v2012
    %2115 = vmatprep.subr.bf16.mxu0 %v2017
    %2116 = vmatpush1.bf16.msra.mxu0 %v2016
    %2117 = vmatprep.subr.bf16.mxu0 %v2021
    %2118 = vmatpush1.bf16.msra.mxu0 %v2020
    %2119 = vmatprep.subr.bf16.mxu0 %v2025
    %2120 = vmatpush1.bf16.msra.mxu0 %v2024
    %2121 = vmatprep.subr.bf16.mxu0 %v2029
    %2122 = vmatpush1.bf16.msra.mxu0 %v2028
    %2123 = vmatprep.subr.bf16.mxu0 %v2033
    %2124 = vmatpush1.bf16.msra.mxu0 %v2032
    %2125 = vmatprep.subr.bf16.mxu0 %v2037
    %2126 = vmatpush1.bf16.msra.mxu0 %v2036
    %2127 = vmatprep.subr.bf16.mxu0 0
    %2128 = vmatpush1.bf16.msra.mxu0 0
    %2129 = vmatprep.subr.bf16.mxu0 0
    %2130 = vmatpush1.bf16.msra.mxu0 0
    %2131 = vmatprep.subr.bf16.mxu0 0
    %2132 = vmatpush1.bf16.msra.mxu0 0
    %2133 = vmatprep.subr.bf16.mxu0 0
    %2134 = vmatpush1.bf16.msra.mxu0 0
    %2135 = vmatprep.subr.bf16.mxu0 0
    %2136 = vmatpush1.bf16.msra.mxu0 0
    %2137 = vmatprep.subr.bf16.mxu0 0
    %2138 = vmatpush1.bf16.msra.mxu0 0
    %2139 = vmatprep.subr.bf16.mxu0 0
    %2140 = vmatpush1.bf16.msra.mxu0 0
    %2141 = vmatprep.subr.bf16.mxu0 0
    %2142 = vmatpush1.bf16.msra.mxu0 0
    %2143 = vmatprep.mubr.bf16.mxu0 0
    %2144 = vmatmul.mubr.bf16.gmra.mrb[0].mxu0 %v1296
    %v2145 = vpop.f32.mrb[0].mxu0
    %v2146 = vadd.f32 0.0, %v2145
    %v2147 = vpop.f32.mrb[0].mxu0
    %v2148 = vadd.f32 0.0, %v2147
    %v2149 = vpop.f32.mrb[0].mxu0
    %v2150 = vpop.f32.mrb[0].mxu0
    %2151 = vdwg.mxu0
    %v2156 = vcombine.low %v2105, %v2107
    %v2157 = vcombine.low %v2146, %v2148
    %v2159 = vunpack.c.l.s4 1983009808
    %v2160 = vunpack.c.0.s8 %v2159
    %v2161 = vlaneseq
    %v2162 = vshrl.u32 %v2161, 7
    %v2163 = vsub.s32 %v2160, %v2162
    %v2164 = vrot.slane %v2156, %v2163
    %v2166 = vunpack.c.l.s4 1983009808
    %v2167 = vunpack.c.0.s8 %v2166
    %v2168 = vlaneseq
    %v2169 = vshrl.u32 %v2168, 7
    %v2170 = vsub.s32 %v2167, %v2169
    %v2171 = vrot.slane %v2157, %v2170
    %v2172 = vcombine.low %v2164, %v2171
    %v2174 = vadd.f32 %v1877, %v2172
    %v2175 = vxor.u32 %v2174, 2147483648
    %v2176 = vmul.f32 %v2175, 1.442695
    %v2177 = vpow.pop %v2176
    %v2178 = vadd.f32 %v2177, 1.0
    %v2179 = vrcp.pop %v2178
    %v2180 = vmul.f32 1.0, %v2179
    %v2182 = vrot.slane %v2174, 6
    %v2184 = vtanh.pop %v2182
    %v2186 = vrot.slane %v2180, 2
    %v2188 = vmul.f32 %v2186, %v1291
    %v2189 = vmul.f32 %v2180, %v2184
    %v2190 = vadd.f32 %v2188, %v2189
    %v2191 = vtanh.pop %v2190
    %v2192 = vrot.slane %v2180, 4
    %v2194 = vmul.f32 %v2192, %v2191
    %v2195 = vpack.c.bf16 %v2194, %v2194
    %v2196 = vld [vmem:[%s2] sm:$0xff]
    %v2197 = vld [vmem:[%s2 + $0x8] sm:$0xff]
    %v2198 = vld [vmem:[%s2 + $0x10] sm:$0xff]
    %v2199 = vld [vmem:[%s2 + $0x18] sm:$0xff]
    %v2200 = vld [vmem:[%s2 + $0x20] sm:$0xff]
    %v2201 = vld [vmem:[%s2 + $0x28] sm:$0xff]
    %v2202 = vld [vmem:[%s2 + $0x30] sm:$0xff]
    %v2203 = vld [vmem:[%s2 + $0x38] sm:$0xff]
    %v2204 = vld [vmem:[%s2 + $0x40] sm:$0xff]
    %v2205 = vld [vmem:[%s2 + $0x48] sm:$0xff]
    %v2206 = vld [vmem:[%s2 + $0x50] sm:$0xff]
    %v2207 = vld [vmem:[%s2 + $0x58] sm:$0xff]
    %v2208 = vld [vmem:[%s2 + $0x60] sm:$0xff]
    %v2209 = vld [vmem:[%s2 + $0x68] sm:$0xff]
    %v2210 = vld [vmem:[%s2 + $0x70] sm:$0xff]
    %v2211 = vld [vmem:[%s2 + $0x78] sm:$0xff]
    %v2212 = vld [vmem:[%s2 + $0x80] sm:$0xff]
    %v2213 = vld [vmem:[%s2 + $0x88] sm:$0xff]
    %v2214 = vld [vmem:[%s2 + $0x90] sm:$0xff]
    %v2215 = vld [vmem:[%s2 + $0x98] sm:$0xff]
    %v2216 = vld [vmem:[%s2 + $0xa0] sm:$0xff]
    %v2217 = vld [vmem:[%s2 + $0xa8] sm:$0xff]
    %v2218 = vld [vmem:[%s2 + $0xb0] sm:$0xff]
    %v2219 = vld [vmem:[%s2 + $0xb8] sm:$0xff]
    %v2220 = vld [vmem:[%s2 + $0xc0] sm:$0xff]
    %v2221 = vld [vmem:[%s2 + $0xc8] sm:$0xff]
    %v2222 = vld [vmem:[%s2 + $0xd0] sm:$0xff]
    %v2223 = vld [vmem:[%s2 + $0xd8] sm:$0xff]
    %v2224 = vld [vmem:[%s2 + $0xe0] sm:$0xff]
    %v2225 = vld [vmem:[%s2 + $0xe8] sm:$0xff]
    %v2226 = vld [vmem:[%s2 + $0xf0] sm:$0xff]
    %v2227 = vld [vmem:[%s2 + $0xf8] sm:$0xff]
    %v2228 = vld [vmem:[%s3] sm:$0xff]
    %v2229 = vld [vmem:[%s3 + $0x8] sm:$0xff]
    %v2230 = vld [vmem:[%s3 + $0x10] sm:$0xff]
    %v2231 = vld [vmem:[%s3 + $0x18] sm:$0xff]
    %v2232 = vld [vmem:[%s3 + $0x20] sm:$0xff]
    %v2233 = vld [vmem:[%s3 + $0x28] sm:$0xff]
    %v2234 = vld [vmem:[%s3 + $0x30] sm:$0xff]
    %v2235 = vld [vmem:[%s3 + $0x38] sm:$0xff]
    %v2236 = vld [vmem:[%s3 + $0x40] sm:$0xff]
    %v2237 = vld [vmem:[%s3 + $0x48] sm:$0xff]
    %v2238 = vld [vmem:[%s3 + $0x50] sm:$0xff]
    %v2239 = vld [vmem:[%s3 + $0x58] sm:$0xff]
    %v2240 = vld [vmem:[%s3 + $0x60] sm:$0xff]
    %v2241 = vld [vmem:[%s3 + $0x68] sm:$0xff]
    %v2242 = vld [vmem:[%s3 + $0x70] sm:$0xff]
    %v2243 = vld [vmem:[%s3 + $0x78] sm:$0xff]
    %v2244 = vld [vmem:[%s3 + $0x80] sm:$0xff]
    %v2245 = vld [vmem:[%s3 + $0x88] sm:$0xff]
    %v2246 = vld [vmem:[%s3 + $0x90] sm:$0xff]
    %v2247 = vld [vmem:[%s3 + $0x98] sm:$0xff]
    %v2248 = vld [vmem:[%s3 + $0xa0] sm:$0xff]
    %v2249 = vld [vmem:[%s3 + $0xa8] sm:$0xff]
    %v2250 = vld [vmem:[%s3 + $0xb0] sm:$0xff]
    %v2251 = vld [vmem:[%s3 + $0xb8] sm:$0xff]
    %v2252 = vld [vmem:[%s3 + $0xc0] sm:$0xff]
    %v2253 = vld [vmem:[%s3 + $0xc8] sm:$0xff]
    %v2254 = vld [vmem:[%s3 + $0xd0] sm:$0xff]
    %v2255 = vld [vmem:[%s3 + $0xd8] sm:$0xff]
    %v2256 = vld [vmem:[%s3 + $0xe0] sm:$0xff]
    %v2257 = vld [vmem:[%s3 + $0xe8] sm:$0xff]
    %v2258 = vld [vmem:[%s3 + $0xf0] sm:$0xff]
    %v2259 = vld [vmem:[%s3 + $0xf8] sm:$0xff]
    %v2292 = vunpack.c.l.b16 %v2228
    %v2293 = vunpack.c.h.b16 %v2228
    %v2294 = vunpack.c.l.b16 %v2229
    %v2295 = vunpack.c.h.b16 %v2229
    %v2296 = vunpack.c.l.b16 %v2230
    %v2297 = vunpack.c.h.b16 %v2230
    %v2298 = vunpack.c.l.b16 %v2231
    %v2299 = vunpack.c.h.b16 %v2231
    %v2300 = vunpack.c.l.b16 %v2232
    %v2301 = vunpack.c.h.b16 %v2232
    %v2302 = vunpack.c.l.b16 %v2233
    %v2303 = vunpack.c.h.b16 %v2233
    %v2304 = vunpack.c.l.b16 %v2234
    %v2305 = vunpack.c.h.b16 %v2234
    %v2306 = vunpack.c.l.b16 %v2235
    %v2307 = vunpack.c.h.b16 %v2235
    %v2308 = vunpack.c.l.b16 %v2236
    %v2309 = vunpack.c.h.b16 %v2236
    %v2310 = vunpack.c.l.b16 %v2237
    %v2311 = vunpack.c.h.b16 %v2237
    %v2312 = vunpack.c.l.b16 %v2238
    %v2313 = vunpack.c.h.b16 %v2238
    %v2314 = vunpack.c.l.b16 %v2239
    %v2315 = vunpack.c.h.b16 %v2239
    %v2316 = vunpack.c.l.b16 %v2240
    %v2317 = vunpack.c.h.b16 %v2240
    %v2318 = vunpack.c.l.b16 %v2241
    %v2319 = vunpack.c.h.b16 %v2241
    %v2320 = vunpack.c.l.b16 %v2242
    %v2321 = vunpack.c.h.b16 %v2242
    %v2322 = vunpack.c.l.b16 %v2243
    %v2323 = vunpack.c.h.b16 %v2243
    %v2324 = vunpack.c.l.b16 %v2244
    %v2325 = vunpack.c.h.b16 %v2244
    %v2326 = vunpack.c.l.b16 %v2245
    %v2327 = vunpack.c.h.b16 %v2245
    %v2328 = vunpack.c.l.b16 %v2246
    %v2329 = vunpack.c.h.b16 %v2246
    %v2330 = vunpack.c.l.b16 %v2247
    %v2331 = vunpack.c.h.b16 %v2247
    %v2332 = vunpack.c.l.b16 %v2248
    %v2333 = vunpack.c.h.b16 %v2248
    %v2334 = vunpack.c.l.b16 %v2249
    %v2335 = vunpack.c.h.b16 %v2249
    %v2336 = vunpack.c.l.b16 %v2250
    %v2337 = vunpack.c.h.b16 %v2250
    %v2338 = vunpack.c.l.b16 %v2251
    %v2339 = vunpack.c.h.b16 %v2251
    %v2340 = vunpack.c.l.b16 %v2252
    %v2341 = vunpack.c.h.b16 %v2252
    %v2342 = vunpack.c.l.b16 %v2253
    %v2343 = vunpack.c.h.b16 %v2253
    %v2344 = vunpack.c.l.b16 %v2254
    %v2345 = vunpack.c.h.b16 %v2254
    %v2346 = vunpack.c.l.b16 %v2255
    %v2347 = vunpack.c.h.b16 %v2255
    %v2348 = vunpack.c.l.b16 %v2256
    %v2349 = vunpack.c.h.b16 %v2256
    %v2350 = vunpack.c.l.b16 %v2257
    %v2351 = vunpack.c.h.b16 %v2257
    %v2352 = vunpack.c.l.b16 %v2258
    %v2353 = vunpack.c.h.b16 %v2258
    %v2354 = vunpack.c.l.b16 %v2259
    %v2355 = vunpack.c.h.b16 %v2259
    %v2356 = vpack.c.b16 %v2296, %v2292
    %v2357 = vpack.c.b16 %v2297, %v2293
    %v2358 = vpack.c.b16 %v2298, %v2294
    %v2359 = vpack.c.b16 %v2299, %v2295
    %v2360 = vpack.c.b16 %v2304, %v2300
    %v2361 = vpack.c.b16 %v2305, %v2301
    %v2362 = vpack.c.b16 %v2306, %v2302
    %v2363 = vpack.c.b16 %v2307, %v2303
    %v2364 = vpack.c.b16 %v2312, %v2308
    %v2365 = vpack.c.b16 %v2313, %v2309
    %v2366 = vpack.c.b16 %v2314, %v2310
    %v2367 = vpack.c.b16 %v2315, %v2311
    %v2368 = vpack.c.b16 %v2320, %v2316
    %v2369 = vpack.c.b16 %v2321, %v2317
    %v2370 = vpack.c.b16 %v2322, %v2318
    %v2371 = vpack.c.b16 %v2323, %v2319
    %v2372 = vpack.c.b16 %v2328, %v2324
    %v2373 = vpack.c.b16 %v2329, %v2325
    %v2374 = vpack.c.b16 %v2330, %v2326
    %v2375 = vpack.c.b16 %v2331, %v2327
    %v2376 = vpack.c.b16 %v2336, %v2332
    %v2377 = vpack.c.b16 %v2337, %v2333
    %v2378 = vpack.c.b16 %v2338, %v2334
    %v2379 = vpack.c.b16 %v2339, %v2335
    %v2380 = vpack.c.b16 %v2344, %v2340
    %v2381 = vpack.c.b16 %v2345, %v2341
    %v2382 = vpack.c.b16 %v2346, %v2342
    %v2383 = vpack.c.b16 %v2347, %v2343
    %v2384 = vpack.c.b16 %v2352, %v2348
    %v2385 = vpack.c.b16 %v2353, %v2349
    %v2386 = vpack.c.b16 %v2354, %v2350
    %v2387 = vpack.c.b16 %v2355, %v2351
    %2420 = vmatprep.subr.bf16.mxu0 %v2357
    %2421 = vmatpush1.bf16.msra.mxu0 %v2356
    %2422 = vmatprep.subr.bf16.mxu0 %v2361
    %2423 = vmatpush1.bf16.msra.mxu0 %v2360
    %2424 = vmatprep.subr.bf16.mxu0 %v2365
    %2425 = vmatpush1.bf16.msra.mxu0 %v2364
    %2426 = vmatprep.subr.bf16.mxu0 %v2369
    %2427 = vmatpush1.bf16.msra.mxu0 %v2368
    %2428 = vmatprep.subr.bf16.mxu0 %v2373
    %2429 = vmatpush1.bf16.msra.mxu0 %v2372
    %2430 = vmatprep.subr.bf16.mxu0 %v2377
    %2431 = vmatpush1.bf16.msra.mxu0 %v2376
    %2432 = vmatprep.subr.bf16.mxu0 %v2381
    %2433 = vmatpush1.bf16.msra.mxu0 %v2380
    %2434 = vmatprep.subr.bf16.mxu0 %v2385
    %2435 = vmatpush1.bf16.msra.mxu0 %v2384
    %2436 = vmatprep.subr.bf16.mxu0 0
    %2437 = vmatpush1.bf16.msra.mxu0 0
    %2438 = vmatprep.subr.bf16.mxu0 0
    %2439 = vmatpush1.bf16.msra.mxu0 0
    %2440 = vmatprep.subr.bf16.mxu0 0
    %2441 = vmatpush1.bf16.msra.mxu0 0
    %2442 = vmatprep.subr.bf16.mxu0 0
    %2443 = vmatpush1.bf16.msra.mxu0 0
    %2444 = vmatprep.subr.bf16.mxu0 0
    %2445 = vmatpush1.bf16.msra.mxu0 0
    %2446 = vmatprep.subr.bf16.mxu0 0
    %2447 = vmatpush1.bf16.msra.mxu0 0
    %2448 = vmatprep.subr.bf16.mxu0 0
    %2449 = vmatpush1.bf16.msra.mxu0 0
    %2450 = vmatprep.subr.bf16.mxu0 0
    %2451 = vmatpush1.bf16.msra.mxu0 0
    %2452 = vmatprep.mubr.bf16.mxu0 0
    %2453 = vmatmul.mubr.bf16.gmra.mrb[0].mxu0 %v1873
    %v2454 = vpop.f32.mrb[0].mxu0
    %v2455 = vadd.f32 0.0, %v2454
    %v2456 = vpop.f32.mrb[0].mxu0
    %v2457 = vadd.f32 0.0, %v2456
    %v2458 = vpop.f32.mrb[0].mxu0
    %v2459 = vpop.f32.mrb[0].mxu0
    %2460 = vdwg.mxu0
    %2461 = vmatprep.subr.bf16.mxu0 %v2359
    %2462 = vmatpush1.bf16.msra.mxu0 %v2358
    %2463 = vmatprep.subr.bf16.mxu0 %v2363
    %2464 = vmatpush1.bf16.msra.mxu0 %v2362
    %2465 = vmatprep.subr.bf16.mxu0 %v2367
    %2466 = vmatpush1.bf16.msra.mxu0 %v2366
    %2467 = vmatprep.subr.bf16.mxu0 %v2371
    %2468 = vmatpush1.bf16.msra.mxu0 %v2370
    %2469 = vmatprep.subr.bf16.mxu0 %v2375
    %2470 = vmatpush1.bf16.msra.mxu0 %v2374
    %2471 = vmatprep.subr.bf16.mxu0 %v2379
    %2472 = vmatpush1.bf16.msra.mxu0 %v2378
    %2473 = vmatprep.subr.bf16.mxu0 %v2383
    %2474 = vmatpush1.bf16.msra.mxu0 %v2382
    %2475 = vmatprep.subr.bf16.mxu0 %v2387
    %2476 = vmatpush1.bf16.msra.mxu0 %v2386
    %2477 = vmatprep.subr.bf16.mxu0 0
    %2478 = vmatpush1.bf16.msra.mxu0 0
    %2479 = vmatprep.subr.bf16.mxu0 0
    %2480 = vmatpush1.bf16.msra.mxu0 0
    %2481 = vmatprep.subr.bf16.mxu0 0
    %2482 = vmatpush1.bf16.msra.mxu0 0
    %2483 = vmatprep.subr.bf16.mxu0 0
    %2484 = vmatpush1.bf16.msra.mxu0 0
    %2485 = vmatprep.subr.bf16.mxu0 0
    %2486 = vmatpush1.bf16.msra.mxu0 0
    %2487 = vmatprep.subr.bf16.mxu0 0
    %2488 = vmatpush1.bf16.msra.mxu0 0
    %2489 = vmatprep.subr.bf16.mxu0 0
    %2490 = vmatpush1.bf16.msra.mxu0 0
    %2491 = vmatprep.subr.bf16.mxu0 0
    %2492 = vmatpush1.bf16.msra.mxu0 0
    %2493 = vmatprep.mubr.bf16.mxu0 0
    %2494 = vmatmul.mubr.bf16.gmra.mrb[0].mxu0 %v1873
    %v2495 = vpop.f32.mrb[0].mxu0
    %v2496 = vadd.f32 0.0, %v2495
    %v2497 = vpop.f32.mrb[0].mxu0
    %v2498 = vadd.f32 0.0, %v2497
    %v2499 = vpop.f32.mrb[0].mxu0
    %v2500 = vpop.f32.mrb[0].mxu0
    %2501 = vdwg.mxu0
    %v2534 = vunpack.c.l.b16 %v2196
    %v2535 = vunpack.c.h.b16 %v2196
    %v2536 = vunpack.c.l.b16 %v2197
    %v2537 = vunpack.c.h.b16 %v2197
    %v2538 = vunpack.c.l.b16 %v2198
    %v2539 = vunpack.c.h.b16 %v2198
    %v2540 = vunpack.c.l.b16 %v2199
    %v2541 = vunpack.c.h.b16 %v2199
    %v2542 = vunpack.c.l.b16 %v2200
    %v2543 = vunpack.c.h.b16 %v2200
    %v2544 = vunpack.c.l.b16 %v2201
    %v2545 = vunpack.c.h.b16 %v2201
    %v2546 = vunpack.c.l.b16 %v2202
    %v2547 = vunpack.c.h.b16 %v2202
    %v2548 = vunpack.c.l.b16 %v2203
    %v2549 = vunpack.c.h.b16 %v2203
    %v2550 = vunpack.c.l.b16 %v2204
    %v2551 = vunpack.c.h.b16 %v2204
    %v2552 = vunpack.c.l.b16 %v2205
    %v2553 = vunpack.c.h.b16 %v2205
    %v2554 = vunpack.c.l.b16 %v2206
    %v2555 = vunpack.c.h.b16 %v2206
    %v2556 = vunpack.c.l.b16 %v2207
    %v2557 = vunpack.c.h.b16 %v2207
    %v2558 = vunpack.c.l.b16 %v2208
    %v2559 = vunpack.c.h.b16 %v2208
    %v2560 = vunpack.c.l.b16 %v2209
    %v2561 = vunpack.c.h.b16 %v2209
    %v2562 = vunpack.c.l.b16 %v2210
    %v2563 = vunpack.c.h.b16 %v2210
    %v2564 = vunpack.c.l.b16 %v2211
    %v2565 = vunpack.c.h.b16 %v2211
    %v2566 = vunpack.c.l.b16 %v2212
    %v2567 = vunpack.c.h.b16 %v2212
    %v2568 = vunpack.c.l.b16 %v2213
    %v2569 = vunpack.c.h.b16 %v2213
    %v2570 = vunpack.c.l.b16 %v2214
    %v2571 = vunpack.c.h.b16 %v2214
    %v2572 = vunpack.c.l.b16 %v2215
    %v2573 = vunpack.c.h.b16 %v2215
    %v2574 = vunpack.c.l.b16 %v2216
    %v2575 = vunpack.c.h.b16 %v2216
    %v2576 = vunpack.c.l.b16 %v2217
    %v2577 = vunpack.c.h.b16 %v2217
    %v2578 = vunpack.c.l.b16 %v2218
    %v2579 = vunpack.c.h.b16 %v2218
    %v2580 = vunpack.c.l.b16 %v2219
    %v2581 = vunpack.c.h.b16 %v2219
    %v2582 = vunpack.c.l.b16 %v2220
    %v2583 = vunpack.c.h.b16 %v2220
    %v2584 = vunpack.c.l.b16 %v2221
    %v2585 = vunpack.c.h.b16 %v2221
    %v2586 = vunpack.c.l.b16 %v2222
    %v2587 = vunpack.c.h.b16 %v2222
    %v2588 = vunpack.c.l.b16 %v2223
    %v2589 = vunpack.c.h.b16 %v2223
    %v2590 = vunpack.c.l.b16 %v2224
    %v2591 = vunpack.c.h.b16 %v2224
    %v2592 = vunpack.c.l.b16 %v2225
    %v2593 = vunpack.c.h.b16 %v2225
    %v2594 = vunpack.c.l.b16 %v2226
    %v2595 = vunpack.c.h.b16 %v2226
    %v2596 = vunpack.c.l.b16 %v2227
    %v2597 = vunpack.c.h.b16 %v2227
    %v2598 = vpack.c.b16 %v2538, %v2534
    %v2599 = vpack.c.b16 %v2539, %v2535
    %v2600 = vpack.c.b16 %v2540, %v2536
    %v2601 = vpack.c.b16 %v2541, %v2537
    %v2602 = vpack.c.b16 %v2546, %v2542
    %v2603 = vpack.c.b16 %v2547, %v2543
    %v2604 = vpack.c.b16 %v2548, %v2544
    %v2605 = vpack.c.b16 %v2549, %v2545
    %v2606 = vpack.c.b16 %v2554, %v2550
    %v2607 = vpack.c.b16 %v2555, %v2551
    %v2608 = vpack.c.b16 %v2556, %v2552
    %v2609 = vpack.c.b16 %v2557, %v2553
    %v2610 = vpack.c.b16 %v2562, %v2558
    %v2611 = vpack.c.b16 %v2563, %v2559
    %v2612 = vpack.c.b16 %v2564, %v2560
    %v2613 = vpack.c.b16 %v2565, %v2561
    %v2614 = vpack.c.b16 %v2570, %v2566
    %v2615 = vpack.c.b16 %v2571, %v2567
    %v2616 = vpack.c.b16 %v2572, %v2568
    %v2617 = vpack.c.b16 %v2573, %v2569
    %v2618 = vpack.c.b16 %v2578, %v2574
    %v2619 = vpack.c.b16 %v2579, %v2575
    %v2620 = vpack.c.b16 %v2580, %v2576
    %v2621 = vpack.c.b16 %v2581, %v2577
    %v2622 = vpack.c.b16 %v2586, %v2582
    %v2623 = vpack.c.b16 %v2587, %v2583
    %v2624 = vpack.c.b16 %v2588, %v2584
    %v2625 = vpack.c.b16 %v2589, %v2585
    %v2626 = vpack.c.b16 %v2594, %v2590
    %v2627 = vpack.c.b16 %v2595, %v2591
    %v2628 = vpack.c.b16 %v2596, %v2592
    %v2629 = vpack.c.b16 %v2597, %v2593
    %2662 = vmatprep.subr.bf16.mxu0 %v2599
    %2663 = vmatpush1.bf16.msra.mxu0 %v2598
    %2664 = vmatprep.subr.bf16.mxu0 %v2603
    %2665 = vmatpush1.bf16.msra.mxu0 %v2602
    %2666 = vmatprep.subr.bf16.mxu0 %v2607
    %2667 = vmatpush1.bf16.msra.mxu0 %v2606
    %2668 = vmatprep.subr.bf16.mxu0 %v2611
    %2669 = vmatpush1.bf16.msra.mxu0 %v2610
    %2670 = vmatprep.subr.bf16.mxu0 %v2615
    %2671 = vmatpush1.bf16.msra.mxu0 %v2614
    %2672 = vmatprep.subr.bf16.mxu0 %v2619
    %2673 = vmatpush1.bf16.msra.mxu0 %v2618
    %2674 = vmatprep.subr.bf16.mxu0 %v2623
    %2675 = vmatpush1.bf16.msra.mxu0 %v2622
    %2676 = vmatprep.subr.bf16.mxu0 %v2627
    %2677 = vmatpush1.bf16.msra.mxu0 %v2626
    %2678 = vmatprep.subr.bf16.mxu0 0
    %2679 = vmatpush1.bf16.msra.mxu0 0
    %2680 = vmatprep.subr.bf16.mxu0 0
    %2681 = vmatpush1.bf16.msra.mxu0 0
    %2682 = vmatprep.subr.bf16.mxu0 0
    %2683 = vmatpush1.bf16.msra.mxu0 0
    %2684 = vmatprep.subr.bf16.mxu0 0
    %2685 = vmatpush1.bf16.msra.mxu0 0
    %2686 = vmatprep.subr.bf16.mxu0 0
    %2687 = vmatpush1.bf16.msra.mxu0 0
    %2688 = vmatprep.subr.bf16.mxu0 0
    %2689 = vmatpush1.bf16.msra.mxu0 0
    %2690 = vmatprep.subr.bf16.mxu0 0
    %2691 = vmatpush1.bf16.msra.mxu0 0
    %2692 = vmatprep.subr.bf16.mxu0 0
    %2693 = vmatpush1.bf16.msra.mxu0 0
    %2694 = vmatprep.mubr.bf16.mxu0 0
    %2695 = vmatmul.mubr.bf16.gmra.mrb[0].mxu0 %v2195
    %v2696 = vpop.f32.mrb[0].mxu0
    %v2697 = vadd.f32 %v2455, %v2696
    %v2698 = vpop.f32.mrb[0].mxu0
    %v2699 = vadd.f32 %v2457, %v2698
    %v2700 = vpop.f32.mrb[0].mxu0
    %v2701 = vpop.f32.mrb[0].mxu0
    %2702 = vdwg.mxu0
    %2703 = vmatprep.subr.bf16.mxu0 %v2601
    %2704 = vmatpush1.bf16.msra.mxu0 %v2600
    %2705 = vmatprep.subr.bf16.mxu0 %v2605
    %2706 = vmatpush1.bf16.msra.mxu0 %v2604
    %2707 = vmatprep.subr.bf16.mxu0 %v2609
    %2708 = vmatpush1.bf16.msra.mxu0 %v2608
    %2709 = vmatprep.subr.bf16.mxu0 %v2613
    %2710 = vmatpush1.bf16.msra.mxu0 %v2612
    %2711 = vmatprep.subr.bf16.mxu0 %v2617
    %2712 = vmatpush1.bf16.msra.mxu0 %v2616
    %2713 = vmatprep.subr.bf16.mxu0 %v2621
    %2714 = vmatpush1.bf16.msra.mxu0 %v2620
    %2715 = vmatprep.subr.bf16.mxu0 %v2625
    %2716 = vmatpush1.bf16.msra.mxu0 %v2624
    %2717 = vmatprep.subr.bf16.mxu0 %v2629
    %2718 = vmatpush1.bf16.msra.mxu0 %v2628
    %2719 = vmatprep.subr.bf16.mxu0 0
    %2720 = vmatpush1.bf16.msra.mxu0 0
    %2721 = vmatprep.subr.bf16.mxu0 0
    %2722 = vmatpush1.bf16.msra.mxu0 0
    %2723 = vmatprep.subr.bf16.mxu0 0
    %2724 = vmatpush1.bf16.msra.mxu0 0
    %2725 = vmatprep.subr.bf16.mxu0 0
    %2726 = vmatpush1.bf16.msra.mxu0 0
    %2727 = vmatprep.subr.bf16.mxu0 0
    %2728 = vmatpush1.bf16.msra.mxu0 0
    %2729 = vmatprep.subr.bf16.mxu0 0
    %2730 = vmatpush1.bf16.msra.mxu0 0
    %2731 = vmatprep.subr.bf16.mxu0 0
    %2732 = vmatpush1.bf16.msra.mxu0 0
    %2733 = vmatprep.subr.bf16.mxu0 0
    %2734 = vmatpush1.bf16.msra.mxu0 0
    %2735 = vmatprep.mubr.bf16.mxu0 0
    %2736 = vmatmul.mubr.bf16.gmra.mrb[0].mxu0 %v2195
    %v2737 = vpop.f32.mrb[0].mxu0
    %v2738 = vadd.f32 %v2496, %v2737
    %v2739 = vpop.f32.mrb[0].mxu0
    %v2740 = vadd.f32 %v2498, %v2739
    %v2741 = vpop.f32.mrb[0].mxu0
    %v2742 = vpop.f32.mrb[0].mxu0
    %2743 = vdwg.mxu0
    %v2744 = vadd.f32 %v2697, %v55
    %v2745 = vadd.f32 %v2699, %v59
    %v2746 = vadd.f32 %v2738, %v63
    %v2747 = vadd.f32 %v2740, %v67
    %v2748 = vxor.u32 %v2744, 2147483648
    %v2749 = vxor.u32 %v2745, 2147483648
    %v2750 = vxor.u32 %v2746, 2147483648
    %v2751 = vmul.f32 %v2748, 1.442695
    %v2752 = vpow.pop %v2751
    %v2753 = vmul.f32 %v2749, 1.442695
    %v2754 = vpow.pop %v2753
    %v2755 = vmul.f32 %v2750, 1.442695
    %v2756 = vpow.pop %v2755
    %v2757 = vadd.f32 %v2752, 1.0
    %v2758 = vadd.f32 %v2754, 1.0
    %v2759 = vadd.f32 %v2756, 1.0
    %v2760 = vrcp.pop %v2757
    %v2761 = vmul.f32 1.0, %v2760
    %v2762 = vrcp.pop %v2758
    %v2763 = vmul.f32 1.0, %v2762
    %v2764 = vrcp.pop %v2759
    %v2765 = vmul.f32 1.0, %v2764
    %v2766 = vtanh.pop %v2747
    %v2767 = vmul.f32 %v2763, %v1870
    %v2768 = vmul.f32 %v2761, %v2766
    %v2769 = vadd.f32 %v2767, %v2768
    %v2770 = vtanh.pop %v2769
    %v2771 = vmul.f32 %v2765, %v2770
    %v2772 = vpack.c.bf16 %v2771, %v2771
    %s2773 = scalar_lea.vmem [#allocation2], 2
    %2774 = vst [vmem:[%s2773] sm:$0x1] %v2772
    %s2775 = scalar_lea.vmem %s0, 24
    %v2776 = vld [vmem:[%s2775] sm:$0xff]
    %v2777 = vld [vmem:[%s1] sm:$0xff]
    %v2778 = vld [vmem:[%s1 + $0x8] sm:$0xff]
    %v2779 = vld [vmem:[%s1 + $0x10] sm:$0xff]
    %v2780 = vld [vmem:[%s1 + $0x18] sm:$0xff]
    %v2781 = vld [vmem:[%s1 + $0x20] sm:$0xff]
    %v2782 = vld [vmem:[%s1 + $0x28] sm:$0xff]
    %v2783 = vld [vmem:[%s1 + $0x30] sm:$0xff]
    %v2784 = vld [vmem:[%s1 + $0x38] sm:$0xff]
    %v2785 = vld [vmem:[%s1 + $0x40] sm:$0xff]
    %v2786 = vld [vmem:[%s1 + $0x48] sm:$0xff]
    %v2787 = vld [vmem:[%s1 + $0x50] sm:$0xff]
    %v2788 = vld [vmem:[%s1 + $0x58] sm:$0xff]
    %v2789 = vld [vmem:[%s1 + $0x60] sm:$0xff]
    %v2790 = vld [vmem:[%s1 + $0x68] sm:$0xff]
    %v2791 = vld [vmem:[%s1 + $0x70] sm:$0xff]
    %v2792 = vld [vmem:[%s1 + $0x78] sm:$0xff]
    %v2793 = vld [vmem:[%s1 + $0x80] sm:$0xff]
    %v2794 = vld [vmem:[%s1 + $0x88] sm:$0xff]
    %v2795 = vld [vmem:[%s1 + $0x90] sm:$0xff]
    %v2796 = vld [vmem:[%s1 + $0x98] sm:$0xff]
    %v2797 = vld [vmem:[%s1 + $0xa0] sm:$0xff]
    %v2798 = vld [vmem:[%s1 + $0xa8] sm:$0xff]
    %v2799 = vld [vmem:[%s1 + $0xb0] sm:$0xff]
    %v2800 = vld [vmem:[%s1 + $0xb8] sm:$0xff]
    %v2801 = vld [vmem:[%s1 + $0xc0] sm:$0xff]
    %v2802 = vld [vmem:[%s1 + $0xc8] sm:$0xff]
    %v2803 = vld [vmem:[%s1 + $0xd0] sm:$0xff]
    %v2804 = vld [vmem:[%s1 + $0xd8] sm:$0xff]
    %v2805 = vld [vmem:[%s1 + $0xe0] sm:$0xff]
    %v2806 = vld [vmem:[%s1 + $0xe8] sm:$0xff]
    %v2807 = vld [vmem:[%s1 + $0xf0] sm:$0xff]
    %v2808 = vld [vmem:[%s1 + $0xf8] sm:$0xff]
    %v2841 = vunpack.c.l.b16 %v2777
    %v2842 = vunpack.c.h.b16 %v2777
    %v2843 = vunpack.c.l.b16 %v2778
    %v2844 = vunpack.c.h.b16 %v2778
    %v2845 = vunpack.c.l.b16 %v2779
    %v2846 = vunpack.c.h.b16 %v2779
    %v2847 = vunpack.c.l.b16 %v2780
    %v2848 = vunpack.c.h.b16 %v2780
    %v2849 = vunpack.c.l.b16 %v2781
    %v2850 = vunpack.c.h.b16 %v2781
    %v2851 = vunpack.c.l.b16 %v2782
    %v2852 = vunpack.c.h.b16 %v2782
    %v2853 = vunpack.c.l.b16 %v2783
    %v2854 = vunpack.c.h.b16 %v2783
    %v2855 = vunpack.c.l.b16 %v2784
    %v2856 = vunpack.c.h.b16 %v2784
    %v2857 = vunpack.c.l.b16 %v2785
    %v2858 = vunpack.c.h.b16 %v2785
    %v2859 = vunpack.c.l.b16 %v2786
    %v2860 = vunpack.c.h.b16 %v2786
    %v2861 = vunpack.c.l.b16 %v2787
    %v2862 = vunpack.c.h.b16 %v2787
    %v2863 = vunpack.c.l.b16 %v2788
    %v2864 = vunpack.c.h.b16 %v2788
    %v2865 = vunpack.c.l.b16 %v2789
    %v2866 = vunpack.c.h.b16 %v2789
    %v2867 = vunpack.c.l.b16 %v2790
    %v2868 = vunpack.c.h.b16 %v2790
    %v2869 = vunpack.c.l.b16 %v2791
    %v2870 = vunpack.c.h.b16 %v2791
    %v2871 = vunpack.c.l.b16 %v2792
    %v2872 = vunpack.c.h.b16 %v2792
    %v2873 = vunpack.c.l.b16 %v2793
    %v2874 = vunpack.c.h.b16 %v2793
    %v2875 = vunpack.c.l.b16 %v2794
    %v2876 = vunpack.c.h.b16 %v2794
    %v2877 = vunpack.c.l.b16 %v2795
    %v2878 = vunpack.c.h.b16 %v2795
    %v2879 = vunpack.c.l.b16 %v2796
    %v2880 = vunpack.c.h.b16 %v2796
    %v2881 = vunpack.c.l.b16 %v2797
    %v2882 = vunpack.c.h.b16 %v2797
    %v2883 = vunpack.c.l.b16 %v2798
    %v2884 = vunpack.c.h.b16 %v2798
    %v2885 = vunpack.c.l.b16 %v2799
    %v2886 = vunpack.c.h.b16 %v2799
    %v2887 = vunpack.c.l.b16 %v2800
    %v2888 = vunpack.c.h.b16 %v2800
    %v2889 = vunpack.c.l.b16 %v2801
    %v2890 = vunpack.c.h.b16 %v2801
    %v2891 = vunpack.c.l.b16 %v2802
    %v2892 = vunpack.c.h.b16 %v2802
    %v2893 = vunpack.c.l.b16 %v2803
    %v2894 = vunpack.c.h.b16 %v2803
    %v2895 = vunpack.c.l.b16 %v2804
    %v2896 = vunpack.c.h.b16 %v2804
    %v2897 = vunpack.c.l.b16 %v2805
    %v2898 = vunpack.c.h.b16 %v2805
    %v2899 = vunpack.c.l.b16 %v2806
    %v2900 = vunpack.c.h.b16 %v2806
    %v2901 = vunpack.c.l.b16 %v2807
    %v2902 = vunpack.c.h.b16 %v2807
    %v2903 = vunpack.c.l.b16 %v2808
    %v2904 = vunpack.c.h.b16 %v2808
    %v2905 = vpack.c.b16 %v2845, %v2841
    %v2906 = vpack.c.b16 %v2846, %v2842
    %v2907 = vpack.c.b16 %v2847, %v2843
    %v2908 = vpack.c.b16 %v2848, %v2844
    %v2909 = vpack.c.b16 %v2853, %v2849
    %v2910 = vpack.c.b16 %v2854, %v2850
    %v2911 = vpack.c.b16 %v2855, %v2851
    %v2912 = vpack.c.b16 %v2856, %v2852
    %v2913 = vpack.c.b16 %v2861, %v2857
    %v2914 = vpack.c.b16 %v2862, %v2858
    %v2915 = vpack.c.b16 %v2863, %v2859
    %v2916 = vpack.c.b16 %v2864, %v2860
    %v2917 = vpack.c.b16 %v2869, %v2865
    %v2918 = vpack.c.b16 %v2870, %v2866
    %v2919 = vpack.c.b16 %v2871, %v2867
    %v2920 = vpack.c.b16 %v2872, %v2868
    %v2921 = vpack.c.b16 %v2877, %v2873
    %v2922 = vpack.c.b16 %v2878, %v2874
    %v2923 = vpack.c.b16 %v2879, %v2875
    %v2924 = vpack.c.b16 %v2880, %v2876
    %v2925 = vpack.c.b16 %v2885, %v2881
    %v2926 = vpack.c.b16 %v2886, %v2882
    %v2927 = vpack.c.b16 %v2887, %v2883
    %v2928 = vpack.c.b16 %v2888, %v2884
    %v2929 = vpack.c.b16 %v2893, %v2889
    %v2930 = vpack.c.b16 %v2894, %v2890
    %v2931 = vpack.c.b16 %v2895, %v2891
    %v2932 = vpack.c.b16 %v2896, %v2892
    %v2933 = vpack.c.b16 %v2901, %v2897
    %v2934 = vpack.c.b16 %v2902, %v2898
    %v2935 = vpack.c.b16 %v2903, %v2899
    %v2936 = vpack.c.b16 %v2904, %v2900
    %2969 = vmatprep.subr.bf16.mxu0 %v2906
    %2970 = vmatpush1.bf16.msra.mxu0 %v2905
    %2971 = vmatprep.subr.bf16.mxu0 %v2910
    %2972 = vmatpush1.bf16.msra.mxu0 %v2909
    %2973 = vmatprep.subr.bf16.mxu0 %v2914
    %2974 = vmatpush1.bf16.msra.mxu0 %v2913
    %2975 = vmatprep.subr.bf16.mxu0 %v2918
    %2976 = vmatpush1.bf16.msra.mxu0 %v2917
    %2977 = vmatprep.subr.bf16.mxu0 %v2922
    %2978 = vmatpush1.bf16.msra.mxu0 %v2921
    %2979 = vmatprep.subr.bf16.mxu0 %v2926
    %2980 = vmatpush1.bf16.msra.mxu0 %v2925
    %2981 = vmatprep.subr.bf16.mxu0 %v2930
    %2982 = vmatpush1.bf16.msra.mxu0 %v2929
    %2983 = vmatprep.subr.bf16.mxu0 %v2934
    %2984 = vmatpush1.bf16.msra.mxu0 %v2933
    %2985 = vmatprep.subr.bf16.mxu0 0
    %2986 = vmatpush1.bf16.msra.mxu0 0
    %2987 = vmatprep.subr.bf16.mxu0 0
    %2988 = vmatpush1.bf16.msra.mxu0 0
    %2989 = vmatprep.subr.bf16.mxu0 0
    %2990 = vmatpush1.bf16.msra.mxu0 0
    %2991 = vmatprep.subr.bf16.mxu0 0
    %2992 = vmatpush1.bf16.msra.mxu0 0
    %2993 = vmatprep.subr.bf16.mxu0 0
    %2994 = vmatpush1.bf16.msra.mxu0 0
    %2995 = vmatprep.subr.bf16.mxu0 0
    %2996 = vmatpush1.bf16.msra.mxu0 0
    %2997 = vmatprep.subr.bf16.mxu0 0
    %2998 = vmatpush1.bf16.msra.mxu0 0
    %2999 = vmatprep.subr.bf16.mxu0 0
    %3000 = vmatpush1.bf16.msra.mxu0 0
    %3001 = vmatprep.mubr.bf16.mxu0 0
    %3002 = vmatmul.mubr.bf16.gmra.mrb[0].mxu0 %v2195
    %v3003 = vpop.f32.mrb[0].mxu0
    %v3004 = vadd.f32 0.0, %v3003
    %v3005 = vpop.f32.mrb[0].mxu0
    %v3006 = vadd.f32 0.0, %v3005
    %v3007 = vpop.f32.mrb[0].mxu0
    %v3008 = vpop.f32.mrb[0].mxu0
    %3009 = vdwg.mxu0
    %3010 = vmatprep.subr.bf16.mxu0 %v2908
    %3011 = vmatpush1.bf16.msra.mxu0 %v2907
    %3012 = vmatprep.subr.bf16.mxu0 %v2912
    %3013 = vmatpush1.bf16.msra.mxu0 %v2911
    %3014 = vmatprep.subr.bf16.mxu0 %v2916
    %3015 = vmatpush1.bf16.msra.mxu0 %v2915
    %3016 = vmatprep.subr.bf16.mxu0 %v2920
    %3017 = vmatpush1.bf16.msra.mxu0 %v2919
    %3018 = vmatprep.subr.bf16.mxu0 %v2924
    %3019 = vmatpush1.bf16.msra.mxu0 %v2923
    %3020 = vmatprep.subr.bf16.mxu0 %v2928
    %3021 = vmatpush1.bf16.msra.mxu0 %v2927
    %3022 = vmatprep.subr.bf16.mxu0 %v2932
    %3023 = vmatpush1.bf16.msra.mxu0 %v2931
    %3024 = vmatprep.subr.bf16.mxu0 %v2936
    %3025 = vmatpush1.bf16.msra.mxu0 %v2935
    %3026 = vmatprep.subr.bf16.mxu0 0
    %3027 = vmatpush1.bf16.msra.mxu0 0
    %3028 = vmatprep.subr.bf16.mxu0 0
    %3029 = vmatpush1.bf16.msra.mxu0 0
    %3030 = vmatprep.subr.bf16.mxu0 0
    %3031 = vmatpush1.bf16.msra.mxu0 0
    %3032 = vmatprep.subr.bf16.mxu0 0
    %3033 = vmatpush1.bf16.msra.mxu0 0
    %3034 = vmatprep.subr.bf16.mxu0 0
    %3035 = vmatpush1.bf16.msra.mxu0 0
    %3036 = vmatprep.subr.bf16.mxu0 0
    %3037 = vmatpush1.bf16.msra.mxu0 0
    %3038 = vmatprep.subr.bf16.mxu0 0
    %3039 = vmatpush1.bf16.msra.mxu0 0
    %3040 = vmatprep.subr.bf16.mxu0 0
    %3041 = vmatpush1.bf16.msra.mxu0 0
    %3042 = vmatprep.mubr.bf16.mxu0 0
    %3043 = vmatmul.mubr.bf16.gmra.mrb[0].mxu0 %v2195
    %v3044 = vpop.f32.mrb[0].mxu0
    %v3045 = vadd.f32 0.0, %v3044
    %v3046 = vpop.f32.mrb[0].mxu0
    %v3047 = vadd.f32 0.0, %v3046
    %v3048 = vpop.f32.mrb[0].mxu0
    %v3049 = vpop.f32.mrb[0].mxu0
    %3050 = vdwg.mxu0
    %v3055 = vcombine.low %v3004, %v3006
    %v3056 = vcombine.low %v3045, %v3047
    %v3058 = vunpack.c.l.s4 1983009808
    %v3059 = vunpack.c.0.s8 %v3058
    %v3060 = vlaneseq
    %v3061 = vshrl.u32 %v3060, 7
    %v3062 = vsub.s32 %v3059, %v3061
    %v3063 = vrot.slane %v3055, %v3062
    %v3065 = vunpack.c.l.s4 1983009808
    %v3066 = vunpack.c.0.s8 %v3065
    %v3067 = vlaneseq
    %v3068 = vshrl.u32 %v3067, 7
    %v3069 = vsub.s32 %v3066, %v3068
    %v3070 = vrot.slane %v3056, %v3069
    %v3071 = vcombine.low %v3063, %v3070
    %v3073 = vadd.f32 %v2776, %v3071
    %v3074 = vxor.u32 %v3073, 2147483648
    %v3075 = vmul.f32 %v3074, 1.442695
    %v3076 = vpow.pop %v3075
    %v3077 = vadd.f32 %v3076, 1.0
    %v3078 = vrcp.pop %v3077
    %v3079 = vmul.f32 1.0, %v3078
    %v3081 = vrot.slane %v3073, 6
    %v3083 = vtanh.pop %v3081
    %v3085 = vrot.slane %v3079, 2
    %v3087 = vmul.f32 %v3085, %v2190
    %v3088 = vmul.f32 %v3079, %v3083
    %v3089 = vadd.f32 %v3087, %v3088
    %v3090 = vtanh.pop %v3089
    %v3091 = vrot.slane %v3079, 4
    %v3093 = vmul.f32 %v3091, %v3090
    %v3094 = vpack.c.bf16 %v3093, %v3093
    %v3095 = vld [vmem:[%s2] sm:$0xff]
    %v3096 = vld [vmem:[%s2 + $0x8] sm:$0xff]
    %v3097 = vld [vmem:[%s2 + $0x10] sm:$0xff]
    %v3098 = vld [vmem:[%s2 + $0x18] sm:$0xff]
    %v3099 = vld [vmem:[%s2 + $0x20] sm:$0xff]
    %v3100 = vld [vmem:[%s2 + $0x28] sm:$0xff]
    %v3101 = vld [vmem:[%s2 + $0x30] sm:$0xff]
    %v3102 = vld [vmem:[%s2 + $0x38] sm:$0xff]
    %v3103 = vld [vmem:[%s2 + $0x40] sm:$0xff]
    %v3104 = vld [vmem:[%s2 + $0x48] sm:$0xff]
    %v3105 = vld [vmem:[%s2 + $0x50] sm:$0xff]
    %v3106 = vld [vmem:[%s2 + $0x58] sm:$0xff]
    %v3107 = vld [vmem:[%s2 + $0x60] sm:$0xff]
    %v3108 = vld [vmem:[%s2 + $0x68] sm:$0xff]
    %v3109 = vld [vmem:[%s2 + $0x70] sm:$0xff]
    %v3110 = vld [vmem:[%s2 + $0x78] sm:$0xff]
    %v3111 = vld [vmem:[%s2 + $0x80] sm:$0xff]
    %v3112 = vld [vmem:[%s2 + $0x88] sm:$0xff]
    %v3113 = vld [vmem:[%s2 + $0x90] sm:$0xff]
    %v3114 = vld [vmem:[%s2 + $0x98] sm:$0xff]
    %v3115 = vld [vmem:[%s2 + $0xa0] sm:$0xff]
    %v3116 = vld [vmem:[%s2 + $0xa8] sm:$0xff]
    %v3117 = vld [vmem:[%s2 + $0xb0] sm:$0xff]
    %v3118 = vld [vmem:[%s2 + $0xb8] sm:$0xff]
    %v3119 = vld [vmem:[%s2 + $0xc0] sm:$0xff]
    %v3120 = vld [vmem:[%s2 + $0xc8] sm:$0xff]
    %v3121 = vld [vmem:[%s2 + $0xd0] sm:$0xff]
    %v3122 = vld [vmem:[%s2 + $0xd8] sm:$0xff]
    %v3123 = vld [vmem:[%s2 + $0xe0] sm:$0xff]
    %v3124 = vld [vmem:[%s2 + $0xe8] sm:$0xff]
    %v3125 = vld [vmem:[%s2 + $0xf0] sm:$0xff]
    %v3126 = vld [vmem:[%s2 + $0xf8] sm:$0xff]
    %v3127 = vld [vmem:[%s3] sm:$0xff]
    %v3128 = vld [vmem:[%s3 + $0x8] sm:$0xff]
    %v3129 = vld [vmem:[%s3 + $0x10] sm:$0xff]
    %v3130 = vld [vmem:[%s3 + $0x18] sm:$0xff]
    %v3131 = vld [vmem:[%s3 + $0x20] sm:$0xff]
    %v3132 = vld [vmem:[%s3 + $0x28] sm:$0xff]
    %v3133 = vld [vmem:[%s3 + $0x30] sm:$0xff]
    %v3134 = vld [vmem:[%s3 + $0x38] sm:$0xff]
    %v3135 = vld [vmem:[%s3 + $0x40] sm:$0xff]
    %v3136 = vld [vmem:[%s3 + $0x48] sm:$0xff]
    %v3137 = vld [vmem:[%s3 + $0x50] sm:$0xff]
    %v3138 = vld [vmem:[%s3 + $0x58] sm:$0xff]
    %v3139 = vld [vmem:[%s3 + $0x60] sm:$0xff]
    %v3140 = vld [vmem:[%s3 + $0x68] sm:$0xff]
    %v3141 = vld [vmem:[%s3 + $0x70] sm:$0xff]
    %v3142 = vld [vmem:[%s3 + $0x78] sm:$0xff]
    %v3143 = vld [vmem:[%s3 + $0x80] sm:$0xff]
    %v3144 = vld [vmem:[%s3 + $0x88] sm:$0xff]
    %v3145 = vld [vmem:[%s3 + $0x90] sm:$0xff]
    %v3146 = vld [vmem:[%s3 + $0x98] sm:$0xff]
    %v3147 = vld [vmem:[%s3 + $0xa0] sm:$0xff]
    %v3148 = vld [vmem:[%s3 + $0xa8] sm:$0xff]
    %v3149 = vld [vmem:[%s3 + $0xb0] sm:$0xff]
    %v3150 = vld [vmem:[%s3 + $0xb8] sm:$0xff]
    %v3151 = vld [vmem:[%s3 + $0xc0] sm:$0xff]
    %v3152 = vld [vmem:[%s3 + $0xc8] sm:$0xff]
    %v3153 = vld [vmem:[%s3 + $0xd0] sm:$0xff]
    %v3154 = vld [vmem:[%s3 + $0xd8] sm:$0xff]
    %v3155 = vld [vmem:[%s3 + $0xe0] sm:$0xff]
    %v3156 = vld [vmem:[%s3 + $0xe8] sm:$0xff]
    %v3157 = vld [vmem:[%s3 + $0xf0] sm:$0xff]
    %v3158 = vld [vmem:[%s3 + $0xf8] sm:$0xff]
    %v3191 = vunpack.c.l.b16 %v3127
    %v3192 = vunpack.c.h.b16 %v3127
    %v3193 = vunpack.c.l.b16 %v3128
    %v3194 = vunpack.c.h.b16 %v3128
    %v3195 = vunpack.c.l.b16 %v3129
    %v3196 = vunpack.c.h.b16 %v3129
    %v3197 = vunpack.c.l.b16 %v3130
    %v3198 = vunpack.c.h.b16 %v3130
    %v3199 = vunpack.c.l.b16 %v3131
    %v3200 = vunpack.c.h.b16 %v3131
    %v3201 = vunpack.c.l.b16 %v3132
    %v3202 = vunpack.c.h.b16 %v3132
    %v3203 = vunpack.c.l.b16 %v3133
    %v3204 = vunpack.c.h.b16 %v3133
    %v3205 = vunpack.c.l.b16 %v3134
    %v3206 = vunpack.c.h.b16 %v3134
    %v3207 = vunpack.c.l.b16 %v3135
    %v3208 = vunpack.c.h.b16 %v3135
    %v3209 = vunpack.c.l.b16 %v3136
    %v3210 = vunpack.c.h.b16 %v3136
    %v3211 = vunpack.c.l.b16 %v3137
    %v3212 = vunpack.c.h.b16 %v3137
    %v3213 = vunpack.c.l.b16 %v3138
    %v3214 = vunpack.c.h.b16 %v3138
    %v3215 = vunpack.c.l.b16 %v3139
    %v3216 = vunpack.c.h.b16 %v3139
    %v3217 = vunpack.c.l.b16 %v3140
    %v3218 = vunpack.c.h.b16 %v3140
    %v3219 = vunpack.c.l.b16 %v3141
    %v3220 = vunpack.c.h.b16 %v3141
    %v3221 = vunpack.c.l.b16 %v3142
    %v3222 = vunpack.c.h.b16 %v3142
    %v3223 = vunpack.c.l.b16 %v3143
    %v3224 = vunpack.c.h.b16 %v3143
    %v3225 = vunpack.c.l.b16 %v3144
    %v3226 = vunpack.c.h.b16 %v3144
    %v3227 = vunpack.c.l.b16 %v3145
    %v3228 = vunpack.c.h.b16 %v3145
    %v3229 = vunpack.c.l.b16 %v3146
    %v3230 = vunpack.c.h.b16 %v3146
    %v3231 = vunpack.c.l.b16 %v3147
    %v3232 = vunpack.c.h.b16 %v3147
    %v3233 = vunpack.c.l.b16 %v3148
    %v3234 = vunpack.c.h.b16 %v3148
    %v3235 = vunpack.c.l.b16 %v3149
    %v3236 = vunpack.c.h.b16 %v3149
    %v3237 = vunpack.c.l.b16 %v3150
    %v3238 = vunpack.c.h.b16 %v3150
    %v3239 = vunpack.c.l.b16 %v3151
    %v3240 = vunpack.c.h.b16 %v3151
    %v3241 = vunpack.c.l.b16 %v3152
    %v3242 = vunpack.c.h.b16 %v3152
    %v3243 = vunpack.c.l.b16 %v3153
    %v3244 = vunpack.c.h.b16 %v3153
    %v3245 = vunpack.c.l.b16 %v3154
    %v3246 = vunpack.c.h.b16 %v3154
    %v3247 = vunpack.c.l.b16 %v3155
    %v3248 = vunpack.c.h.b16 %v3155
    %v3249 = vunpack.c.l.b16 %v3156
    %v3250 = vunpack.c.h.b16 %v3156
    %v3251 = vunpack.c.l.b16 %v3157
    %v3252 = vunpack.c.h.b16 %v3157
    %v3253 = vunpack.c.l.b16 %v3158
    %v3254 = vunpack.c.h.b16 %v3158
    %v3255 = vpack.c.b16 %v3195, %v3191
    %v3256 = vpack.c.b16 %v3196, %v3192
    %v3257 = vpack.c.b16 %v3197, %v3193
    %v3258 = vpack.c.b16 %v3198, %v3194
    %v3259 = vpack.c.b16 %v3203, %v3199
    %v3260 = vpack.c.b16 %v3204, %v3200
    %v3261 = vpack.c.b16 %v3205, %v3201
    %v3262 = vpack.c.b16 %v3206, %v3202
    %v3263 = vpack.c.b16 %v3211, %v3207
    %v3264 = vpack.c.b16 %v3212, %v3208
    %v3265 = vpack.c.b16 %v3213, %v3209
    %v3266 = vpack.c.b16 %v3214, %v3210
    %v3267 = vpack.c.b16 %v3219, %v3215
    %v3268 = vpack.c.b16 %v3220, %v3216
    %v3269 = vpack.c.b16 %v3221, %v3217
    %v3270 = vpack.c.b16 %v3222, %v3218
    %v3271 = vpack.c.b16 %v3227, %v3223
    %v3272 = vpack.c.b16 %v3228, %v3224
    %v3273 = vpack.c.b16 %v3229, %v3225
    %v3274 = vpack.c.b16 %v3230, %v3226
    %v3275 = vpack.c.b16 %v3235, %v3231
    %v3276 = vpack.c.b16 %v3236, %v3232
    %v3277 = vpack.c.b16 %v3237, %v3233
    %v3278 = vpack.c.b16 %v3238, %v3234
    %v3279 = vpack.c.b16 %v3243, %v3239
    %v3280 = vpack.c.b16 %v3244, %v3240
    %v3281 = vpack.c.b16 %v3245, %v3241
    %v3282 = vpack.c.b16 %v3246, %v3242
    %v3283 = vpack.c.b16 %v3251, %v3247
    %v3284 = vpack.c.b16 %v3252, %v3248
    %v3285 = vpack.c.b16 %v3253, %v3249
    %v3286 = vpack.c.b16 %v3254, %v3250
    %3319 = vmatprep.subr.bf16.mxu0 %v3256
    %3320 = vmatpush1.bf16.msra.mxu0 %v3255
    %3321 = vmatprep.subr.bf16.mxu0 %v3260
    %3322 = vmatpush1.bf16.msra.mxu0 %v3259
    %3323 = vmatprep.subr.bf16.mxu0 %v3264
    %3324 = vmatpush1.bf16.msra.mxu0 %v3263
    %3325 = vmatprep.subr.bf16.mxu0 %v3268
    %3326 = vmatpush1.bf16.msra.mxu0 %v3267
    %3327 = vmatprep.subr.bf16.mxu0 %v3272
    %3328 = vmatpush1.bf16.msra.mxu0 %v3271
    %3329 = vmatprep.subr.bf16.mxu0 %v3276
    %3330 = vmatpush1.bf16.msra.mxu0 %v3275
    %3331 = vmatprep.subr.bf16.mxu0 %v3280
    %3332 = vmatpush1.bf16.msra.mxu0 %v3279
    %3333 = vmatprep.subr.bf16.mxu0 %v3284
    %3334 = vmatpush1.bf16.msra.mxu0 %v3283
    %3335 = vmatprep.subr.bf16.mxu0 0
    %3336 = vmatpush1.bf16.msra.mxu0 0
    %3337 = vmatprep.subr.bf16.mxu0 0
    %3338 = vmatpush1.bf16.msra.mxu0 0
    %3339 = vmatprep.subr.bf16.mxu0 0
    %3340 = vmatpush1.bf16.msra.mxu0 0
    %3341 = vmatprep.subr.bf16.mxu0 0
    %3342 = vmatpush1.bf16.msra.mxu0 0
    %3343 = vmatprep.subr.bf16.mxu0 0
    %3344 = vmatpush1.bf16.msra.mxu0 0
    %3345 = vmatprep.subr.bf16.mxu0 0
    %3346 = vmatpush1.bf16.msra.mxu0 0
    %3347 = vmatprep.subr.bf16.mxu0 0
    %3348 = vmatpush1.bf16.msra.mxu0 0
    %3349 = vmatprep.subr.bf16.mxu0 0
    %3350 = vmatpush1.bf16.msra.mxu0 0
    %3351 = vmatprep.mubr.bf16.mxu0 0
    %3352 = vmatmul.mubr.bf16.gmra.mrb[0].mxu0 %v2772
    %v3353 = vpop.f32.mrb[0].mxu0
    %v3354 = vadd.f32 0.0, %v3353
    %v3355 = vpop.f32.mrb[0].mxu0
    %v3356 = vadd.f32 0.0, %v3355
    %v3357 = vpop.f32.mrb[0].mxu0
    %v3358 = vpop.f32.mrb[0].mxu0
    %3359 = vdwg.mxu0
    %3360 = vmatprep.subr.bf16.mxu0 %v3258
    %3361 = vmatpush1.bf16.msra.mxu0 %v3257
    %3362 = vmatprep.subr.bf16.mxu0 %v3262
    %3363 = vmatpush1.bf16.msra.mxu0 %v3261
    %3364 = vmatprep.subr.bf16.mxu0 %v3266
    %3365 = vmatpush1.bf16.msra.mxu0 %v3265
    %3366 = vmatprep.subr.bf16.mxu0 %v3270
    %3367 = vmatpush1.bf16.msra.mxu0 %v3269
    %3368 = vmatprep.subr.bf16.mxu0 %v3274
    %3369 = vmatpush1.bf16.msra.mxu0 %v3273
    %3370 = vmatprep.subr.bf16.mxu0 %v3278
    %3371 = vmatpush1.bf16.msra.mxu0 %v3277
    %3372 = vmatprep.subr.bf16.mxu0 %v3282
    %3373 = vmatpush1.bf16.msra.mxu0 %v3281
    %3374 = vmatprep.subr.bf16.mxu0 %v3286
    %3375 = vmatpush1.bf16.msra.mxu0 %v3285
    %3376 = vmatprep.subr.bf16.mxu0 0
    %3377 = vmatpush1.bf16.msra.mxu0 0
    %3378 = vmatprep.subr.bf16.mxu0 0
    %3379 = vmatpush1.bf16.msra.mxu0 0
    %3380 = vmatprep.subr.bf16.mxu0 0
    %3381 = vmatpush1.bf16.msra.mxu0 0
    %3382 = vmatprep.subr.bf16.mxu0 0
    %3383 = vmatpush1.bf16.msra.mxu0 0
    %3384 = vmatprep.subr.bf16.mxu0 0
    %3385 = vmatpush1.bf16.msra.mxu0 0
    %3386 = vmatprep.subr.bf16.mxu0 0
    %3387 = vmatpush1.bf16.msra.mxu0 0
    %3388 = vmatprep.subr.bf16.mxu0 0
    %3389 = vmatpush1.bf16.msra.mxu0 0
    %3390 = vmatprep.subr.bf16.mxu0 0
    %3391 = vmatpush1.bf16.msra.mxu0 0
    %3392 = vmatprep.mubr.bf16.mxu0 0
    %3393 = vmatmul.mubr.bf16.gmra.mrb[0].mxu0 %v2772
    %v3394 = vpop.f32.mrb[0].mxu0
    %v3395 = vadd.f32 0.0, %v3394
    %v3396 = vpop.f32.mrb[0].mxu0
    %v3397 = vadd.f32 0.0, %v3396
    %v3398 = vpop.f32.mrb[0].mxu0
    %v3399 = vpop.f32.mrb[0].mxu0
    %3400 = vdwg.mxu0
    %v3433 = vunpack.c.l.b16 %v3095
    %v3434 = vunpack.c.h.b16 %v3095
    %v3435 = vunpack.c.l.b16 %v3096
    %v3436 = vunpack.c.h.b16 %v3096
    %v3437 = vunpack.c.l.b16 %v3097
    %v3438 = vunpack.c.h.b16 %v3097
    %v3439 = vunpack.c.l.b16 %v3098
    %v3440 = vunpack.c.h.b16 %v3098
    %v3441 = vunpack.c.l.b16 %v3099
    %v3442 = vunpack.c.h.b16 %v3099
    %v3443 = vunpack.c.l.b16 %v3100
    %v3444 = vunpack.c.h.b16 %v3100
    %v3445 = vunpack.c.l.b16 %v3101
    %v3446 = vunpack.c.h.b16 %v3101
    %v3447 = vunpack.c.l.b16 %v3102
    %v3448 = vunpack.c.h.b16 %v3102
    %v3449 = vunpack.c.l.b16 %v3103
    %v3450 = vunpack.c.h.b16 %v3103
    %v3451 = vunpack.c.l.b16 %v3104
    %v3452 = vunpack.c.h.b16 %v3104
    %v3453 = vunpack.c.l.b16 %v3105
    %v3454 = vunpack.c.h.b16 %v3105
    %v3455 = vunpack.c.l.b16 %v3106
    %v3456 = vunpack.c.h.b16 %v3106
    %v3457 = vunpack.c.l.b16 %v3107
    %v3458 = vunpack.c.h.b16 %v3107
    %v3459 = vunpack.c.l.b16 %v3108
    %v3460 = vunpack.c.h.b16 %v3108
    %v3461 = vunpack.c.l.b16 %v3109
    %v3462 = vunpack.c.h.b16 %v3109
    %v3463 = vunpack.c.l.b16 %v3110
    %v3464 = vunpack.c.h.b16 %v3110
    %v3465 = vunpack.c.l.b16 %v3111
    %v3466 = vunpack.c.h.b16 %v3111
    %v3467 = vunpack.c.l.b16 %v3112
    %v3468 = vunpack.c.h.b16 %v3112
    %v3469 = vunpack.c.l.b16 %v3113
    %v3470 = vunpack.c.h.b16 %v3113
    %v3471 = vunpack.c.l.b16 %v3114
    %v3472 = vunpack.c.h.b16 %v3114
    %v3473 = vunpack.c.l.b16 %v3115
    %v3474 = vunpack.c.h.b16 %v3115
    %v3475 = vunpack.c.l.b16 %v3116
    %v3476 = vunpack.c.h.b16 %v3116
    %v3477 = vunpack.c.l.b16 %v3117
    %v3478 = vunpack.c.h.b16 %v3117
    %v3479 = vunpack.c.l.b16 %v3118
    %v3480 = vunpack.c.h.b16 %v3118
    %v3481 = vunpack.c.l.b16 %v3119
    %v3482 = vunpack.c.h.b16 %v3119
    %v3483 = vunpack.c.l.b16 %v3120
    %v3484 = vunpack.c.h.b16 %v3120
    %v3485 = vunpack.c.l.b16 %v3121
    %v3486 = vunpack.c.h.b16 %v3121
    %v3487 = vunpack.c.l.b16 %v3122
    %v3488 = vunpack.c.h.b16 %v3122
    %v3489 = vunpack.c.l.b16 %v3123
    %v3490 = vunpack.c.h.b16 %v3123
    %v3491 = vunpack.c.l.b16 %v3124
    %v3492 = vunpack.c.h.b16 %v3124
    %v3493 = vunpack.c.l.b16 %v3125
    %v3494 = vunpack.c.h.b16 %v3125
    %v3495 = vunpack.c.l.b16 %v3126
    %v3496 = vunpack.c.h.b16 %v3126
    %v3497 = vpack.c.b16 %v3437, %v3433
    %v3498 = vpack.c.b16 %v3438, %v3434
    %v3499 = vpack.c.b16 %v3439, %v3435
    %v3500 = vpack.c.b16 %v3440, %v3436
    %v3501 = vpack.c.b16 %v3445, %v3441
    %v3502 = vpack.c.b16 %v3446, %v3442
    %v3503 = vpack.c.b16 %v3447, %v3443
    %v3504 = vpack.c.b16 %v3448, %v3444
    %v3505 = vpack.c.b16 %v3453, %v3449
    %v3506 = vpack.c.b16 %v3454, %v3450
    %v3507 = vpack.c.b16 %v3455, %v3451
    %v3508 = vpack.c.b16 %v3456, %v3452
    %v3509 = vpack.c.b16 %v3461, %v3457
    %v3510 = vpack.c.b16 %v3462, %v3458
    %v3511 = vpack.c.b16 %v3463, %v3459
    %v3512 = vpack.c.b16 %v3464, %v3460
    %v3513 = vpack.c.b16 %v3469, %v3465
    %v3514 = vpack.c.b16 %v3470, %v3466
    %v3515 = vpack.c.b16 %v3471, %v3467
    %v3516 = vpack.c.b16 %v3472, %v3468
    %v3517 = vpack.c.b16 %v3477, %v3473
    %v3518 = vpack.c.b16 %v3478, %v3474
    %v3519 = vpack.c.b16 %v3479, %v3475
    %v3520 = vpack.c.b16 %v3480, %v3476
    %v3521 = vpack.c.b16 %v3485, %v3481
    %v3522 = vpack.c.b16 %v3486, %v3482
    %v3523 = vpack.c.b16 %v3487, %v3483
    %v3524 = vpack.c.b16 %v3488, %v3484
    %v3525 = vpack.c.b16 %v3493, %v3489
    %v3526 = vpack.c.b16 %v3494, %v3490
    %v3527 = vpack.c.b16 %v3495, %v3491
    %v3528 = vpack.c.b16 %v3496, %v3492
    %3561 = vmatprep.subr.bf16.mxu0 %v3498
    %3562 = vmatpush1.bf16.msra.mxu0 %v3497
    %3563 = vmatprep.subr.bf16.mxu0 %v3502
    %3564 = vmatpush1.bf16.msra.mxu0 %v3501
    %3565 = vmatprep.subr.bf16.mxu0 %v3506
    %3566 = vmatpush1.bf16.msra.mxu0 %v3505
    %3567 = vmatprep.subr.bf16.mxu0 %v3510
    %3568 = vmatpush1.bf16.msra.mxu0 %v3509
    %3569 = vmatprep.subr.bf16.mxu0 %v3514
    %3570 = vmatpush1.bf16.msra.mxu0 %v3513
    %3571 = vmatprep.subr.bf16.mxu0 %v3518
    %3572 = vmatpush1.bf16.msra.mxu0 %v3517
    %3573 = vmatprep.subr.bf16.mxu0 %v3522
    %3574 = vmatpush1.bf16.msra.mxu0 %v3521
    %3575 = vmatprep.subr.bf16.mxu0 %v3526
    %3576 = vmatpush1.bf16.msra.mxu0 %v3525
    %3577 = vmatprep.subr.bf16.mxu0 0
    %3578 = vmatpush1.bf16.msra.mxu0 0
    %3579 = vmatprep.subr.bf16.mxu0 0
    %3580 = vmatpush1.bf16.msra.mxu0 0
    %3581 = vmatprep.subr.bf16.mxu0 0
    %3582 = vmatpush1.bf16.msra.mxu0 0
    %3583 = vmatprep.subr.bf16.mxu0 0
    %3584 = vmatpush1.bf16.msra.mxu0 0
    %3585 = vmatprep.subr.bf16.mxu0 0
    %3586 = vmatpush1.bf16.msra.mxu0 0
    %3587 = vmatprep.subr.bf16.mxu0 0
    %3588 = vmatpush1.bf16.msra.mxu0 0
    %3589 = vmatprep.subr.bf16.mxu0 0
    %3590 = vmatpush1.bf16.msra.mxu0 0
    %3591 = vmatprep.subr.bf16.mxu0 0
    %3592 = vmatpush1.bf16.msra.mxu0 0
    %3593 = vmatprep.mubr.bf16.mxu0 0
    %3594 = vmatmul.mubr.bf16.gmra.mrb[0].mxu0 %v3094
    %v3595 = vpop.f32.mrb[0].mxu0
    %v3596 = vadd.f32 %v3354, %v3595
    %v3597 = vpop.f32.mrb[0].mxu0
    %v3598 = vadd.f32 %v3356, %v3597
    %v3599 = vpop.f32.mrb[0].mxu0
    %v3600 = vpop.f32.mrb[0].mxu0
    %3601 = vdwg.mxu0
    %3602 = vmatprep.subr.bf16.mxu0 %v3500
    %3603 = vmatpush1.bf16.msra.mxu0 %v3499
    %3604 = vmatprep.subr.bf16.mxu0 %v3504
    %3605 = vmatpush1.bf16.msra.mxu0 %v3503
    %3606 = vmatprep.subr.bf16.mxu0 %v3508
    %3607 = vmatpush1.bf16.msra.mxu0 %v3507
    %3608 = vmatprep.subr.bf16.mxu0 %v3512
    %3609 = vmatpush1.bf16.msra.mxu0 %v3511
    %3610 = vmatprep.subr.bf16.mxu0 %v3516
    %3611 = vmatpush1.bf16.msra.mxu0 %v3515
    %3612 = vmatprep.subr.bf16.mxu0 %v3520
    %3613 = vmatpush1.bf16.msra.mxu0 %v3519
    %3614 = vmatprep.subr.bf16.mxu0 %v3524
    %3615 = vmatpush1.bf16.msra.mxu0 %v3523
    %3616 = vmatprep.subr.bf16.mxu0 %v3528
    %3617 = vmatpush1.bf16.msra.mxu0 %v3527
    %3618 = vmatprep.subr.bf16.mxu0 0
    %3619 = vmatpush1.bf16.msra.mxu0 0
    %3620 = vmatprep.subr.bf16.mxu0 0
    %3621 = vmatpush1.bf16.msra.mxu0 0
    %3622 = vmatprep.subr.bf16.mxu0 0
    %3623 = vmatpush1.bf16.msra.mxu0 0
    %3624 = vmatprep.subr.bf16.mxu0 0
    %3625 = vmatpush1.bf16.msra.mxu0 0
    %3626 = vmatprep.subr.bf16.mxu0 0
    %3627 = vmatpush1.bf16.msra.mxu0 0
    %3628 = vmatprep.subr.bf16.mxu0 0
    %3629 = vmatpush1.bf16.msra.mxu0 0
    %3630 = vmatprep.subr.bf16.mxu0 0
    %3631 = vmatpush1.bf16.msra.mxu0 0
    %3632 = vmatprep.subr.bf16.mxu0 0
    %3633 = vmatpush1.bf16.msra.mxu0 0
    %3634 = vmatprep.mubr.bf16.mxu0 0
    %3635 = vmatmul.mubr.bf16.gmra.mrb[0].mxu0 %v3094
    %v3636 = vpop.f32.mrb[0].mxu0
    %v3637 = vadd.f32 %v3395, %v3636
    %v3638 = vpop.f32.mrb[0].mxu0
    %v3639 = vadd.f32 %v3397, %v3638
    %v3640 = vpop.f32.mrb[0].mxu0
    %v3641 = vpop.f32.mrb[0].mxu0
    %3642 = vdwg.mxu0
    %v3643 = vadd.f32 %v3596, %v55
    %v3644 = vadd.f32 %v3598, %v59
    %v3645 = vadd.f32 %v3637, %v63
    %v3646 = vadd.f32 %v3639, %v67
    %v3647 = vxor.u32 %v3643, 2147483648
    %v3648 = vxor.u32 %v3644, 2147483648
    %v3649 = vxor.u32 %v3645, 2147483648
    %v3650 = vmul.f32 %v3647, 1.442695
    %v3651 = vpow.pop %v3650
    %v3652 = vmul.f32 %v3648, 1.442695
    %v3653 = vpow.pop %v3652
    %v3654 = vmul.f32 %v3649, 1.442695
    %v3655 = vpow.pop %v3654
    %v3656 = vadd.f32 %v3651, 1.0
    %v3657 = vadd.f32 %v3653, 1.0
    %v3658 = vadd.f32 %v3655, 1.0
    %v3659 = vrcp.pop %v3656
    %v3660 = vmul.f32 1.0, %v3659
    %v3661 = vrcp.pop %v3657
    %v3662 = vmul.f32 1.0, %v3661
    %v3663 = vrcp.pop %v3658
    %v3664 = vmul.f32 1.0, %v3663
    %v3665 = vtanh.pop %v3646
    %v3666 = vmul.f32 %v3662, %v2769
    %v3667 = vmul.f32 %v3660, %v3665
    %v3668 = vadd.f32 %v3666, %v3667
    %v3669 = vtanh.pop %v3668
    %v3670 = vmul.f32 %v3664, %v3669
    %v3671 = vpack.c.bf16 %v3670, %v3670
    %s3672 = scalar_lea.vmem [#allocation2], 3
    %3673 = vst [vmem:[%s3672] sm:$0x1] %v3671
    %s3674 = scalar_lea.vmem %s0, 32
    %v3675 = vld [vmem:[%s3674] sm:$0xff]
    %v3676 = vld [vmem:[%s1] sm:$0xff]
    %v3677 = vld [vmem:[%s1 + $0x8] sm:$0xff]
    %v3678 = vld [vmem:[%s1 + $0x10] sm:$0xff]
    %v3679 = vld [vmem:[%s1 + $0x18] sm:$0xff]
    %v3680 = vld [vmem:[%s1 + $0x20] sm:$0xff]
    %v3681 = vld [vmem:[%s1 + $0x28] sm:$0xff]
    %v3682 = vld [vmem:[%s1 + $0x30] sm:$0xff]
    %v3683 = vld [vmem:[%s1 + $0x38] sm:$0xff]
    %v3684 = vld [vmem:[%s1 + $0x40] sm:$0xff]
    %v3685 = vld [vmem:[%s1 + $0x48] sm:$0xff]
    %v3686 = vld [vmem:[%s1 + $0x50] sm:$0xff]
    %v3687 = vld [vmem:[%s1 + $0x58] sm:$0xff]
    %v3688 = vld [vmem:[%s1 + $0x60] sm:$0xff]
    %v3689 = vld [vmem:[%s1 + $0x68] sm:$0xff]
    %v3690 = vld [vmem:[%s1 + $0x70] sm:$0xff]
    %v3691 = vld [vmem:[%s1 + $0x78] sm:$0xff]
    %v3692 = vld [vmem:[%s1 + $0x80] sm:$0xff]
    %v3693 = vld [vmem:[%s1 + $0x88] sm:$0xff]
    %v3694 = vld [vmem:[%s1 + $0x90] sm:$0xff]
    %v3695 = vld [vmem:[%s1 + $0x98] sm:$0xff]
    %v3696 = vld [vmem:[%s1 + $0xa0] sm:$0xff]
    %v3697 = vld [vmem:[%s1 + $0xa8] sm:$0xff]
    %v3698 = vld [vmem:[%s1 + $0xb0] sm:$0xff]
    %v3699 = vld [vmem:[%s1 + $0xb8] sm:$0xff]
    %v3700 = vld [vmem:[%s1 + $0xc0] sm:$0xff]
    %v3701 = vld [vmem:[%s1 + $0xc8] sm:$0xff]
    %v3702 = vld [vmem:[%s1 + $0xd0] sm:$0xff]
    %v3703 = vld [vmem:[%s1 + $0xd8] sm:$0xff]
    %v3704 = vld [vmem:[%s1 + $0xe0] sm:$0xff]
    %v3705 = vld [vmem:[%s1 + $0xe8] sm:$0xff]
    %v3706 = vld [vmem:[%s1 + $0xf0] sm:$0xff]
    %v3707 = vld [vmem:[%s1 + $0xf8] sm:$0xff]
    %v3740 = vunpack.c.l.b16 %v3676
    %v3741 = vunpack.c.h.b16 %v3676
    %v3742 = vunpack.c.l.b16 %v3677
    %v3743 = vunpack.c.h.b16 %v3677
    %v3744 = vunpack.c.l.b16 %v3678
    %v3745 = vunpack.c.h.b16 %v3678
    %v3746 = vunpack.c.l.b16 %v3679
    %v3747 = vunpack.c.h.b16 %v3679
    %v3748 = vunpack.c.l.b16 %v3680
    %v3749 = vunpack.c.h.b16 %v3680
    %v3750 = vunpack.c.l.b16 %v3681
    %v3751 = vunpack.c.h.b16 %v3681
    %v3752 = vunpack.c.l.b16 %v3682
    %v3753 = vunpack.c.h.b16 %v3682
    %v3754 = vunpack.c.l.b16 %v3683
    %v3755 = vunpack.c.h.b16 %v3683
    %v3756 = vunpack.c.l.b16 %v3684
    %v3757 = vunpack.c.h.b16 %v3684
    %v3758 = vunpack.c.l.b16 %v3685
    %v3759 = vunpack.c.h.b16 %v3685
    %v3760 = vunpack.c.l.b16 %v3686
    %v3761 = vunpack.c.h.b16 %v3686
    %v3762 = vunpack.c.l.b16 %v3687
    %v3763 = vunpack.c.h.b16 %v3687
    %v3764 = vunpack.c.l.b16 %v3688
    %v3765 = vunpack.c.h.b16 %v3688
    %v3766 = vunpack.c.l.b16 %v3689
    %v3767 = vunpack.c.h.b16 %v3689
    %v3768 = vunpack.c.l.b16 %v3690
    %v3769 = vunpack.c.h.b16 %v3690
    %v3770 = vunpack.c.l.b16 %v3691
    %v3771 = vunpack.c.h.b16 %v3691
    %v3772 = vunpack.c.l.b16 %v3692
    %v3773 = vunpack.c.h.b16 %v3692
    %v3774 = vunpack.c.l.b16 %v3693
    %v3775 = vunpack.c.h.b16 %v3693
    %v3776 = vunpack.c.l.b16 %v3694
    %v3777 = vunpack.c.h.b16 %v3694
    %v3778 = vunpack.c.l.b16 %v3695
    %v3779 = vunpack.c.h.b16 %v3695
    %v3780 = vunpack.c.l.b16 %v3696
    %v3781 = vunpack.c.h.b16 %v3696
    %v3782 = vunpack.c.l.b16 %v3697
    %v3783 = vunpack.c.h.b16 %v3697
    %v3784 = vunpack.c.l.b16 %v3698
    %v3785 = vunpack.c.h.b16 %v3698
    %v3786 = vunpack.c.l.b16 %v3699
    %v3787 = vunpack.c.h.b16 %v3699
    %v3788 = vunpack.c.l.b16 %v3700
    %v3789 = vunpack.c.h.b16 %v3700
    %v3790 = vunpack.c.l.b16 %v3701
    %v3791 = vunpack.c.h.b16 %v3701
    %v3792 = vunpack.c.l.b16 %v3702
    %v3793 = vunpack.c.h.b16 %v3702
    %v3794 = vunpack.c.l.b16 %v3703
    %v3795 = vunpack.c.h.b16 %v3703
    %v3796 = vunpack.c.l.b16 %v3704
    %v3797 = vunpack.c.h.b16 %v3704
    %v3798 = vunpack.c.l.b16 %v3705
    %v3799 = vunpack.c.h.b16 %v3705
    %v3800 = vunpack.c.l.b16 %v3706
    %v3801 = vunpack.c.h.b16 %v3706
    %v3802 = vunpack.c.l.b16 %v3707
    %v3803 = vunpack.c.h.b16 %v3707
    %v3804 = vpack.c.b16 %v3744, %v3740
    %v3805 = vpack.c.b16 %v3745, %v3741
    %v3806 = vpack.c.b16 %v3746, %v3742
    %v3807 = vpack.c.b16 %v3747, %v3743
    %v3808 = vpack.c.b16 %v3752, %v3748
    %v3809 = vpack.c.b16 %v3753, %v3749
    %v3810 = vpack.c.b16 %v3754, %v3750
    %v3811 = vpack.c.b16 %v3755, %v3751
    %v3812 = vpack.c.b16 %v3760, %v3756
    %v3813 = vpack.c.b16 %v3761, %v3757
    %v3814 = vpack.c.b16 %v3762, %v3758
    %v3815 = vpack.c.b16 %v3763, %v3759
    %v3816 = vpack.c.b16 %v3768, %v3764
    %v3817 = vpack.c.b16 %v3769, %v3765
    %v3818 = vpack.c.b16 %v3770, %v3766
    %v3819 = vpack.c.b16 %v3771, %v3767
    %v3820 = vpack.c.b16 %v3776, %v3772
    %v3821 = vpack.c.b16 %v3777, %v3773
    %v3822 = vpack.c.b16 %v3778, %v3774
    %v3823 = vpack.c.b16 %v3779, %v3775
    %v3824 = vpack.c.b16 %v3784, %v3780
    %v3825 = vpack.c.b16 %v3785, %v3781
    %v3826 = vpack.c.b16 %v3786, %v3782
    %v3827 = vpack.c.b16 %v3787, %v3783
    %v3828 = vpack.c.b16 %v3792, %v3788
    %v3829 = vpack.c.b16 %v3793, %v3789
    %v3830 = vpack.c.b16 %v3794, %v3790
    %v3831 = vpack.c.b16 %v3795, %v3791
    %v3832 = vpack.c.b16 %v3800, %v3796
    %v3833 = vpack.c.b16 %v3801, %v3797
    %v3834 = vpack.c.b16 %v3802, %v3798
    %v3835 = vpack.c.b16 %v3803, %v3799
    %3868 = vmatprep.subr.bf16.mxu0 %v3805
    %3869 = vmatpush1.bf16.msra.mxu0 %v3804
    %3870 = vmatprep.subr.bf16.mxu0 %v3809
    %3871 = vmatpush1.bf16.msra.mxu0 %v3808
    %3872 = vmatprep.subr.bf16.mxu0 %v3813
    %3873 = vmatpush1.bf16.msra.mxu0 %v3812
    %3874 = vmatprep.subr.bf16.mxu0 %v3817
    %3875 = vmatpush1.bf16.msra.mxu0 %v3816
    %3876 = vmatprep.subr.bf16.mxu0 %v3821
    %3877 = vmatpush1.bf16.msra.mxu0 %v3820
    %3878 = vmatprep.subr.bf16.mxu0 %v3825
    %3879 = vmatpush1.bf16.msra.mxu0 %v3824
    %3880 = vmatprep.subr.bf16.mxu0 %v3829
    %3881 = vmatpush1.bf16.msra.mxu0 %v3828
    %3882 = vmatprep.subr.bf16.mxu0 %v3833
    %3883 = vmatpush1.bf16.msra.mxu0 %v3832
    %3884 = vmatprep.subr.bf16.mxu0 0
    %3885 = vmatpush1.bf16.msra.mxu0 0
    %3886 = vmatprep.subr.bf16.mxu0 0
    %3887 = vmatpush1.bf16.msra.mxu0 0
    %3888 = vmatprep.subr.bf16.mxu0 0
    %3889 = vmatpush1.bf16.msra.mxu0 0
    %3890 = vmatprep.subr.bf16.mxu0 0
    %3891 = vmatpush1.bf16.msra.mxu0 0
    %3892 = vmatprep.subr.bf16.mxu0 0
    %3893 = vmatpush1.bf16.msra.mxu0 0
    %3894 = vmatprep.subr.bf16.mxu0 0
    %3895 = vmatpush1.bf16.msra.mxu0 0
    %3896 = vmatprep.subr.bf16.mxu0 0
    %3897 = vmatpush1.bf16.msra.mxu0 0
    %3898 = vmatprep.subr.bf16.mxu0 0
    %3899 = vmatpush1.bf16.msra.mxu0 0
    %3900 = vmatprep.mubr.bf16.mxu0 0
    %3901 = vmatmul.mubr.bf16.gmra.mrb[0].mxu0 %v3094
    %v3902 = vpop.f32.mrb[0].mxu0
    %v3903 = vadd.f32 0.0, %v3902
    %v3904 = vpop.f32.mrb[0].mxu0
    %v3905 = vadd.f32 0.0, %v3904
    %v3906 = vpop.f32.mrb[0].mxu0
    %v3907 = vpop.f32.mrb[0].mxu0
    %3908 = vdwg.mxu0
    %3909 = vmatprep.subr.bf16.mxu0 %v3807
    %3910 = vmatpush1.bf16.msra.mxu0 %v3806
    %3911 = vmatprep.subr.bf16.mxu0 %v3811
    %3912 = vmatpush1.bf16.msra.mxu0 %v3810
    %3913 = vmatprep.subr.bf16.mxu0 %v3815
    %3914 = vmatpush1.bf16.msra.mxu0 %v3814
    %3915 = vmatprep.subr.bf16.mxu0 %v3819
    %3916 = vmatpush1.bf16.msra.mxu0 %v3818
    %3917 = vmatprep.subr.bf16.mxu0 %v3823
    %3918 = vmatpush1.bf16.msra.mxu0 %v3822
    %3919 = vmatprep.subr.bf16.mxu0 %v3827
    %3920 = vmatpush1.bf16.msra.mxu0 %v3826
    %3921 = vmatprep.subr.bf16.mxu0 %v3831
    %3922 = vmatpush1.bf16.msra.mxu0 %v3830
    %3923 = vmatprep.subr.bf16.mxu0 %v3835
    %3924 = vmatpush1.bf16.msra.mxu0 %v3834
    %3925 = vmatprep.subr.bf16.mxu0 0
    %3926 = vmatpush1.bf16.msra.mxu0 0
    %3927 = vmatprep.subr.bf16.mxu0 0
    %3928 = vmatpush1.bf16.msra.mxu0 0
    %3929 = vmatprep.subr.bf16.mxu0 0
    %3930 = vmatpush1.bf16.msra.mxu0 0
    %3931 = vmatprep.subr.bf16.mxu0 0
    %3932 = vmatpush1.bf16.msra.mxu0 0
    %3933 = vmatprep.subr.bf16.mxu0 0
    %3934 = vmatpush1.bf16.msra.mxu0 0
    %3935 = vmatprep.subr.bf16.mxu0 0
    %3936 = vmatpush1.bf16.msra.mxu0 0
    %3937 = vmatprep.subr.bf16.mxu0 0
    %3938 = vmatpush1.bf16.msra.mxu0 0
    %3939 = vmatprep.subr.bf16.mxu0 0
    %3940 = vmatpush1.bf16.msra.mxu0 0
    %3941 = vmatprep.mubr.bf16.mxu0 0
    %3942 = vmatmul.mubr.bf16.gmra.mrb[0].mxu0 %v3094
    %v3943 = vpop.f32.mrb[0].mxu0
    %v3944 = vadd.f32 0.0, %v3943
    %v3945 = vpop.f32.mrb[0].mxu0
    %v3946 = vadd.f32 0.0, %v3945
    %v3947 = vpop.f32.mrb[0].mxu0
    %v3948 = vpop.f32.mrb[0].mxu0
    %3949 = vdwg.mxu0
    %v3954 = vcombine.low %v3903, %v3905
    %v3955 = vcombine.low %v3944, %v3946
    %v3957 = vunpack.c.l.s4 1983009808
    %v3958 = vunpack.c.0.s8 %v3957
    %v3959 = vlaneseq
    %v3960 = vshrl.u32 %v3959, 7
    %v3961 = vsub.s32 %v3958, %v3960
    %v3962 = vrot.slane %v3954, %v3961
    %v3964 = vunpack.c.l.s4 1983009808
    %v3965 = vunpack.c.0.s8 %v3964
    %v3966 = vlaneseq
    %v3967 = vshrl.u32 %v3966, 7
    %v3968 = vsub.s32 %v3965, %v3967
    %v3969 = vrot.slane %v3955, %v3968
    %v3970 = vcombine.low %v3962, %v3969
    %v3972 = vadd.f32 %v3675, %v3970
    %v3973 = vxor.u32 %v3972, 2147483648
    %v3974 = vmul.f32 %v3973, 1.442695
    %v3975 = vpow.pop %v3974
    %v3976 = vadd.f32 %v3975, 1.0
    %v3977 = vrcp.pop %v3976
    %v3978 = vmul.f32 1.0, %v3977
    %v3980 = vrot.slane %v3972, 6
    %v3982 = vtanh.pop %v3980
    %v3984 = vrot.slane %v3978, 2
    %v3986 = vmul.f32 %v3984, %v3089
    %v3987 = vmul.f32 %v3978, %v3982
    %v3988 = vadd.f32 %v3986, %v3987
    %v3989 = vtanh.pop %v3988
    %v3990 = vrot.slane %v3978, 4
    %v3992 = vmul.f32 %v3990, %v3989
    %v3993 = vpack.c.bf16 %v3992, %v3992
    %v3994 = vld [vmem:[%s2] sm:$0xff]
    %v3995 = vld [vmem:[%s2 + $0x8] sm:$0xff]
    %v3996 = vld [vmem:[%s2 + $0x10] sm:$0xff]
    %v3997 = vld [vmem:[%s2 + $0x18] sm:$0xff]
    %v3998 = vld [vmem:[%s2 + $0x20] sm:$0xff]
    %v3999 = vld [vmem:[%s2 + $0x28] sm:$0xff]
    %v4000 = vld [vmem:[%s2 + $0x30] sm:$0xff]
    %v4001 = vld [vmem:[%s2 + $0x38] sm:$0xff]
    %v4002 = vld [vmem:[%s2 + $0x40] sm:$0xff]
    %v4003 = vld [vmem:[%s2 + $0x48] sm:$0xff]
    %v4004 = vld [vmem:[%s2 + $0x50] sm:$0xff]
    %v4005 = vld [vmem:[%s2 + $0x58] sm:$0xff]
    %v4006 = vld [vmem:[%s2 + $0x60] sm:$0xff]
    %v4007 = vld [vmem:[%s2 + $0x68] sm:$0xff]
    %v4008 = vld [vmem:[%s2 + $0x70] sm:$0xff]
    %v4009 = vld [vmem:[%s2 + $0x78] sm:$0xff]
    %v4010 = vld [vmem:[%s2 + $0x80] sm:$0xff]
    %v4011 = vld [vmem:[%s2 + $0x88] sm:$0xff]
    %v4012 = vld [vmem:[%s2 + $0x90] sm:$0xff]
    %v4013 = vld [vmem:[%s2 + $0x98] sm:$0xff]
    %v4014 = vld [vmem:[%s2 + $0xa0] sm:$0xff]
    %v4015 = vld [vmem:[%s2 + $0xa8] sm:$0xff]
    %v4016 = vld [vmem:[%s2 + $0xb0] sm:$0xff]
    %v4017 = vld [vmem:[%s2 + $0xb8] sm:$0xff]
    %v4018 = vld [vmem:[%s2 + $0xc0] sm:$0xff]
    %v4019 = vld [vmem:[%s2 + $0xc8] sm:$0xff]
    %v4020 = vld [vmem:[%s2 + $0xd0] sm:$0xff]
    %v4021 = vld [vmem:[%s2 + $0xd8] sm:$0xff]
    %v4022 = vld [vmem:[%s2 + $0xe0] sm:$0xff]
    %v4023 = vld [vmem:[%s2 + $0xe8] sm:$0xff]
    %v4024 = vld [vmem:[%s2 + $0xf0] sm:$0xff]
    %v4025 = vld [vmem:[%s2 + $0xf8] sm:$0xff]
    %v4026 = vld [vmem:[%s3] sm:$0xff]
    %v4027 = vld [vmem:[%s3 + $0x8] sm:$0xff]
    %v4028 = vld [vmem:[%s3 + $0x10] sm:$0xff]
    %v4029 = vld [vmem:[%s3 + $0x18] sm:$0xff]
    %v4030 = vld [vmem:[%s3 + $0x20] sm:$0xff]
    %v4031 = vld [vmem:[%s3 + $0x28] sm:$0xff]
    %v4032 = vld [vmem:[%s3 + $0x30] sm:$0xff]
    %v4033 = vld [vmem:[%s3 + $0x38] sm:$0xff]
    %v4034 = vld [vmem:[%s3 + $0x40] sm:$0xff]
    %v4035 = vld [vmem:[%s3 + $0x48] sm:$0xff]
    %v4036 = vld [vmem:[%s3 + $0x50] sm:$0xff]
    %v4037 = vld [vmem:[%s3 + $0x58] sm:$0xff]
    %v4038 = vld [vmem:[%s3 + $0x60] sm:$0xff]
    %v4039 = vld [vmem:[%s3 + $0x68] sm:$0xff]
    %v4040 = vld [vmem:[%s3 + $0x70] sm:$0xff]
    %v4041 = vld [vmem:[%s3 + $0x78] sm:$0xff]
    %v4042 = vld [vmem:[%s3 + $0x80] sm:$0xff]
    %v4043 = vld [vmem:[%s3 + $0x88] sm:$0xff]
    %v4044 = vld [vmem:[%s3 + $0x90] sm:$0xff]
    %v4045 = vld [vmem:[%s3 + $0x98] sm:$0xff]
    %v4046 = vld [vmem:[%s3 + $0xa0] sm:$0xff]
    %v4047 = vld [vmem:[%s3 + $0xa8] sm:$0xff]
    %v4048 = vld [vmem:[%s3 + $0xb0] sm:$0xff]
    %v4049 = vld [vmem:[%s3 + $0xb8] sm:$0xff]
    %v4050 = vld [vmem:[%s3 + $0xc0] sm:$0xff]
    %v4051 = vld [vmem:[%s3 + $0xc8] sm:$0xff]
    %v4052 = vld [vmem:[%s3 + $0xd0] sm:$0xff]
    %v4053 = vld [vmem:[%s3 + $0xd8] sm:$0xff]
    %v4054 = vld [vmem:[%s3 + $0xe0] sm:$0xff]
    %v4055 = vld [vmem:[%s3 + $0xe8] sm:$0xff]
    %v4056 = vld [vmem:[%s3 + $0xf0] sm:$0xff]
    %v4057 = vld [vmem:[%s3 + $0xf8] sm:$0xff]
    %v4090 = vunpack.c.l.b16 %v4026
    %v4091 = vunpack.c.h.b16 %v4026
    %v4092 = vunpack.c.l.b16 %v4027
    %v4093 = vunpack.c.h.b16 %v4027
    %v4094 = vunpack.c.l.b16 %v4028
    %v4095 = vunpack.c.h.b16 %v4028
    %v4096 = vunpack.c.l.b16 %v4029
    %v4097 = vunpack.c.h.b16 %v4029
    %v4098 = vunpack.c.l.b16 %v4030
    %v4099 = vunpack.c.h.b16 %v4030
    %v4100 = vunpack.c.l.b16 %v4031
    %v4101 = vunpack.c.h.b16 %v4031
    %v4102 = vunpack.c.l.b16 %v4032
    %v4103 = vunpack.c.h.b16 %v4032
    %v4104 = vunpack.c.l.b16 %v4033
    %v4105 = vunpack.c.h.b16 %v4033
    %v4106 = vunpack.c.l.b16 %v4034
    %v4107 = vunpack.c.h.b16 %v4034
    %v4108 = vunpack.c.l.b16 %v4035
    %v4109 = vunpack.c.h.b16 %v4035
    %v4110 = vunpack.c.l.b16 %v4036
    %v4111 = vunpack.c.h.b16 %v4036
    %v4112 = vunpack.c.l.b16 %v4037
    %v4113 = vunpack.c.h.b16 %v4037
    %v4114 = vunpack.c.l.b16 %v4038
    %v4115 = vunpack.c.h.b16 %v4038
    %v4116 = vunpack.c.l.b16 %v4039
    %v4117 = vunpack.c.h.b16 %v4039
    %v4118 = vunpack.c.l.b16 %v4040
    %v4119 = vunpack.c.h.b16 %v4040
    %v4120 = vunpack.c.l.b16 %v4041
    %v4121 = vunpack.c.h.b16 %v4041
    %v4122 = vunpack.c.l.b16 %v4042
    %v4123 = vunpack.c.h.b16 %v4042
    %v4124 = vunpack.c.l.b16 %v4043
    %v4125 = vunpack.c.h.b16 %v4043
    %v4126 = vunpack.c.l.b16 %v4044
    %v4127 = vunpack.c.h.b16 %v4044
    %v4128 = vunpack.c.l.b16 %v4045
    %v4129 = vunpack.c.h.b16 %v4045
    %v4130 = vunpack.c.l.b16 %v4046
    %v4131 = vunpack.c.h.b16 %v4046
    %v4132 = vunpack.c.l.b16 %v4047
    %v4133 = vunpack.c.h.b16 %v4047
    %v4134 = vunpack.c.l.b16 %v4048
    %v4135 = vunpack.c.h.b16 %v4048
    %v4136 = vunpack.c.l.b16 %v4049
    %v4137 = vunpack.c.h.b16 %v4049
    %v4138 = vunpack.c.l.b16 %v4050
    %v4139 = vunpack.c.h.b16 %v4050
    %v4140 = vunpack.c.l.b16 %v4051
    %v4141 = vunpack.c.h.b16 %v4051
    %v4142 = vunpack.c.l.b16 %v4052
    %v4143 = vunpack.c.h.b16 %v4052
    %v4144 = vunpack.c.l.b16 %v4053
    %v4145 = vunpack.c.h.b16 %v4053
    %v4146 = vunpack.c.l.b16 %v4054
    %v4147 = vunpack.c.h.b16 %v4054
    %v4148 = vunpack.c.l.b16 %v4055
    %v4149 = vunpack.c.h.b16 %v4055
    %v4150 = vunpack.c.l.b16 %v4056
    %v4151 = vunpack.c.h.b16 %v4056
    %v4152 = vunpack.c.l.b16 %v4057
    %v4153 = vunpack.c.h.b16 %v4057
    %v4154 = vpack.c.b16 %v4094, %v4090
    %v4155 = vpack.c.b16 %v4095, %v4091
    %v4156 = vpack.c.b16 %v4096, %v4092
    %v4157 = vpack.c.b16 %v4097, %v4093
    %v4158 = vpack.c.b16 %v4102, %v4098
    %v4159 = vpack.c.b16 %v4103, %v4099
    %v4160 = vpack.c.b16 %v4104, %v4100
    %v4161 = vpack.c.b16 %v4105, %v4101
    %v4162 = vpack.c.b16 %v4110, %v4106
    %v4163 = vpack.c.b16 %v4111, %v4107
    %v4164 = vpack.c.b16 %v4112, %v4108
    %v4165 = vpack.c.b16 %v4113, %v4109
    %v4166 = vpack.c.b16 %v4118, %v4114
    %v4167 = vpack.c.b16 %v4119, %v4115
    %v4168 = vpack.c.b16 %v4120, %v4116
    %v4169 = vpack.c.b16 %v4121, %v4117
    %v4170 = vpack.c.b16 %v4126, %v4122
    %v4171 = vpack.c.b16 %v4127, %v4123
    %v4172 = vpack.c.b16 %v4128, %v4124
    %v4173 = vpack.c.b16 %v4129, %v4125
    %v4174 = vpack.c.b16 %v4134, %v4130
    %v4175 = vpack.c.b16 %v4135, %v4131
    %v4176 = vpack.c.b16 %v4136, %v4132
    %v4177 = vpack.c.b16 %v4137, %v4133
    %v4178 = vpack.c.b16 %v4142, %v4138
    %v4179 = vpack.c.b16 %v4143, %v4139
    %v4180 = vpack.c.b16 %v4144, %v4140
    %v4181 = vpack.c.b16 %v4145, %v4141
    %v4182 = vpack.c.b16 %v4150, %v4146
    %v4183 = vpack.c.b16 %v4151, %v4147
    %v4184 = vpack.c.b16 %v4152, %v4148
    %v4185 = vpack.c.b16 %v4153, %v4149
    %4218 = vmatprep.subr.bf16.mxu0 %v4155
    %4219 = vmatpush1.bf16.msra.mxu0 %v4154
    %4220 = vmatprep.subr.bf16.mxu0 %v4159
    %4221 = vmatpush1.bf16.msra.mxu0 %v4158
    %4222 = vmatprep.subr.bf16.mxu0 %v4163
    %4223 = vmatpush1.bf16.msra.mxu0 %v4162
    %4224 = vmatprep.subr.bf16.mxu0 %v4167
    %4225 = vmatpush1.bf16.msra.mxu0 %v4166
    %4226 = vmatprep.subr.bf16.mxu0 %v4171
    %4227 = vmatpush1.bf16.msra.mxu0 %v4170
    %4228 = vmatprep.subr.bf16.mxu0 %v4175
    %4229 = vmatpush1.bf16.msra.mxu0 %v4174
    %4230 = vmatprep.subr.bf16.mxu0 %v4179
    %4231 = vmatpush1.bf16.msra.mxu0 %v4178
    %4232 = vmatprep.subr.bf16.mxu0 %v4183
    %4233 = vmatpush1.bf16.msra.mxu0 %v4182
    %4234 = vmatprep.subr.bf16.mxu0 0
    %4235 = vmatpush1.bf16.msra.mxu0 0
    %4236 = vmatprep.subr.bf16.mxu0 0
    %4237 = vmatpush1.bf16.msra.mxu0 0
    %4238 = vmatprep.subr.bf16.mxu0 0
    %4239 = vmatpush1.bf16.msra.mxu0 0
    %4240 = vmatprep.subr.bf16.mxu0 0
    %4241 = vmatpush1.bf16.msra.mxu0 0
    %4242 = vmatprep.subr.bf16.mxu0 0
    %4243 = vmatpush1.bf16.msra.mxu0 0
    %4244 = vmatprep.subr.bf16.mxu0 0
    %4245 = vmatpush1.bf16.msra.mxu0 0
    %4246 = vmatprep.subr.bf16.mxu0 0
    %4247 = vmatpush1.bf16.msra.mxu0 0
    %4248 = vmatprep.subr.bf16.mxu0 0
    %4249 = vmatpush1.bf16.msra.mxu0 0
    %4250 = vmatprep.mubr.bf16.mxu0 0
    %4251 = vmatmul.mubr.bf16.gmra.mrb[0].mxu0 %v3671
    %v4252 = vpop.f32.mrb[0].mxu0
    %v4253 = vadd.f32 0.0, %v4252
    %v4254 = vpop.f32.mrb[0].mxu0
    %v4255 = vadd.f32 0.0, %v4254
    %v4256 = vpop.f32.mrb[0].mxu0
    %v4257 = vpop.f32.mrb[0].mxu0
    %4258 = vdwg.mxu0
    %4259 = vmatprep.subr.bf16.mxu0 %v4157
    %4260 = vmatpush1.bf16.msra.mxu0 %v4156
    %4261 = vmatprep.subr.bf16.mxu0 %v4161
    %4262 = vmatpush1.bf16.msra.mxu0 %v4160
    %4263 = vmatprep.subr.bf16.mxu0 %v4165
    %4264 = vmatpush1.bf16.msra.mxu0 %v4164
    %4265 = vmatprep.subr.bf16.mxu0 %v4169
    %4266 = vmatpush1.bf16.msra.mxu0 %v4168
    %4267 = vmatprep.subr.bf16.mxu0 %v4173
    %4268 = vmatpush1.bf16.msra.mxu0 %v4172
    %4269 = vmatprep.subr.bf16.mxu0 %v4177
    %4270 = vmatpush1.bf16.msra.mxu0 %v4176
    %4271 = vmatprep.subr.bf16.mxu0 %v4181
    %4272 = vmatpush1.bf16.msra.mxu0 %v4180
    %4273 = vmatprep.subr.bf16.mxu0 %v4185
    %4274 = vmatpush1.bf16.msra.mxu0 %v4184
    %4275 = vmatprep.subr.bf16.mxu0 0
    %4276 = vmatpush1.bf16.msra.mxu0 0
    %4277 = vmatprep.subr.bf16.mxu0 0
    %4278 = vmatpush1.bf16.msra.mxu0 0
    %4279 = vmatprep.subr.bf16.mxu0 0
    %4280 = vmatpush1.bf16.msra.mxu0 0
    %4281 = vmatprep.subr.bf16.mxu0 0
    %4282 = vmatpush1.bf16.msra.mxu0 0
    %4283 = vmatprep.subr.bf16.mxu0 0
    %4284 = vmatpush1.bf16.msra.mxu0 0
    %4285 = vmatprep.subr.bf16.mxu0 0
    %4286 = vmatpush1.bf16.msra.mxu0 0
    %4287 = vmatprep.subr.bf16.mxu0 0
    %4288 = vmatpush1.bf16.msra.mxu0 0
    %4289 = vmatprep.subr.bf16.mxu0 0
    %4290 = vmatpush1.bf16.msra.mxu0 0
    %4291 = vmatprep.mubr.bf16.mxu0 0
    %4292 = vmatmul.mubr.bf16.gmra.mrb[0].mxu0 %v3671
    %v4293 = vpop.f32.mrb[0].mxu0
    %v4294 = vadd.f32 0.0, %v4293
    %v4295 = vpop.f32.mrb[0].mxu0
    %v4296 = vadd.f32 0.0, %v4295
    %v4297 = vpop.f32.mrb[0].mxu0
    %v4298 = vpop.f32.mrb[0].mxu0
    %4299 = vdwg.mxu0
    %v4332 = vunpack.c.l.b16 %v3994
    %v4333 = vunpack.c.h.b16 %v3994
    %v4334 = vunpack.c.l.b16 %v3995
    %v4335 = vunpack.c.h.b16 %v3995
    %v4336 = vunpack.c.l.b16 %v3996
    %v4337 = vunpack.c.h.b16 %v3996
    %v4338 = vunpack.c.l.b16 %v3997
    %v4339 = vunpack.c.h.b16 %v3997
    %v4340 = vunpack.c.l.b16 %v3998
    %v4341 = vunpack.c.h.b16 %v3998
    %v4342 = vunpack.c.l.b16 %v3999
    %v4343 = vunpack.c.h.b16 %v3999
    %v4344 = vunpack.c.l.b16 %v4000
    %v4345 = vunpack.c.h.b16 %v4000
    %v4346 = vunpack.c.l.b16 %v4001
    %v4347 = vunpack.c.h.b16 %v4001
    %v4348 = vunpack.c.l.b16 %v4002
    %v4349 = vunpack.c.h.b16 %v4002
    %v4350 = vunpack.c.l.b16 %v4003
    %v4351 = vunpack.c.h.b16 %v4003
    %v4352 = vunpack.c.l.b16 %v4004
    %v4353 = vunpack.c.h.b16 %v4004
    %v4354 = vunpack.c.l.b16 %v4005
    %v4355 = vunpack.c.h.b16 %v4005
    %v4356 = vunpack.c.l.b16 %v4006
    %v4357 = vunpack.c.h.b16 %v4006
    %v4358 = vunpack.c.l.b16 %v4007
    %v4359 = vunpack.c.h.b16 %v4007
    %v4360 = vunpack.c.l.b16 %v4008
    %v4361 = vunpack.c.h.b16 %v4008
    %v4362 = vunpack.c.l.b16 %v4009
    %v4363 = vunpack.c.h.b16 %v4009
    %v4364 = vunpack.c.l.b16 %v4010
    %v4365 = vunpack.c.h.b16 %v4010
    %v4366 = vunpack.c.l.b16 %v4011
    %v4367 = vunpack.c.h.b16 %v4011
    %v4368 = vunpack.c.l.b16 %v4012
    %v4369 = vunpack.c.h.b16 %v4012
    %v4370 = vunpack.c.l.b16 %v4013
    %v4371 = vunpack.c.h.b16 %v4013
    %v4372 = vunpack.c.l.b16 %v4014
    %v4373 = vunpack.c.h.b16 %v4014
    %v4374 = vunpack.c.l.b16 %v4015
    %v4375 = vunpack.c.h.b16 %v4015
    %v4376 = vunpack.c.l.b16 %v4016
    %v4377 = vunpack.c.h.b16 %v4016
    %v4378 = vunpack.c.l.b16 %v4017
    %v4379 = vunpack.c.h.b16 %v4017
    %v4380 = vunpack.c.l.b16 %v4018
    %v4381 = vunpack.c.h.b16 %v4018
    %v4382 = vunpack.c.l.b16 %v4019
    %v4383 = vunpack.c.h.b16 %v4019
    %v4384 = vunpack.c.l.b16 %v4020
    %v4385 = vunpack.c.h.b16 %v4020
    %v4386 = vunpack.c.l.b16 %v4021
    %v4387 = vunpack.c.h.b16 %v4021
    %v4388 = vunpack.c.l.b16 %v4022
    %v4389 = vunpack.c.h.b16 %v4022
    %v4390 = vunpack.c.l.b16 %v4023
    %v4391 = vunpack.c.h.b16 %v4023
    %v4392 = vunpack.c.l.b16 %v4024
    %v4393 = vunpack.c.h.b16 %v4024
    %v4394 = vunpack.c.l.b16 %v4025
    %v4395 = vunpack.c.h.b16 %v4025
    %v4396 = vpack.c.b16 %v4336, %v4332
    %v4397 = vpack.c.b16 %v4337, %v4333
    %v4398 = vpack.c.b16 %v4338, %v4334
    %v4399 = vpack.c.b16 %v4339, %v4335
    %v4400 = vpack.c.b16 %v4344, %v4340
    %v4401 = vpack.c.b16 %v4345, %v4341
    %v4402 = vpack.c.b16 %v4346, %v4342
    %v4403 = vpack.c.b16 %v4347, %v4343
    %v4404 = vpack.c.b16 %v4352, %v4348
    %v4405 = vpack.c.b16 %v4353, %v4349
    %v4406 = vpack.c.b16 %v4354, %v4350
    %v4407 = vpack.c.b16 %v4355, %v4351
    %v4408 = vpack.c.b16 %v4360, %v4356
    %v4409 = vpack.c.b16 %v4361, %v4357
    %v4410 = vpack.c.b16 %v4362, %v4358
    %v4411 = vpack.c.b16 %v4363, %v4359
    %v4412 = vpack.c.b16 %v4368, %v4364
    %v4413 = vpack.c.b16 %v4369, %v4365
    %v4414 = vpack.c.b16 %v4370, %v4366
    %v4415 = vpack.c.b16 %v4371, %v4367
    %v4416 = vpack.c.b16 %v4376, %v4372
    %v4417 = vpack.c.b16 %v4377, %v4373
    %v4418 = vpack.c.b16 %v4378, %v4374
    %v4419 = vpack.c.b16 %v4379, %v4375
    %v4420 = vpack.c.b16 %v4384, %v4380
    %v4421 = vpack.c.b16 %v4385, %v4381
    %v4422 = vpack.c.b16 %v4386, %v4382
    %v4423 = vpack.c.b16 %v4387, %v4383
    %v4424 = vpack.c.b16 %v4392, %v4388
    %v4425 = vpack.c.b16 %v4393, %v4389
    %v4426 = vpack.c.b16 %v4394, %v4390
    %v4427 = vpack.c.b16 %v4395, %v4391
    %4460 = vmatprep.subr.bf16.mxu0 %v4397
    %4461 = vmatpush1.bf16.msra.mxu0 %v4396
    %4462 = vmatprep.subr.bf16.mxu0 %v4401
    %4463 = vmatpush1.bf16.msra.mxu0 %v4400
    %4464 = vmatprep.subr.bf16.mxu0 %v4405
    %4465 = vmatpush1.bf16.msra.mxu0 %v4404
    %4466 = vmatprep.subr.bf16.mxu0 %v4409
    %4467 = vmatpush1.bf16.msra.mxu0 %v4408
    %4468 = vmatprep.subr.bf16.mxu0 %v4413
    %4469 = vmatpush1.bf16.msra.mxu0 %v4412
    %4470 = vmatprep.subr.bf16.mxu0 %v4417
    %4471 = vmatpush1.bf16.msra.mxu0 %v4416
    %4472 = vmatprep.subr.bf16.mxu0 %v4421
    %4473 = vmatpush1.bf16.msra.mxu0 %v4420
    %4474 = vmatprep.subr.bf16.mxu0 %v4425
    %4475 = vmatpush1.bf16.msra.mxu0 %v4424
    %4476 = vmatprep.subr.bf16.mxu0 0
    %4477 = vmatpush1.bf16.msra.mxu0 0
    %4478 = vmatprep.subr.bf16.mxu0 0
    %4479 = vmatpush1.bf16.msra.mxu0 0
    %4480 = vmatprep.subr.bf16.mxu0 0
    %4481 = vmatpush1.bf16.msra.mxu0 0
    %4482 = vmatprep.subr.bf16.mxu0 0
    %4483 = vmatpush1.bf16.msra.mxu0 0
    %4484 = vmatprep.subr.bf16.mxu0 0
    %4485 = vmatpush1.bf16.msra.mxu0 0
    %4486 = vmatprep.subr.bf16.mxu0 0
    %4487 = vmatpush1.bf16.msra.mxu0 0
    %4488 = vmatprep.subr.bf16.mxu0 0
    %4489 = vmatpush1.bf16.msra.mxu0 0
    %4490 = vmatprep.subr.bf16.mxu0 0
    %4491 = vmatpush1.bf16.msra.mxu0 0
    %4492 = vmatprep.mubr.bf16.mxu0 0
    %4493 = vmatmul.mubr.bf16.gmra.mrb[0].mxu0 %v3993
    %v4494 = vpop.f32.mrb[0].mxu0
    %v4495 = vadd.f32 %v4253, %v4494
    %v4496 = vpop.f32.mrb[0].mxu0
    %v4497 = vadd.f32 %v4255, %v4496
    %v4498 = vpop.f32.mrb[0].mxu0
    %v4499 = vpop.f32.mrb[0].mxu0
    %4500 = vdwg.mxu0
    %4501 = vmatprep.subr.bf16.mxu0 %v4399
    %4502 = vmatpush1.bf16.msra.mxu0 %v4398
    %4503 = vmatprep.subr.bf16.mxu0 %v4403
    %4504 = vmatpush1.bf16.msra.mxu0 %v4402
    %4505 = vmatprep.subr.bf16.mxu0 %v4407
    %4506 = vmatpush1.bf16.msra.mxu0 %v4406
    %4507 = vmatprep.subr.bf16.mxu0 %v4411
    %4508 = vmatpush1.bf16.msra.mxu0 %v4410
    %4509 = vmatprep.subr.bf16.mxu0 %v4415
    %4510 = vmatpush1.bf16.msra.mxu0 %v4414
    %4511 = vmatprep.subr.bf16.mxu0 %v4419
    %4512 = vmatpush1.bf16.msra.mxu0 %v4418
    %4513 = vmatprep.subr.bf16.mxu0 %v4423
    %4514 = vmatpush1.bf16.msra.mxu0 %v4422
    %4515 = vmatprep.subr.bf16.mxu0 %v4427
    %4516 = vmatpush1.bf16.msra.mxu0 %v4426
    %4517 = vmatprep.subr.bf16.mxu0 0
    %4518 = vmatpush1.bf16.msra.mxu0 0
    %4519 = vmatprep.subr.bf16.mxu0 0
    %4520 = vmatpush1.bf16.msra.mxu0 0
    %4521 = vmatprep.subr.bf16.mxu0 0
    %4522 = vmatpush1.bf16.msra.mxu0 0
    %4523 = vmatprep.subr.bf16.mxu0 0
    %4524 = vmatpush1.bf16.msra.mxu0 0
    %4525 = vmatprep.subr.bf16.mxu0 0
    %4526 = vmatpush1.bf16.msra.mxu0 0
    %4527 = vmatprep.subr.bf16.mxu0 0
    %4528 = vmatpush1.bf16.msra.mxu0 0
    %4529 = vmatprep.subr.bf16.mxu0 0
    %4530 = vmatpush1.bf16.msra.mxu0 0
    %4531 = vmatprep.subr.bf16.mxu0 0
    %4532 = vmatpush1.bf16.msra.mxu0 0
    %4533 = vmatprep.mubr.bf16.mxu0 0
    %4534 = vmatmul.mubr.bf16.gmra.mrb[0].mxu0 %v3993
    %v4535 = vpop.f32.mrb[0].mxu0
    %v4536 = vadd.f32 %v4294, %v4535
    %v4537 = vpop.f32.mrb[0].mxu0
    %v4538 = vadd.f32 %v4296, %v4537
    %v4539 = vpop.f32.mrb[0].mxu0
    %v4540 = vpop.f32.mrb[0].mxu0
    %4541 = vdwg.mxu0
    %v4542 = vadd.f32 %v4495, %v55
    %v4543 = vadd.f32 %v4497, %v59
    %v4544 = vadd.f32 %v4536, %v63
    %v4545 = vadd.f32 %v4538, %v67
    %v4546 = vxor.u32 %v4542, 2147483648
    %v4547 = vxor.u32 %v4543, 2147483648
    %v4548 = vxor.u32 %v4544, 2147483648
    %v4549 = vmul.f32 %v4546, 1.442695
    %v4550 = vpow.pop %v4549
    %v4551 = vmul.f32 %v4547, 1.442695
    %v4552 = vpow.pop %v4551
    %v4553 = vmul.f32 %v4548, 1.442695
    %v4554 = vpow.pop %v4553
    %v4555 = vadd.f32 %v4550, 1.0
    %v4556 = vadd.f32 %v4552, 1.0
    %v4557 = vadd.f32 %v4554, 1.0
    %v4558 = vrcp.pop %v4555
    %v4559 = vmul.f32 1.0, %v4558
    %v4560 = vrcp.pop %v4556
    %v4561 = vmul.f32 1.0, %v4560
    %v4562 = vrcp.pop %v4557
    %v4563 = vmul.f32 1.0, %v4562
    %v4564 = vtanh.pop %v4545
    %v4565 = vmul.f32 %v4561, %v3668
    %v4566 = vmul.f32 %v4559, %v4564
    %v4567 = vadd.f32 %v4565, %v4566
    %v4568 = vtanh.pop %v4567
    %v4569 = vmul.f32 %v4563, %v4568
    %v4570 = vpack.c.bf16 %v4569, %v4569
    %s4571 = scalar_lea.vmem [#allocation2], 4
    %4572 = vst [vmem:[%s4571] sm:$0x1] %v4570
    %s4573 = scalar_lea.vmem %s0, 40
    %v4574 = vld [vmem:[%s4573] sm:$0xff]
    %v4575 = vld [vmem:[%s1] sm:$0xff]
    %v4576 = vld [vmem:[%s1 + $0x8] sm:$0xff]
    %v4577 = vld [vmem:[%s1 + $0x10] sm:$0xff]
    %v4578 = vld [vmem:[%s1 + $0x18] sm:$0xff]
    %v4579 = vld [vmem:[%s1 + $0x20] sm:$0xff]
    %v4580 = vld [vmem:[%s1 + $0x28] sm:$0xff]
    %v4581 = vld [vmem:[%s1 + $0x30] sm:$0xff]
    %v4582 = vld [vmem:[%s1 + $0x38] sm:$0xff]
    %v4583 = vld [vmem:[%s1 + $0x40] sm:$0xff]
    %v4584 = vld [vmem:[%s1 + $0x48] sm:$0xff]
    %v4585 = vld [vmem:[%s1 + $0x50] sm:$0xff]
    %v4586 = vld [vmem:[%s1 + $0x58] sm:$0xff]
    %v4587 = vld [vmem:[%s1 + $0x60] sm:$0xff]
    %v4588 = vld [vmem:[%s1 + $0x68] sm:$0xff]
    %v4589 = vld [vmem:[%s1 + $0x70] sm:$0xff]
    %v4590 = vld [vmem:[%s1 + $0x78] sm:$0xff]
    %v4591 = vld [vmem:[%s1 + $0x80] sm:$0xff]
    %v4592 = vld [vmem:[%s1 + $0x88] sm:$0xff]
    %v4593 = vld [vmem:[%s1 + $0x90] sm:$0xff]
    %v4594 = vld [vmem:[%s1 + $0x98] sm:$0xff]
    %v4595 = vld [vmem:[%s1 + $0xa0] sm:$0xff]
    %v4596 = vld [vmem:[%s1 + $0xa8] sm:$0xff]
    %v4597 = vld [vmem:[%s1 + $0xb0] sm:$0xff]
    %v4598 = vld [vmem:[%s1 + $0xb8] sm:$0xff]
    %v4599 = vld [vmem:[%s1 + $0xc0] sm:$0xff]
    %v4600 = vld [vmem:[%s1 + $0xc8] sm:$0xff]
    %v4601 = vld [vmem:[%s1 + $0xd0] sm:$0xff]
    %v4602 = vld [vmem:[%s1 + $0xd8] sm:$0xff]
    %v4603 = vld [vmem:[%s1 + $0xe0] sm:$0xff]
    %v4604 = vld [vmem:[%s1 + $0xe8] sm:$0xff]
    %v4605 = vld [vmem:[%s1 + $0xf0] sm:$0xff]
    %v4606 = vld [vmem:[%s1 + $0xf8] sm:$0xff]
    %v4639 = vunpack.c.l.b16 %v4575
    %v4640 = vunpack.c.h.b16 %v4575
    %v4641 = vunpack.c.l.b16 %v4576
    %v4642 = vunpack.c.h.b16 %v4576
    %v4643 = vunpack.c.l.b16 %v4577
    %v4644 = vunpack.c.h.b16 %v4577
    %v4645 = vunpack.c.l.b16 %v4578
    %v4646 = vunpack.c.h.b16 %v4578
    %v4647 = vunpack.c.l.b16 %v4579
    %v4648 = vunpack.c.h.b16 %v4579
    %v4649 = vunpack.c.l.b16 %v4580
    %v4650 = vunpack.c.h.b16 %v4580
    %v4651 = vunpack.c.l.b16 %v4581
    %v4652 = vunpack.c.h.b16 %v4581
    %v4653 = vunpack.c.l.b16 %v4582
    %v4654 = vunpack.c.h.b16 %v4582
    %v4655 = vunpack.c.l.b16 %v4583
    %v4656 = vunpack.c.h.b16 %v4583
    %v4657 = vunpack.c.l.b16 %v4584
    %v4658 = vunpack.c.h.b16 %v4584
    %v4659 = vunpack.c.l.b16 %v4585
    %v4660 = vunpack.c.h.b16 %v4585
    %v4661 = vunpack.c.l.b16 %v4586
    %v4662 = vunpack.c.h.b16 %v4586
    %v4663 = vunpack.c.l.b16 %v4587
    %v4664 = vunpack.c.h.b16 %v4587
    %v4665 = vunpack.c.l.b16 %v4588
    %v4666 = vunpack.c.h.b16 %v4588
    %v4667 = vunpack.c.l.b16 %v4589
    %v4668 = vunpack.c.h.b16 %v4589
    %v4669 = vunpack.c.l.b16 %v4590
    %v4670 = vunpack.c.h.b16 %v4590
    %v4671 = vunpack.c.l.b16 %v4591
    %v4672 = vunpack.c.h.b16 %v4591
    %v4673 = vunpack.c.l.b16 %v4592
    %v4674 = vunpack.c.h.b16 %v4592
    %v4675 = vunpack.c.l.b16 %v4593
    %v4676 = vunpack.c.h.b16 %v4593
    %v4677 = vunpack.c.l.b16 %v4594
    %v4678 = vunpack.c.h.b16 %v4594
    %v4679 = vunpack.c.l.b16 %v4595
    %v4680 = vunpack.c.h.b16 %v4595
    %v4681 = vunpack.c.l.b16 %v4596
    %v4682 = vunpack.c.h.b16 %v4596
    %v4683 = vunpack.c.l.b16 %v4597
    %v4684 = vunpack.c.h.b16 %v4597
    %v4685 = vunpack.c.l.b16 %v4598
    %v4686 = vunpack.c.h.b16 %v4598
    %v4687 = vunpack.c.l.b16 %v4599
    %v4688 = vunpack.c.h.b16 %v4599
    %v4689 = vunpack.c.l.b16 %v4600
    %v4690 = vunpack.c.h.b16 %v4600
    %v4691 = vunpack.c.l.b16 %v4601
    %v4692 = vunpack.c.h.b16 %v4601
    %v4693 = vunpack.c.l.b16 %v4602
    %v4694 = vunpack.c.h.b16 %v4602
    %v4695 = vunpack.c.l.b16 %v4603
    %v4696 = vunpack.c.h.b16 %v4603
    %v4697 = vunpack.c.l.b16 %v4604
    %v4698 = vunpack.c.h.b16 %v4604
    %v4699 = vunpack.c.l.b16 %v4605
    %v4700 = vunpack.c.h.b16 %v4605
    %v4701 = vunpack.c.l.b16 %v4606
    %v4702 = vunpack.c.h.b16 %v4606
    %v4703 = vpack.c.b16 %v4643, %v4639
    %v4704 = vpack.c.b16 %v4644, %v4640
    %v4705 = vpack.c.b16 %v4645, %v4641
    %v4706 = vpack.c.b16 %v4646, %v4642
    %v4707 = vpack.c.b16 %v4651, %v4647
    %v4708 = vpack.c.b16 %v4652, %v4648
    %v4709 = vpack.c.b16 %v4653, %v4649
    %v4710 = vpack.c.b16 %v4654, %v4650
    %v4711 = vpack.c.b16 %v4659, %v4655
    %v4712 = vpack.c.b16 %v4660, %v4656
    %v4713 = vpack.c.b16 %v4661, %v4657
    %v4714 = vpack.c.b16 %v4662, %v4658
    %v4715 = vpack.c.b16 %v4667, %v4663
    %v4716 = vpack.c.b16 %v4668, %v4664
    %v4717 = vpack.c.b16 %v4669, %v4665
    %v4718 = vpack.c.b16 %v4670, %v4666
    %v4719 = vpack.c.b16 %v4675, %v4671
    %v4720 = vpack.c.b16 %v4676, %v4672
    %v4721 = vpack.c.b16 %v4677, %v4673
    %v4722 = vpack.c.b16 %v4678, %v4674
    %v4723 = vpack.c.b16 %v4683, %v4679
    %v4724 = vpack.c.b16 %v4684, %v4680
    %v4725 = vpack.c.b16 %v4685, %v4681
    %v4726 = vpack.c.b16 %v4686, %v4682
    %v4727 = vpack.c.b16 %v4691, %v4687
    %v4728 = vpack.c.b16 %v4692, %v4688
    %v4729 = vpack.c.b16 %v4693, %v4689
    %v4730 = vpack.c.b16 %v4694, %v4690
    %v4731 = vpack.c.b16 %v4699, %v4695
    %v4732 = vpack.c.b16 %v4700, %v4696
    %v4733 = vpack.c.b16 %v4701, %v4697
    %v4734 = vpack.c.b16 %v4702, %v4698
    %4767 = vmatprep.subr.bf16.mxu0 %v4704
    %4768 = vmatpush1.bf16.msra.mxu0 %v4703
    %4769 = vmatprep.subr.bf16.mxu0 %v4708
    %4770 = vmatpush1.bf16.msra.mxu0 %v4707
    %4771 = vmatprep.subr.bf16.mxu0 %v4712
    %4772 = vmatpush1.bf16.msra.mxu0 %v4711
    %4773 = vmatprep.subr.bf16.mxu0 %v4716
    %4774 = vmatpush1.bf16.msra.mxu0 %v4715
    %4775 = vmatprep.subr.bf16.mxu0 %v4720
    %4776 = vmatpush1.bf16.msra.mxu0 %v4719
    %4777 = vmatprep.subr.bf16.mxu0 %v4724
    %4778 = vmatpush1.bf16.msra.mxu0 %v4723
    %4779 = vmatprep.subr.bf16.mxu0 %v4728
    %4780 = vmatpush1.bf16.msra.mxu0 %v4727
    %4781 = vmatprep.subr.bf16.mxu0 %v4732
    %4782 = vmatpush1.bf16.msra.mxu0 %v4731
    %4783 = vmatprep.subr.bf16.mxu0 0
    %4784 = vmatpush1.bf16.msra.mxu0 0
    %4785 = vmatprep.subr.bf16.mxu0 0
    %4786 = vmatpush1.bf16.msra.mxu0 0
    %4787 = vmatprep.subr.bf16.mxu0 0
    %4788 = vmatpush1.bf16.msra.mxu0 0
    %4789 = vmatprep.subr.bf16.mxu0 0
    %4790 = vmatpush1.bf16.msra.mxu0 0
    %4791 = vmatprep.subr.bf16.mxu0 0
    %4792 = vmatpush1.bf16.msra.mxu0 0
    %4793 = vmatprep.subr.bf16.mxu0 0
    %4794 = vmatpush1.bf16.msra.mxu0 0
    %4795 = vmatprep.subr.bf16.mxu0 0
    %4796 = vmatpush1.bf16.msra.mxu0 0
    %4797 = vmatprep.subr.bf16.mxu0 0
    %4798 = vmatpush1.bf16.msra.mxu0 0
    %4799 = vmatprep.mubr.bf16.mxu0 0
    %4800 = vmatmul.mubr.bf16.gmra.mrb[0].mxu0 %v3993
    %v4801 = vpop.f32.mrb[0].mxu0
    %v4802 = vadd.f32 0.0, %v4801
    %v4803 = vpop.f32.mrb[0].mxu0
    %v4804 = vadd.f32 0.0, %v4803
    %v4805 = vpop.f32.mrb[0].mxu0
    %v4806 = vpop.f32.mrb[0].mxu0
    %4807 = vdwg.mxu0
    %4808 = vmatprep.subr.bf16.mxu0 %v4706
    %4809 = vmatpush1.bf16.msra.mxu0 %v4705
    %4810 = vmatprep.subr.bf16.mxu0 %v4710
    %4811 = vmatpush1.bf16.msra.mxu0 %v4709
    %4812 = vmatprep.subr.bf16.mxu0 %v4714
    %4813 = vmatpush1.bf16.msra.mxu0 %v4713
    %4814 = vmatprep.subr.bf16.mxu0 %v4718
    %4815 = vmatpush1.bf16.msra.mxu0 %v4717
    %4816 = vmatprep.subr.bf16.mxu0 %v4722
    %4817 = vmatpush1.bf16.msra.mxu0 %v4721
    %4818 = vmatprep.subr.bf16.mxu0 %v4726
    %4819 = vmatpush1.bf16.msra.mxu0 %v4725
    %4820 = vmatprep.subr.bf16.mxu0 %v4730
    %4821 = vmatpush1.bf16.msra.mxu0 %v4729
    %4822 = vmatprep.subr.bf16.mxu0 %v4734
    %4823 = vmatpush1.bf16.msra.mxu0 %v4733
    %4824 = vmatprep.subr.bf16.mxu0 0
    %4825 = vmatpush1.bf16.msra.mxu0 0
    %4826 = vmatprep.subr.bf16.mxu0 0
    %4827 = vmatpush1.bf16.msra.mxu0 0
    %4828 = vmatprep.subr.bf16.mxu0 0
    %4829 = vmatpush1.bf16.msra.mxu0 0
    %4830 = vmatprep.subr.bf16.mxu0 0
    %4831 = vmatpush1.bf16.msra.mxu0 0
    %4832 = vmatprep.subr.bf16.mxu0 0
    %4833 = vmatpush1.bf16.msra.mxu0 0
    %4834 = vmatprep.subr.bf16.mxu0 0
    %4835 = vmatpush1.bf16.msra.mxu0 0
    %4836 = vmatprep.subr.bf16.mxu0 0
    %4837 = vmatpush1.bf16.msra.mxu0 0
    %4838 = vmatprep.subr.bf16.mxu0 0
    %4839 = vmatpush1.bf16.msra.mxu0 0
    %4840 = vmatprep.mubr.bf16.mxu0 0
    %4841 = vmatmul.mubr.bf16.gmra.mrb[0].mxu0 %v3993
    %v4842 = vpop.f32.mrb[0].mxu0
    %v4843 = vadd.f32 0.0, %v4842
    %v4844 = vpop.f32.mrb[0].mxu0
    %v4845 = vadd.f32 0.0, %v4844
    %v4846 = vpop.f32.mrb[0].mxu0
    %v4847 = vpop.f32.mrb[0].mxu0
    %4848 = vdwg.mxu0
    %v4853 = vcombine.low %v4802, %v4804
    %v4854 = vcombine.low %v4843, %v4845
    %v4856 = vunpack.c.l.s4 1983009808
    %v4857 = vunpack.c.0.s8 %v4856
    %v4858 = vlaneseq
    %v4859 = vshrl.u32 %v4858, 7
    %v4860 = vsub.s32 %v4857, %v4859
    %v4861 = vrot.slane %v4853, %v4860
    %v4863 = vunpack.c.l.s4 1983009808
    %v4864 = vunpack.c.0.s8 %v4863
    %v4865 = vlaneseq
    %v4866 = vshrl.u32 %v4865, 7
    %v4867 = vsub.s32 %v4864, %v4866
    %v4868 = vrot.slane %v4854, %v4867
    %v4869 = vcombine.low %v4861, %v4868
    %v4871 = vadd.f32 %v4574, %v4869
    %v4872 = vxor.u32 %v4871, 2147483648
    %v4873 = vmul.f32 %v4872, 1.442695
    %v4874 = vpow.pop %v4873
    %v4875 = vadd.f32 %v4874, 1.0
    %v4876 = vrcp.pop %v4875
    %v4877 = vmul.f32 1.0, %v4876
    %v4879 = vrot.slane %v4871, 6
    %v4881 = vtanh.pop %v4879
    %v4883 = vrot.slane %v4877, 2
    %v4885 = vmul.f32 %v4883, %v3988
    %v4886 = vmul.f32 %v4877, %v4881
    %v4887 = vadd.f32 %v4885, %v4886
    %v4888 = vtanh.pop %v4887
    %v4889 = vrot.slane %v4877, 4
    %v4891 = vmul.f32 %v4889, %v4888
    %v4892 = vpack.c.bf16 %v4891, %v4891
    %v4893 = vld [vmem:[%s2] sm:$0xff]
    %v4894 = vld [vmem:[%s2 + $0x8] sm:$0xff]
    %v4895 = vld [vmem:[%s2 + $0x10] sm:$0xff]
    %v4896 = vld [vmem:[%s2 + $0x18] sm:$0xff]
    %v4897 = vld [vmem:[%s2 + $0x20] sm:$0xff]
    %v4898 = vld [vmem:[%s2 + $0x28] sm:$0xff]
    %v4899 = vld [vmem:[%s2 + $0x30] sm:$0xff]
    %v4900 = vld [vmem:[%s2 + $0x38] sm:$0xff]
    %v4901 = vld [vmem:[%s2 + $0x40] sm:$0xff]
    %v4902 = vld [vmem:[%s2 + $0x48] sm:$0xff]
    %v4903 = vld [vmem:[%s2 + $0x50] sm:$0xff]
    %v4904 = vld [vmem:[%s2 + $0x58] sm:$0xff]
    %v4905 = vld [vmem:[%s2 + $0x60] sm:$0xff]
    %v4906 = vld [vmem:[%s2 + $0x68] sm:$0xff]
    %v4907 = vld [vmem:[%s2 + $0x70] sm:$0xff]
    %v4908 = vld [vmem:[%s2 + $0x78] sm:$0xff]
    %v4909 = vld [vmem:[%s2 + $0x80] sm:$0xff]
    %v4910 = vld [vmem:[%s2 + $0x88] sm:$0xff]
    %v4911 = vld [vmem:[%s2 + $0x90] sm:$0xff]
    %v4912 = vld [vmem:[%s2 + $0x98] sm:$0xff]
    %v4913 = vld [vmem:[%s2 + $0xa0] sm:$0xff]
    %v4914 = vld [vmem:[%s2 + $0xa8] sm:$0xff]
    %v4915 = vld [vmem:[%s2 + $0xb0] sm:$0xff]
    %v4916 = vld [vmem:[%s2 + $0xb8] sm:$0xff]
    %v4917 = vld [vmem:[%s2 + $0xc0] sm:$0xff]
    %v4918 = vld [vmem:[%s2 + $0xc8] sm:$0xff]
    %v4919 = vld [vmem:[%s2 + $0xd0] sm:$0xff]
    %v4920 = vld [vmem:[%s2 + $0xd8] sm:$0xff]
    %v4921 = vld [vmem:[%s2 + $0xe0] sm:$0xff]
    %v4922 = vld [vmem:[%s2 + $0xe8] sm:$0xff]
    %v4923 = vld [vmem:[%s2 + $0xf0] sm:$0xff]
    %v4924 = vld [vmem:[%s2 + $0xf8] sm:$0xff]
    %v4925 = vld [vmem:[%s3] sm:$0xff]
    %v4926 = vld [vmem:[%s3 + $0x8] sm:$0xff]
    %v4927 = vld [vmem:[%s3 + $0x10] sm:$0xff]
    %v4928 = vld [vmem:[%s3 + $0x18] sm:$0xff]
    %v4929 = vld [vmem:[%s3 + $0x20] sm:$0xff]
    %v4930 = vld [vmem:[%s3 + $0x28] sm:$0xff]
    %v4931 = vld [vmem:[%s3 + $0x30] sm:$0xff]
    %v4932 = vld [vmem:[%s3 + $0x38] sm:$0xff]
    %v4933 = vld [vmem:[%s3 + $0x40] sm:$0xff]
    %v4934 = vld [vmem:[%s3 + $0x48] sm:$0xff]
    %v4935 = vld [vmem:[%s3 + $0x50] sm:$0xff]
    %v4936 = vld [vmem:[%s3 + $0x58] sm:$0xff]
    %v4937 = vld [vmem:[%s3 + $0x60] sm:$0xff]
    %v4938 = vld [vmem:[%s3 + $0x68] sm:$0xff]
    %v4939 = vld [vmem:[%s3 + $0x70] sm:$0xff]
    %v4940 = vld [vmem:[%s3 + $0x78] sm:$0xff]
    %v4941 = vld [vmem:[%s3 + $0x80] sm:$0xff]
    %v4942 = vld [vmem:[%s3 + $0x88] sm:$0xff]
    %v4943 = vld [vmem:[%s3 + $0x90] sm:$0xff]
    %v4944 = vld [vmem:[%s3 + $0x98] sm:$0xff]
    %v4945 = vld [vmem:[%s3 + $0xa0] sm:$0xff]
    %v4946 = vld [vmem:[%s3 + $0xa8] sm:$0xff]
    %v4947 = vld [vmem:[%s3 + $0xb0] sm:$0xff]
    %v4948 = vld [vmem:[%s3 + $0xb8] sm:$0xff]
    %v4949 = vld [vmem:[%s3 + $0xc0] sm:$0xff]
    %v4950 = vld [vmem:[%s3 + $0xc8] sm:$0xff]
    %v4951 = vld [vmem:[%s3 + $0xd0] sm:$0xff]
    %v4952 = vld [vmem:[%s3 + $0xd8] sm:$0xff]
    %v4953 = vld [vmem:[%s3 + $0xe0] sm:$0xff]
    %v4954 = vld [vmem:[%s3 + $0xe8] sm:$0xff]
    %v4955 = vld [vmem:[%s3 + $0xf0] sm:$0xff]
    %v4956 = vld [vmem:[%s3 + $0xf8] sm:$0xff]
    %v4989 = vunpack.c.l.b16 %v4925
    %v4990 = vunpack.c.h.b16 %v4925
    %v4991 = vunpack.c.l.b16 %v4926
    %v4992 = vunpack.c.h.b16 %v4926
    %v4993 = vunpack.c.l.b16 %v4927
    %v4994 = vunpack.c.h.b16 %v4927
    %v4995 = vunpack.c.l.b16 %v4928
    %v4996 = vunpack.c.h.b16 %v4928
    %v4997 = vunpack.c.l.b16 %v4929
    %v4998 = vunpack.c.h.b16 %v4929
    %v4999 = vunpack.c.l.b16 %v4930
    %v5000 = vunpack.c.h.b16 %v4930
    %v5001 = vunpack.c.l.b16 %v4931
    %v5002 = vunpack.c.h.b16 %v4931
    %v5003 = vunpack.c.l.b16 %v4932
    %v5004 = vunpack.c.h.b16 %v4932
    %v5005 = vunpack.c.l.b16 %v4933
    %v5006 = vunpack.c.h.b16 %v4933
    %v5007 = vunpack.c.l.b16 %v4934
    %v5008 = vunpack.c.h.b16 %v4934
    %v5009 = vunpack.c.l.b16 %v4935
    %v5010 = vunpack.c.h.b16 %v4935
    %v5011 = vunpack.c.l.b16 %v4936
    %v5012 = vunpack.c.h.b16 %v4936
    %v5013 = vunpack.c.l.b16 %v4937
    %v5014 = vunpack.c.h.b16 %v4937
    %v5015 = vunpack.c.l.b16 %v4938
    %v5016 = vunpack.c.h.b16 %v4938
    %v5017 = vunpack.c.l.b16 %v4939
    %v5018 = vunpack.c.h.b16 %v4939
    %v5019 = vunpack.c.l.b16 %v4940
    %v5020 = vunpack.c.h.b16 %v4940
    %v5021 = vunpack.c.l.b16 %v4941
    %v5022 = vunpack.c.h.b16 %v4941
    %v5023 = vunpack.c.l.b16 %v4942
    %v5024 = vunpack.c.h.b16 %v4942
    %v5025 = vunpack.c.l.b16 %v4943
    %v5026 = vunpack.c.h.b16 %v4943
    %v5027 = vunpack.c.l.b16 %v4944
    %v5028 = vunpack.c.h.b16 %v4944
    %v5029 = vunpack.c.l.b16 %v4945
    %v5030 = vunpack.c.h.b16 %v4945
    %v5031 = vunpack.c.l.b16 %v4946
    %v5032 = vunpack.c.h.b16 %v4946
    %v5033 = vunpack.c.l.b16 %v4947
    %v5034 = vunpack.c.h.b16 %v4947
    %v5035 = vunpack.c.l.b16 %v4948
    %v5036 = vunpack.c.h.b16 %v4948
    %v5037 = vunpack.c.l.b16 %v4949
    %v5038 = vunpack.c.h.b16 %v4949
    %v5039 = vunpack.c.l.b16 %v4950
    %v5040 = vunpack.c.h.b16 %v4950
    %v5041 = vunpack.c.l.b16 %v4951
    %v5042 = vunpack.c.h.b16 %v4951
    %v5043 = vunpack.c.l.b16 %v4952
    %v5044 = vunpack.c.h.b16 %v4952
    %v5045 = vunpack.c.l.b16 %v4953
    %v5046 = vunpack.c.h.b16 %v4953
    %v5047 = vunpack.c.l.b16 %v4954
    %v5048 = vunpack.c.h.b16 %v4954
    %v5049 = vunpack.c.l.b16 %v4955
    %v5050 = vunpack.c.h.b16 %v4955
    %v5051 = vunpack.c.l.b16 %v4956
    %v5052 = vunpack.c.h.b16 %v4956
    %v5053 = vpack.c.b16 %v4993, %v4989
    %v5054 = vpack.c.b16 %v4994, %v4990
    %v5055 = vpack.c.b16 %v4995, %v4991
    %v5056 = vpack.c.b16 %v4996, %v4992
    %v5057 = vpack.c.b16 %v5001, %v4997
    %v5058 = vpack.c.b16 %v5002, %v4998
    %v5059 = vpack.c.b16 %v5003, %v4999
    %v5060 = vpack.c.b16 %v5004, %v5000
    %v5061 = vpack.c.b16 %v5009, %v5005
    %v5062 = vpack.c.b16 %v5010, %v5006
    %v5063 = vpack.c.b16 %v5011, %v5007
    %v5064 = vpack.c.b16 %v5012, %v5008
    %v5065 = vpack.c.b16 %v5017, %v5013
    %v5066 = vpack.c.b16 %v5018, %v5014
    %v5067 = vpack.c.b16 %v5019, %v5015
    %v5068 = vpack.c.b16 %v5020, %v5016
    %v5069 = vpack.c.b16 %v5025, %v5021
    %v5070 = vpack.c.b16 %v5026, %v5022
    %v5071 = vpack.c.b16 %v5027, %v5023
    %v5072 = vpack.c.b16 %v5028, %v5024
    %v5073 = vpack.c.b16 %v5033, %v5029
    %v5074 = vpack.c.b16 %v5034, %v5030
    %v5075 = vpack.c.b16 %v5035, %v5031
    %v5076 = vpack.c.b16 %v5036, %v5032
    %v5077 = vpack.c.b16 %v5041, %v5037
    %v5078 = vpack.c.b16 %v5042, %v5038
    %v5079 = vpack.c.b16 %v5043, %v5039
    %v5080 = vpack.c.b16 %v5044, %v5040
    %v5081 = vpack.c.b16 %v5049, %v5045
    %v5082 = vpack.c.b16 %v5050, %v5046
    %v5083 = vpack.c.b16 %v5051, %v5047
    %v5084 = vpack.c.b16 %v5052, %v5048
    %5117 = vmatprep.subr.bf16.mxu0 %v5054
    %5118 = vmatpush1.bf16.msra.mxu0 %v5053
    %5119 = vmatprep.subr.bf16.mxu0 %v5058
    %5120 = vmatpush1.bf16.msra.mxu0 %v5057
    %5121 = vmatprep.subr.bf16.mxu0 %v5062
    %5122 = vmatpush1.bf16.msra.mxu0 %v5061
    %5123 = vmatprep.subr.bf16.mxu0 %v5066
    %5124 = vmatpush1.bf16.msra.mxu0 %v5065
    %5125 = vmatprep.subr.bf16.mxu0 %v5070
    %5126 = vmatpush1.bf16.msra.mxu0 %v5069
    %5127 = vmatprep.subr.bf16.mxu0 %v5074
    %5128 = vmatpush1.bf16.msra.mxu0 %v5073
    %5129 = vmatprep.subr.bf16.mxu0 %v5078
    %5130 = vmatpush1.bf16.msra.mxu0 %v5077
    %5131 = vmatprep.subr.bf16.mxu0 %v5082
    %5132 = vmatpush1.bf16.msra.mxu0 %v5081
    %5133 = vmatprep.subr.bf16.mxu0 0
    %5134 = vmatpush1.bf16.msra.mxu0 0
    %5135 = vmatprep.subr.bf16.mxu0 0
    %5136 = vmatpush1.bf16.msra.mxu0 0
    %5137 = vmatprep.subr.bf16.mxu0 0
    %5138 = vmatpush1.bf16.msra.mxu0 0
    %5139 = vmatprep.subr.bf16.mxu0 0
    %5140 = vmatpush1.bf16.msra.mxu0 0
    %5141 = vmatprep.subr.bf16.mxu0 0
    %5142 = vmatpush1.bf16.msra.mxu0 0
    %5143 = vmatprep.subr.bf16.mxu0 0
    %5144 = vmatpush1.bf16.msra.mxu0 0
    %5145 = vmatprep.subr.bf16.mxu0 0
    %5146 = vmatpush1.bf16.msra.mxu0 0
    %5147 = vmatprep.subr.bf16.mxu0 0
    %5148 = vmatpush1.bf16.msra.mxu0 0
    %5149 = vmatprep.mubr.bf16.mxu0 0
    %5150 = vmatmul.mubr.bf16.gmra.mrb[0].mxu0 %v4570
    %v5151 = vpop.f32.mrb[0].mxu0
    %v5152 = vadd.f32 0.0, %v5151
    %v5153 = vpop.f32.mrb[0].mxu0
    %v5154 = vadd.f32 0.0, %v5153
    %v5155 = vpop.f32.mrb[0].mxu0
    %v5156 = vpop.f32.mrb[0].mxu0
    %5157 = vdwg.mxu0
    %5158 = vmatprep.subr.bf16.mxu0 %v5056
    %5159 = vmatpush1.bf16.msra.mxu0 %v5055
    %5160 = vmatprep.subr.bf16.mxu0 %v5060
    %5161 = vmatpush1.bf16.msra.mxu0 %v5059
    %5162 = vmatprep.subr.bf16.mxu0 %v5064
    %5163 = vmatpush1.bf16.msra.mxu0 %v5063
    %5164 = vmatprep.subr.bf16.mxu0 %v5068
    %5165 = vmatpush1.bf16.msra.mxu0 %v5067
    %5166 = vmatprep.subr.bf16.mxu0 %v5072
    %5167 = vmatpush1.bf16.msra.mxu0 %v5071
    %5168 = vmatprep.subr.bf16.mxu0 %v5076
    %5169 = vmatpush1.bf16.msra.mxu0 %v5075
    %5170 = vmatprep.subr.bf16.mxu0 %v5080
    %5171 = vmatpush1.bf16.msra.mxu0 %v5079
    %5172 = vmatprep.subr.bf16.mxu0 %v5084
    %5173 = vmatpush1.bf16.msra.mxu0 %v5083
    %5174 = vmatprep.subr.bf16.mxu0 0
    %5175 = vmatpush1.bf16.msra.mxu0 0
    %5176 = vmatprep.subr.bf16.mxu0 0
    %5177 = vmatpush1.bf16.msra.mxu0 0
    %5178 = vmatprep.subr.bf16.mxu0 0
    %5179 = vmatpush1.bf16.msra.mxu0 0
    %5180 = vmatprep.subr.bf16.mxu0 0
    %5181 = vmatpush1.bf16.msra.mxu0 0
    %5182 = vmatprep.subr.bf16.mxu0 0
    %5183 = vmatpush1.bf16.msra.mxu0 0
    %5184 = vmatprep.subr.bf16.mxu0 0
    %5185 = vmatpush1.bf16.msra.mxu0 0
    %5186 = vmatprep.subr.bf16.mxu0 0
    %5187 = vmatpush1.bf16.msra.mxu0 0
    %5188 = vmatprep.subr.bf16.mxu0 0
    %5189 = vmatpush1.bf16.msra.mxu0 0
    %5190 = vmatprep.mubr.bf16.mxu0 0
    %5191 = vmatmul.mubr.bf16.gmra.mrb[0].mxu0 %v4570
    %v5192 = vpop.f32.mrb[0].mxu0
    %v5193 = vadd.f32 0.0, %v5192
    %v5194 = vpop.f32.mrb[0].mxu0
    %v5195 = vadd.f32 0.0, %v5194
    %v5196 = vpop.f32.mrb[0].mxu0
    %v5197 = vpop.f32.mrb[0].mxu0
    %5198 = vdwg.mxu0
    %v5231 = vunpack.c.l.b16 %v4893
    %v5232 = vunpack.c.h.b16 %v4893
    %v5233 = vunpack.c.l.b16 %v4894
    %v5234 = vunpack.c.h.b16 %v4894
    %v5235 = vunpack.c.l.b16 %v4895
    %v5236 = vunpack.c.h.b16 %v4895
    %v5237 = vunpack.c.l.b16 %v4896
    %v5238 = vunpack.c.h.b16 %v4896
    %v5239 = vunpack.c.l.b16 %v4897
    %v5240 = vunpack.c.h.b16 %v4897
    %v5241 = vunpack.c.l.b16 %v4898
    %v5242 = vunpack.c.h.b16 %v4898
    %v5243 = vunpack.c.l.b16 %v4899
    %v5244 = vunpack.c.h.b16 %v4899
    %v5245 = vunpack.c.l.b16 %v4900
    %v5246 = vunpack.c.h.b16 %v4900
    %v5247 = vunpack.c.l.b16 %v4901
    %v5248 = vunpack.c.h.b16 %v4901
    %v5249 = vunpack.c.l.b16 %v4902
    %v5250 = vunpack.c.h.b16 %v4902
    %v5251 = vunpack.c.l.b16 %v4903
    %v5252 = vunpack.c.h.b16 %v4903
    %v5253 = vunpack.c.l.b16 %v4904
    %v5254 = vunpack.c.h.b16 %v4904
    %v5255 = vunpack.c.l.b16 %v4905
    %v5256 = vunpack.c.h.b16 %v4905
    %v5257 = vunpack.c.l.b16 %v4906
    %v5258 = vunpack.c.h.b16 %v4906
    %v5259 = vunpack.c.l.b16 %v4907
    %v5260 = vunpack.c.h.b16 %v4907
    %v5261 = vunpack.c.l.b16 %v4908
    %v5262 = vunpack.c.h.b16 %v4908
    %v5263 = vunpack.c.l.b16 %v4909
    %v5264 = vunpack.c.h.b16 %v4909
    %v5265 = vunpack.c.l.b16 %v4910
    %v5266 = vunpack.c.h.b16 %v4910
    %v5267 = vunpack.c.l.b16 %v4911
    %v5268 = vunpack.c.h.b16 %v4911
    %v5269 = vunpack.c.l.b16 %v4912
    %v5270 = vunpack.c.h.b16 %v4912
    %v5271 = vunpack.c.l.b16 %v4913
    %v5272 = vunpack.c.h.b16 %v4913
    %v5273 = vunpack.c.l.b16 %v4914
    %v5274 = vunpack.c.h.b16 %v4914
    %v5275 = vunpack.c.l.b16 %v4915
    %v5276 = vunpack.c.h.b16 %v4915
    %v5277 = vunpack.c.l.b16 %v4916
    %v5278 = vunpack.c.h.b16 %v4916
    %v5279 = vunpack.c.l.b16 %v4917
    %v5280 = vunpack.c.h.b16 %v4917
    %v5281 = vunpack.c.l.b16 %v4918
    %v5282 = vunpack.c.h.b16 %v4918
    %v5283 = vunpack.c.l.b16 %v4919
    %v5284 = vunpack.c.h.b16 %v4919
    %v5285 = vunpack.c.l.b16 %v4920
    %v5286 = vunpack.c.h.b16 %v4920
    %v5287 = vunpack.c.l.b16 %v4921
    %v5288 = vunpack.c.h.b16 %v4921
    %v5289 = vunpack.c.l.b16 %v4922
    %v5290 = vunpack.c.h.b16 %v4922
    %v5291 = vunpack.c.l.b16 %v4923
    %v5292 = vunpack.c.h.b16 %v4923
    %v5293 = vunpack.c.l.b16 %v4924
    %v5294 = vunpack.c.h.b16 %v4924
    %v5295 = vpack.c.b16 %v5235, %v5231
    %v5296 = vpack.c.b16 %v5236, %v5232
    %v5297 = vpack.c.b16 %v5237, %v5233
    %v5298 = vpack.c.b16 %v5238, %v5234
    %v5299 = vpack.c.b16 %v5243, %v5239
    %v5300 = vpack.c.b16 %v5244, %v5240
    %v5301 = vpack.c.b16 %v5245, %v5241
    %v5302 = vpack.c.b16 %v5246, %v5242
    %v5303 = vpack.c.b16 %v5251, %v5247
    %v5304 = vpack.c.b16 %v5252, %v5248
    %v5305 = vpack.c.b16 %v5253, %v5249
    %v5306 = vpack.c.b16 %v5254, %v5250
    %v5307 = vpack.c.b16 %v5259, %v5255
    %v5308 = vpack.c.b16 %v5260, %v5256
    %v5309 = vpack.c.b16 %v5261, %v5257
    %v5310 = vpack.c.b16 %v5262, %v5258
    %v5311 = vpack.c.b16 %v5267, %v5263
    %v5312 = vpack.c.b16 %v5268, %v5264
    %v5313 = vpack.c.b16 %v5269, %v5265
    %v5314 = vpack.c.b16 %v5270, %v5266
    %v5315 = vpack.c.b16 %v5275, %v5271
    %v5316 = vpack.c.b16 %v5276, %v5272
    %v5317 = vpack.c.b16 %v5277, %v5273
    %v5318 = vpack.c.b16 %v5278, %v5274
    %v5319 = vpack.c.b16 %v5283, %v5279
    %v5320 = vpack.c.b16 %v5284, %v5280
    %v5321 = vpack.c.b16 %v5285, %v5281
    %v5322 = vpack.c.b16 %v5286, %v5282
    %v5323 = vpack.c.b16 %v5291, %v5287
    %v5324 = vpack.c.b16 %v5292, %v5288
    %v5325 = vpack.c.b16 %v5293, %v5289
    %v5326 = vpack.c.b16 %v5294, %v5290
    %5359 = vmatprep.subr.bf16.mxu0 %v5296
    %5360 = vmatpush1.bf16.msra.mxu0 %v5295
    %5361 = vmatprep.subr.bf16.mxu0 %v5300
    %5362 = vmatpush1.bf16.msra.mxu0 %v5299
    %5363 = vmatprep.subr.bf16.mxu0 %v5304
    %5364 = vmatpush1.bf16.msra.mxu0 %v5303
    %5365 = vmatprep.subr.bf16.mxu0 %v5308
    %5366 = vmatpush1.bf16.msra.mxu0 %v5307
    %5367 = vmatprep.subr.bf16.mxu0 %v5312
    %5368 = vmatpush1.bf16.msra.mxu0 %v5311
    %5369 = vmatprep.subr.bf16.mxu0 %v5316
    %5370 = vmatpush1.bf16.msra.mxu0 %v5315
    %5371 = vmatprep.subr.bf16.mxu0 %v5320
    %5372 = vmatpush1.bf16.msra.mxu0 %v5319
    %5373 = vmatprep.subr.bf16.mxu0 %v5324
    %5374 = vmatpush1.bf16.msra.mxu0 %v5323
    %5375 = vmatprep.subr.bf16.mxu0 0
    %5376 = vmatpush1.bf16.msra.mxu0 0
    %5377 = vmatprep.subr.bf16.mxu0 0
    %5378 = vmatpush1.bf16.msra.mxu0 0
    %5379 = vmatprep.subr.bf16.mxu0 0
    %5380 = vmatpush1.bf16.msra.mxu0 0
    %5381 = vmatprep.subr.bf16.mxu0 0
    %5382 = vmatpush1.bf16.msra.mxu0 0
    %5383 = vmatprep.subr.bf16.mxu0 0
    %5384 = vmatpush1.bf16.msra.mxu0 0
    %5385 = vmatprep.subr.bf16.mxu0 0
    %5386 = vmatpush1.bf16.msra.mxu0 0
    %5387 = vmatprep.subr.bf16.mxu0 0
    %5388 = vmatpush1.bf16.msra.mxu0 0
    %5389 = vmatprep.subr.bf16.mxu0 0
    %5390 = vmatpush1.bf16.msra.mxu0 0
    %5391 = vmatprep.mubr.bf16.mxu0 0
    %5392 = vmatmul.mubr.bf16.gmra.mrb[0].mxu0 %v4892
    %v5393 = vpop.f32.mrb[0].mxu0
    %v5394 = vadd.f32 %v5152, %v5393
    %v5395 = vpop.f32.mrb[0].mxu0
    %v5396 = vadd.f32 %v5154, %v5395
    %v5397 = vpop.f32.mrb[0].mxu0
    %v5398 = vpop.f32.mrb[0].mxu0
    %5399 = vdwg.mxu0
    %5400 = vmatprep.subr.bf16.mxu0 %v5298
    %5401 = vmatpush1.bf16.msra.mxu0 %v5297
    %5402 = vmatprep.subr.bf16.mxu0 %v5302
    %5403 = vmatpush1.bf16.msra.mxu0 %v5301
    %5404 = vmatprep.subr.bf16.mxu0 %v5306
    %5405 = vmatpush1.bf16.msra.mxu0 %v5305
    %5406 = vmatprep.subr.bf16.mxu0 %v5310
    %5407 = vmatpush1.bf16.msra.mxu0 %v5309
    %5408 = vmatprep.subr.bf16.mxu0 %v5314
    %5409 = vmatpush1.bf16.msra.mxu0 %v5313
    %5410 = vmatprep.subr.bf16.mxu0 %v5318
    %5411 = vmatpush1.bf16.msra.mxu0 %v5317
    %5412 = vmatprep.subr.bf16.mxu0 %v5322
    %5413 = vmatpush1.bf16.msra.mxu0 %v5321
    %5414 = vmatprep.subr.bf16.mxu0 %v5326
    %5415 = vmatpush1.bf16.msra.mxu0 %v5325
    %5416 = vmatprep.subr.bf16.mxu0 0
    %5417 = vmatpush1.bf16.msra.mxu0 0
    %5418 = vmatprep.subr.bf16.mxu0 0
    %5419 = vmatpush1.bf16.msra.mxu0 0
    %5420 = vmatprep.subr.bf16.mxu0 0
    %5421 = vmatpush1.bf16.msra.mxu0 0
    %5422 = vmatprep.subr.bf16.mxu0 0
    %5423 = vmatpush1.bf16.msra.mxu0 0
    %5424 = vmatprep.subr.bf16.mxu0 0
    %5425 = vmatpush1.bf16.msra.mxu0 0
    %5426 = vmatprep.subr.bf16.mxu0 0
    %5427 = vmatpush1.bf16.msra.mxu0 0
    %5428 = vmatprep.subr.bf16.mxu0 0
    %5429 = vmatpush1.bf16.msra.mxu0 0
    %5430 = vmatprep.subr.bf16.mxu0 0
    %5431 = vmatpush1.bf16.msra.mxu0 0
    %5432 = vmatprep.mubr.bf16.mxu0 0
    %5433 = vmatmul.mubr.bf16.gmra.mrb[0].mxu0 %v4892
    %v5434 = vpop.f32.mrb[0].mxu0
    %v5435 = vadd.f32 %v5193, %v5434
    %v5436 = vpop.f32.mrb[0].mxu0
    %v5437 = vadd.f32 %v5195, %v5436
    %v5438 = vpop.f32.mrb[0].mxu0
    %v5439 = vpop.f32.mrb[0].mxu0
    %5440 = vdwg.mxu0
    %v5441 = vadd.f32 %v5394, %v55
    %v5442 = vadd.f32 %v5396, %v59
    %v5443 = vadd.f32 %v5435, %v63
    %v5444 = vadd.f32 %v5437, %v67
    %v5445 = vxor.u32 %v5441, 2147483648
    %v5446 = vxor.u32 %v5442, 2147483648
    %v5447 = vxor.u32 %v5443, 2147483648
    %v5448 = vmul.f32 %v5445, 1.442695
    %v5449 = vpow.pop %v5448
    %v5450 = vmul.f32 %v5446, 1.442695
    %v5451 = vpow.pop %v5450
    %v5452 = vmul.f32 %v5447, 1.442695
    %v5453 = vpow.pop %v5452
    %v5454 = vadd.f32 %v5449, 1.0
    %v5455 = vadd.f32 %v5451, 1.0
    %v5456 = vadd.f32 %v5453, 1.0
    %v5457 = vrcp.pop %v5454
    %v5458 = vmul.f32 1.0, %v5457
    %v5459 = vrcp.pop %v5455
    %v5460 = vmul.f32 1.0, %v5459
    %v5461 = vrcp.pop %v5456
    %v5462 = vmul.f32 1.0, %v5461
    %v5463 = vtanh.pop %v5444
    %v5464 = vmul.f32 %v5460, %v4567
    %v5465 = vmul.f32 %v5458, %v5463
    %v5466 = vadd.f32 %v5464, %v5465
    %v5467 = vtanh.pop %v5466
    %v5468 = vmul.f32 %v5462, %v5467
    %v5469 = vpack.c.bf16 %v5468, %v5468
    %s5470 = scalar_lea.vmem [#allocation2], 5
    %5471 = vst [vmem:[%s5470] sm:$0x1] %v5469
    %s5472 = scalar_lea.vmem %s0, 48
    %v5473 = vld [vmem:[%s5472] sm:$0xff]
    %v5474 = vld [vmem:[%s1] sm:$0xff]
    %v5475 = vld [vmem:[%s1 + $0x8] sm:$0xff]
    %v5476 = vld [vmem:[%s1 + $0x10] sm:$0xff]
    %v5477 = vld [vmem:[%s1 + $0x18] sm:$0xff]
    %v5478 = vld [vmem:[%s1 + $0x20] sm:$0xff]
    %v5479 = vld [vmem:[%s1 + $0x28] sm:$0xff]
    %v5480 = vld [vmem:[%s1 + $0x30] sm:$0xff]
    %v5481 = vld [vmem:[%s1 + $0x38] sm:$0xff]
    %v5482 = vld [vmem:[%s1 + $0x40] sm:$0xff]
    %v5483 = vld [vmem:[%s1 + $0x48] sm:$0xff]
    %v5484 = vld [vmem:[%s1 + $0x50] sm:$0xff]
    %v5485 = vld [vmem:[%s1 + $0x58] sm:$0xff]
    %v5486 = vld [vmem:[%s1 + $0x60] sm:$0xff]
    %v5487 = vld [vmem:[%s1 + $0x68] sm:$0xff]
    %v5488 = vld [vmem:[%s1 + $0x70] sm:$0xff]
    %v5489 = vld [vmem:[%s1 + $0x78] sm:$0xff]
    %v5490 = vld [vmem:[%s1 + $0x80] sm:$0xff]
    %v5491 = vld [vmem:[%s1 + $0x88] sm:$0xff]
    %v5492 = vld [vmem:[%s1 + $0x90] sm:$0xff]
    %v5493 = vld [vmem:[%s1 + $0x98] sm:$0xff]
    %v5494 = vld [vmem:[%s1 + $0xa0] sm:$0xff]
    %v5495 = vld [vmem:[%s1 + $0xa8] sm:$0xff]
    %v5496 = vld [vmem:[%s1 + $0xb0] sm:$0xff]
    %v5497 = vld [vmem:[%s1 + $0xb8] sm:$0xff]
    %v5498 = vld [vmem:[%s1 + $0xc0] sm:$0xff]
    %v5499 = vld [vmem:[%s1 + $0xc8] sm:$0xff]
    %v5500 = vld [vmem:[%s1 + $0xd0] sm:$0xff]
    %v5501 = vld [vmem:[%s1 + $0xd8] sm:$0xff]
    %v5502 = vld [vmem:[%s1 + $0xe0] sm:$0xff]
    %v5503 = vld [vmem:[%s1 + $0xe8] sm:$0xff]
    %v5504 = vld [vmem:[%s1 + $0xf0] sm:$0xff]
    %v5505 = vld [vmem:[%s1 + $0xf8] sm:$0xff]
    %v5538 = vunpack.c.l.b16 %v5474
    %v5539 = vunpack.c.h.b16 %v5474
    %v5540 = vunpack.c.l.b16 %v5475
    %v5541 = vunpack.c.h.b16 %v5475
    %v5542 = vunpack.c.l.b16 %v5476
    %v5543 = vunpack.c.h.b16 %v5476
    %v5544 = vunpack.c.l.b16 %v5477
    %v5545 = vunpack.c.h.b16 %v5477
    %v5546 = vunpack.c.l.b16 %v5478
    %v5547 = vunpack.c.h.b16 %v5478
    %v5548 = vunpack.c.l.b16 %v5479
    %v5549 = vunpack.c.h.b16 %v5479
    %v5550 = vunpack.c.l.b16 %v5480
    %v5551 = vunpack.c.h.b16 %v5480
    %v5552 = vunpack.c.l.b16 %v5481
    %v5553 = vunpack.c.h.b16 %v5481
    %v5554 = vunpack.c.l.b16 %v5482
    %v5555 = vunpack.c.h.b16 %v5482
    %v5556 = vunpack.c.l.b16 %v5483
    %v5557 = vunpack.c.h.b16 %v5483
    %v5558 = vunpack.c.l.b16 %v5484
    %v5559 = vunpack.c.h.b16 %v5484
    %v5560 = vunpack.c.l.b16 %v5485
    %v5561 = vunpack.c.h.b16 %v5485
    %v5562 = vunpack.c.l.b16 %v5486
    %v5563 = vunpack.c.h.b16 %v5486
    %v5564 = vunpack.c.l.b16 %v5487
    %v5565 = vunpack.c.h.b16 %v5487
    %v5566 = vunpack.c.l.b16 %v5488
    %v5567 = vunpack.c.h.b16 %v5488
    %v5568 = vunpack.c.l.b16 %v5489
    %v5569 = vunpack.c.h.b16 %v5489
    %v5570 = vunpack.c.l.b16 %v5490
    %v5571 = vunpack.c.h.b16 %v5490
    %v5572 = vunpack.c.l.b16 %v5491
    %v5573 = vunpack.c.h.b16 %v5491
    %v5574 = vunpack.c.l.b16 %v5492
    %v5575 = vunpack.c.h.b16 %v5492
    %v5576 = vunpack.c.l.b16 %v5493
    %v5577 = vunpack.c.h.b16 %v5493
    %v5578 = vunpack.c.l.b16 %v5494
    %v5579 = vunpack.c.h.b16 %v5494
    %v5580 = vunpack.c.l.b16 %v5495
    %v5581 = vunpack.c.h.b16 %v5495
    %v5582 = vunpack.c.l.b16 %v5496
    %v5583 = vunpack.c.h.b16 %v5496
    %v5584 = vunpack.c.l.b16 %v5497
    %v5585 = vunpack.c.h.b16 %v5497
    %v5586 = vunpack.c.l.b16 %v5498
    %v5587 = vunpack.c.h.b16 %v5498
    %v5588 = vunpack.c.l.b16 %v5499
    %v5589 = vunpack.c.h.b16 %v5499
    %v5590 = vunpack.c.l.b16 %v5500
    %v5591 = vunpack.c.h.b16 %v5500
    %v5592 = vunpack.c.l.b16 %v5501
    %v5593 = vunpack.c.h.b16 %v5501
    %v5594 = vunpack.c.l.b16 %v5502
    %v5595 = vunpack.c.h.b16 %v5502
    %v5596 = vunpack.c.l.b16 %v5503
    %v5597 = vunpack.c.h.b16 %v5503
    %v5598 = vunpack.c.l.b16 %v5504
    %v5599 = vunpack.c.h.b16 %v5504
    %v5600 = vunpack.c.l.b16 %v5505
    %v5601 = vunpack.c.h.b16 %v5505
    %v5602 = vpack.c.b16 %v5542, %v5538
    %v5603 = vpack.c.b16 %v5543, %v5539
    %v5604 = vpack.c.b16 %v5544, %v5540
    %v5605 = vpack.c.b16 %v5545, %v5541
    %v5606 = vpack.c.b16 %v5550, %v5546
    %v5607 = vpack.c.b16 %v5551, %v5547
    %v5608 = vpack.c.b16 %v5552, %v5548
    %v5609 = vpack.c.b16 %v5553, %v5549
    %v5610 = vpack.c.b16 %v5558, %v5554
    %v5611 = vpack.c.b16 %v5559, %v5555
    %v5612 = vpack.c.b16 %v5560, %v5556
    %v5613 = vpack.c.b16 %v5561, %v5557
    %v5614 = vpack.c.b16 %v5566, %v5562
    %v5615 = vpack.c.b16 %v5567, %v5563
    %v5616 = vpack.c.b16 %v5568, %v5564
    %v5617 = vpack.c.b16 %v5569, %v5565
    %v5618 = vpack.c.b16 %v5574, %v5570
    %v5619 = vpack.c.b16 %v5575, %v5571
    %v5620 = vpack.c.b16 %v5576, %v5572
    %v5621 = vpack.c.b16 %v5577, %v5573
    %v5622 = vpack.c.b16 %v5582, %v5578
    %v5623 = vpack.c.b16 %v5583, %v5579
    %v5624 = vpack.c.b16 %v5584, %v5580
    %v5625 = vpack.c.b16 %v5585, %v5581
    %v5626 = vpack.c.b16 %v5590, %v5586
    %v5627 = vpack.c.b16 %v5591, %v5587
    %v5628 = vpack.c.b16 %v5592, %v5588
    %v5629 = vpack.c.b16 %v5593, %v5589
    %v5630 = vpack.c.b16 %v5598, %v5594
    %v5631 = vpack.c.b16 %v5599, %v5595
    %v5632 = vpack.c.b16 %v5600, %v5596
    %v5633 = vpack.c.b16 %v5601, %v5597
    %5666 = vmatprep.subr.bf16.mxu0 %v5603
    %5667 = vmatpush1.bf16.msra.mxu0 %v5602
    %5668 = vmatprep.subr.bf16.mxu0 %v5607
    %5669 = vmatpush1.bf16.msra.mxu0 %v5606
    %5670 = vmatprep.subr.bf16.mxu0 %v5611
    %5671 = vmatpush1.bf16.msra.mxu0 %v5610
    %5672 = vmatprep.subr.bf16.mxu0 %v5615
    %5673 = vmatpush1.bf16.msra.mxu0 %v5614
    %5674 = vmatprep.subr.bf16.mxu0 %v5619
    %5675 = vmatpush1.bf16.msra.mxu0 %v5618
    %5676 = vmatprep.subr.bf16.mxu0 %v5623
    %5677 = vmatpush1.bf16.msra.mxu0 %v5622
    %5678 = vmatprep.subr.bf16.mxu0 %v5627
    %5679 = vmatpush1.bf16.msra.mxu0 %v5626
    %5680 = vmatprep.subr.bf16.mxu0 %v5631
    %5681 = vmatpush1.bf16.msra.mxu0 %v5630
    %5682 = vmatprep.subr.bf16.mxu0 0
    %5683 = vmatpush1.bf16.msra.mxu0 0
    %5684 = vmatprep.subr.bf16.mxu0 0
    %5685 = vmatpush1.bf16.msra.mxu0 0
    %5686 = vmatprep.subr.bf16.mxu0 0
    %5687 = vmatpush1.bf16.msra.mxu0 0
    %5688 = vmatprep.subr.bf16.mxu0 0
    %5689 = vmatpush1.bf16.msra.mxu0 0
    %5690 = vmatprep.subr.bf16.mxu0 0
    %5691 = vmatpush1.bf16.msra.mxu0 0
    %5692 = vmatprep.subr.bf16.mxu0 0
    %5693 = vmatpush1.bf16.msra.mxu0 0
    %5694 = vmatprep.subr.bf16.mxu0 0
    %5695 = vmatpush1.bf16.msra.mxu0 0
    %5696 = vmatprep.subr.bf16.mxu0 0
    %5697 = vmatpush1.bf16.msra.mxu0 0
    %5698 = vmatprep.mubr.bf16.mxu0 0
    %5699 = vmatmul.mubr.bf16.gmra.mrb[0].mxu0 %v4892
    %v5700 = vpop.f32.mrb[0].mxu0
    %v5701 = vadd.f32 0.0, %v5700
    %v5702 = vpop.f32.mrb[0].mxu0
    %v5703 = vadd.f32 0.0, %v5702
    %v5704 = vpop.f32.mrb[0].mxu0
    %v5705 = vpop.f32.mrb[0].mxu0
    %5706 = vdwg.mxu0
    %5707 = vmatprep.subr.bf16.mxu0 %v5605
    %5708 = vmatpush1.bf16.msra.mxu0 %v5604
    %5709 = vmatprep.subr.bf16.mxu0 %v5609
    %5710 = vmatpush1.bf16.msra.mxu0 %v5608
    %5711 = vmatprep.subr.bf16.mxu0 %v5613
    %5712 = vmatpush1.bf16.msra.mxu0 %v5612
    %5713 = vmatprep.subr.bf16.mxu0 %v5617
    %5714 = vmatpush1.bf16.msra.mxu0 %v5616
    %5715 = vmatprep.subr.bf16.mxu0 %v5621
    %5716 = vmatpush1.bf16.msra.mxu0 %v5620
    %5717 = vmatprep.subr.bf16.mxu0 %v5625
    %5718 = vmatpush1.bf16.msra.mxu0 %v5624
    %5719 = vmatprep.subr.bf16.mxu0 %v5629
    %5720 = vmatpush1.bf16.msra.mxu0 %v5628
    %5721 = vmatprep.subr.bf16.mxu0 %v5633
    %5722 = vmatpush1.bf16.msra.mxu0 %v5632
    %5723 = vmatprep.subr.bf16.mxu0 0
    %5724 = vmatpush1.bf16.msra.mxu0 0
    %5725 = vmatprep.subr.bf16.mxu0 0
    %5726 = vmatpush1.bf16.msra.mxu0 0
    %5727 = vmatprep.subr.bf16.mxu0 0
    %5728 = vmatpush1.bf16.msra.mxu0 0
    %5729 = vmatprep.subr.bf16.mxu0 0
    %5730 = vmatpush1.bf16.msra.mxu0 0
    %5731 = vmatprep.subr.bf16.mxu0 0
    %5732 = vmatpush1.bf16.msra.mxu0 0
    %5733 = vmatprep.subr.bf16.mxu0 0
    %5734 = vmatpush1.bf16.msra.mxu0 0
    %5735 = vmatprep.subr.bf16.mxu0 0
    %5736 = vmatpush1.bf16.msra.mxu0 0
    %5737 = vmatprep.subr.bf16.mxu0 0
    %5738 = vmatpush1.bf16.msra.mxu0 0
    %5739 = vmatprep.mubr.bf16.mxu0 0
    %5740 = vmatmul.mubr.bf16.gmra.mrb[0].mxu0 %v4892
    %v5741 = vpop.f32.mrb[0].mxu0
    %v5742 = vadd.f32 0.0, %v5741
    %v5743 = vpop.f32.mrb[0].mxu0
    %v5744 = vadd.f32 0.0, %v5743
    %v5745 = vpop.f32.mrb[0].mxu0
    %v5746 = vpop.f32.mrb[0].mxu0
    %5747 = vdwg.mxu0
    %v5752 = vcombine.low %v5701, %v5703
    %v5753 = vcombine.low %v5742, %v5744
    %v5755 = vunpack.c.l.s4 1983009808
    %v5756 = vunpack.c.0.s8 %v5755
    %v5757 = vlaneseq
    %v5758 = vshrl.u32 %v5757, 7
    %v5759 = vsub.s32 %v5756, %v5758
    %v5760 = vrot.slane %v5752, %v5759
    %v5762 = vunpack.c.l.s4 1983009808
    %v5763 = vunpack.c.0.s8 %v5762
    %v5764 = vlaneseq
    %v5765 = vshrl.u32 %v5764, 7
    %v5766 = vsub.s32 %v5763, %v5765
    %v5767 = vrot.slane %v5753, %v5766
    %v5768 = vcombine.low %v5760, %v5767
    %v5770 = vadd.f32 %v5473, %v5768
    %v5771 = vxor.u32 %v5770, 2147483648
    %v5772 = vmul.f32 %v5771, 1.442695
    %v5773 = vpow.pop %v5772
    %v5774 = vadd.f32 %v5773, 1.0
    %v5775 = vrcp.pop %v5774
    %v5776 = vmul.f32 1.0, %v5775
    %v5778 = vrot.slane %v5770, 6
    %v5780 = vtanh.pop %v5778
    %v5782 = vrot.slane %v5776, 2
    %v5784 = vmul.f32 %v5782, %v4887
    %v5785 = vmul.f32 %v5776, %v5780
    %v5786 = vadd.f32 %v5784, %v5785
    %v5787 = vtanh.pop %v5786
    %v5788 = vrot.slane %v5776, 4
    %v5790 = vmul.f32 %v5788, %v5787
    %v5791 = vpack.c.bf16 %v5790, %v5790
    %v5792 = vld [vmem:[%s2] sm:$0xff]
    %v5793 = vld [vmem:[%s2 + $0x8] sm:$0xff]
    %v5794 = vld [vmem:[%s2 + $0x10] sm:$0xff]
    %v5795 = vld [vmem:[%s2 + $0x18] sm:$0xff]
    %v5796 = vld [vmem:[%s2 + $0x20] sm:$0xff]
    %v5797 = vld [vmem:[%s2 + $0x28] sm:$0xff]
    %v5798 = vld [vmem:[%s2 + $0x30] sm:$0xff]
    %v5799 = vld [vmem:[%s2 + $0x38] sm:$0xff]
    %v5800 = vld [vmem:[%s2 + $0x40] sm:$0xff]
    %v5801 = vld [vmem:[%s2 + $0x48] sm:$0xff]
    %v5802 = vld [vmem:[%s2 + $0x50] sm:$0xff]
    %v5803 = vld [vmem:[%s2 + $0x58] sm:$0xff]
    %v5804 = vld [vmem:[%s2 + $0x60] sm:$0xff]
    %v5805 = vld [vmem:[%s2 + $0x68] sm:$0xff]
    %v5806 = vld [vmem:[%s2 + $0x70] sm:$0xff]
    %v5807 = vld [vmem:[%s2 + $0x78] sm:$0xff]
    %v5808 = vld [vmem:[%s2 + $0x80] sm:$0xff]
    %v5809 = vld [vmem:[%s2 + $0x88] sm:$0xff]
    %v5810 = vld [vmem:[%s2 + $0x90] sm:$0xff]
    %v5811 = vld [vmem:[%s2 + $0x98] sm:$0xff]
    %v5812 = vld [vmem:[%s2 + $0xa0] sm:$0xff]
    %v5813 = vld [vmem:[%s2 + $0xa8] sm:$0xff]
    %v5814 = vld [vmem:[%s2 + $0xb0] sm:$0xff]
    %v5815 = vld [vmem:[%s2 + $0xb8] sm:$0xff]
    %v5816 = vld [vmem:[%s2 + $0xc0] sm:$0xff]
    %v5817 = vld [vmem:[%s2 + $0xc8] sm:$0xff]
    %v5818 = vld [vmem:[%s2 + $0xd0] sm:$0xff]
    %v5819 = vld [vmem:[%s2 + $0xd8] sm:$0xff]
    %v5820 = vld [vmem:[%s2 + $0xe0] sm:$0xff]
    %v5821 = vld [vmem:[%s2 + $0xe8] sm:$0xff]
    %v5822 = vld [vmem:[%s2 + $0xf0] sm:$0xff]
    %v5823 = vld [vmem:[%s2 + $0xf8] sm:$0xff]
    %v5824 = vld [vmem:[%s3] sm:$0xff]
    %v5825 = vld [vmem:[%s3 + $0x8] sm:$0xff]
    %v5826 = vld [vmem:[%s3 + $0x10] sm:$0xff]
    %v5827 = vld [vmem:[%s3 + $0x18] sm:$0xff]
    %v5828 = vld [vmem:[%s3 + $0x20] sm:$0xff]
    %v5829 = vld [vmem:[%s3 + $0x28] sm:$0xff]
    %v5830 = vld [vmem:[%s3 + $0x30] sm:$0xff]
    %v5831 = vld [vmem:[%s3 + $0x38] sm:$0xff]
    %v5832 = vld [vmem:[%s3 + $0x40] sm:$0xff]
    %v5833 = vld [vmem:[%s3 + $0x48] sm:$0xff]
    %v5834 = vld [vmem:[%s3 + $0x50] sm:$0xff]
    %v5835 = vld [vmem:[%s3 + $0x58] sm:$0xff]
    %v5836 = vld [vmem:[%s3 + $0x60] sm:$0xff]
    %v5837 = vld [vmem:[%s3 + $0x68] sm:$0xff]
    %v5838 = vld [vmem:[%s3 + $0x70] sm:$0xff]
    %v5839 = vld [vmem:[%s3 + $0x78] sm:$0xff]
    %v5840 = vld [vmem:[%s3 + $0x80] sm:$0xff]
    %v5841 = vld [vmem:[%s3 + $0x88] sm:$0xff]
    %v5842 = vld [vmem:[%s3 + $0x90] sm:$0xff]
    %v5843 = vld [vmem:[%s3 + $0x98] sm:$0xff]
    %v5844 = vld [vmem:[%s3 + $0xa0] sm:$0xff]
    %v5845 = vld [vmem:[%s3 + $0xa8] sm:$0xff]
    %v5846 = vld [vmem:[%s3 + $0xb0] sm:$0xff]
    %v5847 = vld [vmem:[%s3 + $0xb8] sm:$0xff]
    %v5848 = vld [vmem:[%s3 + $0xc0] sm:$0xff]
    %v5849 = vld [vmem:[%s3 + $0xc8] sm:$0xff]
    %v5850 = vld [vmem:[%s3 + $0xd0] sm:$0xff]
    %v5851 = vld [vmem:[%s3 + $0xd8] sm:$0xff]
    %v5852 = vld [vmem:[%s3 + $0xe0] sm:$0xff]
    %v5853 = vld [vmem:[%s3 + $0xe8] sm:$0xff]
    %v5854 = vld [vmem:[%s3 + $0xf0] sm:$0xff]
    %v5855 = vld [vmem:[%s3 + $0xf8] sm:$0xff]
    %v5888 = vunpack.c.l.b16 %v5824
    %v5889 = vunpack.c.h.b16 %v5824
    %v5890 = vunpack.c.l.b16 %v5825
    %v5891 = vunpack.c.h.b16 %v5825
    %v5892 = vunpack.c.l.b16 %v5826
    %v5893 = vunpack.c.h.b16 %v5826
    %v5894 = vunpack.c.l.b16 %v5827
    %v5895 = vunpack.c.h.b16 %v5827
    %v5896 = vunpack.c.l.b16 %v5828
    %v5897 = vunpack.c.h.b16 %v5828
    %v5898 = vunpack.c.l.b16 %v5829
    %v5899 = vunpack.c.h.b16 %v5829
    %v5900 = vunpack.c.l.b16 %v5830
    %v5901 = vunpack.c.h.b16 %v5830
    %v5902 = vunpack.c.l.b16 %v5831
    %v5903 = vunpack.c.h.b16 %v5831
    %v5904 = vunpack.c.l.b16 %v5832
    %v5905 = vunpack.c.h.b16 %v5832
    %v5906 = vunpack.c.l.b16 %v5833
    %v5907 = vunpack.c.h.b16 %v5833
    %v5908 = vunpack.c.l.b16 %v5834
    %v5909 = vunpack.c.h.b16 %v5834
    %v5910 = vunpack.c.l.b16 %v5835
    %v5911 = vunpack.c.h.b16 %v5835
    %v5912 = vunpack.c.l.b16 %v5836
    %v5913 = vunpack.c.h.b16 %v5836
    %v5914 = vunpack.c.l.b16 %v5837
    %v5915 = vunpack.c.h.b16 %v5837
    %v5916 = vunpack.c.l.b16 %v5838
    %v5917 = vunpack.c.h.b16 %v5838
    %v5918 = vunpack.c.l.b16 %v5839
    %v5919 = vunpack.c.h.b16 %v5839
    %v5920 = vunpack.c.l.b16 %v5840
    %v5921 = vunpack.c.h.b16 %v5840
    %v5922 = vunpack.c.l.b16 %v5841
    %v5923 = vunpack.c.h.b16 %v5841
    %v5924 = vunpack.c.l.b16 %v5842
    %v5925 = vunpack.c.h.b16 %v5842
    %v5926 = vunpack.c.l.b16 %v5843
    %v5927 = vunpack.c.h.b16 %v5843
    %v5928 = vunpack.c.l.b16 %v5844
    %v5929 = vunpack.c.h.b16 %v5844
    %v5930 = vunpack.c.l.b16 %v5845
    %v5931 = vunpack.c.h.b16 %v5845
    %v5932 = vunpack.c.l.b16 %v5846
    %v5933 = vunpack.c.h.b16 %v5846
    %v5934 = vunpack.c.l.b16 %v5847
    %v5935 = vunpack.c.h.b16 %v5847
    %v5936 = vunpack.c.l.b16 %v5848
    %v5937 = vunpack.c.h.b16 %v5848
    %v5938 = vunpack.c.l.b16 %v5849
    %v5939 = vunpack.c.h.b16 %v5849
    %v5940 = vunpack.c.l.b16 %v5850
    %v5941 = vunpack.c.h.b16 %v5850
    %v5942 = vunpack.c.l.b16 %v5851
    %v5943 = vunpack.c.h.b16 %v5851
    %v5944 = vunpack.c.l.b16 %v5852
    %v5945 = vunpack.c.h.b16 %v5852
    %v5946 = vunpack.c.l.b16 %v5853
    %v5947 = vunpack.c.h.b16 %v5853
    %v5948 = vunpack.c.l.b16 %v5854
    %v5949 = vunpack.c.h.b16 %v5854
    %v5950 = vunpack.c.l.b16 %v5855
    %v5951 = vunpack.c.h.b16 %v5855
    %v5952 = vpack.c.b16 %v5892, %v5888
    %v5953 = vpack.c.b16 %v5893, %v5889
    %v5954 = vpack.c.b16 %v5894, %v5890
    %v5955 = vpack.c.b16 %v5895, %v5891
    %v5956 = vpack.c.b16 %v5900, %v5896
    %v5957 = vpack.c.b16 %v5901, %v5897
    %v5958 = vpack.c.b16 %v5902, %v5898
    %v5959 = vpack.c.b16 %v5903, %v5899
    %v5960 = vpack.c.b16 %v5908, %v5904
    %v5961 = vpack.c.b16 %v5909, %v5905
    %v5962 = vpack.c.b16 %v5910, %v5906
    %v5963 = vpack.c.b16 %v5911, %v5907
    %v5964 = vpack.c.b16 %v5916, %v5912
    %v5965 = vpack.c.b16 %v5917, %v5913
    %v5966 = vpack.c.b16 %v5918, %v5914
    %v5967 = vpack.c.b16 %v5919, %v5915
    %v5968 = vpack.c.b16 %v5924, %v5920
    %v5969 = vpack.c.b16 %v5925, %v5921
    %v5970 = vpack.c.b16 %v5926, %v5922
    %v5971 = vpack.c.b16 %v5927, %v5923
    %v5972 = vpack.c.b16 %v5932, %v5928
    %v5973 = vpack.c.b16 %v5933, %v5929
    %v5974 = vpack.c.b16 %v5934, %v5930
    %v5975 = vpack.c.b16 %v5935, %v5931
    %v5976 = vpack.c.b16 %v5940, %v5936
    %v5977 = vpack.c.b16 %v5941, %v5937
    %v5978 = vpack.c.b16 %v5942, %v5938
    %v5979 = vpack.c.b16 %v5943, %v5939
    %v5980 = vpack.c.b16 %v5948, %v5944
    %v5981 = vpack.c.b16 %v5949, %v5945
    %v5982 = vpack.c.b16 %v5950, %v5946
    %v5983 = vpack.c.b16 %v5951, %v5947
    %6016 = vmatprep.subr.bf16.mxu0 %v5953
    %6017 = vmatpush1.bf16.msra.mxu0 %v5952
    %6018 = vmatprep.subr.bf16.mxu0 %v5957
    %6019 = vmatpush1.bf16.msra.mxu0 %v5956
    %6020 = vmatprep.subr.bf16.mxu0 %v5961
    %6021 = vmatpush1.bf16.msra.mxu0 %v5960
    %6022 = vmatprep.subr.bf16.mxu0 %v5965
    %6023 = vmatpush1.bf16.msra.mxu0 %v5964
    %6024 = vmatprep.subr.bf16.mxu0 %v5969
    %6025 = vmatpush1.bf16.msra.mxu0 %v5968
    %6026 = vmatprep.subr.bf16.mxu0 %v5973
    %6027 = vmatpush1.bf16.msra.mxu0 %v5972
    %6028 = vmatprep.subr.bf16.mxu0 %v5977
    %6029 = vmatpush1.bf16.msra.mxu0 %v5976
    %6030 = vmatprep.subr.bf16.mxu0 %v5981
    %6031 = vmatpush1.bf16.msra.mxu0 %v5980
    %6032 = vmatprep.subr.bf16.mxu0 0
    %6033 = vmatpush1.bf16.msra.mxu0 0
    %6034 = vmatprep.subr.bf16.mxu0 0
    %6035 = vmatpush1.bf16.msra.mxu0 0
    %6036 = vmatprep.subr.bf16.mxu0 0
    %6037 = vmatpush1.bf16.msra.mxu0 0
    %6038 = vmatprep.subr.bf16.mxu0 0
    %6039 = vmatpush1.bf16.msra.mxu0 0
    %6040 = vmatprep.subr.bf16.mxu0 0
    %6041 = vmatpush1.bf16.msra.mxu0 0
    %6042 = vmatprep.subr.bf16.mxu0 0
    %6043 = vmatpush1.bf16.msra.mxu0 0
    %6044 = vmatprep.subr.bf16.mxu0 0
    %6045 = vmatpush1.bf16.msra.mxu0 0
    %6046 = vmatprep.subr.bf16.mxu0 0
    %6047 = vmatpush1.bf16.msra.mxu0 0
    %6048 = vmatprep.mubr.bf16.mxu0 0
    %6049 = vmatmul.mubr.bf16.gmra.mrb[0].mxu0 %v5469
    %v6050 = vpop.f32.mrb[0].mxu0
    %v6051 = vadd.f32 0.0, %v6050
    %v6052 = vpop.f32.mrb[0].mxu0
    %v6053 = vadd.f32 0.0, %v6052
    %v6054 = vpop.f32.mrb[0].mxu0
    %v6055 = vpop.f32.mrb[0].mxu0
    %6056 = vdwg.mxu0
    %6057 = vmatprep.subr.bf16.mxu0 %v5955
    %6058 = vmatpush1.bf16.msra.mxu0 %v5954
    %6059 = vmatprep.subr.bf16.mxu0 %v5959
    %6060 = vmatpush1.bf16.msra.mxu0 %v5958
    %6061 = vmatprep.subr.bf16.mxu0 %v5963
    %6062 = vmatpush1.bf16.msra.mxu0 %v5962
    %6063 = vmatprep.subr.bf16.mxu0 %v5967
    %6064 = vmatpush1.bf16.msra.mxu0 %v5966
    %6065 = vmatprep.subr.bf16.mxu0 %v5971
    %6066 = vmatpush1.bf16.msra.mxu0 %v5970
    %6067 = vmatprep.subr.bf16.mxu0 %v5975
    %6068 = vmatpush1.bf16.msra.mxu0 %v5974
    %6069 = vmatprep.subr.bf16.mxu0 %v5979
    %6070 = vmatpush1.bf16.msra.mxu0 %v5978
    %6071 = vmatprep.subr.bf16.mxu0 %v5983
    %6072 = vmatpush1.bf16.msra.mxu0 %v5982
    %6073 = vmatprep.subr.bf16.mxu0 0
    %6074 = vmatpush1.bf16.msra.mxu0 0
    %6075 = vmatprep.subr.bf16.mxu0 0
    %6076 = vmatpush1.bf16.msra.mxu0 0
    %6077 = vmatprep.subr.bf16.mxu0 0
    %6078 = vmatpush1.bf16.msra.mxu0 0
    %6079 = vmatprep.subr.bf16.mxu0 0
    %6080 = vmatpush1.bf16.msra.mxu0 0
    %6081 = vmatprep.subr.bf16.mxu0 0
    %6082 = vmatpush1.bf16.msra.mxu0 0
    %6083 = vmatprep.subr.bf16.mxu0 0
    %6084 = vmatpush1.bf16.msra.mxu0 0
    %6085 = vmatprep.subr.bf16.mxu0 0
    %6086 = vmatpush1.bf16.msra.mxu0 0
    %6087 = vmatprep.subr.bf16.mxu0 0
    %6088 = vmatpush1.bf16.msra.mxu0 0
    %6089 = vmatprep.mubr.bf16.mxu0 0
    %6090 = vmatmul.mubr.bf16.gmra.mrb[0].mxu0 %v5469
    %v6091 = vpop.f32.mrb[0].mxu0
    %v6092 = vadd.f32 0.0, %v6091
    %v6093 = vpop.f32.mrb[0].mxu0
    %v6094 = vadd.f32 0.0, %v6093
    %v6095 = vpop.f32.mrb[0].mxu0
    %v6096 = vpop.f32.mrb[0].mxu0
    %6097 = vdwg.mxu0
    %v6130 = vunpack.c.l.b16 %v5792
    %v6131 = vunpack.c.h.b16 %v5792
    %v6132 = vunpack.c.l.b16 %v5793
    %v6133 = vunpack.c.h.b16 %v5793
    %v6134 = vunpack.c.l.b16 %v5794
    %v6135 = vunpack.c.h.b16 %v5794
    %v6136 = vunpack.c.l.b16 %v5795
    %v6137 = vunpack.c.h.b16 %v5795
    %v6138 = vunpack.c.l.b16 %v5796
    %v6139 = vunpack.c.h.b16 %v5796
    %v6140 = vunpack.c.l.b16 %v5797
    %v6141 = vunpack.c.h.b16 %v5797
    %v6142 = vunpack.c.l.b16 %v5798
    %v6143 = vunpack.c.h.b16 %v5798
    %v6144 = vunpack.c.l.b16 %v5799
    %v6145 = vunpack.c.h.b16 %v5799
    %v6146 = vunpack.c.l.b16 %v5800
    %v6147 = vunpack.c.h.b16 %v5800
    %v6148 = vunpack.c.l.b16 %v5801
    %v6149 = vunpack.c.h.b16 %v5801
    %v6150 = vunpack.c.l.b16 %v5802
    %v6151 = vunpack.c.h.b16 %v5802
    %v6152 = vunpack.c.l.b16 %v5803
    %v6153 = vunpack.c.h.b16 %v5803
    %v6154 = vunpack.c.l.b16 %v5804
    %v6155 = vunpack.c.h.b16 %v5804
    %v6156 = vunpack.c.l.b16 %v5805
    %v6157 = vunpack.c.h.b16 %v5805
    %v6158 = vunpack.c.l.b16 %v5806
    %v6159 = vunpack.c.h.b16 %v5806
    %v6160 = vunpack.c.l.b16 %v5807
    %v6161 = vunpack.c.h.b16 %v5807
    %v6162 = vunpack.c.l.b16 %v5808
    %v6163 = vunpack.c.h.b16 %v5808
    %v6164 = vunpack.c.l.b16 %v5809
    %v6165 = vunpack.c.h.b16 %v5809
    %v6166 = vunpack.c.l.b16 %v5810
    %v6167 = vunpack.c.h.b16 %v5810
    %v6168 = vunpack.c.l.b16 %v5811
    %v6169 = vunpack.c.h.b16 %v5811
    %v6170 = vunpack.c.l.b16 %v5812
    %v6171 = vunpack.c.h.b16 %v5812
    %v6172 = vunpack.c.l.b16 %v5813
    %v6173 = vunpack.c.h.b16 %v5813
    %v6174 = vunpack.c.l.b16 %v5814
    %v6175 = vunpack.c.h.b16 %v5814
    %v6176 = vunpack.c.l.b16 %v5815
    %v6177 = vunpack.c.h.b16 %v5815
    %v6178 = vunpack.c.l.b16 %v5816
    %v6179 = vunpack.c.h.b16 %v5816
    %v6180 = vunpack.c.l.b16 %v5817
    %v6181 = vunpack.c.h.b16 %v5817
    %v6182 = vunpack.c.l.b16 %v5818
    %v6183 = vunpack.c.h.b16 %v5818
    %v6184 = vunpack.c.l.b16 %v5819
    %v6185 = vunpack.c.h.b16 %v5819
    %v6186 = vunpack.c.l.b16 %v5820
    %v6187 = vunpack.c.h.b16 %v5820
    %v6188 = vunpack.c.l.b16 %v5821
    %v6189 = vunpack.c.h.b16 %v5821
    %v6190 = vunpack.c.l.b16 %v5822
    %v6191 = vunpack.c.h.b16 %v5822
    %v6192 = vunpack.c.l.b16 %v5823
    %v6193 = vunpack.c.h.b16 %v5823
    %v6194 = vpack.c.b16 %v6134, %v6130
    %v6195 = vpack.c.b16 %v6135, %v6131
    %v6196 = vpack.c.b16 %v6136, %v6132
    %v6197 = vpack.c.b16 %v6137, %v6133
    %v6198 = vpack.c.b16 %v6142, %v6138
    %v6199 = vpack.c.b16 %v6143, %v6139
    %v6200 = vpack.c.b16 %v6144, %v6140
    %v6201 = vpack.c.b16 %v6145, %v6141
    %v6202 = vpack.c.b16 %v6150, %v6146
    %v6203 = vpack.c.b16 %v6151, %v6147
    %v6204 = vpack.c.b16 %v6152, %v6148
    %v6205 = vpack.c.b16 %v6153, %v6149
    %v6206 = vpack.c.b16 %v6158, %v6154
    %v6207 = vpack.c.b16 %v6159, %v6155
    %v6208 = vpack.c.b16 %v6160, %v6156
    %v6209 = vpack.c.b16 %v6161, %v6157
    %v6210 = vpack.c.b16 %v6166, %v6162
    %v6211 = vpack.c.b16 %v6167, %v6163
    %v6212 = vpack.c.b16 %v6168, %v6164
    %v6213 = vpack.c.b16 %v6169, %v6165
    %v6214 = vpack.c.b16 %v6174, %v6170
    %v6215 = vpack.c.b16 %v6175, %v6171
    %v6216 = vpack.c.b16 %v6176, %v6172
    %v6217 = vpack.c.b16 %v6177, %v6173
    %v6218 = vpack.c.b16 %v6182, %v6178
    %v6219 = vpack.c.b16 %v6183, %v6179
    %v6220 = vpack.c.b16 %v6184, %v6180
    %v6221 = vpack.c.b16 %v6185, %v6181
    %v6222 = vpack.c.b16 %v6190, %v6186
    %v6223 = vpack.c.b16 %v6191, %v6187
    %v6224 = vpack.c.b16 %v6192, %v6188
    %v6225 = vpack.c.b16 %v6193, %v6189
    %6258 = vmatprep.subr.bf16.mxu0 %v6195
    %6259 = vmatpush1.bf16.msra.mxu0 %v6194
    %6260 = vmatprep.subr.bf16.mxu0 %v6199
    %6261 = vmatpush1.bf16.msra.mxu0 %v6198
    %6262 = vmatprep.subr.bf16.mxu0 %v6203
    %6263 = vmatpush1.bf16.msra.mxu0 %v6202
    %6264 = vmatprep.subr.bf16.mxu0 %v6207
    %6265 = vmatpush1.bf16.msra.mxu0 %v6206
    %6266 = vmatprep.subr.bf16.mxu0 %v6211
    %6267 = vmatpush1.bf16.msra.mxu0 %v6210
    %6268 = vmatprep.subr.bf16.mxu0 %v6215
    %6269 = vmatpush1.bf16.msra.mxu0 %v6214
    %6270 = vmatprep.subr.bf16.mxu0 %v6219
    %6271 = vmatpush1.bf16.msra.mxu0 %v6218
    %6272 = vmatprep.subr.bf16.mxu0 %v6223
    %6273 = vmatpush1.bf16.msra.mxu0 %v6222
    %6274 = vmatprep.subr.bf16.mxu0 0
    %6275 = vmatpush1.bf16.msra.mxu0 0
    %6276 = vmatprep.subr.bf16.mxu0 0
    %6277 = vmatpush1.bf16.msra.mxu0 0
    %6278 = vmatprep.subr.bf16.mxu0 0
    %6279 = vmatpush1.bf16.msra.mxu0 0
    %6280 = vmatprep.subr.bf16.mxu0 0
    %6281 = vmatpush1.bf16.msra.mxu0 0
    %6282 = vmatprep.subr.bf16.mxu0 0
    %6283 = vmatpush1.bf16.msra.mxu0 0
    %6284 = vmatprep.subr.bf16.mxu0 0
    %6285 = vmatpush1.bf16.msra.mxu0 0
    %6286 = vmatprep.subr.bf16.mxu0 0
    %6287 = vmatpush1.bf16.msra.mxu0 0
    %6288 = vmatprep.subr.bf16.mxu0 0
    %6289 = vmatpush1.bf16.msra.mxu0 0
    %6290 = vmatprep.mubr.bf16.mxu0 0
    %6291 = vmatmul.mubr.bf16.gmra.mrb[0].mxu0 %v5791
    %v6292 = vpop.f32.mrb[0].mxu0
    %v6293 = vadd.f32 %v6051, %v6292
    %v6294 = vpop.f32.mrb[0].mxu0
    %v6295 = vadd.f32 %v6053, %v6294
    %v6296 = vpop.f32.mrb[0].mxu0
    %v6297 = vpop.f32.mrb[0].mxu0
    %6298 = vdwg.mxu0
    %6299 = vmatprep.subr.bf16.mxu0 %v6197
    %6300 = vmatpush1.bf16.msra.mxu0 %v6196
    %6301 = vmatprep.subr.bf16.mxu0 %v6201
    %6302 = vmatpush1.bf16.msra.mxu0 %v6200
    %6303 = vmatprep.subr.bf16.mxu0 %v6205
    %6304 = vmatpush1.bf16.msra.mxu0 %v6204
    %6305 = vmatprep.subr.bf16.mxu0 %v6209
    %6306 = vmatpush1.bf16.msra.mxu0 %v6208
    %6307 = vmatprep.subr.bf16.mxu0 %v6213
    %6308 = vmatpush1.bf16.msra.mxu0 %v6212
    %6309 = vmatprep.subr.bf16.mxu0 %v6217
    %6310 = vmatpush1.bf16.msra.mxu0 %v6216
    %6311 = vmatprep.subr.bf16.mxu0 %v6221
    %6312 = vmatpush1.bf16.msra.mxu0 %v6220
    %6313 = vmatprep.subr.bf16.mxu0 %v6225
    %6314 = vmatpush1.bf16.msra.mxu0 %v6224
    %6315 = vmatprep.subr.bf16.mxu0 0
    %6316 = vmatpush1.bf16.msra.mxu0 0
    %6317 = vmatprep.subr.bf16.mxu0 0
    %6318 = vmatpush1.bf16.msra.mxu0 0
    %6319 = vmatprep.subr.bf16.mxu0 0
    %6320 = vmatpush1.bf16.msra.mxu0 0
    %6321 = vmatprep.subr.bf16.mxu0 0
    %6322 = vmatpush1.bf16.msra.mxu0 0
    %6323 = vmatprep.subr.bf16.mxu0 0
    %6324 = vmatpush1.bf16.msra.mxu0 0
    %6325 = vmatprep.subr.bf16.mxu0 0
    %6326 = vmatpush1.bf16.msra.mxu0 0
    %6327 = vmatprep.subr.bf16.mxu0 0
    %6328 = vmatpush1.bf16.msra.mxu0 0
    %6329 = vmatprep.subr.bf16.mxu0 0
    %6330 = vmatpush1.bf16.msra.mxu0 0
    %6331 = vmatprep.mubr.bf16.mxu0 0
    %6332 = vmatmul.mubr.bf16.gmra.mrb[0].mxu0 %v5791
    %v6333 = vpop.f32.mrb[0].mxu0
    %v6334 = vadd.f32 %v6092, %v6333
    %v6335 = vpop.f32.mrb[0].mxu0
    %v6336 = vadd.f32 %v6094, %v6335
    %v6337 = vpop.f32.mrb[0].mxu0
    %v6338 = vpop.f32.mrb[0].mxu0
    %6339 = vdwg.mxu0
    %v6340 = vadd.f32 %v6293, %v55
    %v6341 = vadd.f32 %v6295, %v59
    %v6342 = vadd.f32 %v6334, %v63
    %v6343 = vadd.f32 %v6336, %v67
    %v6344 = vxor.u32 %v6340, 2147483648
    %v6345 = vxor.u32 %v6341, 2147483648
    %v6346 = vxor.u32 %v6342, 2147483648
    %v6347 = vmul.f32 %v6344, 1.442695
    %v6348 = vpow.pop %v6347
    %v6349 = vmul.f32 %v6345, 1.442695
    %v6350 = vpow.pop %v6349
    %v6351 = vmul.f32 %v6346, 1.442695
    %v6352 = vpow.pop %v6351
    %v6353 = vadd.f32 %v6348, 1.0
    %v6354 = vadd.f32 %v6350, 1.0
    %v6355 = vadd.f32 %v6352, 1.0
    %v6356 = vrcp.pop %v6353
    %v6357 = vmul.f32 1.0, %v6356
    %v6358 = vrcp.pop %v6354
    %v6359 = vmul.f32 1.0, %v6358
    %v6360 = vrcp.pop %v6355
    %v6361 = vmul.f32 1.0, %v6360
    %v6362 = vtanh.pop %v6343
    %v6363 = vmul.f32 %v6359, %v5466
    %v6364 = vmul.f32 %v6357, %v6362
    %v6365 = vadd.f32 %v6363, %v6364
    %v6366 = vtanh.pop %v6365
    %v6367 = vmul.f32 %v6361, %v6366
    %v6368 = vpack.c.bf16 %v6367, %v6367
    %s6369 = scalar_lea.vmem [#allocation2], 6
    %6370 = vst [vmem:[%s6369] sm:$0x1] %v6368
    %s6371 = scalar_lea.vmem %s0, 56
    %v6372 = vld [vmem:[%s6371] sm:$0xff]
    %v6373 = vld [vmem:[%s1] sm:$0xff]
    %v6374 = vld [vmem:[%s1 + $0x8] sm:$0xff]
    %v6375 = vld [vmem:[%s1 + $0x10] sm:$0xff]
    %v6376 = vld [vmem:[%s1 + $0x18] sm:$0xff]
    %v6377 = vld [vmem:[%s1 + $0x20] sm:$0xff]
    %v6378 = vld [vmem:[%s1 + $0x28] sm:$0xff]
    %v6379 = vld [vmem:[%s1 + $0x30] sm:$0xff]
    %v6380 = vld [vmem:[%s1 + $0x38] sm:$0xff]
    %v6381 = vld [vmem:[%s1 + $0x40] sm:$0xff]
    %v6382 = vld [vmem:[%s1 + $0x48] sm:$0xff]
    %v6383 = vld [vmem:[%s1 + $0x50] sm:$0xff]
    %v6384 = vld [vmem:[%s1 + $0x58] sm:$0xff]
    %v6385 = vld [vmem:[%s1 + $0x60] sm:$0xff]
    %v6386 = vld [vmem:[%s1 + $0x68] sm:$0xff]
    %v6387 = vld [vmem:[%s1 + $0x70] sm:$0xff]
    %v6388 = vld [vmem:[%s1 + $0x78] sm:$0xff]
    %v6389 = vld [vmem:[%s1 + $0x80] sm:$0xff]
    %v6390 = vld [vmem:[%s1 + $0x88] sm:$0xff]
    %v6391 = vld [vmem:[%s1 + $0x90] sm:$0xff]
    %v6392 = vld [vmem:[%s1 + $0x98] sm:$0xff]
    %v6393 = vld [vmem:[%s1 + $0xa0] sm:$0xff]
    %v6394 = vld [vmem:[%s1 + $0xa8] sm:$0xff]
    %v6395 = vld [vmem:[%s1 + $0xb0] sm:$0xff]
    %v6396 = vld [vmem:[%s1 + $0xb8] sm:$0xff]
    %v6397 = vld [vmem:[%s1 + $0xc0] sm:$0xff]
    %v6398 = vld [vmem:[%s1 + $0xc8] sm:$0xff]
    %v6399 = vld [vmem:[%s1 + $0xd0] sm:$0xff]
    %v6400 = vld [vmem:[%s1 + $0xd8] sm:$0xff]
    %v6401 = vld [vmem:[%s1 + $0xe0] sm:$0xff]
    %v6402 = vld [vmem:[%s1 + $0xe8] sm:$0xff]
    %v6403 = vld [vmem:[%s1 + $0xf0] sm:$0xff]
    %v6404 = vld [vmem:[%s1 + $0xf8] sm:$0xff]
    %v6437 = vunpack.c.l.b16 %v6373
    %v6438 = vunpack.c.h.b16 %v6373
    %v6439 = vunpack.c.l.b16 %v6374
    %v6440 = vunpack.c.h.b16 %v6374
    %v6441 = vunpack.c.l.b16 %v6375
    %v6442 = vunpack.c.h.b16 %v6375
    %v6443 = vunpack.c.l.b16 %v6376
    %v6444 = vunpack.c.h.b16 %v6376
    %v6445 = vunpack.c.l.b16 %v6377
    %v6446 = vunpack.c.h.b16 %v6377
    %v6447 = vunpack.c.l.b16 %v6378
    %v6448 = vunpack.c.h.b16 %v6378
    %v6449 = vunpack.c.l.b16 %v6379
    %v6450 = vunpack.c.h.b16 %v6379
    %v6451 = vunpack.c.l.b16 %v6380
    %v6452 = vunpack.c.h.b16 %v6380
    %v6453 = vunpack.c.l.b16 %v6381
    %v6454 = vunpack.c.h.b16 %v6381
    %v6455 = vunpack.c.l.b16 %v6382
    %v6456 = vunpack.c.h.b16 %v6382
    %v6457 = vunpack.c.l.b16 %v6383
    %v6458 = vunpack.c.h.b16 %v6383
    %v6459 = vunpack.c.l.b16 %v6384
    %v6460 = vunpack.c.h.b16 %v6384
    %v6461 = vunpack.c.l.b16 %v6385
    %v6462 = vunpack.c.h.b16 %v6385
    %v6463 = vunpack.c.l.b16 %v6386
    %v6464 = vunpack.c.h.b16 %v6386
    %v6465 = vunpack.c.l.b16 %v6387
    %v6466 = vunpack.c.h.b16 %v6387
    %v6467 = vunpack.c.l.b16 %v6388
    %v6468 = vunpack.c.h.b16 %v6388
    %v6469 = vunpack.c.l.b16 %v6389
    %v6470 = vunpack.c.h.b16 %v6389
    %v6471 = vunpack.c.l.b16 %v6390
    %v6472 = vunpack.c.h.b16 %v6390
    %v6473 = vunpack.c.l.b16 %v6391
    %v6474 = vunpack.c.h.b16 %v6391
    %v6475 = vunpack.c.l.b16 %v6392
    %v6476 = vunpack.c.h.b16 %v6392
    %v6477 = vunpack.c.l.b16 %v6393
    %v6478 = vunpack.c.h.b16 %v6393
    %v6479 = vunpack.c.l.b16 %v6394
    %v6480 = vunpack.c.h.b16 %v6394
    %v6481 = vunpack.c.l.b16 %v6395
    %v6482 = vunpack.c.h.b16 %v6395
    %v6483 = vunpack.c.l.b16 %v6396
    %v6484 = vunpack.c.h.b16 %v6396
    %v6485 = vunpack.c.l.b16 %v6397
    %v6486 = vunpack.c.h.b16 %v6397
    %v6487 = vunpack.c.l.b16 %v6398
    %v6488 = vunpack.c.h.b16 %v6398
    %v6489 = vunpack.c.l.b16 %v6399
    %v6490 = vunpack.c.h.b16 %v6399
    %v6491 = vunpack.c.l.b16 %v6400
    %v6492 = vunpack.c.h.b16 %v6400
    %v6493 = vunpack.c.l.b16 %v6401
    %v6494 = vunpack.c.h.b16 %v6401
    %v6495 = vunpack.c.l.b16 %v6402
    %v6496 = vunpack.c.h.b16 %v6402
    %v6497 = vunpack.c.l.b16 %v6403
    %v6498 = vunpack.c.h.b16 %v6403
    %v6499 = vunpack.c.l.b16 %v6404
    %v6500 = vunpack.c.h.b16 %v6404
    %v6501 = vpack.c.b16 %v6441, %v6437
    %v6502 = vpack.c.b16 %v6442, %v6438
    %v6503 = vpack.c.b16 %v6443, %v6439
    %v6504 = vpack.c.b16 %v6444, %v6440
    %v6505 = vpack.c.b16 %v6449, %v6445
    %v6506 = vpack.c.b16 %v6450, %v6446
    %v6507 = vpack.c.b16 %v6451, %v6447
    %v6508 = vpack.c.b16 %v6452, %v6448
    %v6509 = vpack.c.b16 %v6457, %v6453
    %v6510 = vpack.c.b16 %v6458, %v6454
    %v6511 = vpack.c.b16 %v6459, %v6455
    %v6512 = vpack.c.b16 %v6460, %v6456
    %v6513 = vpack.c.b16 %v6465, %v6461
    %v6514 = vpack.c.b16 %v6466, %v6462
    %v6515 = vpack.c.b16 %v6467, %v6463
    %v6516 = vpack.c.b16 %v6468, %v6464
    %v6517 = vpack.c.b16 %v6473, %v6469
    %v6518 = vpack.c.b16 %v6474, %v6470
    %v6519 = vpack.c.b16 %v6475, %v6471
    %v6520 = vpack.c.b16 %v6476, %v6472
    %v6521 = vpack.c.b16 %v6481, %v6477
    %v6522 = vpack.c.b16 %v6482, %v6478
    %v6523 = vpack.c.b16 %v6483, %v6479
    %v6524 = vpack.c.b16 %v6484, %v6480
    %v6525 = vpack.c.b16 %v6489, %v6485
    %v6526 = vpack.c.b16 %v6490, %v6486
    %v6527 = vpack.c.b16 %v6491, %v6487
    %v6528 = vpack.c.b16 %v6492, %v6488
    %v6529 = vpack.c.b16 %v6497, %v6493
    %v6530 = vpack.c.b16 %v6498, %v6494
    %v6531 = vpack.c.b16 %v6499, %v6495
    %v6532 = vpack.c.b16 %v6500, %v6496
    %6565 = vmatprep.subr.bf16.mxu0 %v6502
    %6566 = vmatpush1.bf16.msra.mxu0 %v6501
    %6567 = vmatprep.subr.bf16.mxu0 %v6506
    %6568 = vmatpush1.bf16.msra.mxu0 %v6505
    %6569 = vmatprep.subr.bf16.mxu0 %v6510
    %6570 = vmatpush1.bf16.msra.mxu0 %v6509
    %6571 = vmatprep.subr.bf16.mxu0 %v6514
    %6572 = vmatpush1.bf16.msra.mxu0 %v6513
    %6573 = vmatprep.subr.bf16.mxu0 %v6518
    %6574 = vmatpush1.bf16.msra.mxu0 %v6517
    %6575 = vmatprep.subr.bf16.mxu0 %v6522
    %6576 = vmatpush1.bf16.msra.mxu0 %v6521
    %6577 = vmatprep.subr.bf16.mxu0 %v6526
    %6578 = vmatpush1.bf16.msra.mxu0 %v6525
    %6579 = vmatprep.subr.bf16.mxu0 %v6530
    %6580 = vmatpush1.bf16.msra.mxu0 %v6529
    %6581 = vmatprep.subr.bf16.mxu0 0
    %6582 = vmatpush1.bf16.msra.mxu0 0
    %6583 = vmatprep.subr.bf16.mxu0 0
    %6584 = vmatpush1.bf16.msra.mxu0 0
    %6585 = vmatprep.subr.bf16.mxu0 0
    %6586 = vmatpush1.bf16.msra.mxu0 0
    %6587 = vmatprep.subr.bf16.mxu0 0
    %6588 = vmatpush1.bf16.msra.mxu0 0
    %6589 = vmatprep.subr.bf16.mxu0 0
    %6590 = vmatpush1.bf16.msra.mxu0 0
    %6591 = vmatprep.subr.bf16.mxu0 0
    %6592 = vmatpush1.bf16.msra.mxu0 0
    %6593 = vmatprep.subr.bf16.mxu0 0
    %6594 = vmatpush1.bf16.msra.mxu0 0
    %6595 = vmatprep.subr.bf16.mxu0 0
    %6596 = vmatpush1.bf16.msra.mxu0 0
    %6597 = vmatprep.mubr.bf16.mxu0 0
    %6598 = vmatmul.mubr.bf16.gmra.mrb[0].mxu0 %v5791
    %v6599 = vpop.f32.mrb[0].mxu0
    %v6600 = vadd.f32 0.0, %v6599
    %v6601 = vpop.f32.mrb[0].mxu0
    %v6602 = vadd.f32 0.0, %v6601
    %v6603 = vpop.f32.mrb[0].mxu0
    %v6604 = vpop.f32.mrb[0].mxu0
    %6605 = vdwg.mxu0
    %6606 = vmatprep.subr.bf16.mxu0 %v6504
    %6607 = vmatpush1.bf16.msra.mxu0 %v6503
    %6608 = vmatprep.subr.bf16.mxu0 %v6508
    %6609 = vmatpush1.bf16.msra.mxu0 %v6507
    %6610 = vmatprep.subr.bf16.mxu0 %v6512
    %6611 = vmatpush1.bf16.msra.mxu0 %v6511
    %6612 = vmatprep.subr.bf16.mxu0 %v6516
    %6613 = vmatpush1.bf16.msra.mxu0 %v6515
    %6614 = vmatprep.subr.bf16.mxu0 %v6520
    %6615 = vmatpush1.bf16.msra.mxu0 %v6519
    %6616 = vmatprep.subr.bf16.mxu0 %v6524
    %6617 = vmatpush1.bf16.msra.mxu0 %v6523
    %6618 = vmatprep.subr.bf16.mxu0 %v6528
    %6619 = vmatpush1.bf16.msra.mxu0 %v6527
    %6620 = vmatprep.subr.bf16.mxu0 %v6532
    %6621 = vmatpush1.bf16.msra.mxu0 %v6531
    %6622 = vmatprep.subr.bf16.mxu0 0
    %6623 = vmatpush1.bf16.msra.mxu0 0
    %6624 = vmatprep.subr.bf16.mxu0 0
    %6625 = vmatpush1.bf16.msra.mxu0 0
    %6626 = vmatprep.subr.bf16.mxu0 0
    %6627 = vmatpush1.bf16.msra.mxu0 0
    %6628 = vmatprep.subr.bf16.mxu0 0
    %6629 = vmatpush1.bf16.msra.mxu0 0
    %6630 = vmatprep.subr.bf16.mxu0 0
    %6631 = vmatpush1.bf16.msra.mxu0 0
    %6632 = vmatprep.subr.bf16.mxu0 0
    %6633 = vmatpush1.bf16.msra.mxu0 0
    %6634 = vmatprep.subr.bf16.mxu0 0
    %6635 = vmatpush1.bf16.msra.mxu0 0
    %6636 = vmatprep.subr.bf16.mxu0 0
    %6637 = vmatpush1.bf16.msra.mxu0 0
    %6638 = vmatprep.mubr.bf16.mxu0 0
    %6639 = vmatmul.mubr.bf16.gmra.mrb[0].mxu0 %v5791
    %v6640 = vpop.f32.mrb[0].mxu0
    %v6641 = vadd.f32 0.0, %v6640
    %v6642 = vpop.f32.mrb[0].mxu0
    %v6643 = vadd.f32 0.0, %v6642
    %v6644 = vpop.f32.mrb[0].mxu0
    %v6645 = vpop.f32.mrb[0].mxu0
    %6646 = vdwg.mxu0
    %v6651 = vcombine.low %v6600, %v6602
    %v6652 = vcombine.low %v6641, %v6643
    %v6654 = vunpack.c.l.s4 1983009808
    %v6655 = vunpack.c.0.s8 %v6654
    %v6656 = vlaneseq
    %v6657 = vshrl.u32 %v6656, 7
    %v6658 = vsub.s32 %v6655, %v6657
    %v6659 = vrot.slane %v6651, %v6658
    %v6661 = vunpack.c.l.s4 1983009808
    %v6662 = vunpack.c.0.s8 %v6661
    %v6663 = vlaneseq
    %v6664 = vshrl.u32 %v6663, 7
    %v6665 = vsub.s32 %v6662, %v6664
    %v6666 = vrot.slane %v6652, %v6665
    %v6667 = vcombine.low %v6659, %v6666
    %v6669 = vadd.f32 %v6372, %v6667
    %v6670 = vxor.u32 %v6669, 2147483648
    %v6671 = vmul.f32 %v6670, 1.442695
    %v6672 = vpow.pop %v6671
    %v6673 = vadd.f32 %v6672, 1.0
    %v6674 = vrcp.pop %v6673
    %v6675 = vmul.f32 1.0, %v6674
    %v6677 = vrot.slane %v6669, 6
    %v6679 = vtanh.pop %v6677
    %v6681 = vrot.slane %v6675, 2
    %v6683 = vmul.f32 %v6681, %v5786
    %v6684 = vmul.f32 %v6675, %v6679
    %v6685 = vadd.f32 %v6683, %v6684
    %v6686 = vtanh.pop %v6685
    %v6687 = vrot.slane %v6675, 4
    %v6689 = vmul.f32 %v6687, %v6686
    %v6690 = vpack.c.bf16 %v6689, %v6689
    %v6691 = vld [vmem:[%s2] sm:$0xff]
    %v6692 = vld [vmem:[%s2 + $0x8] sm:$0xff]
    %v6693 = vld [vmem:[%s2 + $0x10] sm:$0xff]
    %v6694 = vld [vmem:[%s2 + $0x18] sm:$0xff]
    %v6695 = vld [vmem:[%s2 + $0x20] sm:$0xff]
    %v6696 = vld [vmem:[%s2 + $0x28] sm:$0xff]
    %v6697 = vld [vmem:[%s2 + $0x30] sm:$0xff]
    %v6698 = vld [vmem:[%s2 + $0x38] sm:$0xff]
    %v6699 = vld [vmem:[%s2 + $0x40] sm:$0xff]
    %v6700 = vld [vmem:[%s2 + $0x48] sm:$0xff]
    %v6701 = vld [vmem:[%s2 + $0x50] sm:$0xff]
    %v6702 = vld [vmem:[%s2 + $0x58] sm:$0xff]
    %v6703 = vld [vmem:[%s2 + $0x60] sm:$0xff]
    %v6704 = vld [vmem:[%s2 + $0x68] sm:$0xff]
    %v6705 = vld [vmem:[%s2 + $0x70] sm:$0xff]
    %v6706 = vld [vmem:[%s2 + $0x78] sm:$0xff]
    %v6707 = vld [vmem:[%s2 + $0x80] sm:$0xff]
    %v6708 = vld [vmem:[%s2 + $0x88] sm:$0xff]
    %v6709 = vld [vmem:[%s2 + $0x90] sm:$0xff]
    %v6710 = vld [vmem:[%s2 + $0x98] sm:$0xff]
    %v6711 = vld [vmem:[%s2 + $0xa0] sm:$0xff]
    %v6712 = vld [vmem:[%s2 + $0xa8] sm:$0xff]
    %v6713 = vld [vmem:[%s2 + $0xb0] sm:$0xff]
    %v6714 = vld [vmem:[%s2 + $0xb8] sm:$0xff]
    %v6715 = vld [vmem:[%s2 + $0xc0] sm:$0xff]
    %v6716 = vld [vmem:[%s2 + $0xc8] sm:$0xff]
    %v6717 = vld [vmem:[%s2 + $0xd0] sm:$0xff]
    %v6718 = vld [vmem:[%s2 + $0xd8] sm:$0xff]
    %v6719 = vld [vmem:[%s2 + $0xe0] sm:$0xff]
    %v6720 = vld [vmem:[%s2 + $0xe8] sm:$0xff]
    %v6721 = vld [vmem:[%s2 + $0xf0] sm:$0xff]
    %v6722 = vld [vmem:[%s2 + $0xf8] sm:$0xff]
    %v6723 = vld [vmem:[%s3] sm:$0xff]
    %v6724 = vld [vmem:[%s3 + $0x8] sm:$0xff]
    %v6725 = vld [vmem:[%s3 + $0x10] sm:$0xff]
    %v6726 = vld [vmem:[%s3 + $0x18] sm:$0xff]
    %v6727 = vld [vmem:[%s3 + $0x20] sm:$0xff]
    %v6728 = vld [vmem:[%s3 + $0x28] sm:$0xff]
    %v6729 = vld [vmem:[%s3 + $0x30] sm:$0xff]
    %v6730 = vld [vmem:[%s3 + $0x38] sm:$0xff]
    %v6731 = vld [vmem:[%s3 + $0x40] sm:$0xff]
    %v6732 = vld [vmem:[%s3 + $0x48] sm:$0xff]
    %v6733 = vld [vmem:[%s3 + $0x50] sm:$0xff]
    %v6734 = vld [vmem:[%s3 + $0x58] sm:$0xff]
    %v6735 = vld [vmem:[%s3 + $0x60] sm:$0xff]
    %v6736 = vld [vmem:[%s3 + $0x68] sm:$0xff]
    %v6737 = vld [vmem:[%s3 + $0x70] sm:$0xff]
    %v6738 = vld [vmem:[%s3 + $0x78] sm:$0xff]
    %v6739 = vld [vmem:[%s3 + $0x80] sm:$0xff]
    %v6740 = vld [vmem:[%s3 + $0x88] sm:$0xff]
    %v6741 = vld [vmem:[%s3 + $0x90] sm:$0xff]
    %v6742 = vld [vmem:[%s3 + $0x98] sm:$0xff]
    %v6743 = vld [vmem:[%s3 + $0xa0] sm:$0xff]
    %v6744 = vld [vmem:[%s3 + $0xa8] sm:$0xff]
    %v6745 = vld [vmem:[%s3 + $0xb0] sm:$0xff]
    %v6746 = vld [vmem:[%s3 + $0xb8] sm:$0xff]
    %v6747 = vld [vmem:[%s3 + $0xc0] sm:$0xff]
    %v6748 = vld [vmem:[%s3 + $0xc8] sm:$0xff]
    %v6749 = vld [vmem:[%s3 + $0xd0] sm:$0xff]
    %v6750 = vld [vmem:[%s3 + $0xd8] sm:$0xff]
    %v6751 = vld [vmem:[%s3 + $0xe0] sm:$0xff]
    %v6752 = vld [vmem:[%s3 + $0xe8] sm:$0xff]
    %v6753 = vld [vmem:[%s3 + $0xf0] sm:$0xff]
    %v6754 = vld [vmem:[%s3 + $0xf8] sm:$0xff]
    %v6787 = vunpack.c.l.b16 %v6723
    %v6788 = vunpack.c.h.b16 %v6723
    %v6789 = vunpack.c.l.b16 %v6724
    %v6790 = vunpack.c.h.b16 %v6724
    %v6791 = vunpack.c.l.b16 %v6725
    %v6792 = vunpack.c.h.b16 %v6725
    %v6793 = vunpack.c.l.b16 %v6726
    %v6794 = vunpack.c.h.b16 %v6726
    %v6795 = vunpack.c.l.b16 %v6727
    %v6796 = vunpack.c.h.b16 %v6727
    %v6797 = vunpack.c.l.b16 %v6728
    %v6798 = vunpack.c.h.b16 %v6728
    %v6799 = vunpack.c.l.b16 %v6729
    %v6800 = vunpack.c.h.b16 %v6729
    %v6801 = vunpack.c.l.b16 %v6730
    %v6802 = vunpack.c.h.b16 %v6730
    %v6803 = vunpack.c.l.b16 %v6731
    %v6804 = vunpack.c.h.b16 %v6731
    %v6805 = vunpack.c.l.b16 %v6732
    %v6806 = vunpack.c.h.b16 %v6732
    %v6807 = vunpack.c.l.b16 %v6733
    %v6808 = vunpack.c.h.b16 %v6733
    %v6809 = vunpack.c.l.b16 %v6734
    %v6810 = vunpack.c.h.b16 %v6734
    %v6811 = vunpack.c.l.b16 %v6735
    %v6812 = vunpack.c.h.b16 %v6735
    %v6813 = vunpack.c.l.b16 %v6736
    %v6814 = vunpack.c.h.b16 %v6736
    %v6815 = vunpack.c.l.b16 %v6737
    %v6816 = vunpack.c.h.b16 %v6737
    %v6817 = vunpack.c.l.b16 %v6738
    %v6818 = vunpack.c.h.b16 %v6738
    %v6819 = vunpack.c.l.b16 %v6739
    %v6820 = vunpack.c.h.b16 %v6739
    %v6821 = vunpack.c.l.b16 %v6740
    %v6822 = vunpack.c.h.b16 %v6740
    %v6823 = vunpack.c.l.b16 %v6741
    %v6824 = vunpack.c.h.b16 %v6741
    %v6825 = vunpack.c.l.b16 %v6742
    %v6826 = vunpack.c.h.b16 %v6742
    %v6827 = vunpack.c.l.b16 %v6743
    %v6828 = vunpack.c.h.b16 %v6743
    %v6829 = vunpack.c.l.b16 %v6744
    %v6830 = vunpack.c.h.b16 %v6744
    %v6831 = vunpack.c.l.b16 %v6745
    %v6832 = vunpack.c.h.b16 %v6745
    %v6833 = vunpack.c.l.b16 %v6746
    %v6834 = vunpack.c.h.b16 %v6746
    %v6835 = vunpack.c.l.b16 %v6747
    %v6836 = vunpack.c.h.b16 %v6747
    %v6837 = vunpack.c.l.b16 %v6748
    %v6838 = vunpack.c.h.b16 %v6748
    %v6839 = vunpack.c.l.b16 %v6749
    %v6840 = vunpack.c.h.b16 %v6749
    %v6841 = vunpack.c.l.b16 %v6750
    %v6842 = vunpack.c.h.b16 %v6750
    %v6843 = vunpack.c.l.b16 %v6751
    %v6844 = vunpack.c.h.b16 %v6751
    %v6845 = vunpack.c.l.b16 %v6752
    %v6846 = vunpack.c.h.b16 %v6752
    %v6847 = vunpack.c.l.b16 %v6753
    %v6848 = vunpack.c.h.b16 %v6753
    %v6849 = vunpack.c.l.b16 %v6754
    %v6850 = vunpack.c.h.b16 %v6754
    %v6851 = vpack.c.b16 %v6791, %v6787
    %v6852 = vpack.c.b16 %v6792, %v6788
    %v6853 = vpack.c.b16 %v6793, %v6789
    %v6854 = vpack.c.b16 %v6794, %v6790
    %v6855 = vpack.c.b16 %v6799, %v6795
    %v6856 = vpack.c.b16 %v6800, %v6796
    %v6857 = vpack.c.b16 %v6801, %v6797
    %v6858 = vpack.c.b16 %v6802, %v6798
    %v6859 = vpack.c.b16 %v6807, %v6803
    %v6860 = vpack.c.b16 %v6808, %v6804
    %v6861 = vpack.c.b16 %v6809, %v6805
    %v6862 = vpack.c.b16 %v6810, %v6806
    %v6863 = vpack.c.b16 %v6815, %v6811
    %v6864 = vpack.c.b16 %v6816, %v6812
    %v6865 = vpack.c.b16 %v6817, %v6813
    %v6866 = vpack.c.b16 %v6818, %v6814
    %v6867 = vpack.c.b16 %v6823, %v6819
    %v6868 = vpack.c.b16 %v6824, %v6820
    %v6869 = vpack.c.b16 %v6825, %v6821
    %v6870 = vpack.c.b16 %v6826, %v6822
    %v6871 = vpack.c.b16 %v6831, %v6827
    %v6872 = vpack.c.b16 %v6832, %v6828
    %v6873 = vpack.c.b16 %v6833, %v6829
    %v6874 = vpack.c.b16 %v6834, %v6830
    %v6875 = vpack.c.b16 %v6839, %v6835
    %v6876 = vpack.c.b16 %v6840, %v6836
    %v6877 = vpack.c.b16 %v6841, %v6837
    %v6878 = vpack.c.b16 %v6842, %v6838
    %v6879 = vpack.c.b16 %v6847, %v6843
    %v6880 = vpack.c.b16 %v6848, %v6844
    %v6881 = vpack.c.b16 %v6849, %v6845
    %v6882 = vpack.c.b16 %v6850, %v6846
    %6915 = vmatprep.subr.bf16.mxu0 %v6852
    %6916 = vmatpush1.bf16.msra.mxu0 %v6851
    %6917 = vmatprep.subr.bf16.mxu0 %v6856
    %6918 = vmatpush1.bf16.msra.mxu0 %v6855
    %6919 = vmatprep.subr.bf16.mxu0 %v6860
    %6920 = vmatpush1.bf16.msra.mxu0 %v6859
    %6921 = vmatprep.subr.bf16.mxu0 %v6864
    %6922 = vmatpush1.bf16.msra.mxu0 %v6863
    %6923 = vmatprep.subr.bf16.mxu0 %v6868
    %6924 = vmatpush1.bf16.msra.mxu0 %v6867
    %6925 = vmatprep.subr.bf16.mxu0 %v6872
    %6926 = vmatpush1.bf16.msra.mxu0 %v6871
    %6927 = vmatprep.subr.bf16.mxu0 %v6876
    %6928 = vmatpush1.bf16.msra.mxu0 %v6875
    %6929 = vmatprep.subr.bf16.mxu0 %v6880
    %6930 = vmatpush1.bf16.msra.mxu0 %v6879
    %6931 = vmatprep.subr.bf16.mxu0 0
    %6932 = vmatpush1.bf16.msra.mxu0 0
    %6933 = vmatprep.subr.bf16.mxu0 0
    %6934 = vmatpush1.bf16.msra.mxu0 0
    %6935 = vmatprep.subr.bf16.mxu0 0
    %6936 = vmatpush1.bf16.msra.mxu0 0
    %6937 = vmatprep.subr.bf16.mxu0 0
    %6938 = vmatpush1.bf16.msra.mxu0 0
    %6939 = vmatprep.subr.bf16.mxu0 0
    %6940 = vmatpush1.bf16.msra.mxu0 0
    %6941 = vmatprep.subr.bf16.mxu0 0
    %6942 = vmatpush1.bf16.msra.mxu0 0
    %6943 = vmatprep.subr.bf16.mxu0 0
    %6944 = vmatpush1.bf16.msra.mxu0 0
    %6945 = vmatprep.subr.bf16.mxu0 0
    %6946 = vmatpush1.bf16.msra.mxu0 0
    %6947 = vmatprep.mubr.bf16.mxu0 0
    %6948 = vmatmul.mubr.bf16.gmra.mrb[0].mxu0 %v6368
    %v6949 = vpop.f32.mrb[0].mxu0
    %v6950 = vadd.f32 0.0, %v6949
    %v6951 = vpop.f32.mrb[0].mxu0
    %v6952 = vadd.f32 0.0, %v6951
    %v6953 = vpop.f32.mrb[0].mxu0
    %v6954 = vpop.f32.mrb[0].mxu0
    %6955 = vdwg.mxu0
    %6956 = vmatprep.subr.bf16.mxu0 %v6854
    %6957 = vmatpush1.bf16.msra.mxu0 %v6853
    %6958 = vmatprep.subr.bf16.mxu0 %v6858
    %6959 = vmatpush1.bf16.msra.mxu0 %v6857
    %6960 = vmatprep.subr.bf16.mxu0 %v6862
    %6961 = vmatpush1.bf16.msra.mxu0 %v6861
    %6962 = vmatprep.subr.bf16.mxu0 %v6866
    %6963 = vmatpush1.bf16.msra.mxu0 %v6865
    %6964 = vmatprep.subr.bf16.mxu0 %v6870
    %6965 = vmatpush1.bf16.msra.mxu0 %v6869
    %6966 = vmatprep.subr.bf16.mxu0 %v6874
    %6967 = vmatpush1.bf16.msra.mxu0 %v6873
    %6968 = vmatprep.subr.bf16.mxu0 %v6878
    %6969 = vmatpush1.bf16.msra.mxu0 %v6877
    %6970 = vmatprep.subr.bf16.mxu0 %v6882
    %6971 = vmatpush1.bf16.msra.mxu0 %v6881
    %6972 = vmatprep.subr.bf16.mxu0 0
    %6973 = vmatpush1.bf16.msra.mxu0 0
    %6974 = vmatprep.subr.bf16.mxu0 0
    %6975 = vmatpush1.bf16.msra.mxu0 0
    %6976 = vmatprep.subr.bf16.mxu0 0
    %6977 = vmatpush1.bf16.msra.mxu0 0
    %6978 = vmatprep.subr.bf16.mxu0 0
    %6979 = vmatpush1.bf16.msra.mxu0 0
    %6980 = vmatprep.subr.bf16.mxu0 0
    %6981 = vmatpush1.bf16.msra.mxu0 0
    %6982 = vmatprep.subr.bf16.mxu0 0
    %6983 = vmatpush1.bf16.msra.mxu0 0
    %6984 = vmatprep.subr.bf16.mxu0 0
    %6985 = vmatpush1.bf16.msra.mxu0 0
    %6986 = vmatprep.subr.bf16.mxu0 0
    %6987 = vmatpush1.bf16.msra.mxu0 0
    %6988 = vmatprep.mubr.bf16.mxu0 0
    %6989 = vmatmul.mubr.bf16.gmra.mrb[0].mxu0 %v6368
    %v6990 = vpop.f32.mrb[0].mxu0
    %v6991 = vadd.f32 0.0, %v6990
    %v6992 = vpop.f32.mrb[0].mxu0
    %v6993 = vadd.f32 0.0, %v6992
    %v6994 = vpop.f32.mrb[0].mxu0
    %v6995 = vpop.f32.mrb[0].mxu0
    %6996 = vdwg.mxu0
    %v7029 = vunpack.c.l.b16 %v6691
    %v7030 = vunpack.c.h.b16 %v6691
    %v7031 = vunpack.c.l.b16 %v6692
    %v7032 = vunpack.c.h.b16 %v6692
    %v7033 = vunpack.c.l.b16 %v6693
    %v7034 = vunpack.c.h.b16 %v6693
    %v7035 = vunpack.c.l.b16 %v6694
    %v7036 = vunpack.c.h.b16 %v6694
    %v7037 = vunpack.c.l.b16 %v6695
    %v7038 = vunpack.c.h.b16 %v6695
    %v7039 = vunpack.c.l.b16 %v6696
    %v7040 = vunpack.c.h.b16 %v6696
    %v7041 = vunpack.c.l.b16 %v6697
    %v7042 = vunpack.c.h.b16 %v6697
    %v7043 = vunpack.c.l.b16 %v6698
    %v7044 = vunpack.c.h.b16 %v6698
    %v7045 = vunpack.c.l.b16 %v6699
    %v7046 = vunpack.c.h.b16 %v6699
    %v7047 = vunpack.c.l.b16 %v6700
    %v7048 = vunpack.c.h.b16 %v6700
    %v7049 = vunpack.c.l.b16 %v6701
    %v7050 = vunpack.c.h.b16 %v6701
    %v7051 = vunpack.c.l.b16 %v6702
    %v7052 = vunpack.c.h.b16 %v6702
    %v7053 = vunpack.c.l.b16 %v6703
    %v7054 = vunpack.c.h.b16 %v6703
    %v7055 = vunpack.c.l.b16 %v6704
    %v7056 = vunpack.c.h.b16 %v6704
    %v7057 = vunpack.c.l.b16 %v6705
    %v7058 = vunpack.c.h.b16 %v6705
    %v7059 = vunpack.c.l.b16 %v6706
    %v7060 = vunpack.c.h.b16 %v6706
    %v7061 = vunpack.c.l.b16 %v6707
    %v7062 = vunpack.c.h.b16 %v6707
    %v7063 = vunpack.c.l.b16 %v6708
    %v7064 = vunpack.c.h.b16 %v6708
    %v7065 = vunpack.c.l.b16 %v6709
    %v7066 = vunpack.c.h.b16 %v6709
    %v7067 = vunpack.c.l.b16 %v6710
    %v7068 = vunpack.c.h.b16 %v6710
    %v7069 = vunpack.c.l.b16 %v6711
    %v7070 = vunpack.c.h.b16 %v6711
    %v7071 = vunpack.c.l.b16 %v6712
    %v7072 = vunpack.c.h.b16 %v6712
    %v7073 = vunpack.c.l.b16 %v6713
    %v7074 = vunpack.c.h.b16 %v6713
    %v7075 = vunpack.c.l.b16 %v6714
    %v7076 = vunpack.c.h.b16 %v6714
    %v7077 = vunpack.c.l.b16 %v6715
    %v7078 = vunpack.c.h.b16 %v6715
    %v7079 = vunpack.c.l.b16 %v6716
    %v7080 = vunpack.c.h.b16 %v6716
    %v7081 = vunpack.c.l.b16 %v6717
    %v7082 = vunpack.c.h.b16 %v6717
    %v7083 = vunpack.c.l.b16 %v6718
    %v7084 = vunpack.c.h.b16 %v6718
    %v7085 = vunpack.c.l.b16 %v6719
    %v7086 = vunpack.c.h.b16 %v6719
    %v7087 = vunpack.c.l.b16 %v6720
    %v7088 = vunpack.c.h.b16 %v6720
    %v7089 = vunpack.c.l.b16 %v6721
    %v7090 = vunpack.c.h.b16 %v6721
    %v7091 = vunpack.c.l.b16 %v6722
    %v7092 = vunpack.c.h.b16 %v6722
    %v7093 = vpack.c.b16 %v7033, %v7029
    %v7094 = vpack.c.b16 %v7034, %v7030
    %v7095 = vpack.c.b16 %v7035, %v7031
    %v7096 = vpack.c.b16 %v7036, %v7032
    %v7097 = vpack.c.b16 %v7041, %v7037
    %v7098 = vpack.c.b16 %v7042, %v7038
    %v7099 = vpack.c.b16 %v7043, %v7039
    %v7100 = vpack.c.b16 %v7044, %v7040
    %v7101 = vpack.c.b16 %v7049, %v7045
    %v7102 = vpack.c.b16 %v7050, %v7046
    %v7103 = vpack.c.b16 %v7051, %v7047
    %v7104 = vpack.c.b16 %v7052, %v7048
    %v7105 = vpack.c.b16 %v7057, %v7053
    %v7106 = vpack.c.b16 %v7058, %v7054
    %v7107 = vpack.c.b16 %v7059, %v7055
    %v7108 = vpack.c.b16 %v7060, %v7056
    %v7109 = vpack.c.b16 %v7065, %v7061
    %v7110 = vpack.c.b16 %v7066, %v7062
    %v7111 = vpack.c.b16 %v7067, %v7063
    %v7112 = vpack.c.b16 %v7068, %v7064
    %v7113 = vpack.c.b16 %v7073, %v7069
    %v7114 = vpack.c.b16 %v7074, %v7070
    %v7115 = vpack.c.b16 %v7075, %v7071
    %v7116 = vpack.c.b16 %v7076, %v7072
    %v7117 = vpack.c.b16 %v7081, %v7077
    %v7118 = vpack.c.b16 %v7082, %v7078
    %v7119 = vpack.c.b16 %v7083, %v7079
    %v7120 = vpack.c.b16 %v7084, %v7080
    %v7121 = vpack.c.b16 %v7089, %v7085
    %v7122 = vpack.c.b16 %v7090, %v7086
    %v7123 = vpack.c.b16 %v7091, %v7087
    %v7124 = vpack.c.b16 %v7092, %v7088
    %7157 = vmatprep.subr.bf16.mxu0 %v7094
    %7158 = vmatpush1.bf16.msra.mxu0 %v7093
    %7159 = vmatprep.subr.bf16.mxu0 %v7098
    %7160 = vmatpush1.bf16.msra.mxu0 %v7097
    %7161 = vmatprep.subr.bf16.mxu0 %v7102
    %7162 = vmatpush1.bf16.msra.mxu0 %v7101
    %7163 = vmatprep.subr.bf16.mxu0 %v7106
    %7164 = vmatpush1.bf16.msra.mxu0 %v7105
    %7165 = vmatprep.subr.bf16.mxu0 %v7110
    %7166 = vmatpush1.bf16.msra.mxu0 %v7109
    %7167 = vmatprep.subr.bf16.mxu0 %v7114
    %7168 = vmatpush1.bf16.msra.mxu0 %v7113
    %7169 = vmatprep.subr.bf16.mxu0 %v7118
    %7170 = vmatpush1.bf16.msra.mxu0 %v7117
    %7171 = vmatprep.subr.bf16.mxu0 %v7122
    %7172 = vmatpush1.bf16.msra.mxu0 %v7121
    %7173 = vmatprep.subr.bf16.mxu0 0
    %7174 = vmatpush1.bf16.msra.mxu0 0
    %7175 = vmatprep.subr.bf16.mxu0 0
    %7176 = vmatpush1.bf16.msra.mxu0 0
    %7177 = vmatprep.subr.bf16.mxu0 0
    %7178 = vmatpush1.bf16.msra.mxu0 0
    %7179 = vmatprep.subr.bf16.mxu0 0
    %7180 = vmatpush1.bf16.msra.mxu0 0
    %7181 = vmatprep.subr.bf16.mxu0 0
    %7182 = vmatpush1.bf16.msra.mxu0 0
    %7183 = vmatprep.subr.bf16.mxu0 0
    %7184 = vmatpush1.bf16.msra.mxu0 0
    %7185 = vmatprep.subr.bf16.mxu0 0
    %7186 = vmatpush1.bf16.msra.mxu0 0
    %7187 = vmatprep.subr.bf16.mxu0 0
    %7188 = vmatpush1.bf16.msra.mxu0 0
    %7189 = vmatprep.mubr.bf16.mxu0 0
    %7190 = vmatmul.mubr.bf16.gmra.mrb[0].mxu0 %v6690
    %v7191 = vpop.f32.mrb[0].mxu0
    %v7192 = vadd.f32 %v6950, %v7191
    %v7193 = vpop.f32.mrb[0].mxu0
    %v7194 = vadd.f32 %v6952, %v7193
    %v7195 = vpop.f32.mrb[0].mxu0
    %v7196 = vpop.f32.mrb[0].mxu0
    %7197 = vdwg.mxu0
    %7198 = vmatprep.subr.bf16.mxu0 %v7096
    %7199 = vmatpush1.bf16.msra.mxu0 %v7095
    %7200 = vmatprep.subr.bf16.mxu0 %v7100
    %7201 = vmatpush1.bf16.msra.mxu0 %v7099
    %7202 = vmatprep.subr.bf16.mxu0 %v7104
    %7203 = vmatpush1.bf16.msra.mxu0 %v7103
    %7204 = vmatprep.subr.bf16.mxu0 %v7108
    %7205 = vmatpush1.bf16.msra.mxu0 %v7107
    %7206 = vmatprep.subr.bf16.mxu0 %v7112
    %7207 = vmatpush1.bf16.msra.mxu0 %v7111
    %7208 = vmatprep.subr.bf16.mxu0 %v7116
    %7209 = vmatpush1.bf16.msra.mxu0 %v7115
    %7210 = vmatprep.subr.bf16.mxu0 %v7120
    %7211 = vmatpush1.bf16.msra.mxu0 %v7119
    %7212 = vmatprep.subr.bf16.mxu0 %v7124
    %7213 = vmatpush1.bf16.msra.mxu0 %v7123
    %7214 = vmatprep.subr.bf16.mxu0 0
    %7215 = vmatpush1.bf16.msra.mxu0 0
    %7216 = vmatprep.subr.bf16.mxu0 0
    %7217 = vmatpush1.bf16.msra.mxu0 0
    %7218 = vmatprep.subr.bf16.mxu0 0
    %7219 = vmatpush1.bf16.msra.mxu0 0
    %7220 = vmatprep.subr.bf16.mxu0 0
    %7221 = vmatpush1.bf16.msra.mxu0 0
    %7222 = vmatprep.subr.bf16.mxu0 0
    %7223 = vmatpush1.bf16.msra.mxu0 0
    %7224 = vmatprep.subr.bf16.mxu0 0
    %7225 = vmatpush1.bf16.msra.mxu0 0
    %7226 = vmatprep.subr.bf16.mxu0 0
    %7227 = vmatpush1.bf16.msra.mxu0 0
    %7228 = vmatprep.subr.bf16.mxu0 0
    %7229 = vmatpush1.bf16.msra.mxu0 0
    %7230 = vmatprep.mubr.bf16.mxu0 0
    %7231 = vmatmul.mubr.bf16.gmra.mrb[0].mxu0 %v6690
    %v7232 = vpop.f32.mrb[0].mxu0
    %v7233 = vadd.f32 %v6991, %v7232
    %v7234 = vpop.f32.mrb[0].mxu0
    %v7235 = vadd.f32 %v6993, %v7234
    %v7236 = vpop.f32.mrb[0].mxu0
    %v7237 = vpop.f32.mrb[0].mxu0
    %7238 = vdwg.mxu0
    %v7239 = vadd.f32 %v7192, %v55
    %v7240 = vadd.f32 %v7194, %v59
    %v7241 = vadd.f32 %v7233, %v63
    %v7242 = vadd.f32 %v7235, %v67
    %v7243 = vxor.u32 %v7239, 2147483648
    %v7244 = vxor.u32 %v7240, 2147483648
    %v7245 = vxor.u32 %v7241, 2147483648
    %v7246 = vmul.f32 %v7243, 1.442695
    %v7247 = vpow.pop %v7246
    %v7248 = vmul.f32 %v7244, 1.442695
    %v7249 = vpow.pop %v7248
    %v7250 = vmul.f32 %v7245, 1.442695
    %v7251 = vpow.pop %v7250
    %v7252 = vadd.f32 %v7247, 1.0
    %v7253 = vadd.f32 %v7249, 1.0
    %v7254 = vadd.f32 %v7251, 1.0
    %v7255 = vrcp.pop %v7252
    %v7256 = vmul.f32 1.0, %v7255
    %v7257 = vrcp.pop %v7253
    %v7258 = vmul.f32 1.0, %v7257
    %v7259 = vrcp.pop %v7254
    %v7260 = vmul.f32 1.0, %v7259
    %v7261 = vtanh.pop %v7242
    %v7262 = vmul.f32 %v7258, %v6365
    %v7263 = vmul.f32 %v7256, %v7261
    %v7264 = vadd.f32 %v7262, %v7263
    %v7265 = vtanh.pop %v7264
    %v7266 = vmul.f32 %v7260, %v7265
    %v7267 = vpack.c.bf16 %v7266, %v7266
    %s7268 = scalar_lea.vmem [#allocation2], 7
    %7269 = vst [vmem:[%s7268] sm:$0x1] %v7267
    %7270 = vst [vmem:[#allocation5] sm:$0x3] %v6689
    %7271 = vst [vmem:[%s74] sm:$0x3] %v7266
    %7272 = vst [vmem:[#allocation7] sm:$0x3] %v6685
    %7273 = vst [vmem:[%s76] sm:$0x3] %v7264
    %v7274 = vld [vmem:[#allocation2] sm:$0x1]
    %v7275 = vld [vmem:[#allocation2 + $0x1] sm:$0x1]
    %v7276 = vld [vmem:[#allocation2 + $0x2] sm:$0x1]
    %v7277 = vld [vmem:[#allocation2 + $0x3] sm:$0x1]
    %v7278 = vld [vmem:[#allocation2 + $0x4] sm:$0x1]
    %v7279 = vld [vmem:[#allocation2 + $0x5] sm:$0x1]
    %v7280 = vld [vmem:[#allocation2 + $0x6] sm:$0x1]
    %v7281 = vld [vmem:[#allocation2 + $0x7] sm:$0x1]
    %v7284 = vpack.i.b16 %v7275, %v7274
    %v7285 = vshrl.u32 %v7274, 16
    %v7286 = vshrl.u32 %v7275, 16
    %v7287 = vpack.i.b16 %v7286, %v7285
    %v7290 = vpack.i.b16 %v7277, %v7276
    %v7291 = vshrl.u32 %v7276, 16
    %v7292 = vshrl.u32 %v7277, 16
    %v7293 = vpack.i.b16 %v7292, %v7291
    %v7296 = vpack.i.b16 %v7279, %v7278
    %v7297 = vshrl.u32 %v7278, 16
    %v7298 = vshrl.u32 %v7279, 16
    %v7299 = vpack.i.b16 %v7298, %v7297
    %v7302 = vpack.i.b16 %v7281, %v7280
    %v7303 = vshrl.u32 %v7280, 16
    %v7304 = vshrl.u32 %v7281, 16
    %v7305 = vpack.i.b16 %v7304, %v7303
    %v7306 = vld [vmem:[%s5] sm:$0xf]
    %v7307 = vld [vmem:[%s5 + $0x4] sm:$0xf]
    %v7308 = vld [vmem:[%s5 + $0x8] sm:$0xf]
    %v7309 = vld [vmem:[%s5 + $0xc] sm:$0xf]
    %v7310 = vld [vmem:[%s5 + $0x10] sm:$0xf]
    %v7311 = vld [vmem:[%s5 + $0x14] sm:$0xf]
    %v7312 = vld [vmem:[%s5 + $0x18] sm:$0xf]
    %v7313 = vld [vmem:[%s5 + $0x1c] sm:$0xf]
    %v7314 = vld [vmem:[%s5 + $0x20] sm:$0xf]
    %v7315 = vld [vmem:[%s5 + $0x24] sm:$0xf]
    %v7316 = vld [vmem:[%s5 + $0x28] sm:$0xf]
    %v7317 = vld [vmem:[%s5 + $0x2c] sm:$0xf]
    %v7318 = vld [vmem:[%s5 + $0x30] sm:$0xf]
    %v7319 = vld [vmem:[%s5 + $0x34] sm:$0xf]
    %v7320 = vld [vmem:[%s5 + $0x38] sm:$0xf]
    %v7321 = vld [vmem:[%s5 + $0x3c] sm:$0xf]
    %v7322 = vld [vmem:[%s6] sm:$0x1]
    %v7324 = vlaneseq
    %v7325 = vshrl.u32 %v7324, 7
    %v7326 = vsub.s32 0, %v7325
    %v7327 = vrot.slane %v7322, %v7326
    %v7329 = vcombine.low %v7284, %v7290
    %v7330 = vcombine.low %v7296, %v7302
    %v7331 = vcombine.low %v7287, %v7293
    %v7332 = vcombine.low %v7299, %v7305
    %v7334 = vunpack.c.l.s4 1966171168
    %v7335 = vunpack.c.0.s8 %v7334
    %v7336 = vlaneseq
    %v7337 = vshrl.u32 %v7336, 7
    %v7338 = vsub.s32 %v7335, %v7337
    %v7339 = vrot.slane %v7329, %v7338
    %v7341 = vunpack.c.l.s4 1966171168
    %v7342 = vunpack.c.0.s8 %v7341
    %v7343 = vlaneseq
    %v7344 = vshrl.u32 %v7343, 7
    %v7345 = vsub.s32 %v7342, %v7344
    %v7346 = vrot.slane %v7330, %v7345
    %v7348 = vunpack.c.l.s4 1966171168
    %v7349 = vunpack.c.0.s8 %v7348
    %v7350 = vlaneseq
    %v7351 = vshrl.u32 %v7350, 7
    %v7352 = vsub.s32 %v7349, %v7351
    %v7353 = vrot.slane %v7331, %v7352
    %v7355 = vunpack.c.l.s4 1966171168
    %v7356 = vunpack.c.0.s8 %v7355
    %v7357 = vlaneseq
    %v7358 = vshrl.u32 %v7357, 7
    %v7359 = vsub.s32 %v7356, %v7358
    %v7360 = vrot.slane %v7332, %v7359
    %v7361 = vcombine.low %v7339, %v7346
    %v7362 = vcombine.low %v7353, %v7360
    %v7364 = vunpack.c.l.s4 1966171168
    %v7365 = vunpack.c.0.s8 %v7364
    %v7366 = vlaneseq
    %v7367 = vshrl.u32 %v7366, 7
    %v7368 = vsub.s32 %v7365, %v7367
    %v7369 = vrot.slane %v7361, %v7368
    %v7371 = vunpack.c.l.s4 1966171168
    %v7372 = vunpack.c.0.s8 %v7371
    %v7373 = vlaneseq
    %v7374 = vshrl.u32 %v7373, 7
    %v7375 = vsub.s32 %v7372, %v7374
    %v7376 = vrot.slane %v7362, %v7375
    %v7377 = vcombine.low %v7369, %v7376
    %v7395 = vunpack.c.l.b16 %v7306
    %v7396 = vunpack.c.l.b16 %v7307
    %v7397 = vunpack.c.l.b16 %v7308
    %v7398 = vunpack.c.l.b16 %v7309
    %v7399 = vunpack.c.l.b16 %v7310
    %v7400 = vunpack.c.l.b16 %v7311
    %v7401 = vunpack.c.l.b16 %v7312
    %v7402 = vunpack.c.l.b16 %v7313
    %v7403 = vunpack.c.l.b16 %v7314
    %v7404 = vunpack.c.l.b16 %v7315
    %v7405 = vunpack.c.l.b16 %v7316
    %v7406 = vunpack.c.l.b16 %v7317
    %v7407 = vunpack.c.l.b16 %v7318
    %v7408 = vunpack.c.l.b16 %v7319
    %v7409 = vunpack.c.l.b16 %v7320
    %v7410 = vunpack.c.l.b16 %v7321
    %v7411 = vpack.c.b16 %v7396, %v7395
    %v7412 = vpack.c.b16 %v7398, %v7397
    %v7413 = vpack.c.b16 %v7400, %v7399
    %v7414 = vpack.c.b16 %v7402, %v7401
    %v7415 = vpack.c.b16 %v7404, %v7403
    %v7416 = vpack.c.b16 %v7406, %v7405
    %v7417 = vpack.c.b16 %v7408, %v7407
    %v7418 = vpack.c.b16 %v7410, %v7409
    %7427 = vmatprep.subr.bf16.mxu0 0
    %7428 = vmatpush1.bf16.msra.mxu0 %v7411
    %7429 = vmatprep.subr.bf16.mxu0 0
    %7430 = vmatpush1.bf16.msra.mxu0 %v7412
    %7431 = vmatprep.subr.bf16.mxu0 0
    %7432 = vmatpush1.bf16.msra.mxu0 %v7413
    %7433 = vmatprep.subr.bf16.mxu0 0
    %7434 = vmatpush1.bf16.msra.mxu0 %v7414
    %7435 = vmatprep.subr.bf16.mxu0 0
    %7436 = vmatpush1.bf16.msra.mxu0 %v7415
    %7437 = vmatprep.subr.bf16.mxu0 0
    %7438 = vmatpush1.bf16.msra.mxu0 %v7416
    %7439 = vmatprep.subr.bf16.mxu0 0
    %7440 = vmatpush1.bf16.msra.mxu0 %v7417
    %7441 = vmatprep.subr.bf16.mxu0 0
    %7442 = vmatpush1.bf16.msra.mxu0 %v7418
    %7443 = vmatprep.subr.bf16.mxu0 0
    %7444 = vmatpush1.bf16.msra.mxu0 0
    %7445 = vmatprep.subr.bf16.mxu0 0
    %7446 = vmatpush1.bf16.msra.mxu0 0
    %7447 = vmatprep.subr.bf16.mxu0 0
    %7448 = vmatpush1.bf16.msra.mxu0 0
    %7449 = vmatprep.subr.bf16.mxu0 0
    %7450 = vmatpush1.bf16.msra.mxu0 0
    %7451 = vmatprep.subr.bf16.mxu0 0
    %7452 = vmatpush1.bf16.msra.mxu0 0
    %7453 = vmatprep.subr.bf16.mxu0 0
    %7454 = vmatpush1.bf16.msra.mxu0 0
    %7455 = vmatprep.subr.bf16.mxu0 0
    %7456 = vmatpush1.bf16.msra.mxu0 0
    %7457 = vmatprep.subr.bf16.mxu0 0
    %7458 = vmatpush1.bf16.msra.mxu0 0
    %7459 = vmatprep.mubr.bf16.mxu0 0
    %7460 = vmatmul.mubr.bf16.gmra.mrb[0].mxu0 %v7377
    %v7461 = vpop.f32.mrb[0].mxu0
    %v7462 = vadd.f32 %v7327, %v7461
    %v7463 = vpop.f32.mrb[0].mxu0
    %v7464 = vpop.f32.mrb[0].mxu0
    %v7465 = vadd.f32 %v7327, %v7464
    %v7466 = vpop.f32.mrb[0].mxu0
    %7467 = vdwg.mxu0
    %vm7468 = vcmask 261120
    %7469 = vst.msk [vmem:[#allocation3] sm:$0xff] %vm7468, %v7462
    %7470 = vst.msk [vmem:[#allocation3 + $0x8] sm:$0xff] %vm7468, %v7465
    // Predicated region
    $region42: #{conditional_lstm_forward.1} parent=1 // pred_check
      _
    $region43: #{conditional_lstm_forward.1} parent=1 // pred_check_branch
      %7472 = sbr.rel (0) target = $region45
    $region44: #{conditional_lstm_forward.1} parent=1 // pred_region
      %s7474 = ssub.s32 256, 256
      %7475 = vsyncadd [#allocation4], %s7474
      %s7476 = sshll.u32 [#allocation3], 4
      %s7477 = int_to_ptr.vmem [resolvable:$true] %s7476
      %7482 = dma.vmem_to_hbm [thread:$0]  %s7477, 256, %s9, [#allocation4], 128, 128, 8
    $region45: #{conditional_lstm_forward.1} parent=1 // pred_fallthru
      _
    // Predicated region
    $region46: #{conditional_lstm_forward.1} parent=1 // pred_check
      _
    $region47: #{conditional_lstm_forward.1} parent=1 // pred_check_branch
      %7484 = sbr.rel (0) target = $region49
    $region48: #{conditional_lstm_forward.1} parent=1 // pred_region
      %s7486 = ssub.s32 64, 64
      %7487 = vsyncadd [#allocation6], %s7486
      %s7488 = sshll.u32 [#allocation5], 4
      %s7489 = int_to_ptr.vmem [resolvable:$true] %s7488
      %7494 = dma.vmem_to_hbm [thread:$0]  %s7489, 64, %s10, [#allocation6], 32, 32, 2
    $region49: #{conditional_lstm_forward.1} parent=1 // pred_fallthru
      _
    // Predicated region
    $region50: #{conditional_lstm_forward.1} parent=1 // pred_check
      _
    $region51: #{conditional_lstm_forward.1} parent=1 // pred_check_branch
      %7496 = sbr.rel (0) target = $region53
    $region52: #{conditional_lstm_forward.1} parent=1 // pred_region
      %s7498 = ssub.s32 64, 64
      %7499 = vsyncadd [#allocation6], %s7498
      %s7500 = sshll.u32 [#allocation7], 4
      %s7501 = int_to_ptr.vmem [resolvable:$true] %s7500
      %7506 = dma.vmem_to_hbm [thread:$0]  %s7501, 64, %s11, [#allocation6], 32, 32, 2
    $region53: #{conditional_lstm_forward.1} parent=1 // pred_fallthru
      _
    // Predicated region
    $region54: #{conditional_lstm_forward.1} parent=1 // pred_check
      _
    $region55: #{conditional_lstm_forward.1} parent=1 // pred_check_branch
      %7508 = sbr.rel (0) target = $region57
    $region56: #{conditional_lstm_forward.1} parent=1 // pred_region
      %7509 = dma.done [#allocation4], 256
    $region57: #{conditional_lstm_forward.1} parent=1 // pred_fallthru
      _
    // Predicated region
    $region58: #{conditional_lstm_forward.1} parent=1 // pred_check
      _
    $region59: #{conditional_lstm_forward.1} parent=1 // pred_check_branch
      %7511 = sbr.rel (0) target = $region61
    $region60: #{conditional_lstm_forward.1} parent=1 // pred_region
      %7512 = dma.done [#allocation6], 64
    $region61: #{conditional_lstm_forward.1} parent=1 // pred_fallthru
      _
    // Predicated region
    $region62: #{conditional_lstm_forward.1} parent=1 // pred_check
      _
    $region63: #{conditional_lstm_forward.1} parent=1 // pred_check_branch
      %7514 = sbr.rel (0) target = $region65
    $region64: #{conditional_lstm_forward.1} parent=1 // pred_region
      %7515 = dma.done [#allocation6], 64
    $region65: #{conditional_lstm_forward.1} parent=1 // pred_fallthru
      _
    %7516 = vsyncpa [#allocation4], 1
    %7517 = vsyncpa [#allocation6], 1

</llo_original>
